<compile_context>
chip_gen: v6e
topology: v6e:2x2x1
jax: 0.10.0
libtpu: 0.0.40
codegen_flags: <defaults>
</compile_context>

<pallas_src>
import numpy as np
import jax
import jax.numpy as jnp
from jax.experimental import pallas as pl
from jax.experimental.pallas import tpu as pltpu

BN_EPS = 1e-5
K, S, P = 4, 2, 1          # conv kernel / stride / padding (all three conv layers)
TAPS = K * K
C1PAD = 128                # layer-1 output channels padded 64 -> 128 (alignment)

# Small compat shim for memory-space naming across jax versions.
_MS = getattr(pltpu, "MemorySpace", None) or getattr(pltpu, "TPUMemorySpace", None)
_ANY_SPACE = getattr(pl, "ANY", None)
if _ANY_SPACE is None:
    _ANY_SPACE = _MS.ANY


def _out_hw(h, w):
    return (h + 2 * P - K) // S + 1, (w + 2 * P - K) // S + 1


# ----------------------------------------------------------------------------
# Fused Pallas kernel: whole encoder forward in one VMEM-resident invocation
# ----------------------------------------------------------------------------
def fused_vae_encoder_kernel(
    p1_ref, w1_ref, b1_ref, g1_ref, be1_ref,
    gs2_hbm, w2_hbm, b2_ref, g2_ref, be2_ref,
    gs3_ref, w3_hbm, b3_ref, g3_ref, be3_ref,
    wh_hbm, bh_ref, eps_ref,
    z_ref, mu_ref, lv_ref,
    gs2_vmem, w2_vmem, w3_vmem, wh_vmem, p2_scr, p3_scr, dma_sem):

    # Kick off the big parameter fetches so their HBM traffic overlaps compute.
    gs2_cp = pltpu.make_async_copy(gs2_hbm, gs2_vmem, dma_sem.at[0])
    w2_cp = pltpu.make_async_copy(w2_hbm, w2_vmem, dma_sem.at[1])
    w3_cp = pltpu.make_async_copy(w3_hbm, w3_vmem, dma_sem.at[2])
    wh_cp = pltpu.make_async_copy(wh_hbm, wh_vmem, dma_sem.at[3])
    gs2_cp.start()
    w2_cp.start()
    w3_cp.start()
    wh_cp.start()

    def bn_relu(y, gamma, beta):
        # Train-mode BatchNorm over the batch*spatial (row) axis, biased
        # variance, two-pass (mean then centered 2nd moment), affine folded
        # into scale/shift, fused with ReLU.  All in f32 (v5e-safe).
        inv_m = 1.0 / y.shape[0]
        mean = jnp.sum(y, axis=0, keepdims=True) * inv_m
        d = y - mean
        var = jnp.sum(d * d, axis=0, keepdims=True) * inv_m
        scale = gamma * jax.lax.rsqrt(var + BN_EPS)
        return jnp.maximum(d * scale + beta, 0.0)

    def pack_patches(rows_bf, scr_ref):
        # rows_bf: [TAPS*M, C] tap-major gathered rows (bf16, C == 128 here).
        # Re-pack into patch-major [M, TAPS*C] with tile-aligned stores only
        # (column offsets are multiples of 128, row slices multiples of 8).
        m = rows_bf.shape[0] // TAPS
        c = rows_bf.shape[1]
        for t in range(TAPS):
            scr_ref[:, t * c:(t + 1) * c] = rows_bf[t * m:(t + 1) * m, :]
        return scr_ref[...]

    # ---- layer 1: conv (im2col patches from wrapper) + BN + ReLU -------------
    # Output channels zero-padded to 128 (zero weight cols, gamma=1, beta=0):
    # pad channels are exactly 0 and hit zero rows of w2, results unchanged.
    y1 = jnp.dot(p1_ref[...], w1_ref[...],
                 preferred_element_type=jnp.float32) + b1_ref[...]
    h1 = bn_relu(y1, g1_ref[...], be1_ref[...]).astype(jnp.bfloat16)   # [M1, 128]

    # ---- layer 2: one-hot row gather (MXU) -> single deep-K conv matmul ------
    gs2_cp.wait()
    rows2 = jnp.dot(gs2_vmem[...], h1,
                    preferred_element_type=jnp.float32).astype(jnp.bfloat16)
    p2 = pack_patches(rows2, p2_scr)                                   # [M2, 2048]
    w2_cp.wait()
    y2 = jnp.dot(p2, w2_vmem[...],
                 preferred_element_type=jnp.float32) + b2_ref[...]
    h2 = bn_relu(y2, g2_ref[...], be2_ref[...]).astype(jnp.bfloat16)   # [M2, 128]

    # ---- layer 3 --------------------------------------------------------------
    rows3 = jnp.dot(gs3_ref[...], h2,
                    preferred_element_type=jnp.float32).astype(jnp.bfloat16)
    p3 = pack_patches(rows3, p3_scr)                                   # [M3, 2048]
    w3_cp.wait()
    y3 = jnp.dot(p3, w3_vmem[...],
                 preferred_element_type=jnp.float32) + b3_ref[...]
    h3 = bn_relu(y3, g3_ref[...], be3_ref[...]).astype(jnp.bfloat16)   # [M3, 256]

    # ---- heads: mu|logvar as ONE matmul, then z = mu + eps * exp(0.5*logvar) --
    wh_cp.wait()
    head = jnp.dot(h3, wh_vmem[...],
                   preferred_element_type=jnp.float32) + bh_ref[...]
    zd = head.shape[1] // 2
    mu = head[:, :zd]
    lv = head[:, zd:]
    z_ref[...] = mu + eps_ref[...] * jnp.exp(0.5 * lv)
    mu_ref[...] = mu
    lv_ref[...] = lv


# ----------------------------------------------------------------------------
# One-time (outside jit) geometry tables + weight layout transforms
# ----------------------------------------------------------------------------
def _patch_indices_nchw(n, c_in, h, w):
    """idx[m, (di*K+dj)*c_in + c] -> flat index into the PADDED NCHW input.

    Row order m = (n*Ho + i)*Wo + j.  Baking the channel interleave into the
    table folds the NCHW->NHWC transpose into a single flat gather.
    """
    hp, wp = h + 2 * P, w + 2 * P
    ho, wo = _out_hw(h, w)
    idx = np.empty((n * ho * wo, TAPS * c_in), np.int32)
    for nn in range(n):
        for i in range(ho):
            for j in range(wo):
                m = (nn * ho + i) * wo + j
                for di in range(K):
                    for dj in range(K):
                        for c in range(c_in):
                            col = (di * K + dj) * c_in + c
                            idx[m, col] = (((nn * c_in + c) * hp + (S * i + di))
                                           * wp + (S * j + dj))
    return idx


def _gather_stack(n, h_in, w_in):
    """One-hot row-gather matrices stacked tap-major: [TAPS*M_out, M_in].

    G[t*M_out + m, src] = 1 where src is the flattened (n, S*i+di-P, S*j+dj-P)
    input row, or an all-zero row when that tap lands in the padding.
    """
    ho, wo = _out_hw(h_in, w_in)
    m_out, m_in = n * ho * wo, n * h_in * w_in
    g = np.zeros((TAPS * m_out, m_in), np.float32)
    for nn in range(n):
        for i in range(ho):
            for j in range(wo):
                m = (nn * ho + i) * wo + j
                for di in range(K):
                    for dj in range(K):
                        r, c = S * i + di - P, S * j + dj - P
                        if 0 <= r < h_in and 0 <= c < w_in:
                            g[(di * K + dj) * m_out + m,
                              (nn * h_in + r) * w_in + c] = 1.0
    return g


def prepare_params(params, n, h, w):
    """Pre-transform weights to bf16 matmul layout + build gather tables (once)."""
    ho1, wo1 = _out_hw(h, w)
    c_in = params["w1"].shape[1]
    z_dim = params["wmu"].shape[0]

    def conv_w(wt, cin_pad=None):
        # [Cout, Cin, K, K] -> [(di, dj, cin[+pad]), Cout] bf16
        cout, cin = wt.shape[0], wt.shape[1]
        wm = jnp.transpose(wt, (2, 3, 1, 0))                 # [K, K, Cin, Cout]
        if cin_pad is not None and cin_pad > cin:
            wm = jnp.pad(wm, ((0, 0), (0, 0), (0, cin_pad - cin), (0, 0)))
        return wm.reshape(-1, cout).astype(jnp.bfloat16)

    def row(v, pad_to=None, pad_val=0.0):
        v = jnp.asarray(v, jnp.float32)
        if pad_to is not None and v.shape[0] < pad_to:
            v = jnp.pad(v, (0, pad_to - v.shape[0]), constant_values=pad_val)
        return v.reshape(1, -1)

    # Layer-1 weight: pad Cout 64 -> 128 with zero columns (exactly-zero pad ch).
    w1 = conv_w(params["w1"])                                # [48, 64]
    w1 = jnp.pad(w1, ((0, 0), (0, C1PAD - w1.shape[1])))     # [48, 128]

    w_mu = params["wmu"].reshape(z_dim, -1).T                # [256, z_dim]
    w_lv = params["wlv"].reshape(z_dim, -1).T

    return {
        "idx1": jnp.asarray(_patch_indices_nchw(n, c_in, h, w), jnp.int32),
        "gs2": jnp.asarray(_gather_stack(n, ho1, wo1), jnp.bfloat16),
        "gs3": jnp.asarray(_gather_stack(n, _out_hw(ho1, wo1)[0],
                                         _out_hw(ho1, wo1)[1]), jnp.bfloat16),
        "w1": w1,
        "b1": row(params["b1"], C1PAD, 0.0),
        "g1": row(params["g1"], C1PAD, 1.0),
        "be1": row(params["be1"], C1PAD, 0.0),
        "w2": conv_w(params["w2"], cin_pad=C1PAD),           # [2048, 128]
        "b2": row(params["b2"]), "g2": row(params["g2"]), "be2": row(params["be2"]),
        "w3": conv_w(params["w3"]),                          # [2048, 256]
        "b3": row(params["b3"]), "g3": row(params["g3"]), "be3": row(params["be3"]),
        "wh": jnp.concatenate([w_mu, w_lv], axis=1).astype(jnp.bfloat16),
        "bh": jnp.concatenate([params["bmu"], params["blv"]])
              .reshape(1, -1).astype(jnp.float32),
    }


# ----------------------------------------------------------------------------
# Jitted forward
# ----------------------------------------------------------------------------
@jax.jit
def vae_encoder(x_nchw, prep, eps_key):
    n, _, h, w = x_nchw.shape
    ho, wo = h // 8, w // 8
    z_dim = prep["bh"].shape[1] // 2
    m2 = prep["gs2"].shape[0] // TAPS
    m3 = prep["gs3"].shape[0] // TAPS
    c1p = prep["w1"].shape[1]      # 128
    c2 = prep["gs3"].shape[0] // m3 * 0 + prep["w2"].shape[1]  # 128

    # Layer-1 im2col patches via ONE flat gather straight from padded NCHW
    # (the NCHW->NHWC transpose is baked into idx1).
    xp = jnp.pad(x_nchw.astype(jnp.float32),
                 ((0, 0), (0, 0), (P, P), (P, P))).reshape(-1)
    p1 = xp[prep["idx1"]].astype(jnp.bfloat16)               # [M1, TAPS*Cin]

    # TODO(synk): draw eps in-kernel (pltpu.prng_seed + prng_random_bits -> normal)
    # to drop this wrapper-side RNG op; kept here for lowering robustness.
    eps = jax.random.normal(eps_key, (m3, z_dim), jnp.float32)

    vmem_spec = pl.BlockSpec(memory_space=_MS.VMEM)
    any_spec = pl.BlockSpec(memory_space=_ANY_SPACE)
    in_specs = [
        vmem_spec, vmem_spec, vmem_spec, vmem_spec, vmem_spec,   # p1, w1, b1, g1, be1
        any_spec, any_spec, vmem_spec, vmem_spec, vmem_spec,     # gs2, w2, b2, g2, be2
        vmem_spec, any_spec, vmem_spec, vmem_spec, vmem_spec,    # gs3, w3, b3, g3, be3
        any_spec, vmem_spec, vmem_spec,                          # wh, bh, eps
    ]

    z_f, mu_f, lv_f = pl.pallas_call(
        fused_vae_encoder_kernel,
        out_shape=(
            jax.ShapeDtypeStruct((m3, z_dim), jnp.float32),
            jax.ShapeDtypeStruct((m3, z_dim), jnp.float32),
            jax.ShapeDtypeStruct((m3, z_dim), jnp.float32),
        ),
        in_specs=in_specs,
        scratch_shapes=[
            pltpu.VMEM(prep["gs2"].shape, jnp.bfloat16),   # gs2 landing buffer
            pltpu.VMEM(prep["w2"].shape, jnp.bfloat16),    # w2 landing buffer
            pltpu.VMEM(prep["w3"].shape, jnp.bfloat16),    # w3 landing buffer
            pltpu.VMEM(prep["wh"].shape, jnp.bfloat16),    # wh landing buffer
            pltpu.VMEM((m2, TAPS * c1p), jnp.bfloat16),    # layer-2 patch rows
            pltpu.VMEM((m3, TAPS * c2), jnp.bfloat16),     # layer-3 patch rows
            pltpu.SemaphoreType.DMA((4,)),
        ],
    )(p1, prep["w1"], prep["b1"], prep["g1"], prep["be1"],
      prep["gs2"], prep["w2"], prep["b2"], prep["g2"], prep["be2"],
      prep["gs3"], prep["w3"], prep["b3"], prep["g3"], prep["be3"],
      prep["wh"], prep["bh"], eps)

    def to_nchw(t):
        return jnp.transpose(t.reshape(n, ho, wo, z_dim), (0, 3, 1, 2))

    return to_nchw(z_f), to_nchw(mu_f), to_nchw(lv_f)


# ----------------------------------------------------------------------------
# PyTorch-style parameter init
# ----------------------------------------------------------------------------
def init_params(key, z_dim=128):
    ks = jax.random.split(key, 5)

    def conv_init(k, cout, cin, kh, kw):
        fan_in = cin * kh * kw
        scale = 1.0 / float(np.sqrt(fan_in))
        kw_, kb_ = jax.random.split(k)
        wt = jax.random.uniform(kw_, (cout, cin, kh, kw), jnp.float32, -scale, scale)
        bs = jax.random.uniform(kb_, (cout,), jnp.float32, -scale, scale)
        return wt, bs

    w1, b1 = conv_init(ks[0], 64, 3, 4, 4)
    w2, b2 = conv_init(ks[1], 128, 64, 4, 4)
    w3, b3 = conv_init(ks[2], 256, 128, 4, 4)
    wmu, bmu = conv_init(ks[3], z_dim, 256, 1, 1)
    wlv, blv = conv_init(ks[4], z_dim, 256, 1, 1)
    # BatchNorm2d default init: weight=1, bias=0.  (Running stats not updated.)
    return dict(
        w1=w1, b1=b1, g1=jnp.ones((64,)), be1=jnp.zeros((64,)),
        w2=w2, b2=b2, g2=jnp.ones((128,)), be2=jnp.zeros((128,)),
        w3=w3, b3=b3, g3=jnp.ones((256,)), be3=jnp.zeros((256,)),
        wmu=wmu, bmu=bmu, wlv=wlv, blv=blv,
    )


if __name__ == "__main__":
    key = jax.random.PRNGKey(0)
    k_x, k_p, k_eps = jax.random.split(key, 3)

    N, H, W = 2, 16, 16
    Z_DIM = 128
    x = jax.random.normal(k_x, (N, 3, H, W), jnp.float32)   # NCHW, like PyTorch

    params = init_params(k_p, z_dim=Z_DIM)
    prep = prepare_params(params, N, H, W)   # one-time weight/layout prep (outside jit)

    z, mu, logvar = vae_encoder(x, prep, k_eps)
    jax.block_until_ready((z, mu, logvar))

    assert z.shape == (N, Z_DIM, H // 8, W // 8)
    assert mu.shape == (N, Z_DIM, H // 8, W // 8)
    assert logvar.shape == (N, Z_DIM, H // 8, W // 8)
    assert bool(jnp.all(jnp.isfinite(z))) and bool(jnp.all(jnp.isfinite(mu)))
    assert bool(jnp.all(jnp.isfinite(logvar)))
    print("KERNEL_OK")
</pallas_src>

<mosaic_0001>
module attributes {stable_mosaic.version = 11 : i64} {
  func.func @fused_vae_encoder_kernel(%arg0: memref<128x48xbf16, #tpu.memory_space<vmem>>, %arg1: memref<48x128xbf16, #tpu.memory_space<vmem>>, %arg2: memref<1x128xf32, #tpu.memory_space<vmem>>, %arg3: memref<1x128xf32, #tpu.memory_space<vmem>>, %arg4: memref<1x128xf32, #tpu.memory_space<vmem>>, %arg5: memref<512x128xbf16, #tpu.memory_space<any>>, %arg6: memref<2048x128xbf16, #tpu.memory_space<any>>, %arg7: memref<1x128xf32, #tpu.memory_space<vmem>>, %arg8: memref<1x128xf32, #tpu.memory_space<vmem>>, %arg9: memref<1x128xf32, #tpu.memory_space<vmem>>, %arg10: memref<128x32xbf16, #tpu.memory_space<vmem>>, %arg11: memref<2048x256xbf16, #tpu.memory_space<any>>, %arg12: memref<1x256xf32, #tpu.memory_space<vmem>>, %arg13: memref<1x256xf32, #tpu.memory_space<vmem>>, %arg14: memref<1x256xf32, #tpu.memory_space<vmem>>, %arg15: memref<256x256xbf16, #tpu.memory_space<any>>, %arg16: memref<1x256xf32, #tpu.memory_space<vmem>>, %arg17: memref<8x128xf32, #tpu.memory_space<vmem>>, %arg18: memref<8x128xf32, #tpu.memory_space<vmem>>, %arg19: memref<8x128xf32, #tpu.memory_space<vmem>>, %arg20: memref<8x128xf32, #tpu.memory_space<vmem>>, %arg21: memref<512x128xbf16, #tpu.memory_space<vmem>>, %arg22: memref<2048x128xbf16, #tpu.memory_space<vmem>>, %arg23: memref<2048x256xbf16, #tpu.memory_space<vmem>>, %arg24: memref<256x256xbf16, #tpu.memory_space<vmem>>, %arg25: memref<32x2048xbf16, #tpu.memory_space<vmem>>, %arg26: memref<8x2048xbf16, #tpu.memory_space<vmem>>, %arg27: memref<4x!tpu.dma_semaphore, #tpu.memory_space<semaphore_mem>>) attributes {dimension_semantics = [], scalar_prefetch = 0 : i64, scratch_operands = 7 : i64, tpu.core_type = #tpu.core_type<tc>} {
    %c0_i32 = arith.constant 0 : i32
    %0 = tpu.memref_slice %arg27[%c0_i32] : memref<4x!tpu.dma_semaphore, #tpu.memory_space<semaphore_mem>> -> memref<1x!tpu.dma_semaphore, #tpu.memory_space<semaphore_mem>>
    %1 = tpu.memref_squeeze %0 : memref<1x!tpu.dma_semaphore, #tpu.memory_space<semaphore_mem>> -> memref<!tpu.dma_semaphore, #tpu.memory_space<semaphore_mem>>
    tpu.enqueue_dma source(%arg5 : memref<512x128xbf16, #tpu.memory_space<any>>) target(%arg21 : memref<512x128xbf16, #tpu.memory_space<vmem>>) target_semaphore(%1 : memref<!tpu.dma_semaphore, #tpu.memory_space<semaphore_mem>>)
    %c1_i32 = arith.constant 1 : i32
    %2 = tpu.memref_slice %arg27[%c1_i32] : memref<4x!tpu.dma_semaphore, #tpu.memory_space<semaphore_mem>> -> memref<1x!tpu.dma_semaphore, #tpu.memory_space<semaphore_mem>>
    %3 = tpu.memref_squeeze %2 : memref<1x!tpu.dma_semaphore, #tpu.memory_space<semaphore_mem>> -> memref<!tpu.dma_semaphore, #tpu.memory_space<semaphore_mem>>
    tpu.enqueue_dma source(%arg6 : memref<2048x128xbf16, #tpu.memory_space<any>>) target(%arg22 : memref<2048x128xbf16, #tpu.memory_space<vmem>>) target_semaphore(%3 : memref<!tpu.dma_semaphore, #tpu.memory_space<semaphore_mem>>)
    %c2_i32 = arith.constant 2 : i32
    %4 = tpu.memref_slice %arg27[%c2_i32] : memref<4x!tpu.dma_semaphore, #tpu.memory_space<semaphore_mem>> -> memref<1x!tpu.dma_semaphore, #tpu.memory_space<semaphore_mem>>
    %5 = tpu.memref_squeeze %4 : memref<1x!tpu.dma_semaphore, #tpu.memory_space<semaphore_mem>> -> memref<!tpu.dma_semaphore, #tpu.memory_space<semaphore_mem>>
    tpu.enqueue_dma source(%arg11 : memref<2048x256xbf16, #tpu.memory_space<any>>) target(%arg23 : memref<2048x256xbf16, #tpu.memory_space<vmem>>) target_semaphore(%5 : memref<!tpu.dma_semaphore, #tpu.memory_space<semaphore_mem>>)
    %c3_i32 = arith.constant 3 : i32
    %6 = tpu.memref_slice %arg27[%c3_i32] : memref<4x!tpu.dma_semaphore, #tpu.memory_space<semaphore_mem>> -> memref<1x!tpu.dma_semaphore, #tpu.memory_space<semaphore_mem>>
    %7 = tpu.memref_squeeze %6 : memref<1x!tpu.dma_semaphore, #tpu.memory_space<semaphore_mem>> -> memref<!tpu.dma_semaphore, #tpu.memory_space<semaphore_mem>>
    tpu.enqueue_dma source(%arg15 : memref<256x256xbf16, #tpu.memory_space<any>>) target(%arg24 : memref<256x256xbf16, #tpu.memory_space<vmem>>) target_semaphore(%7 : memref<!tpu.dma_semaphore, #tpu.memory_space<semaphore_mem>>)
    %c0 = arith.constant 0 : index
    %c0_0 = arith.constant 0 : index
    %8 = vector.load %arg0[%c0, %c0_0] : memref<128x48xbf16, #tpu.memory_space<vmem>>, vector<128x48xbf16>
    %c0_1 = arith.constant 0 : index
    %c0_2 = arith.constant 0 : index
    %9 = vector.load %arg1[%c0_1, %c0_2] : memref<48x128xbf16, #tpu.memory_space<vmem>>, vector<48x128xbf16>
    %cst = arith.constant dense<0.000000e+00> : vector<128x128xf32>
    %10 = tpu.matmul %8, %9, %cst {dimension_numbers = #tpu.dot_dimension_numbers<[1], [0], [0], [1], [0, 0, 1, 1], [], []>} : vector<128x48xbf16>, vector<48x128xbf16>, vector<128x128xf32> -> vector<128x128xf32>
    %c0_3 = arith.constant 0 : index
    %c0_4 = arith.constant 0 : index
    %11 = vector.load %arg2[%c0_3, %c0_4] : memref<1x128xf32, #tpu.memory_space<vmem>>, vector<1x128xf32>
    %12 = vector.broadcast %11 : vector<1x128xf32> to vector<128x128xf32>
    %13 = arith.addf %10, %12 : vector<128x128xf32>
    %c0_5 = arith.constant 0 : index
    %c0_6 = arith.constant 0 : index
    %14 = vector.load %arg3[%c0_5, %c0_6] : memref<1x128xf32, #tpu.memory_space<vmem>>, vector<1x128xf32>
    %c0_7 = arith.constant 0 : index
    %c0_8 = arith.constant 0 : index
    %15 = vector.load %arg4[%c0_7, %c0_8] : memref<1x128xf32, #tpu.memory_space<vmem>>, vector<1x128xf32>
    %cst_9 = arith.constant dense<0.000000e+00> : vector<128xf32>
    %16 = vector.multi_reduction <add>, %13, %cst_9 [0] : vector<128x128xf32> to vector<128xf32>
    %17 = vector.shape_cast %16 : vector<128xf32> to vector<1x128xf32>
    %cst_10 = arith.constant 7.812500e-03 : f32
    %18 = vector.broadcast %cst_10 : f32 to vector<1x128xf32>
    %19 = arith.mulf %17, %18 : vector<1x128xf32>
    %20 = vector.broadcast %19 : vector<1x128xf32> to vector<128x128xf32>
    %21 = arith.subf %13, %20 : vector<128x128xf32>
    %22 = arith.mulf %21, %21 : vector<128x128xf32>
    %cst_11 = arith.constant dense<0.000000e+00> : vector<128xf32>
    %23 = vector.multi_reduction <add>, %22, %cst_11 [0] : vector<128x128xf32> to vector<128xf32>
    %24 = vector.shape_cast %23 : vector<128xf32> to vector<1x128xf32>
    %cst_12 = arith.constant 7.812500e-03 : f32
    %25 = vector.broadcast %cst_12 : f32 to vector<1x128xf32>
    %26 = arith.mulf %24, %25 : vector<1x128xf32>
    %cst_13 = arith.constant 9.99999974E-6 : f32
    %27 = vector.broadcast %cst_13 : f32 to vector<1x128xf32>
    %28 = arith.addf %26, %27 : vector<1x128xf32>
    %29 = math.rsqrt %28 : vector<1x128xf32>
    %30 = arith.mulf %14, %29 : vector<1x128xf32>
    %31 = vector.broadcast %30 : vector<1x128xf32> to vector<128x128xf32>
    %32 = arith.mulf %21, %31 : vector<128x128xf32>
    %33 = vector.broadcast %15 : vector<1x128xf32> to vector<128x128xf32>
    %34 = arith.addf %32, %33 : vector<128x128xf32>
    %cst_14 = arith.constant 0.000000e+00 : f32
    %35 = vector.broadcast %cst_14 : f32 to vector<128x128xf32>
    %36 = arith.maximumf %34, %35 : vector<128x128xf32>
    %37 = arith.truncf %36 : vector<128x128xf32> to vector<128x128xbf16>
    %c0_i32_15 = arith.constant 0 : i32
    %38 = tpu.memref_slice %arg27[%c0_i32_15] : memref<4x!tpu.dma_semaphore, #tpu.memory_space<semaphore_mem>> -> memref<1x!tpu.dma_semaphore, #tpu.memory_space<semaphore_mem>>
    %39 = tpu.memref_squeeze %38 : memref<1x!tpu.dma_semaphore, #tpu.memory_space<semaphore_mem>> -> memref<!tpu.dma_semaphore, #tpu.memory_space<semaphore_mem>>
    tpu.wait_dma2 semaphore(%39 : memref<!tpu.dma_semaphore, #tpu.memory_space<semaphore_mem>>) src(%arg5 : memref<512x128xbf16, #tpu.memory_space<any>>) dst(%arg21 : memref<512x128xbf16, #tpu.memory_space<vmem>>)
    %c0_16 = arith.constant 0 : index
    %c0_17 = arith.constant 0 : index
    %40 = vector.load %arg21[%c0_16, %c0_17] : memref<512x128xbf16, #tpu.memory_space<vmem>>, vector<512x128xbf16>
    %cst_18 = arith.constant dense<0.000000e+00> : vector<512x128xf32>
    %41 = tpu.matmul %40, %37, %cst_18 {dimension_numbers = #tpu.dot_dimension_numbers<[1], [0], [0], [1], [0, 0, 1, 1], [], []>} : vector<512x128xbf16>, vector<128x128xbf16>, vector<512x128xf32> -> vector<512x128xf32>
    %42 = arith.truncf %41 : vector<512x128xf32> to vector<512x128xbf16>
    %43 = vector.extract_strided_slice %42 {offsets = [0, 0], sizes = [32, 128], strides = [1, 1]} : vector<512x128xbf16> to vector<32x128xbf16>
    %c0_19 = arith.constant 0 : index
    %c0_20 = arith.constant 0 : index
    %44 = vector.load %arg25[%c0_19, %c0_20] : memref<32x2048xbf16, #tpu.memory_space<vmem>>, vector<32x128xbf16>
    tpu.vector_store %arg25[%c0_19, %c0_20], %43 {strides = array<i32>} : memref<32x2048xbf16, #tpu.memory_space<vmem>>, vector<32x128xbf16>,
    %45 = vector.extract_strided_slice %42 {offsets = [32, 0], sizes = [32, 128], strides = [1, 1]} : vector<512x128xbf16> to vector<32x128xbf16>
    %c0_21 = arith.constant 0 : index
    %c128 = arith.constant 128 : index
    %46 = vector.load %arg25[%c0_21, %c128] : memref<32x2048xbf16, #tpu.memory_space<vmem>>, vector<32x128xbf16>
    tpu.vector_store %arg25[%c0_21, %c128], %45 {strides = array<i32>} : memref<32x2048xbf16, #tpu.memory_space<vmem>>, vector<32x128xbf16>,
    %47 = vector.extract_strided_slice %42 {offsets = [64, 0], sizes = [32, 128], strides = [1, 1]} : vector<512x128xbf16> to vector<32x128xbf16>
    %c0_22 = arith.constant 0 : index
    %c256 = arith.constant 256 : index
    %48 = vector.load %arg25[%c0_22, %c256] : memref<32x2048xbf16, #tpu.memory_space<vmem>>, vector<32x128xbf16>
    tpu.vector_store %arg25[%c0_22, %c256], %47 {strides = array<i32>} : memref<32x2048xbf16, #tpu.memory_space<vmem>>, vector<32x128xbf16>,
    %49 = vector.extract_strided_slice %42 {offsets = [96, 0], sizes = [32, 128], strides = [1, 1]} : vector<512x128xbf16> to vector<32x128xbf16>
    %c0_23 = arith.constant 0 : index
    %c384 = arith.constant 384 : index
    %50 = vector.load %arg25[%c0_23, %c384] : memref<32x2048xbf16, #tpu.memory_space<vmem>>, vector<32x128xbf16>
    tpu.vector_store %arg25[%c0_23, %c384], %49 {strides = array<i32>} : memref<32x2048xbf16, #tpu.memory_space<vmem>>, vector<32x128xbf16>,
    %51 = vector.extract_strided_slice %42 {offsets = [128, 0], sizes = [32, 128], strides = [1, 1]} : vector<512x128xbf16> to vector<32x128xbf16>
    %c0_24 = arith.constant 0 : index
    %c512 = arith.constant 512 : index
    %52 = vector.load %arg25[%c0_24, %c512] : memref<32x2048xbf16, #tpu.memory_space<vmem>>, vector<32x128xbf16>
    tpu.vector_store %arg25[%c0_24, %c512], %51 {strides = array<i32>} : memref<32x2048xbf16, #tpu.memory_space<vmem>>, vector<32x128xbf16>,
    %53 = vector.extract_strided_slice %42 {offsets = [160, 0], sizes = [32, 128], strides = [1, 1]} : vector<512x128xbf16> to vector<32x128xbf16>
    %c0_25 = arith.constant 0 : index
    %c640 = arith.constant 640 : index
    %54 = vector.load %arg25[%c0_25, %c640] : memref<32x2048xbf16, #tpu.memory_space<vmem>>, vector<32x128xbf16>
    tpu.vector_store %arg25[%c0_25, %c640], %53 {strides = array<i32>} : memref<32x2048xbf16, #tpu.memory_space<vmem>>, vector<32x128xbf16>,
    %55 = vector.extract_strided_slice %42 {offsets = [192, 0], sizes = [32, 128], strides = [1, 1]} : vector<512x128xbf16> to vector<32x128xbf16>
    %c0_26 = arith.constant 0 : index
    %c768 = arith.constant 768 : index
    %56 = vector.load %arg25[%c0_26, %c768] : memref<32x2048xbf16, #tpu.memory_space<vmem>>, vector<32x128xbf16>
    tpu.vector_store %arg25[%c0_26, %c768], %55 {strides = array<i32>} : memref<32x2048xbf16, #tpu.memory_space<vmem>>, vector<32x128xbf16>,
    %57 = vector.extract_strided_slice %42 {offsets = [224, 0], sizes = [32, 128], strides = [1, 1]} : vector<512x128xbf16> to vector<32x128xbf16>
    %c0_27 = arith.constant 0 : index
    %c896 = arith.constant 896 : index
    %58 = vector.load %arg25[%c0_27, %c896] : memref<32x2048xbf16, #tpu.memory_space<vmem>>, vector<32x128xbf16>
    tpu.vector_store %arg25[%c0_27, %c896], %57 {strides = array<i32>} : memref<32x2048xbf16, #tpu.memory_space<vmem>>, vector<32x128xbf16>,
    %59 = vector.extract_strided_slice %42 {offsets = [256, 0], sizes = [32, 128], strides = [1, 1]} : vector<512x128xbf16> to vector<32x128xbf16>
    %c0_28 = arith.constant 0 : index
    %c1024 = arith.constant 1024 : index
    %60 = vector.load %arg25[%c0_28, %c1024] : memref<32x2048xbf16, #tpu.memory_space<vmem>>, vector<32x128xbf16>
    tpu.vector_store %arg25[%c0_28, %c1024], %59 {strides = array<i32>} : memref<32x2048xbf16, #tpu.memory_space<vmem>>, vector<32x128xbf16>,
    %61 = vector.extract_strided_slice %42 {offsets = [288, 0], sizes = [32, 128], strides = [1, 1]} : vector<512x128xbf16> to vector<32x128xbf16>
    %c0_29 = arith.constant 0 : index
    %c1152 = arith.constant 1152 : index
    %62 = vector.load %arg25[%c0_29, %c1152] : memref<32x2048xbf16, #tpu.memory_space<vmem>>, vector<32x128xbf16>
    tpu.vector_store %arg25[%c0_29, %c1152], %61 {strides = array<i32>} : memref<32x2048xbf16, #tpu.memory_space<vmem>>, vector<32x128xbf16>,
    %63 = vector.extract_strided_slice %42 {offsets = [320, 0], sizes = [32, 128], strides = [1, 1]} : vector<512x128xbf16> to vector<32x128xbf16>
    %c0_30 = arith.constant 0 : index
    %c1280 = arith.constant 1280 : index
    %64 = vector.load %arg25[%c0_30, %c1280] : memref<32x2048xbf16, #tpu.memory_space<vmem>>, vector<32x128xbf16>
    tpu.vector_store %arg25[%c0_30, %c1280], %63 {strides = array<i32>} : memref<32x2048xbf16, #tpu.memory_space<vmem>>, vector<32x128xbf16>,
    %65 = vector.extract_strided_slice %42 {offsets = [352, 0], sizes = [32, 128], strides = [1, 1]} : vector<512x128xbf16> to vector<32x128xbf16>
    %c0_31 = arith.constant 0 : index
    %c1408 = arith.constant 1408 : index
    %66 = vector.load %arg25[%c0_31, %c1408] : memref<32x2048xbf16, #tpu.memory_space<vmem>>, vector<32x128xbf16>
    tpu.vector_store %arg25[%c0_31, %c1408], %65 {strides = array<i32>} : memref<32x2048xbf16, #tpu.memory_space<vmem>>, vector<32x128xbf16>,
    %67 = vector.extract_strided_slice %42 {offsets = [384, 0], sizes = [32, 128], strides = [1, 1]} : vector<512x128xbf16> to vector<32x128xbf16>
    %c0_32 = arith.constant 0 : index
    %c1536 = arith.constant 1536 : index
    %68 = vector.load %arg25[%c0_32, %c1536] : memref<32x2048xbf16, #tpu.memory_space<vmem>>, vector<32x128xbf16>
    tpu.vector_store %arg25[%c0_32, %c1536], %67 {strides = array<i32>} : memref<32x2048xbf16, #tpu.memory_space<vmem>>, vector<32x128xbf16>,
    %69 = vector.extract_strided_slice %42 {offsets = [416, 0], sizes = [32, 128], strides = [1, 1]} : vector<512x128xbf16> to vector<32x128xbf16>
    %c0_33 = arith.constant 0 : index
    %c1664 = arith.constant 1664 : index
    %70 = vector.load %arg25[%c0_33, %c1664] : memref<32x2048xbf16, #tpu.memory_space<vmem>>, vector<32x128xbf16>
    tpu.vector_store %arg25[%c0_33, %c1664], %69 {strides = array<i32>} : memref<32x2048xbf16, #tpu.memory_space<vmem>>, vector<32x128xbf16>,
    %71 = vector.extract_strided_slice %42 {offsets = [448, 0], sizes = [32, 128], strides = [1, 1]} : vector<512x128xbf16> to vector<32x128xbf16>
    %c0_34 = arith.constant 0 : index
    %c1792 = arith.constant 1792 : index
    %72 = vector.load %arg25[%c0_34, %c1792] : memref<32x2048xbf16, #tpu.memory_space<vmem>>, vector<32x128xbf16>
    tpu.vector_store %arg25[%c0_34, %c1792], %71 {strides = array<i32>} : memref<32x2048xbf16, #tpu.memory_space<vmem>>, vector<32x128xbf16>,
    %73 = vector.extract_strided_slice %42 {offsets = [480, 0], sizes = [32, 128], strides = [1, 1]} : vector<512x128xbf16> to vector<32x128xbf16>
    %c0_35 = arith.constant 0 : index
    %c1920 = arith.constant 1920 : index
    %74 = vector.load %arg25[%c0_35, %c1920] : memref<32x2048xbf16, #tpu.memory_space<vmem>>, vector<32x128xbf16>
    tpu.vector_store %arg25[%c0_35, %c1920], %73 {strides = array<i32>} : memref<32x2048xbf16, #tpu.memory_space<vmem>>, vector<32x128xbf16>,
    %c0_36 = arith.constant 0 : index
    %c0_37 = arith.constant 0 : index
    %75 = vector.load %arg25[%c0_36, %c0_37] : memref<32x2048xbf16, #tpu.memory_space<vmem>>, vector<32x2048xbf16>
    %c1_i32_38 = arith.constant 1 : i32
    %76 = tpu.memref_slice %arg27[%c1_i32_38] : memref<4x!tpu.dma_semaphore, #tpu.memory_space<semaphore_mem>> -> memref<1x!tpu.dma_semaphore, #tpu.memory_space<semaphore_mem>>
    %77 = tpu.memref_squeeze %76 : memref<1x!tpu.dma_semaphore, #tpu.memory_space<semaphore_mem>> -> memref<!tpu.dma_semaphore, #tpu.memory_space<semaphore_mem>>
    tpu.wait_dma2 semaphore(%77 : memref<!tpu.dma_semaphore, #tpu.memory_space<semaphore_mem>>) src(%arg6 : memref<2048x128xbf16, #tpu.memory_space<any>>) dst(%arg22 : memref<2048x128xbf16, #tpu.memory_space<vmem>>)
    %c0_39 = arith.constant 0 : index
    %c0_40 = arith.constant 0 : index
    %78 = vector.load %arg22[%c0_39, %c0_40] : memref<2048x128xbf16, #tpu.memory_space<vmem>>, vector<2048x128xbf16>
    %cst_41 = arith.constant dense<0.000000e+00> : vector<32x128xf32>
    %79 = tpu.matmul %75, %78, %cst_41 {dimension_numbers = #tpu.dot_dimension_numbers<[1], [0], [0], [1], [0, 0, 1, 1], [], []>} : vector<32x2048xbf16>, vector<2048x128xbf16>, vector<32x128xf32> -> vector<32x128xf32>
    %c0_42 = arith.constant 0 : index
    %c0_43 = arith.constant 0 : index
    %80 = vector.load %arg7[%c0_42, %c0_43] : memref<1x128xf32, #tpu.memory_space<vmem>>, vector<1x128xf32>
    %81 = vector.broadcast %80 : vector<1x128xf32> to vector<32x128xf32>
    %82 = arith.addf %79, %81 : vector<32x128xf32>
    %c0_44 = arith.constant 0 : index
    %c0_45 = arith.constant 0 : index
    %83 = vector.load %arg8[%c0_44, %c0_45] : memref<1x128xf32, #tpu.memory_space<vmem>>, vector<1x128xf32>
    %c0_46 = arith.constant 0 : index
    %c0_47 = arith.constant 0 : index
    %84 = vector.load %arg9[%c0_46, %c0_47] : memref<1x128xf32, #tpu.memory_space<vmem>>, vector<1x128xf32>
    %cst_48 = arith.constant dense<0.000000e+00> : vector<128xf32>
    %85 = vector.multi_reduction <add>, %82, %cst_48 [0] : vector<32x128xf32> to vector<128xf32>
    %86 = vector.shape_cast %85 : vector<128xf32> to vector<1x128xf32>
    %cst_49 = arith.constant 3.125000e-02 : f32
    %87 = vector.broadcast %cst_49 : f32 to vector<1x128xf32>
    %88 = arith.mulf %86, %87 : vector<1x128xf32>
    %89 = vector.broadcast %88 : vector<1x128xf32> to vector<32x128xf32>
    %90 = arith.subf %82, %89 : vector<32x128xf32>
    %91 = arith.mulf %90, %90 : vector<32x128xf32>
    %cst_50 = arith.constant dense<0.000000e+00> : vector<128xf32>
    %92 = vector.multi_reduction <add>, %91, %cst_50 [0] : vector<32x128xf32> to vector<128xf32>
    %93 = vector.shape_cast %92 : vector<128xf32> to vector<1x128xf32>
    %cst_51 = arith.constant 3.125000e-02 : f32
    %94 = vector.broadcast %cst_51 : f32 to vector<1x128xf32>
    %95 = arith.mulf %93, %94 : vector<1x128xf32>
    %cst_52 = arith.constant 9.99999974E-6 : f32
    %96 = vector.broadcast %cst_52 : f32 to vector<1x128xf32>
    %97 = arith.addf %95, %96 : vector<1x128xf32>
    %98 = math.rsqrt %97 : vector<1x128xf32>
    %99 = arith.mulf %83, %98 : vector<1x128xf32>
    %100 = vector.broadcast %99 : vector<1x128xf32> to vector<32x128xf32>
    %101 = arith.mulf %90, %100 : vector<32x128xf32>
    %102 = vector.broadcast %84 : vector<1x128xf32> to vector<32x128xf32>
    %103 = arith.addf %101, %102 : vector<32x128xf32>
    %cst_53 = arith.constant 0.000000e+00 : f32
    %104 = vector.broadcast %cst_53 : f32 to vector<32x128xf32>
    %105 = arith.maximumf %103, %104 : vector<32x128xf32>
    %106 = arith.truncf %105 : vector<32x128xf32> to vector<32x128xbf16>
    %c0_54 = arith.constant 0 : index
    %c0_55 = arith.constant 0 : index
    %107 = vector.load %arg10[%c0_54, %c0_55] : memref<128x32xbf16, #tpu.memory_space<vmem>>, vector<128x32xbf16>
    %cst_56 = arith.constant dense<0.000000e+00> : vector<128x128xf32>
    %108 = tpu.matmul %107, %106, %cst_56 {dimension_numbers = #tpu.dot_dimension_numbers<[1], [0], [0], [1], [0, 0, 1, 1], [], []>} : vector<128x32xbf16>, vector<32x128xbf16>, vector<128x128xf32> -> vector<128x128xf32>
    %109 = arith.truncf %108 : vector<128x128xf32> to vector<128x128xbf16>
    %110 = vector.extract_strided_slice %109 {offsets = [0, 0], sizes = [8, 128], strides = [1, 1]} : vector<128x128xbf16> to vector<8x128xbf16>
    %c0_57 = arith.constant 0 : index
    %c0_58 = arith.constant 0 : index
    %111 = vector.load %arg26[%c0_57, %c0_58] : memref<8x2048xbf16, #tpu.memory_space<vmem>>, vector<8x128xbf16>
    tpu.vector_store %arg26[%c0_57, %c0_58], %110 {strides = array<i32>} : memref<8x2048xbf16, #tpu.memory_space<vmem>>, vector<8x128xbf16>,
    %112 = vector.extract_strided_slice %109 {offsets = [8, 0], sizes = [8, 128], strides = [1, 1]} : vector<128x128xbf16> to vector<8x128xbf16>
    %c0_59 = arith.constant 0 : index
    %c128_60 = arith.constant 128 : index
    %113 = vector.load %arg26[%c0_59, %c128_60] : memref<8x2048xbf16, #tpu.memory_space<vmem>>, vector<8x128xbf16>
    tpu.vector_store %arg26[%c0_59, %c128_60], %112 {strides = array<i32>} : memref<8x2048xbf16, #tpu.memory_space<vmem>>, vector<8x128xbf16>,
    %114 = vector.extract_strided_slice %109 {offsets = [16, 0], sizes = [8, 128], strides = [1, 1]} : vector<128x128xbf16> to vector<8x128xbf16>
    %c0_61 = arith.constant 0 : index
    %c256_62 = arith.constant 256 : index
    %115 = vector.load %arg26[%c0_61, %c256_62] : memref<8x2048xbf16, #tpu.memory_space<vmem>>, vector<8x128xbf16>
    tpu.vector_store %arg26[%c0_61, %c256_62], %114 {strides = array<i32>} : memref<8x2048xbf16, #tpu.memory_space<vmem>>, vector<8x128xbf16>,
    %116 = vector.extract_strided_slice %109 {offsets = [24, 0], sizes = [8, 128], strides = [1, 1]} : vector<128x128xbf16> to vector<8x128xbf16>
    %c0_63 = arith.constant 0 : index
    %c384_64 = arith.constant 384 : index
    %117 = vector.load %arg26[%c0_63, %c384_64] : memref<8x2048xbf16, #tpu.memory_space<vmem>>, vector<8x128xbf16>
    tpu.vector_store %arg26[%c0_63, %c384_64], %116 {strides = array<i32>} : memref<8x2048xbf16, #tpu.memory_space<vmem>>, vector<8x128xbf16>,
    %118 = vector.extract_strided_slice %109 {offsets = [32, 0], sizes = [8, 128], strides = [1, 1]} : vector<128x128xbf16> to vector<8x128xbf16>
    %c0_65 = arith.constant 0 : index
    %c512_66 = arith.constant 512 : index
    %119 = vector.load %arg26[%c0_65, %c512_66] : memref<8x2048xbf16, #tpu.memory_space<vmem>>, vector<8x128xbf16>
    tpu.vector_store %arg26[%c0_65, %c512_66], %118 {strides = array<i32>} : memref<8x2048xbf16, #tpu.memory_space<vmem>>, vector<8x128xbf16>,
    %120 = vector.extract_strided_slice %109 {offsets = [40, 0], sizes = [8, 128], strides = [1, 1]} : vector<128x128xbf16> to vector<8x128xbf16>
    %c0_67 = arith.constant 0 : index
    %c640_68 = arith.constant 640 : index
    %121 = vector.load %arg26[%c0_67, %c640_68] : memref<8x2048xbf16, #tpu.memory_space<vmem>>, vector<8x128xbf16>
    tpu.vector_store %arg26[%c0_67, %c640_68], %120 {strides = array<i32>} : memref<8x2048xbf16, #tpu.memory_space<vmem>>, vector<8x128xbf16>,
    %122 = vector.extract_strided_slice %109 {offsets = [48, 0], sizes = [8, 128], strides = [1, 1]} : vector<128x128xbf16> to vector<8x128xbf16>
    %c0_69 = arith.constant 0 : index
    %c768_70 = arith.constant 768 : index
    %123 = vector.load %arg26[%c0_69, %c768_70] : memref<8x2048xbf16, #tpu.memory_space<vmem>>, vector<8x128xbf16>
    tpu.vector_store %arg26[%c0_69, %c768_70], %122 {strides = array<i32>} : memref<8x2048xbf16, #tpu.memory_space<vmem>>, vector<8x128xbf16>,
    %124 = vector.extract_strided_slice %109 {offsets = [56, 0], sizes = [8, 128], strides = [1, 1]} : vector<128x128xbf16> to vector<8x128xbf16>
    %c0_71 = arith.constant 0 : index
    %c896_72 = arith.constant 896 : index
    %125 = vector.load %arg26[%c0_71, %c896_72] : memref<8x2048xbf16, #tpu.memory_space<vmem>>, vector<8x128xbf16>
    tpu.vector_store %arg26[%c0_71, %c896_72], %124 {strides = array<i32>} : memref<8x2048xbf16, #tpu.memory_space<vmem>>, vector<8x128xbf16>,
    %126 = vector.extract_strided_slice %109 {offsets = [64, 0], sizes = [8, 128], strides = [1, 1]} : vector<128x128xbf16> to vector<8x128xbf16>
    %c0_73 = arith.constant 0 : index
    %c1024_74 = arith.constant 1024 : index
    %127 = vector.load %arg26[%c0_73, %c1024_74] : memref<8x2048xbf16, #tpu.memory_space<vmem>>, vector<8x128xbf16>
    tpu.vector_store %arg26[%c0_73, %c1024_74], %126 {strides = array<i32>} : memref<8x2048xbf16, #tpu.memory_space<vmem>>, vector<8x128xbf16>,
    %128 = vector.extract_strided_slice %109 {offsets = [72, 0], sizes = [8, 128], strides = [1, 1]} : vector<128x128xbf16> to vector<8x128xbf16>
    %c0_75 = arith.constant 0 : index
    %c1152_76 = arith.constant 1152 : index
    %129 = vector.load %arg26[%c0_75, %c1152_76] : memref<8x2048xbf16, #tpu.memory_space<vmem>>, vector<8x128xbf16>
    tpu.vector_store %arg26[%c0_75, %c1152_76], %128 {strides = array<i32>} : memref<8x2048xbf16, #tpu.memory_space<vmem>>, vector<8x128xbf16>,
    %130 = vector.extract_strided_slice %109 {offsets = [80, 0], sizes = [8, 128], strides = [1, 1]} : vector<128x128xbf16> to vector<8x128xbf16>
    %c0_77 = arith.constant 0 : index
    %c1280_78 = arith.constant 1280 : index
    %131 = vector.load %arg26[%c0_77, %c1280_78] : memref<8x2048xbf16, #tpu.memory_space<vmem>>, vector<8x128xbf16>
    tpu.vector_store %arg26[%c0_77, %c1280_78], %130 {strides = array<i32>} : memref<8x2048xbf16, #tpu.memory_space<vmem>>, vector<8x128xbf16>,
    %132 = vector.extract_strided_slice %109 {offsets = [88, 0], sizes = [8, 128], strides = [1, 1]} : vector<128x128xbf16> to vector<8x128xbf16>
    %c0_79 = arith.constant 0 : index
    %c1408_80 = arith.constant 1408 : index
    %133 = vector.load %arg26[%c0_79, %c1408_80] : memref<8x2048xbf16, #tpu.memory_space<vmem>>, vector<8x128xbf16>
    tpu.vector_store %arg26[%c0_79, %c1408_80], %132 {strides = array<i32>} : memref<8x2048xbf16, #tpu.memory_space<vmem>>, vector<8x128xbf16>,
    %134 = vector.extract_strided_slice %109 {offsets = [96, 0], sizes = [8, 128], strides = [1, 1]} : vector<128x128xbf16> to vector<8x128xbf16>
    %c0_81 = arith.constant 0 : index
    %c1536_82 = arith.constant 1536 : index
    %135 = vector.load %arg26[%c0_81, %c1536_82] : memref<8x2048xbf16, #tpu.memory_space<vmem>>, vector<8x128xbf16>
    tpu.vector_store %arg26[%c0_81, %c1536_82], %134 {strides = array<i32>} : memref<8x2048xbf16, #tpu.memory_space<vmem>>, vector<8x128xbf16>,
    %136 = vector.extract_strided_slice %109 {offsets = [104, 0], sizes = [8, 128], strides = [1, 1]} : vector<128x128xbf16> to vector<8x128xbf16>
    %c0_83 = arith.constant 0 : index
    %c1664_84 = arith.constant 1664 : index
    %137 = vector.load %arg26[%c0_83, %c1664_84] : memref<8x2048xbf16, #tpu.memory_space<vmem>>, vector<8x128xbf16>
    tpu.vector_store %arg26[%c0_83, %c1664_84], %136 {strides = array<i32>} : memref<8x2048xbf16, #tpu.memory_space<vmem>>, vector<8x128xbf16>,
    %138 = vector.extract_strided_slice %109 {offsets = [112, 0], sizes = [8, 128], strides = [1, 1]} : vector<128x128xbf16> to vector<8x128xbf16>
    %c0_85 = arith.constant 0 : index
    %c1792_86 = arith.constant 1792 : index
    %139 = vector.load %arg26[%c0_85, %c1792_86] : memref<8x2048xbf16, #tpu.memory_space<vmem>>, vector<8x128xbf16>
    tpu.vector_store %arg26[%c0_85, %c1792_86], %138 {strides = array<i32>} : memref<8x2048xbf16, #tpu.memory_space<vmem>>, vector<8x128xbf16>,
    %140 = vector.extract_strided_slice %109 {offsets = [120, 0], sizes = [8, 128], strides = [1, 1]} : vector<128x128xbf16> to vector<8x128xbf16>
    %c0_87 = arith.constant 0 : index
    %c1920_88 = arith.constant 1920 : index
    %141 = vector.load %arg26[%c0_87, %c1920_88] : memref<8x2048xbf16, #tpu.memory_space<vmem>>, vector<8x128xbf16>
    tpu.vector_store %arg26[%c0_87, %c1920_88], %140 {strides = array<i32>} : memref<8x2048xbf16, #tpu.memory_space<vmem>>, vector<8x128xbf16>,
    %c0_89 = arith.constant 0 : index
    %c0_90 = arith.constant 0 : index
    %142 = vector.load %arg26[%c0_89, %c0_90] : memref<8x2048xbf16, #tpu.memory_space<vmem>>, vector<8x2048xbf16>
    %c2_i32_91 = arith.constant 2 : i32
    %143 = tpu.memref_slice %arg27[%c2_i32_91] : memref<4x!tpu.dma_semaphore, #tpu.memory_space<semaphore_mem>> -> memref<1x!tpu.dma_semaphore, #tpu.memory_space<semaphore_mem>>
    %144 = tpu.memref_squeeze %143 : memref<1x!tpu.dma_semaphore, #tpu.memory_space<semaphore_mem>> -> memref<!tpu.dma_semaphore, #tpu.memory_space<semaphore_mem>>
    tpu.wait_dma2 semaphore(%144 : memref<!tpu.dma_semaphore, #tpu.memory_space<semaphore_mem>>) src(%arg11 : memref<2048x256xbf16, #tpu.memory_space<any>>) dst(%arg23 : memref<2048x256xbf16, #tpu.memory_space<vmem>>)
    %c0_92 = arith.constant 0 : index
    %c0_93 = arith.constant 0 : index
    %145 = vector.load %arg23[%c0_92, %c0_93] : memref<2048x256xbf16, #tpu.memory_space<vmem>>, vector<2048x256xbf16>
    %cst_94 = arith.constant dense<0.000000e+00> : vector<8x256xf32>
    %146 = tpu.matmul %142, %145, %cst_94 {dimension_numbers = #tpu.dot_dimension_numbers<[1], [0], [0], [1], [0, 0, 1, 1], [], []>} : vector<8x2048xbf16>, vector<2048x256xbf16>, vector<8x256xf32> -> vector<8x256xf32>
    %c0_95 = arith.constant 0 : index
    %c0_96 = arith.constant 0 : index
    %147 = vector.load %arg12[%c0_95, %c0_96] : memref<1x256xf32, #tpu.memory_space<vmem>>, vector<1x256xf32>
    %148 = vector.broadcast %147 : vector<1x256xf32> to vector<8x256xf32>
    %149 = arith.addf %146, %148 : vector<8x256xf32>
    %c0_97 = arith.constant 0 : index
    %c0_98 = arith.constant 0 : index
    %150 = vector.load %arg13[%c0_97, %c0_98] : memref<1x256xf32, #tpu.memory_space<vmem>>, vector<1x256xf32>
    %c0_99 = arith.constant 0 : index
    %c0_100 = arith.constant 0 : index
    %151 = vector.load %arg14[%c0_99, %c0_100] : memref<1x256xf32, #tpu.memory_space<vmem>>, vector<1x256xf32>
    %cst_101 = arith.constant dense<0.000000e+00> : vector<256xf32>
    %152 = vector.multi_reduction <add>, %149, %cst_101 [0] : vector<8x256xf32> to vector<256xf32>
    %153 = vector.shape_cast %152 : vector<256xf32> to vector<1x256xf32>
    %cst_102 = arith.constant 1.250000e-01 : f32
    %154 = vector.broadcast %cst_102 : f32 to vector<1x256xf32>
    %155 = arith.mulf %153, %154 : vector<1x256xf32>
    %156 = vector.broadcast %155 : vector<1x256xf32> to vector<8x256xf32>
    %157 = arith.subf %149, %156 : vector<8x256xf32>
    %158 = arith.mulf %157, %157 : vector<8x256xf32>
    %cst_103 = arith.constant dense<0.000000e+00> : vector<256xf32>
    %159 = vector.multi_reduction <add>, %158, %cst_103 [0] : vector<8x256xf32> to vector<256xf32>
    %160 = vector.shape_cast %159 : vector<256xf32> to vector<1x256xf32>
    %cst_104 = arith.constant 1.250000e-01 : f32
    %161 = vector.broadcast %cst_104 : f32 to vector<1x256xf32>
    %162 = arith.mulf %160, %161 : vector<1x256xf32>
    %cst_105 = arith.constant 9.99999974E-6 : f32
    %163 = vector.broadcast %cst_105 : f32 to vector<1x256xf32>
    %164 = arith.addf %162, %163 : vector<1x256xf32>
    %165 = math.rsqrt %164 : vector<1x256xf32>
    %166 = arith.mulf %150, %165 : vector<1x256xf32>
    %167 = vector.broadcast %166 : vector<1x256xf32> to vector<8x256xf32>
    %168 = arith.mulf %157, %167 : vector<8x256xf32>
    %169 = vector.broadcast %151 : vector<1x256xf32> to vector<8x256xf32>
    %170 = arith.addf %168, %169 : vector<8x256xf32>
    %cst_106 = arith.constant 0.000000e+00 : f32
    %171 = vector.broadcast %cst_106 : f32 to vector<8x256xf32>
    %172 = arith.maximumf %170, %171 : vector<8x256xf32>
    %173 = arith.truncf %172 : vector<8x256xf32> to vector<8x256xbf16>
    %c3_i32_107 = arith.constant 3 : i32
    %174 = tpu.memref_slice %arg27[%c3_i32_107] : memref<4x!tpu.dma_semaphore, #tpu.memory_space<semaphore_mem>> -> memref<1x!tpu.dma_semaphore, #tpu.memory_space<semaphore_mem>>
    %175 = tpu.memref_squeeze %174 : memref<1x!tpu.dma_semaphore, #tpu.memory_space<semaphore_mem>> -> memref<!tpu.dma_semaphore, #tpu.memory_space<semaphore_mem>>
    tpu.wait_dma2 semaphore(%175 : memref<!tpu.dma_semaphore, #tpu.memory_space<semaphore_mem>>) src(%arg15 : memref<256x256xbf16, #tpu.memory_space<any>>) dst(%arg24 : memref<256x256xbf16, #tpu.memory_space<vmem>>)
    %c0_108 = arith.constant 0 : index
    %c0_109 = arith.constant 0 : index
    %176 = vector.load %arg24[%c0_108, %c0_109] : memref<256x256xbf16, #tpu.memory_space<vmem>>, vector<256x256xbf16>
    %cst_110 = arith.constant dense<0.000000e+00> : vector<8x256xf32>
    %177 = tpu.matmul %173, %176, %cst_110 {dimension_numbers = #tpu.dot_dimension_numbers<[1], [0], [0], [1], [0, 0, 1, 1], [], []>} : vector<8x256xbf16>, vector<256x256xbf16>, vector<8x256xf32> -> vector<8x256xf32>
    %c0_111 = arith.constant 0 : index
    %c0_112 = arith.constant 0 : index
    %178 = vector.load %arg16[%c0_111, %c0_112] : memref<1x256xf32, #tpu.memory_space<vmem>>, vector<1x256xf32>
    %179 = vector.broadcast %178 : vector<1x256xf32> to vector<8x256xf32>
    %180 = arith.addf %177, %179 : vector<8x256xf32>
    %181 = vector.extract_strided_slice %180 {offsets = [0, 0], sizes = [8, 128], strides = [1, 1]} : vector<8x256xf32> to vector<8x128xf32>
    %182 = vector.extract_strided_slice %180 {offsets = [0, 128], sizes = [8, 128], strides = [1, 1]} : vector<8x256xf32> to vector<8x128xf32>
    %c0_113 = arith.constant 0 : index
    %c0_114 = arith.constant 0 : index
    %183 = vector.load %arg17[%c0_113, %c0_114] : memref<8x128xf32, #tpu.memory_space<vmem>>, vector<8x128xf32>
    %cst_115 = arith.constant 5.000000e-01 : f32
    %184 = vector.broadcast %cst_115 : f32 to vector<8x128xf32>
    %185 = arith.mulf %184, %182 : vector<8x128xf32>
    %186 = math.exp %185 : vector<8x128xf32>
    %187 = arith.mulf %183, %186 : vector<8x128xf32>
    %188 = arith.addf %181, %187 : vector<8x128xf32>
    %c0_116 = arith.constant 0 : index
    %c0_117 = arith.constant 0 : index
    %189 = vector.load %arg18[%c0_116, %c0_117] : memref<8x128xf32, #tpu.memory_space<vmem>>, vector<8x128xf32>
    tpu.vector_store %arg18[%c0_116, %c0_117], %188 {strides = array<i32>} : memref<8x128xf32, #tpu.memory_space<vmem>>, vector<8x128xf32>,
    %c0_118 = arith.constant 0 : index
    %c0_119 = arith.constant 0 : index
    %190 = vector.load %arg19[%c0_118, %c0_119] : memref<8x128xf32, #tpu.memory_space<vmem>>, vector<8x128xf32>
    tpu.vector_store %arg19[%c0_118, %c0_119], %181 {strides = array<i32>} : memref<8x128xf32, #tpu.memory_space<vmem>>, vector<8x128xf32>,
    %c0_120 = arith.constant 0 : index
    %c0_121 = arith.constant 0 : index
    %191 = vector.load %arg20[%c0_120, %c0_121] : memref<8x128xf32, #tpu.memory_space<vmem>>, vector<8x128xf32>
    tpu.vector_store %arg20[%c0_120, %c0_121], %182 {strides = array<i32>} : memref<8x128xf32, #tpu.memory_space<vmem>>, vector<8x128xf32>,
    return
  }
}

</mosaic_0001>

<llo_original>
// kernel: vae_encoder.1
$region0: #{vae_encoder.1}
  #allocation0 [shape = 'u32[]', space=smem, size = 0x4, offset = 0x4, fixed_abs, tag = 'smem constant byte address 0x4 - core index']
  #allocation1 [shape = 'u32[144,128]{1,0:T(1,128)}', space=vmem, size = 0x12000, scoped, tag = 'internal scratch']
  #allocation2 [shape = 'bf16[512,128]{1,0:T(8,128)(2,1)}', space=vmem, size = 0x20000, scoped, tag = 'scratch operand']
  #allocation3 [shape = 'bf16[2048,128]{1,0:T(8,128)(2,1)}', space=vmem, size = 0x80000, scoped, tag = 'scratch operand']
  #allocation4 [shape = 'bf16[2048,256]{1,0:T(8,128)(2,1)}', space=vmem, size = 0x100000, scoped, tag = 'scratch operand']
  #allocation5 [shape = 'bf16[256,256]{1,0:T(8,128)(2,1)}', space=vmem, size = 0x20000, scoped, tag = 'scratch operand']
  #allocation6 [shape = 'bf16[32,2048]{1,0:T(8,128)(2,1)}', space=vmem, size = 0x20000, scoped, tag = 'scratch operand']
  #allocation7 [shape = 'bf16[8,2048]{1,0:T(8,128)(2,1)}', space=vmem, size = 0x8000, scoped, tag = 'scratch operand']
  #allocation8 [shape = 's32[4]{0}', space=sflag, size = 0x10, scoped, tag = 'scratch operand']
  #allocation14 [shape = 's32[]', space=sflag, size = 0x4, offset = 0, fixed_abs, tag = 'sflag constant byte address 0x0 - dummy sync flag']
  #allocation15 [shape = 's32[]', space=sflag, size = 0x4, offset = 0, fixed_abs, tag = 'sflag constant byte address 0x0 - dummy sync flag']
  #allocation16 [shape = 's32[]', space=sflag, size = 0x4, offset = 0, fixed_abs, tag = 'sflag constant byte address 0x0 - dummy sync flag']
  #allocation17 [shape = 's32[]', space=sflag, size = 0x4, offset = 0, fixed_abs, tag = 'sflag constant byte address 0x0 - dummy sync flag']
  %s0 = inlined_call_operand.vmem [shape: bf16[128,48], index: 0, kind: input, shape index: {}]
  %s1 = inlined_call_operand.vmem [shape: bf16[48,128], index: 1, kind: input, shape index: {}]
  %s2 = inlined_call_operand.vmem [shape: f32[1,128], index: 2, kind: input, shape index: {}]
  %s3 = inlined_call_operand.vmem [shape: f32[1,128], index: 3, kind: input, shape index: {}]
  %s4 = inlined_call_operand.vmem [shape: f32[1,128], index: 4, kind: input, shape index: {}]
  %s5 = inlined_call_operand.vmem [shape: bf16[512,128], index: 5, kind: input, shape index: {}]
  %s6 = inlined_call_operand.vmem [shape: bf16[2048,128], index: 6, kind: input, shape index: {}]
  %s7 = inlined_call_operand.vmem [shape: f32[1,128], index: 7, kind: input, shape index: {}]
  %s8 = inlined_call_operand.vmem [shape: f32[1,128], index: 8, kind: input, shape index: {}]
  %s9 = inlined_call_operand.vmem [shape: f32[1,128], index: 9, kind: input, shape index: {}]
  %s10 = inlined_call_operand.vmem [shape: bf16[128,32], index: 10, kind: input, shape index: {}]
  %s11 = inlined_call_operand.vmem [shape: bf16[2048,256], index: 11, kind: input, shape index: {}]
  %s12 = inlined_call_operand.vmem [shape: f32[1,256], index: 12, kind: input, shape index: {}]
  %s13 = inlined_call_operand.vmem [shape: f32[1,256], index: 13, kind: input, shape index: {}]
  %s14 = inlined_call_operand.vmem [shape: f32[1,256], index: 14, kind: input, shape index: {}]
  %s15 = inlined_call_operand.vmem [shape: bf16[256,256], index: 15, kind: input, shape index: {}]
  %s16 = inlined_call_operand.vmem [shape: f32[1,256], index: 16, kind: input, shape index: {}]
  %s17 = inlined_call_operand.vmem [shape: f32[8,128], index: 17, kind: input, shape index: {}]
  %s18 = inlined_call_operand.hbm [shape: f32[8,128], index: 18, kind: output, shape index: {0}]
  %s19 = inlined_call_operand.hbm [shape: f32[8,128], index: 19, kind: output, shape index: {1}]
  %s20 = inlined_call_operand.hbm [shape: f32[8,128], index: 20, kind: output, shape index: {2}]
  %21 = xla_tuple %s18, %s19, %s20
  %s22 = sld [smem:[#allocation0]]
  $region218: #{vae_encoder.1} parent=0
    _
  %s24 = ssub.s32 1, %s22
  %s25 = scalar_select 0, %s24, %s22
  $region1: #{vae_encoder.1} parent=0
    #allocation9 [shape = 'u8[4096]{0}', space=vmem, size = 0x1000, scoped, tag = 'output window, operand 0, single buffered']
    #allocation10 [shape = 's32[1]{0}', space=sflag, size = 0x4, scoped, tag = 'scoped memory for vae_encoder.1']
    #allocation11 [shape = 'u8[4096]{0}', space=vmem, size = 0x1000, scoped, tag = 'output window, operand 1, single buffered']
    #allocation12 [shape = 's32[1]{0}', space=sflag, size = 0x4, scoped, tag = 'scoped memory for vae_encoder.1']
    #allocation13 [shape = 'u8[4096]{0}', space=vmem, size = 0x1000, scoped, tag = 'output window, operand 2, single buffered']
    %26 = vsyncpa [#allocation10], 0
    %27 = vsyncpa [#allocation12], 0
    // Predicated region
    $region2: #{vae_encoder.1} parent=1 // pred_check
      _
    $region3: #{vae_encoder.1} parent=1 // pred_check_branch
      %29 = sbr.rel (0) target = $region5
    $region4: #{vae_encoder.1} parent=1 // pred_region
      _
    $region5: #{vae_encoder.1} parent=1 // pred_fallthru
      _
    // Predicated region
    $region6: #{vae_encoder.1} parent=1 // pred_check
      _
    $region7: #{vae_encoder.1} parent=1 // pred_check_branch
      %31 = sbr.rel (0) target = $region9
    $region8: #{vae_encoder.1} parent=1 // pred_region
      _
    $region9: #{vae_encoder.1} parent=1 // pred_fallthru
      _
    // Predicated region
    $region10: #{vae_encoder.1} parent=1 // pred_check
      _
    $region11: #{vae_encoder.1} parent=1 // pred_check_branch
      %33 = sbr.rel (0) target = $region13
    $region12: #{vae_encoder.1} parent=1 // pred_region
      _
    $region13: #{vae_encoder.1} parent=1 // pred_fallthru
      _
    // Predicated region
    $region14: #{vae_encoder.1} parent=1 // pred_check
      _
    $region15: #{vae_encoder.1} parent=1 // pred_check_branch
      %35 = sbr.rel (0) target = $region17
    $region16: #{vae_encoder.1} parent=1 // pred_region
      _
    $region17: #{vae_encoder.1} parent=1 // pred_fallthru
      _
    // Predicated region
    $region18: #{vae_encoder.1} parent=1 // pred_check
      _
    $region19: #{vae_encoder.1} parent=1 // pred_check_branch
      %37 = sbr.rel (0) target = $region21
    $region20: #{vae_encoder.1} parent=1 // pred_region
      _
    $region21: #{vae_encoder.1} parent=1 // pred_fallthru
      _
    // Predicated region
    $region22: #{vae_encoder.1} parent=1 // pred_check
      _
    $region23: #{vae_encoder.1} parent=1 // pred_check_branch
      %39 = sbr.rel (0) target = $region25
    $region24: #{vae_encoder.1} parent=1 // pred_region
      _
    $region25: #{vae_encoder.1} parent=1 // pred_fallthru
      _
    // Predicated region
    $region26: #{vae_encoder.1} parent=1 // pred_check
      _
    $region27: #{vae_encoder.1} parent=1 // pred_check_branch
      %41 = sbr.rel (0) target = $region29
    $region28: #{vae_encoder.1} parent=1 // pred_region
      _
    $region29: #{vae_encoder.1} parent=1 // pred_fallthru
      _
    // Predicated region
    $region30: #{vae_encoder.1} parent=1 // pred_check
      _
    $region31: #{vae_encoder.1} parent=1 // pred_check_branch
      %43 = sbr.rel (0) target = $region33
    $region32: #{vae_encoder.1} parent=1 // pred_region
      _
    $region33: #{vae_encoder.1} parent=1 // pred_fallthru
      _
    // Predicated region
    $region34: #{vae_encoder.1} parent=1 // pred_check
      _
    $region35: #{vae_encoder.1} parent=1 // pred_check_branch
      %45 = sbr.rel (0) target = $region37
    $region36: #{vae_encoder.1} parent=1 // pred_region
      _
    $region37: #{vae_encoder.1} parent=1 // pred_fallthru
      _
    // Predicated region
    $region38: #{vae_encoder.1} parent=1 // pred_check
      _
    $region39: #{vae_encoder.1} parent=1 // pred_check_branch
      %47 = sbr.rel (0) target = $region41
    $region40: #{vae_encoder.1} parent=1 // pred_region
      _
    $region41: #{vae_encoder.1} parent=1 // pred_fallthru
      _
    // Predicated region
    $region42: #{vae_encoder.1} parent=1 // pred_check
      _
    $region43: #{vae_encoder.1} parent=1 // pred_check_branch
      %49 = sbr.rel (0) target = $region45
    $region44: #{vae_encoder.1} parent=1 // pred_region
      _
    $region45: #{vae_encoder.1} parent=1 // pred_fallthru
      _
    // Predicated region
    $region46: #{vae_encoder.1} parent=1 // pred_check
      _
    $region47: #{vae_encoder.1} parent=1 // pred_check_branch
      %51 = sbr.rel (0) target = $region49
    $region48: #{vae_encoder.1} parent=1 // pred_region
      _
    $region49: #{vae_encoder.1} parent=1 // pred_fallthru
      _
    // Predicated region
    $region50: #{vae_encoder.1} parent=1 // pred_check
      _
    $region51: #{vae_encoder.1} parent=1 // pred_check_branch
      %53 = sbr.rel (0) target = $region53
    $region52: #{vae_encoder.1} parent=1 // pred_region
      _
    $region53: #{vae_encoder.1} parent=1 // pred_fallthru
      _
    // Predicated region
    $region54: #{vae_encoder.1} parent=1 // pred_check
      _
    $region55: #{vae_encoder.1} parent=1 // pred_check_branch
      %55 = sbr.rel (0) target = $region57
    $region56: #{vae_encoder.1} parent=1 // pred_region
      _
    $region57: #{vae_encoder.1} parent=1 // pred_fallthru
      _
    %p58 = scmp.lt.u32.totalorder 256, 8
    %p59 = pneg %p58
    // Predicated region
    $region58: #{vae_encoder.1} parent=1 // pred_check
      _
    $region59: #{vae_encoder.1} parent=1 // pred_check_branch
      %61 = sbr.rel (%p58) target = $region61
    $region60: #{vae_encoder.1} parent=1 // pred_region
      %s77 = sand.u32 256, 7
      %p78 = scmp.eq.s32.totalorder %s77, 0
      // Predicated region
      $region73: #{vae_encoder.1} parent=60 // pred_check
        %p79 = pneg %p78
      $region74: #{vae_encoder.1} parent=60 // pred_check_branch
        %81 = sbr.rel (%p79) target = $region76
      $region75: #{vae_encoder.1} parent=60 // pred_region
        loop: start=0, step=1, limit=1
        $region77: #{vae_encoder.1} parent=75 // loop_pre_header
          _
        $region78: #{vae_encoder.1} parent=75 // loop_header
          %s83 = sphi 0, %s87
          %p84 = scmp.ge.s32.totalorder %s83, 1
          %s88 = sphi %s5, %s5
          %s89 = sphi [#allocation2], [#allocation2]
        $region79: #{vae_encoder.1} parent=75 // loop_header_branch
          %86 = sbr.rel (%p84) target = $region83
        $region80: #{vae_encoder.1} parent=75 // loop_body
          %v90 = vld [vmem:[%s88] sm:$0xff]
          %91 = vst [vmem:[%s89] sm:$0xff] %v90
          %v92 = vld [vmem:[%s88 + $0x8] sm:$0xff]
          %93 = vst [vmem:[%s89 + $0x8] sm:$0xff] %v92
          %v94 = vld [vmem:[%s88 + $0x10] sm:$0xff]
          %95 = vst [vmem:[%s89 + $0x10] sm:$0xff] %v94
          %v96 = vld [vmem:[%s88 + $0x18] sm:$0xff]
          %97 = vst [vmem:[%s89 + $0x18] sm:$0xff] %v96
          %v98 = vld [vmem:[%s88 + $0x20] sm:$0xff]
          %99 = vst [vmem:[%s89 + $0x20] sm:$0xff] %v98
          %v100 = vld [vmem:[%s88 + $0x28] sm:$0xff]
          %101 = vst [vmem:[%s89 + $0x28] sm:$0xff] %v100
          %v102 = vld [vmem:[%s88 + $0x30] sm:$0xff]
          %103 = vst [vmem:[%s89 + $0x30] sm:$0xff] %v102
          %v104 = vld [vmem:[%s88 + $0x38] sm:$0xff]
          %105 = vst [vmem:[%s89 + $0x38] sm:$0xff] %v104
          %v106 = vld [vmem:[%s88 + $0x40] sm:$0xff]
          %107 = vst [vmem:[%s89 + $0x40] sm:$0xff] %v106
          %v108 = vld [vmem:[%s88 + $0x48] sm:$0xff]
          %109 = vst [vmem:[%s89 + $0x48] sm:$0xff] %v108
          %v110 = vld [vmem:[%s88 + $0x50] sm:$0xff]
          %111 = vst [vmem:[%s89 + $0x50] sm:$0xff] %v110
          %v112 = vld [vmem:[%s88 + $0x58] sm:$0xff]
          %113 = vst [vmem:[%s89 + $0x58] sm:$0xff] %v112
          %v114 = vld [vmem:[%s88 + $0x60] sm:$0xff]
          %115 = vst [vmem:[%s89 + $0x60] sm:$0xff] %v114
          %v116 = vld [vmem:[%s88 + $0x68] sm:$0xff]
          %117 = vst [vmem:[%s89 + $0x68] sm:$0xff] %v116
          %v118 = vld [vmem:[%s88 + $0x70] sm:$0xff]
          %119 = vst [vmem:[%s89 + $0x70] sm:$0xff] %v118
          %v120 = vld [vmem:[%s88 + $0x78] sm:$0xff]
          %121 = vst [vmem:[%s89 + $0x78] sm:$0xff] %v120
          %v122 = vld [vmem:[%s88 + $0x80] sm:$0xff]
          %123 = vst [vmem:[%s89 + $0x80] sm:$0xff] %v122
          %v124 = vld [vmem:[%s88 + $0x88] sm:$0xff]
          %125 = vst [vmem:[%s89 + $0x88] sm:$0xff] %v124
          %v126 = vld [vmem:[%s88 + $0x90] sm:$0xff]
          %127 = vst [vmem:[%s89 + $0x90] sm:$0xff] %v126
          %v128 = vld [vmem:[%s88 + $0x98] sm:$0xff]
          %129 = vst [vmem:[%s89 + $0x98] sm:$0xff] %v128
          %v130 = vld [vmem:[%s88 + $0xa0] sm:$0xff]
          %131 = vst [vmem:[%s89 + $0xa0] sm:$0xff] %v130
          %v132 = vld [vmem:[%s88 + $0xa8] sm:$0xff]
          %133 = vst [vmem:[%s89 + $0xa8] sm:$0xff] %v132
          %v134 = vld [vmem:[%s88 + $0xb0] sm:$0xff]
          %135 = vst [vmem:[%s89 + $0xb0] sm:$0xff] %v134
          %v136 = vld [vmem:[%s88 + $0xb8] sm:$0xff]
          %137 = vst [vmem:[%s89 + $0xb8] sm:$0xff] %v136
          %v138 = vld [vmem:[%s88 + $0xc0] sm:$0xff]
          %139 = vst [vmem:[%s89 + $0xc0] sm:$0xff] %v138
          %v140 = vld [vmem:[%s88 + $0xc8] sm:$0xff]
          %141 = vst [vmem:[%s89 + $0xc8] sm:$0xff] %v140
          %v142 = vld [vmem:[%s88 + $0xd0] sm:$0xff]
          %143 = vst [vmem:[%s89 + $0xd0] sm:$0xff] %v142
          %v144 = vld [vmem:[%s88 + $0xd8] sm:$0xff]
          %145 = vst [vmem:[%s89 + $0xd8] sm:$0xff] %v144
          %v146 = vld [vmem:[%s88 + $0xe0] sm:$0xff]
          %147 = vst [vmem:[%s89 + $0xe0] sm:$0xff] %v146
          %v148 = vld [vmem:[%s88 + $0xe8] sm:$0xff]
          %149 = vst [vmem:[%s89 + $0xe8] sm:$0xff] %v148
          %v150 = vld [vmem:[%s88 + $0xf0] sm:$0xff]
          %151 = vst [vmem:[%s89 + $0xf0] sm:$0xff] %v150
          %v152 = vld [vmem:[%s88 + $0xf8] sm:$0xff]
          %153 = vst [vmem:[%s89 + $0xf8] sm:$0xff] %v152
        $region81: #{vae_encoder.1} parent=75 // loop_footer
          %s87 = sadd.s32 1, %s83
        $region82: #{vae_encoder.1} parent=75 // loop_footer_branch
          %82 = sbr.rel target = $region78
        $region83: #{vae_encoder.1} parent=75 // loop_exit
          _
      $region76: #{vae_encoder.1} parent=60 // pred_fallthru
        _
      %p154 = pneg %p78
      // Predicated region
      $region84: #{vae_encoder.1} parent=60 // pred_check
        _
      $region85: #{vae_encoder.1} parent=60 // pred_check_branch
        %156 = sbr.rel (%p78) target = $region87
      $region86: #{vae_encoder.1} parent=60 // pred_region
        %s157 = sand.u32 256, 7
      $region87: #{vae_encoder.1} parent=60 // pred_fallthru
        _
    $region61: #{vae_encoder.1} parent=1 // pred_fallthru
      _
    // Predicated region
    $region62: #{vae_encoder.1} parent=1 // pred_check
      %p62 = pneg %p58
    $region63: #{vae_encoder.1} parent=1 // pred_check_branch
      %64 = sbr.rel (%p62) target = $region65
    $region64: #{vae_encoder.1} parent=1 // pred_region
      %s65 = sshll.u32 1, 256
      %s66 = ssub.s32 %s65, 1
      loop: start=0, step=1, limit=1
      $region66: #{vae_encoder.1} parent=64 // loop_pre_header
        _
      $region67: #{vae_encoder.1} parent=64 // loop_header
        %s68 = sphi 0, %s72
        %p69 = scmp.ge.s32.totalorder %s68, 1
        %s73 = sphi %s5, %s5
        %s74 = sphi [#allocation2], [#allocation2]
      $region68: #{vae_encoder.1} parent=64 // loop_header_branch
        %71 = sbr.rel (%p69) target = $region72
      $region69: #{vae_encoder.1} parent=64 // loop_body
        %v75 = vld [vmem:[%s73] sm:%s66]
        %76 = vst [vmem:[%s74] sm:%s66] %v75
      $region70: #{vae_encoder.1} parent=64 // loop_footer
        %s72 = sadd.s32 1, %s68
      $region71: #{vae_encoder.1} parent=64 // loop_footer_branch
        %67 = sbr.rel target = $region67
      $region72: #{vae_encoder.1} parent=64 // loop_exit
        _
    $region65: #{vae_encoder.1} parent=1 // pred_fallthru
      _
    // Predicated region
    $region88: #{vae_encoder.1} parent=1 // pred_check
      _
    $region89: #{vae_encoder.1} parent=1 // pred_check_branch
      %160 = sbr.rel (0) target = $region91
    $region90: #{vae_encoder.1} parent=1 // pred_region
      %161 = vsyncadd [#allocation8], 4096
    $region91: #{vae_encoder.1} parent=1 // pred_fallthru
      _
    %s162 = scalar_lea.sflag [#allocation8], 1
    %p164 = scmp.lt.u32.totalorder 1024, 8
    %p165 = pneg %p164
    // Predicated region
    $region92: #{vae_encoder.1} parent=1 // pred_check
      _
    $region93: #{vae_encoder.1} parent=1 // pred_check_branch
      %167 = sbr.rel (%p164) target = $region95
    $region94: #{vae_encoder.1} parent=1 // pred_region
      %s183 = sand.u32 1024, 7
      %p184 = scmp.eq.s32.totalorder %s183, 0
      // Predicated region
      $region107: #{vae_encoder.1} parent=94 // pred_check
        %p185 = pneg %p184
      $region108: #{vae_encoder.1} parent=94 // pred_check_branch
        %187 = sbr.rel (%p185) target = $region110
      $region109: #{vae_encoder.1} parent=94 // pred_region
        loop: start=0, step=1, limit=1
        $region111: #{vae_encoder.1} parent=109 // loop_pre_header
          _
        $region112: #{vae_encoder.1} parent=109 // loop_header
          %s189 = sphi 0, %s193
          %p190 = scmp.ge.s32.totalorder %s189, 1
          %s194 = sphi %s6, %s6
          %s195 = sphi [#allocation3], [#allocation3]
        $region113: #{vae_encoder.1} parent=109 // loop_header_branch
          %192 = sbr.rel (%p190) target = $region117
        $region114: #{vae_encoder.1} parent=109 // loop_body
          %v196 = vld [vmem:[%s194] sm:$0xff]
          %197 = vst [vmem:[%s195] sm:$0xff] %v196
          %v198 = vld [vmem:[%s194 + $0x8] sm:$0xff]
          %199 = vst [vmem:[%s195 + $0x8] sm:$0xff] %v198
          %v200 = vld [vmem:[%s194 + $0x10] sm:$0xff]
          %201 = vst [vmem:[%s195 + $0x10] sm:$0xff] %v200
          %v202 = vld [vmem:[%s194 + $0x18] sm:$0xff]
          %203 = vst [vmem:[%s195 + $0x18] sm:$0xff] %v202
          %v204 = vld [vmem:[%s194 + $0x20] sm:$0xff]
          %205 = vst [vmem:[%s195 + $0x20] sm:$0xff] %v204
          %v206 = vld [vmem:[%s194 + $0x28] sm:$0xff]
          %207 = vst [vmem:[%s195 + $0x28] sm:$0xff] %v206
          %v208 = vld [vmem:[%s194 + $0x30] sm:$0xff]
          %209 = vst [vmem:[%s195 + $0x30] sm:$0xff] %v208
          %v210 = vld [vmem:[%s194 + $0x38] sm:$0xff]
          %211 = vst [vmem:[%s195 + $0x38] sm:$0xff] %v210
          %v212 = vld [vmem:[%s194 + $0x40] sm:$0xff]
          %213 = vst [vmem:[%s195 + $0x40] sm:$0xff] %v212
          %v214 = vld [vmem:[%s194 + $0x48] sm:$0xff]
          %215 = vst [vmem:[%s195 + $0x48] sm:$0xff] %v214
          %v216 = vld [vmem:[%s194 + $0x50] sm:$0xff]
          %217 = vst [vmem:[%s195 + $0x50] sm:$0xff] %v216
          %v218 = vld [vmem:[%s194 + $0x58] sm:$0xff]
          %219 = vst [vmem:[%s195 + $0x58] sm:$0xff] %v218
          %v220 = vld [vmem:[%s194 + $0x60] sm:$0xff]
          %221 = vst [vmem:[%s195 + $0x60] sm:$0xff] %v220
          %v222 = vld [vmem:[%s194 + $0x68] sm:$0xff]
          %223 = vst [vmem:[%s195 + $0x68] sm:$0xff] %v222
          %v224 = vld [vmem:[%s194 + $0x70] sm:$0xff]
          %225 = vst [vmem:[%s195 + $0x70] sm:$0xff] %v224
          %v226 = vld [vmem:[%s194 + $0x78] sm:$0xff]
          %227 = vst [vmem:[%s195 + $0x78] sm:$0xff] %v226
          %v228 = vld [vmem:[%s194 + $0x80] sm:$0xff]
          %229 = vst [vmem:[%s195 + $0x80] sm:$0xff] %v228
          %v230 = vld [vmem:[%s194 + $0x88] sm:$0xff]
          %231 = vst [vmem:[%s195 + $0x88] sm:$0xff] %v230
          %v232 = vld [vmem:[%s194 + $0x90] sm:$0xff]
          %233 = vst [vmem:[%s195 + $0x90] sm:$0xff] %v232
          %v234 = vld [vmem:[%s194 + $0x98] sm:$0xff]
          %235 = vst [vmem:[%s195 + $0x98] sm:$0xff] %v234
          %v236 = vld [vmem:[%s194 + $0xa0] sm:$0xff]
          %237 = vst [vmem:[%s195 + $0xa0] sm:$0xff] %v236
          %v238 = vld [vmem:[%s194 + $0xa8] sm:$0xff]
          %239 = vst [vmem:[%s195 + $0xa8] sm:$0xff] %v238
          %v240 = vld [vmem:[%s194 + $0xb0] sm:$0xff]
          %241 = vst [vmem:[%s195 + $0xb0] sm:$0xff] %v240
          %v242 = vld [vmem:[%s194 + $0xb8] sm:$0xff]
          %243 = vst [vmem:[%s195 + $0xb8] sm:$0xff] %v242
          %v244 = vld [vmem:[%s194 + $0xc0] sm:$0xff]
          %245 = vst [vmem:[%s195 + $0xc0] sm:$0xff] %v244
          %v246 = vld [vmem:[%s194 + $0xc8] sm:$0xff]
          %247 = vst [vmem:[%s195 + $0xc8] sm:$0xff] %v246
          %v248 = vld [vmem:[%s194 + $0xd0] sm:$0xff]
          %249 = vst [vmem:[%s195 + $0xd0] sm:$0xff] %v248
          %v250 = vld [vmem:[%s194 + $0xd8] sm:$0xff]
          %251 = vst [vmem:[%s195 + $0xd8] sm:$0xff] %v250
          %v252 = vld [vmem:[%s194 + $0xe0] sm:$0xff]
          %253 = vst [vmem:[%s195 + $0xe0] sm:$0xff] %v252
          %v254 = vld [vmem:[%s194 + $0xe8] sm:$0xff]
          %255 = vst [vmem:[%s195 + $0xe8] sm:$0xff] %v254
          %v256 = vld [vmem:[%s194 + $0xf0] sm:$0xff]
          %257 = vst [vmem:[%s195 + $0xf0] sm:$0xff] %v256
          %v258 = vld [vmem:[%s194 + $0xf8] sm:$0xff]
          %259 = vst [vmem:[%s195 + $0xf8] sm:$0xff] %v258
          %v260 = vld [vmem:[%s194 + $0x100] sm:$0xff]
          %261 = vst [vmem:[%s195 + $0x100] sm:$0xff] %v260
          %v262 = vld [vmem:[%s194 + $0x108] sm:$0xff]
          %263 = vst [vmem:[%s195 + $0x108] sm:$0xff] %v262
          %v264 = vld [vmem:[%s194 + $0x110] sm:$0xff]
          %265 = vst [vmem:[%s195 + $0x110] sm:$0xff] %v264
          %v266 = vld [vmem:[%s194 + $0x118] sm:$0xff]
          %267 = vst [vmem:[%s195 + $0x118] sm:$0xff] %v266
          %v268 = vld [vmem:[%s194 + $0x120] sm:$0xff]
          %269 = vst [vmem:[%s195 + $0x120] sm:$0xff] %v268
          %v270 = vld [vmem:[%s194 + $0x128] sm:$0xff]
          %271 = vst [vmem:[%s195 + $0x128] sm:$0xff] %v270
          %v272 = vld [vmem:[%s194 + $0x130] sm:$0xff]
          %273 = vst [vmem:[%s195 + $0x130] sm:$0xff] %v272
          %v274 = vld [vmem:[%s194 + $0x138] sm:$0xff]
          %275 = vst [vmem:[%s195 + $0x138] sm:$0xff] %v274
          %v276 = vld [vmem:[%s194 + $0x140] sm:$0xff]
          %277 = vst [vmem:[%s195 + $0x140] sm:$0xff] %v276
          %v278 = vld [vmem:[%s194 + $0x148] sm:$0xff]
          %279 = vst [vmem:[%s195 + $0x148] sm:$0xff] %v278
          %v280 = vld [vmem:[%s194 + $0x150] sm:$0xff]
          %281 = vst [vmem:[%s195 + $0x150] sm:$0xff] %v280
          %v282 = vld [vmem:[%s194 + $0x158] sm:$0xff]
          %283 = vst [vmem:[%s195 + $0x158] sm:$0xff] %v282
          %v284 = vld [vmem:[%s194 + $0x160] sm:$0xff]
          %285 = vst [vmem:[%s195 + $0x160] sm:$0xff] %v284
          %v286 = vld [vmem:[%s194 + $0x168] sm:$0xff]
          %287 = vst [vmem:[%s195 + $0x168] sm:$0xff] %v286
          %v288 = vld [vmem:[%s194 + $0x170] sm:$0xff]
          %289 = vst [vmem:[%s195 + $0x170] sm:$0xff] %v288
          %v290 = vld [vmem:[%s194 + $0x178] sm:$0xff]
          %291 = vst [vmem:[%s195 + $0x178] sm:$0xff] %v290
          %v292 = vld [vmem:[%s194 + $0x180] sm:$0xff]
          %293 = vst [vmem:[%s195 + $0x180] sm:$0xff] %v292
          %v294 = vld [vmem:[%s194 + $0x188] sm:$0xff]
          %295 = vst [vmem:[%s195 + $0x188] sm:$0xff] %v294
          %v296 = vld [vmem:[%s194 + $0x190] sm:$0xff]
          %297 = vst [vmem:[%s195 + $0x190] sm:$0xff] %v296
          %v298 = vld [vmem:[%s194 + $0x198] sm:$0xff]
          %299 = vst [vmem:[%s195 + $0x198] sm:$0xff] %v298
          %v300 = vld [vmem:[%s194 + $0x1a0] sm:$0xff]
          %301 = vst [vmem:[%s195 + $0x1a0] sm:$0xff] %v300
          %v302 = vld [vmem:[%s194 + $0x1a8] sm:$0xff]
          %303 = vst [vmem:[%s195 + $0x1a8] sm:$0xff] %v302
          %v304 = vld [vmem:[%s194 + $0x1b0] sm:$0xff]
          %305 = vst [vmem:[%s195 + $0x1b0] sm:$0xff] %v304
          %v306 = vld [vmem:[%s194 + $0x1b8] sm:$0xff]
          %307 = vst [vmem:[%s195 + $0x1b8] sm:$0xff] %v306
          %v308 = vld [vmem:[%s194 + $0x1c0] sm:$0xff]
          %309 = vst [vmem:[%s195 + $0x1c0] sm:$0xff] %v308
          %v310 = vld [vmem:[%s194 + $0x1c8] sm:$0xff]
          %311 = vst [vmem:[%s195 + $0x1c8] sm:$0xff] %v310
          %v312 = vld [vmem:[%s194 + $0x1d0] sm:$0xff]
          %313 = vst [vmem:[%s195 + $0x1d0] sm:$0xff] %v312
          %v314 = vld [vmem:[%s194 + $0x1d8] sm:$0xff]
          %315 = vst [vmem:[%s195 + $0x1d8] sm:$0xff] %v314
          %v316 = vld [vmem:[%s194 + $0x1e0] sm:$0xff]
          %317 = vst [vmem:[%s195 + $0x1e0] sm:$0xff] %v316
          %v318 = vld [vmem:[%s194 + $0x1e8] sm:$0xff]
          %319 = vst [vmem:[%s195 + $0x1e8] sm:$0xff] %v318
          %v320 = vld [vmem:[%s194 + $0x1f0] sm:$0xff]
          %321 = vst [vmem:[%s195 + $0x1f0] sm:$0xff] %v320
          %v322 = vld [vmem:[%s194 + $0x1f8] sm:$0xff]
          %323 = vst [vmem:[%s195 + $0x1f8] sm:$0xff] %v322
          %v324 = vld [vmem:[%s194 + $0x200] sm:$0xff]
          %325 = vst [vmem:[%s195 + $0x200] sm:$0xff] %v324
          %v326 = vld [vmem:[%s194 + $0x208] sm:$0xff]
          %327 = vst [vmem:[%s195 + $0x208] sm:$0xff] %v326
          %v328 = vld [vmem:[%s194 + $0x210] sm:$0xff]
          %329 = vst [vmem:[%s195 + $0x210] sm:$0xff] %v328
          %v330 = vld [vmem:[%s194 + $0x218] sm:$0xff]
          %331 = vst [vmem:[%s195 + $0x218] sm:$0xff] %v330
          %v332 = vld [vmem:[%s194 + $0x220] sm:$0xff]
          %333 = vst [vmem:[%s195 + $0x220] sm:$0xff] %v332
          %v334 = vld [vmem:[%s194 + $0x228] sm:$0xff]
          %335 = vst [vmem:[%s195 + $0x228] sm:$0xff] %v334
          %v336 = vld [vmem:[%s194 + $0x230] sm:$0xff]
          %337 = vst [vmem:[%s195 + $0x230] sm:$0xff] %v336
          %v338 = vld [vmem:[%s194 + $0x238] sm:$0xff]
          %339 = vst [vmem:[%s195 + $0x238] sm:$0xff] %v338
          %v340 = vld [vmem:[%s194 + $0x240] sm:$0xff]
          %341 = vst [vmem:[%s195 + $0x240] sm:$0xff] %v340
          %v342 = vld [vmem:[%s194 + $0x248] sm:$0xff]
          %343 = vst [vmem:[%s195 + $0x248] sm:$0xff] %v342
          %v344 = vld [vmem:[%s194 + $0x250] sm:$0xff]
          %345 = vst [vmem:[%s195 + $0x250] sm:$0xff] %v344
          %v346 = vld [vmem:[%s194 + $0x258] sm:$0xff]
          %347 = vst [vmem:[%s195 + $0x258] sm:$0xff] %v346
          %v348 = vld [vmem:[%s194 + $0x260] sm:$0xff]
          %349 = vst [vmem:[%s195 + $0x260] sm:$0xff] %v348
          %v350 = vld [vmem:[%s194 + $0x268] sm:$0xff]
          %351 = vst [vmem:[%s195 + $0x268] sm:$0xff] %v350
          %v352 = vld [vmem:[%s194 + $0x270] sm:$0xff]
          %353 = vst [vmem:[%s195 + $0x270] sm:$0xff] %v352
          %v354 = vld [vmem:[%s194 + $0x278] sm:$0xff]
          %355 = vst [vmem:[%s195 + $0x278] sm:$0xff] %v354
          %v356 = vld [vmem:[%s194 + $0x280] sm:$0xff]
          %357 = vst [vmem:[%s195 + $0x280] sm:$0xff] %v356
          %v358 = vld [vmem:[%s194 + $0x288] sm:$0xff]
          %359 = vst [vmem:[%s195 + $0x288] sm:$0xff] %v358
          %v360 = vld [vmem:[%s194 + $0x290] sm:$0xff]
          %361 = vst [vmem:[%s195 + $0x290] sm:$0xff] %v360
          %v362 = vld [vmem:[%s194 + $0x298] sm:$0xff]
          %363 = vst [vmem:[%s195 + $0x298] sm:$0xff] %v362
          %v364 = vld [vmem:[%s194 + $0x2a0] sm:$0xff]
          %365 = vst [vmem:[%s195 + $0x2a0] sm:$0xff] %v364
          %v366 = vld [vmem:[%s194 + $0x2a8] sm:$0xff]
          %367 = vst [vmem:[%s195 + $0x2a8] sm:$0xff] %v366
          %v368 = vld [vmem:[%s194 + $0x2b0] sm:$0xff]
          %369 = vst [vmem:[%s195 + $0x2b0] sm:$0xff] %v368
          %v370 = vld [vmem:[%s194 + $0x2b8] sm:$0xff]
          %371 = vst [vmem:[%s195 + $0x2b8] sm:$0xff] %v370
          %v372 = vld [vmem:[%s194 + $0x2c0] sm:$0xff]
          %373 = vst [vmem:[%s195 + $0x2c0] sm:$0xff] %v372
          %v374 = vld [vmem:[%s194 + $0x2c8] sm:$0xff]
          %375 = vst [vmem:[%s195 + $0x2c8] sm:$0xff] %v374
          %v376 = vld [vmem:[%s194 + $0x2d0] sm:$0xff]
          %377 = vst [vmem:[%s195 + $0x2d0] sm:$0xff] %v376
          %v378 = vld [vmem:[%s194 + $0x2d8] sm:$0xff]
          %379 = vst [vmem:[%s195 + $0x2d8] sm:$0xff] %v378
          %v380 = vld [vmem:[%s194 + $0x2e0] sm:$0xff]
          %381 = vst [vmem:[%s195 + $0x2e0] sm:$0xff] %v380
          %v382 = vld [vmem:[%s194 + $0x2e8] sm:$0xff]
          %383 = vst [vmem:[%s195 + $0x2e8] sm:$0xff] %v382
          %v384 = vld [vmem:[%s194 + $0x2f0] sm:$0xff]
          %385 = vst [vmem:[%s195 + $0x2f0] sm:$0xff] %v384
          %v386 = vld [vmem:[%s194 + $0x2f8] sm:$0xff]
          %387 = vst [vmem:[%s195 + $0x2f8] sm:$0xff] %v386
          %v388 = vld [vmem:[%s194 + $0x300] sm:$0xff]
          %389 = vst [vmem:[%s195 + $0x300] sm:$0xff] %v388
          %v390 = vld [vmem:[%s194 + $0x308] sm:$0xff]
          %391 = vst [vmem:[%s195 + $0x308] sm:$0xff] %v390
          %v392 = vld [vmem:[%s194 + $0x310] sm:$0xff]
          %393 = vst [vmem:[%s195 + $0x310] sm:$0xff] %v392
          %v394 = vld [vmem:[%s194 + $0x318] sm:$0xff]
          %395 = vst [vmem:[%s195 + $0x318] sm:$0xff] %v394
          %v396 = vld [vmem:[%s194 + $0x320] sm:$0xff]
          %397 = vst [vmem:[%s195 + $0x320] sm:$0xff] %v396
          %v398 = vld [vmem:[%s194 + $0x328] sm:$0xff]
          %399 = vst [vmem:[%s195 + $0x328] sm:$0xff] %v398
          %v400 = vld [vmem:[%s194 + $0x330] sm:$0xff]
          %401 = vst [vmem:[%s195 + $0x330] sm:$0xff] %v400
          %v402 = vld [vmem:[%s194 + $0x338] sm:$0xff]
          %403 = vst [vmem:[%s195 + $0x338] sm:$0xff] %v402
          %v404 = vld [vmem:[%s194 + $0x340] sm:$0xff]
          %405 = vst [vmem:[%s195 + $0x340] sm:$0xff] %v404
          %v406 = vld [vmem:[%s194 + $0x348] sm:$0xff]
          %407 = vst [vmem:[%s195 + $0x348] sm:$0xff] %v406
          %v408 = vld [vmem:[%s194 + $0x350] sm:$0xff]
          %409 = vst [vmem:[%s195 + $0x350] sm:$0xff] %v408
          %v410 = vld [vmem:[%s194 + $0x358] sm:$0xff]
          %411 = vst [vmem:[%s195 + $0x358] sm:$0xff] %v410
          %v412 = vld [vmem:[%s194 + $0x360] sm:$0xff]
          %413 = vst [vmem:[%s195 + $0x360] sm:$0xff] %v412
          %v414 = vld [vmem:[%s194 + $0x368] sm:$0xff]
          %415 = vst [vmem:[%s195 + $0x368] sm:$0xff] %v414
          %v416 = vld [vmem:[%s194 + $0x370] sm:$0xff]
          %417 = vst [vmem:[%s195 + $0x370] sm:$0xff] %v416
          %v418 = vld [vmem:[%s194 + $0x378] sm:$0xff]
          %419 = vst [vmem:[%s195 + $0x378] sm:$0xff] %v418
          %v420 = vld [vmem:[%s194 + $0x380] sm:$0xff]
          %421 = vst [vmem:[%s195 + $0x380] sm:$0xff] %v420
          %v422 = vld [vmem:[%s194 + $0x388] sm:$0xff]
          %423 = vst [vmem:[%s195 + $0x388] sm:$0xff] %v422
          %v424 = vld [vmem:[%s194 + $0x390] sm:$0xff]
          %425 = vst [vmem:[%s195 + $0x390] sm:$0xff] %v424
          %v426 = vld [vmem:[%s194 + $0x398] sm:$0xff]
          %427 = vst [vmem:[%s195 + $0x398] sm:$0xff] %v426
          %v428 = vld [vmem:[%s194 + $0x3a0] sm:$0xff]
          %429 = vst [vmem:[%s195 + $0x3a0] sm:$0xff] %v428
          %v430 = vld [vmem:[%s194 + $0x3a8] sm:$0xff]
          %431 = vst [vmem:[%s195 + $0x3a8] sm:$0xff] %v430
          %v432 = vld [vmem:[%s194 + $0x3b0] sm:$0xff]
          %433 = vst [vmem:[%s195 + $0x3b0] sm:$0xff] %v432
          %v434 = vld [vmem:[%s194 + $0x3b8] sm:$0xff]
          %435 = vst [vmem:[%s195 + $0x3b8] sm:$0xff] %v434
          %v436 = vld [vmem:[%s194 + $0x3c0] sm:$0xff]
          %437 = vst [vmem:[%s195 + $0x3c0] sm:$0xff] %v436
          %v438 = vld [vmem:[%s194 + $0x3c8] sm:$0xff]
          %439 = vst [vmem:[%s195 + $0x3c8] sm:$0xff] %v438
          %v440 = vld [vmem:[%s194 + $0x3d0] sm:$0xff]
          %441 = vst [vmem:[%s195 + $0x3d0] sm:$0xff] %v440
          %v442 = vld [vmem:[%s194 + $0x3d8] sm:$0xff]
          %443 = vst [vmem:[%s195 + $0x3d8] sm:$0xff] %v442
          %v444 = vld [vmem:[%s194 + $0x3e0] sm:$0xff]
          %445 = vst [vmem:[%s195 + $0x3e0] sm:$0xff] %v444
          %v446 = vld [vmem:[%s194 + $0x3e8] sm:$0xff]
          %447 = vst [vmem:[%s195 + $0x3e8] sm:$0xff] %v446
          %v448 = vld [vmem:[%s194 + $0x3f0] sm:$0xff]
          %449 = vst [vmem:[%s195 + $0x3f0] sm:$0xff] %v448
          %v450 = vld [vmem:[%s194 + $0x3f8] sm:$0xff]
          %451 = vst [vmem:[%s195 + $0x3f8] sm:$0xff] %v450
        $region115: #{vae_encoder.1} parent=109 // loop_footer
          %s193 = sadd.s32 1, %s189
        $region116: #{vae_encoder.1} parent=109 // loop_footer_branch
          %188 = sbr.rel target = $region112
        $region117: #{vae_encoder.1} parent=109 // loop_exit
          _
      $region110: #{vae_encoder.1} parent=94 // pred_fallthru
        _
      %p452 = pneg %p184
      // Predicated region
      $region118: #{vae_encoder.1} parent=94 // pred_check
        _
      $region119: #{vae_encoder.1} parent=94 // pred_check_branch
        %454 = sbr.rel (%p184) target = $region121
      $region120: #{vae_encoder.1} parent=94 // pred_region
        %s455 = sand.u32 1024, 7
      $region121: #{vae_encoder.1} parent=94 // pred_fallthru
        _
    $region95: #{vae_encoder.1} parent=1 // pred_fallthru
      _
    // Predicated region
    $region96: #{vae_encoder.1} parent=1 // pred_check
      %p168 = pneg %p164
    $region97: #{vae_encoder.1} parent=1 // pred_check_branch
      %170 = sbr.rel (%p168) target = $region99
    $region98: #{vae_encoder.1} parent=1 // pred_region
      %s171 = sshll.u32 1, 1024
      %s172 = ssub.s32 %s171, 1
      loop: start=0, step=1, limit=1
      $region100: #{vae_encoder.1} parent=98 // loop_pre_header
        _
      $region101: #{vae_encoder.1} parent=98 // loop_header
        %s174 = sphi 0, %s178
        %p175 = scmp.ge.s32.totalorder %s174, 1
        %s179 = sphi %s6, %s6
        %s180 = sphi [#allocation3], [#allocation3]
      $region102: #{vae_encoder.1} parent=98 // loop_header_branch
        %177 = sbr.rel (%p175) target = $region106
      $region103: #{vae_encoder.1} parent=98 // loop_body
        %v181 = vld [vmem:[%s179] sm:%s172]
        %182 = vst [vmem:[%s180] sm:%s172] %v181
      $region104: #{vae_encoder.1} parent=98 // loop_footer
        %s178 = sadd.s32 1, %s174
      $region105: #{vae_encoder.1} parent=98 // loop_footer_branch
        %173 = sbr.rel target = $region101
      $region106: #{vae_encoder.1} parent=98 // loop_exit
        _
    $region99: #{vae_encoder.1} parent=1 // pred_fallthru
      _
    // Predicated region
    $region122: #{vae_encoder.1} parent=1 // pred_check
      _
    $region123: #{vae_encoder.1} parent=1 // pred_check_branch
      %458 = sbr.rel (0) target = $region125
    $region124: #{vae_encoder.1} parent=1 // pred_region
      %459 = vsyncadd %s162, 16384
    $region125: #{vae_encoder.1} parent=1 // pred_fallthru
      _
    %s460 = scalar_lea.sflag [#allocation8], 2
    %p462 = scmp.lt.u32.totalorder 2048, 8
    %p463 = pneg %p462
    // Predicated region
    $region126: #{vae_encoder.1} parent=1 // pred_check
      _
    $region127: #{vae_encoder.1} parent=1 // pred_check_branch
      %465 = sbr.rel (%p462) target = $region129
    $region128: #{vae_encoder.1} parent=1 // pred_region
      %s481 = sand.u32 2048, 7
      %p482 = scmp.eq.s32.totalorder %s481, 0
      // Predicated region
      $region141: #{vae_encoder.1} parent=128 // pred_check
        %p483 = pneg %p482
      $region142: #{vae_encoder.1} parent=128 // pred_check_branch
        %485 = sbr.rel (%p483) target = $region144
      $region143: #{vae_encoder.1} parent=128 // pred_region
        loop: start=0, step=1, limit=1
        $region145: #{vae_encoder.1} parent=143 // loop_pre_header
          _
        $region146: #{vae_encoder.1} parent=143 // loop_header
          %s487 = sphi 0, %s491
          %p488 = scmp.ge.s32.totalorder %s487, 1
          %s492 = sphi %s11, %s11
          %s493 = sphi [#allocation4], [#allocation4]
        $region147: #{vae_encoder.1} parent=143 // loop_header_branch
          %490 = sbr.rel (%p488) target = $region151
        $region148: #{vae_encoder.1} parent=143 // loop_body
          %v494 = vld [vmem:[%s492] sm:$0xff]
          %495 = vst [vmem:[%s493] sm:$0xff] %v494
          %v496 = vld [vmem:[%s492 + $0x8] sm:$0xff]
          %497 = vst [vmem:[%s493 + $0x8] sm:$0xff] %v496
          %v498 = vld [vmem:[%s492 + $0x10] sm:$0xff]
          %499 = vst [vmem:[%s493 + $0x10] sm:$0xff] %v498
          %v500 = vld [vmem:[%s492 + $0x18] sm:$0xff]
          %501 = vst [vmem:[%s493 + $0x18] sm:$0xff] %v500
          %v502 = vld [vmem:[%s492 + $0x20] sm:$0xff]
          %503 = vst [vmem:[%s493 + $0x20] sm:$0xff] %v502
          %v504 = vld [vmem:[%s492 + $0x28] sm:$0xff]
          %505 = vst [vmem:[%s493 + $0x28] sm:$0xff] %v504
          %v506 = vld [vmem:[%s492 + $0x30] sm:$0xff]
          %507 = vst [vmem:[%s493 + $0x30] sm:$0xff] %v506
          %v508 = vld [vmem:[%s492 + $0x38] sm:$0xff]
          %509 = vst [vmem:[%s493 + $0x38] sm:$0xff] %v508
          %v510 = vld [vmem:[%s492 + $0x40] sm:$0xff]
          %511 = vst [vmem:[%s493 + $0x40] sm:$0xff] %v510
          %v512 = vld [vmem:[%s492 + $0x48] sm:$0xff]
          %513 = vst [vmem:[%s493 + $0x48] sm:$0xff] %v512
          %v514 = vld [vmem:[%s492 + $0x50] sm:$0xff]
          %515 = vst [vmem:[%s493 + $0x50] sm:$0xff] %v514
          %v516 = vld [vmem:[%s492 + $0x58] sm:$0xff]
          %517 = vst [vmem:[%s493 + $0x58] sm:$0xff] %v516
          %v518 = vld [vmem:[%s492 + $0x60] sm:$0xff]
          %519 = vst [vmem:[%s493 + $0x60] sm:$0xff] %v518
          %v520 = vld [vmem:[%s492 + $0x68] sm:$0xff]
          %521 = vst [vmem:[%s493 + $0x68] sm:$0xff] %v520
          %v522 = vld [vmem:[%s492 + $0x70] sm:$0xff]
          %523 = vst [vmem:[%s493 + $0x70] sm:$0xff] %v522
          %v524 = vld [vmem:[%s492 + $0x78] sm:$0xff]
          %525 = vst [vmem:[%s493 + $0x78] sm:$0xff] %v524
          %v526 = vld [vmem:[%s492 + $0x80] sm:$0xff]
          %527 = vst [vmem:[%s493 + $0x80] sm:$0xff] %v526
          %v528 = vld [vmem:[%s492 + $0x88] sm:$0xff]
          %529 = vst [vmem:[%s493 + $0x88] sm:$0xff] %v528
          %v530 = vld [vmem:[%s492 + $0x90] sm:$0xff]
          %531 = vst [vmem:[%s493 + $0x90] sm:$0xff] %v530
          %v532 = vld [vmem:[%s492 + $0x98] sm:$0xff]
          %533 = vst [vmem:[%s493 + $0x98] sm:$0xff] %v532
          %v534 = vld [vmem:[%s492 + $0xa0] sm:$0xff]
          %535 = vst [vmem:[%s493 + $0xa0] sm:$0xff] %v534
          %v536 = vld [vmem:[%s492 + $0xa8] sm:$0xff]
          %537 = vst [vmem:[%s493 + $0xa8] sm:$0xff] %v536
          %v538 = vld [vmem:[%s492 + $0xb0] sm:$0xff]
          %539 = vst [vmem:[%s493 + $0xb0] sm:$0xff] %v538
          %v540 = vld [vmem:[%s492 + $0xb8] sm:$0xff]
          %541 = vst [vmem:[%s493 + $0xb8] sm:$0xff] %v540
          %v542 = vld [vmem:[%s492 + $0xc0] sm:$0xff]
          %543 = vst [vmem:[%s493 + $0xc0] sm:$0xff] %v542
          %v544 = vld [vmem:[%s492 + $0xc8] sm:$0xff]
          %545 = vst [vmem:[%s493 + $0xc8] sm:$0xff] %v544
          %v546 = vld [vmem:[%s492 + $0xd0] sm:$0xff]
          %547 = vst [vmem:[%s493 + $0xd0] sm:$0xff] %v546
          %v548 = vld [vmem:[%s492 + $0xd8] sm:$0xff]
          %549 = vst [vmem:[%s493 + $0xd8] sm:$0xff] %v548
          %v550 = vld [vmem:[%s492 + $0xe0] sm:$0xff]
          %551 = vst [vmem:[%s493 + $0xe0] sm:$0xff] %v550
          %v552 = vld [vmem:[%s492 + $0xe8] sm:$0xff]
          %553 = vst [vmem:[%s493 + $0xe8] sm:$0xff] %v552
          %v554 = vld [vmem:[%s492 + $0xf0] sm:$0xff]
          %555 = vst [vmem:[%s493 + $0xf0] sm:$0xff] %v554
          %v556 = vld [vmem:[%s492 + $0xf8] sm:$0xff]
          %557 = vst [vmem:[%s493 + $0xf8] sm:$0xff] %v556
          %v558 = vld [vmem:[%s492 + $0x100] sm:$0xff]
          %559 = vst [vmem:[%s493 + $0x100] sm:$0xff] %v558
          %v560 = vld [vmem:[%s492 + $0x108] sm:$0xff]
          %561 = vst [vmem:[%s493 + $0x108] sm:$0xff] %v560
          %v562 = vld [vmem:[%s492 + $0x110] sm:$0xff]
          %563 = vst [vmem:[%s493 + $0x110] sm:$0xff] %v562
          %v564 = vld [vmem:[%s492 + $0x118] sm:$0xff]
          %565 = vst [vmem:[%s493 + $0x118] sm:$0xff] %v564
          %v566 = vld [vmem:[%s492 + $0x120] sm:$0xff]
          %567 = vst [vmem:[%s493 + $0x120] sm:$0xff] %v566
          %v568 = vld [vmem:[%s492 + $0x128] sm:$0xff]
          %569 = vst [vmem:[%s493 + $0x128] sm:$0xff] %v568
          %v570 = vld [vmem:[%s492 + $0x130] sm:$0xff]
          %571 = vst [vmem:[%s493 + $0x130] sm:$0xff] %v570
          %v572 = vld [vmem:[%s492 + $0x138] sm:$0xff]
          %573 = vst [vmem:[%s493 + $0x138] sm:$0xff] %v572
          %v574 = vld [vmem:[%s492 + $0x140] sm:$0xff]
          %575 = vst [vmem:[%s493 + $0x140] sm:$0xff] %v574
          %v576 = vld [vmem:[%s492 + $0x148] sm:$0xff]
          %577 = vst [vmem:[%s493 + $0x148] sm:$0xff] %v576
          %v578 = vld [vmem:[%s492 + $0x150] sm:$0xff]
          %579 = vst [vmem:[%s493 + $0x150] sm:$0xff] %v578
          %v580 = vld [vmem:[%s492 + $0x158] sm:$0xff]
          %581 = vst [vmem:[%s493 + $0x158] sm:$0xff] %v580
          %v582 = vld [vmem:[%s492 + $0x160] sm:$0xff]
          %583 = vst [vmem:[%s493 + $0x160] sm:$0xff] %v582
          %v584 = vld [vmem:[%s492 + $0x168] sm:$0xff]
          %585 = vst [vmem:[%s493 + $0x168] sm:$0xff] %v584
          %v586 = vld [vmem:[%s492 + $0x170] sm:$0xff]
          %587 = vst [vmem:[%s493 + $0x170] sm:$0xff] %v586
          %v588 = vld [vmem:[%s492 + $0x178] sm:$0xff]
          %589 = vst [vmem:[%s493 + $0x178] sm:$0xff] %v588
          %v590 = vld [vmem:[%s492 + $0x180] sm:$0xff]
          %591 = vst [vmem:[%s493 + $0x180] sm:$0xff] %v590
          %v592 = vld [vmem:[%s492 + $0x188] sm:$0xff]
          %593 = vst [vmem:[%s493 + $0x188] sm:$0xff] %v592
          %v594 = vld [vmem:[%s492 + $0x190] sm:$0xff]
          %595 = vst [vmem:[%s493 + $0x190] sm:$0xff] %v594
          %v596 = vld [vmem:[%s492 + $0x198] sm:$0xff]
          %597 = vst [vmem:[%s493 + $0x198] sm:$0xff] %v596
          %v598 = vld [vmem:[%s492 + $0x1a0] sm:$0xff]
          %599 = vst [vmem:[%s493 + $0x1a0] sm:$0xff] %v598
          %v600 = vld [vmem:[%s492 + $0x1a8] sm:$0xff]
          %601 = vst [vmem:[%s493 + $0x1a8] sm:$0xff] %v600
          %v602 = vld [vmem:[%s492 + $0x1b0] sm:$0xff]
          %603 = vst [vmem:[%s493 + $0x1b0] sm:$0xff] %v602
          %v604 = vld [vmem:[%s492 + $0x1b8] sm:$0xff]
          %605 = vst [vmem:[%s493 + $0x1b8] sm:$0xff] %v604
          %v606 = vld [vmem:[%s492 + $0x1c0] sm:$0xff]
          %607 = vst [vmem:[%s493 + $0x1c0] sm:$0xff] %v606
          %v608 = vld [vmem:[%s492 + $0x1c8] sm:$0xff]
          %609 = vst [vmem:[%s493 + $0x1c8] sm:$0xff] %v608
          %v610 = vld [vmem:[%s492 + $0x1d0] sm:$0xff]
          %611 = vst [vmem:[%s493 + $0x1d0] sm:$0xff] %v610
          %v612 = vld [vmem:[%s492 + $0x1d8] sm:$0xff]
          %613 = vst [vmem:[%s493 + $0x1d8] sm:$0xff] %v612
          %v614 = vld [vmem:[%s492 + $0x1e0] sm:$0xff]
          %615 = vst [vmem:[%s493 + $0x1e0] sm:$0xff] %v614
          %v616 = vld [vmem:[%s492 + $0x1e8] sm:$0xff]
          %617 = vst [vmem:[%s493 + $0x1e8] sm:$0xff] %v616
          %v618 = vld [vmem:[%s492 + $0x1f0] sm:$0xff]
          %619 = vst [vmem:[%s493 + $0x1f0] sm:$0xff] %v618
          %v620 = vld [vmem:[%s492 + $0x1f8] sm:$0xff]
          %621 = vst [vmem:[%s493 + $0x1f8] sm:$0xff] %v620
          %v622 = vld [vmem:[%s492 + $0x200] sm:$0xff]
          %623 = vst [vmem:[%s493 + $0x200] sm:$0xff] %v622
          %v624 = vld [vmem:[%s492 + $0x208] sm:$0xff]
          %625 = vst [vmem:[%s493 + $0x208] sm:$0xff] %v624
          %v626 = vld [vmem:[%s492 + $0x210] sm:$0xff]
          %627 = vst [vmem:[%s493 + $0x210] sm:$0xff] %v626
          %v628 = vld [vmem:[%s492 + $0x218] sm:$0xff]
          %629 = vst [vmem:[%s493 + $0x218] sm:$0xff] %v628
          %v630 = vld [vmem:[%s492 + $0x220] sm:$0xff]
          %631 = vst [vmem:[%s493 + $0x220] sm:$0xff] %v630
          %v632 = vld [vmem:[%s492 + $0x228] sm:$0xff]
          %633 = vst [vmem:[%s493 + $0x228] sm:$0xff] %v632
          %v634 = vld [vmem:[%s492 + $0x230] sm:$0xff]
          %635 = vst [vmem:[%s493 + $0x230] sm:$0xff] %v634
          %v636 = vld [vmem:[%s492 + $0x238] sm:$0xff]
          %637 = vst [vmem:[%s493 + $0x238] sm:$0xff] %v636
          %v638 = vld [vmem:[%s492 + $0x240] sm:$0xff]
          %639 = vst [vmem:[%s493 + $0x240] sm:$0xff] %v638
          %v640 = vld [vmem:[%s492 + $0x248] sm:$0xff]
          %641 = vst [vmem:[%s493 + $0x248] sm:$0xff] %v640
          %v642 = vld [vmem:[%s492 + $0x250] sm:$0xff]
          %643 = vst [vmem:[%s493 + $0x250] sm:$0xff] %v642
          %v644 = vld [vmem:[%s492 + $0x258] sm:$0xff]
          %645 = vst [vmem:[%s493 + $0x258] sm:$0xff] %v644
          %v646 = vld [vmem:[%s492 + $0x260] sm:$0xff]
          %647 = vst [vmem:[%s493 + $0x260] sm:$0xff] %v646
          %v648 = vld [vmem:[%s492 + $0x268] sm:$0xff]
          %649 = vst [vmem:[%s493 + $0x268] sm:$0xff] %v648
          %v650 = vld [vmem:[%s492 + $0x270] sm:$0xff]
          %651 = vst [vmem:[%s493 + $0x270] sm:$0xff] %v650
          %v652 = vld [vmem:[%s492 + $0x278] sm:$0xff]
          %653 = vst [vmem:[%s493 + $0x278] sm:$0xff] %v652
          %v654 = vld [vmem:[%s492 + $0x280] sm:$0xff]
          %655 = vst [vmem:[%s493 + $0x280] sm:$0xff] %v654
          %v656 = vld [vmem:[%s492 + $0x288] sm:$0xff]
          %657 = vst [vmem:[%s493 + $0x288] sm:$0xff] %v656
          %v658 = vld [vmem:[%s492 + $0x290] sm:$0xff]
          %659 = vst [vmem:[%s493 + $0x290] sm:$0xff] %v658
          %v660 = vld [vmem:[%s492 + $0x298] sm:$0xff]
          %661 = vst [vmem:[%s493 + $0x298] sm:$0xff] %v660
          %v662 = vld [vmem:[%s492 + $0x2a0] sm:$0xff]
          %663 = vst [vmem:[%s493 + $0x2a0] sm:$0xff] %v662
          %v664 = vld [vmem:[%s492 + $0x2a8] sm:$0xff]
          %665 = vst [vmem:[%s493 + $0x2a8] sm:$0xff] %v664
          %v666 = vld [vmem:[%s492 + $0x2b0] sm:$0xff]
          %667 = vst [vmem:[%s493 + $0x2b0] sm:$0xff] %v666
          %v668 = vld [vmem:[%s492 + $0x2b8] sm:$0xff]
          %669 = vst [vmem:[%s493 + $0x2b8] sm:$0xff] %v668
          %v670 = vld [vmem:[%s492 + $0x2c0] sm:$0xff]
          %671 = vst [vmem:[%s493 + $0x2c0] sm:$0xff] %v670
          %v672 = vld [vmem:[%s492 + $0x2c8] sm:$0xff]
          %673 = vst [vmem:[%s493 + $0x2c8] sm:$0xff] %v672
          %v674 = vld [vmem:[%s492 + $0x2d0] sm:$0xff]
          %675 = vst [vmem:[%s493 + $0x2d0] sm:$0xff] %v674
          %v676 = vld [vmem:[%s492 + $0x2d8] sm:$0xff]
          %677 = vst [vmem:[%s493 + $0x2d8] sm:$0xff] %v676
          %v678 = vld [vmem:[%s492 + $0x2e0] sm:$0xff]
          %679 = vst [vmem:[%s493 + $0x2e0] sm:$0xff] %v678
          %v680 = vld [vmem:[%s492 + $0x2e8] sm:$0xff]
          %681 = vst [vmem:[%s493 + $0x2e8] sm:$0xff] %v680
          %v682 = vld [vmem:[%s492 + $0x2f0] sm:$0xff]
          %683 = vst [vmem:[%s493 + $0x2f0] sm:$0xff] %v682
          %v684 = vld [vmem:[%s492 + $0x2f8] sm:$0xff]
          %685 = vst [vmem:[%s493 + $0x2f8] sm:$0xff] %v684
          %v686 = vld [vmem:[%s492 + $0x300] sm:$0xff]
          %687 = vst [vmem:[%s493 + $0x300] sm:$0xff] %v686
          %v688 = vld [vmem:[%s492 + $0x308] sm:$0xff]
          %689 = vst [vmem:[%s493 + $0x308] sm:$0xff] %v688
          %v690 = vld [vmem:[%s492 + $0x310] sm:$0xff]
          %691 = vst [vmem:[%s493 + $0x310] sm:$0xff] %v690
          %v692 = vld [vmem:[%s492 + $0x318] sm:$0xff]
          %693 = vst [vmem:[%s493 + $0x318] sm:$0xff] %v692
          %v694 = vld [vmem:[%s492 + $0x320] sm:$0xff]
          %695 = vst [vmem:[%s493 + $0x320] sm:$0xff] %v694
          %v696 = vld [vmem:[%s492 + $0x328] sm:$0xff]
          %697 = vst [vmem:[%s493 + $0x328] sm:$0xff] %v696
          %v698 = vld [vmem:[%s492 + $0x330] sm:$0xff]
          %699 = vst [vmem:[%s493 + $0x330] sm:$0xff] %v698
          %v700 = vld [vmem:[%s492 + $0x338] sm:$0xff]
          %701 = vst [vmem:[%s493 + $0x338] sm:$0xff] %v700
          %v702 = vld [vmem:[%s492 + $0x340] sm:$0xff]
          %703 = vst [vmem:[%s493 + $0x340] sm:$0xff] %v702
          %v704 = vld [vmem:[%s492 + $0x348] sm:$0xff]
          %705 = vst [vmem:[%s493 + $0x348] sm:$0xff] %v704
          %v706 = vld [vmem:[%s492 + $0x350] sm:$0xff]
          %707 = vst [vmem:[%s493 + $0x350] sm:$0xff] %v706
          %v708 = vld [vmem:[%s492 + $0x358] sm:$0xff]
          %709 = vst [vmem:[%s493 + $0x358] sm:$0xff] %v708
          %v710 = vld [vmem:[%s492 + $0x360] sm:$0xff]
          %711 = vst [vmem:[%s493 + $0x360] sm:$0xff] %v710
          %v712 = vld [vmem:[%s492 + $0x368] sm:$0xff]
          %713 = vst [vmem:[%s493 + $0x368] sm:$0xff] %v712
          %v714 = vld [vmem:[%s492 + $0x370] sm:$0xff]
          %715 = vst [vmem:[%s493 + $0x370] sm:$0xff] %v714
          %v716 = vld [vmem:[%s492 + $0x378] sm:$0xff]
          %717 = vst [vmem:[%s493 + $0x378] sm:$0xff] %v716
          %v718 = vld [vmem:[%s492 + $0x380] sm:$0xff]
          %719 = vst [vmem:[%s493 + $0x380] sm:$0xff] %v718
          %v720 = vld [vmem:[%s492 + $0x388] sm:$0xff]
          %721 = vst [vmem:[%s493 + $0x388] sm:$0xff] %v720
          %v722 = vld [vmem:[%s492 + $0x390] sm:$0xff]
          %723 = vst [vmem:[%s493 + $0x390] sm:$0xff] %v722
          %v724 = vld [vmem:[%s492 + $0x398] sm:$0xff]
          %725 = vst [vmem:[%s493 + $0x398] sm:$0xff] %v724
          %v726 = vld [vmem:[%s492 + $0x3a0] sm:$0xff]
          %727 = vst [vmem:[%s493 + $0x3a0] sm:$0xff] %v726
          %v728 = vld [vmem:[%s492 + $0x3a8] sm:$0xff]
          %729 = vst [vmem:[%s493 + $0x3a8] sm:$0xff] %v728
          %v730 = vld [vmem:[%s492 + $0x3b0] sm:$0xff]
          %731 = vst [vmem:[%s493 + $0x3b0] sm:$0xff] %v730
          %v732 = vld [vmem:[%s492 + $0x3b8] sm:$0xff]
          %733 = vst [vmem:[%s493 + $0x3b8] sm:$0xff] %v732
          %v734 = vld [vmem:[%s492 + $0x3c0] sm:$0xff]
          %735 = vst [vmem:[%s493 + $0x3c0] sm:$0xff] %v734
          %v736 = vld [vmem:[%s492 + $0x3c8] sm:$0xff]
          %737 = vst [vmem:[%s493 + $0x3c8] sm:$0xff] %v736
          %v738 = vld [vmem:[%s492 + $0x3d0] sm:$0xff]
          %739 = vst [vmem:[%s493 + $0x3d0] sm:$0xff] %v738
          %v740 = vld [vmem:[%s492 + $0x3d8] sm:$0xff]
          %741 = vst [vmem:[%s493 + $0x3d8] sm:$0xff] %v740
          %v742 = vld [vmem:[%s492 + $0x3e0] sm:$0xff]
          %743 = vst [vmem:[%s493 + $0x3e0] sm:$0xff] %v742
          %v744 = vld [vmem:[%s492 + $0x3e8] sm:$0xff]
          %745 = vst [vmem:[%s493 + $0x3e8] sm:$0xff] %v744
          %v746 = vld [vmem:[%s492 + $0x3f0] sm:$0xff]
          %747 = vst [vmem:[%s493 + $0x3f0] sm:$0xff] %v746
          %v748 = vld [vmem:[%s492 + $0x3f8] sm:$0xff]
          %749 = vst [vmem:[%s493 + $0x3f8] sm:$0xff] %v748
          %v750 = vld [vmem:[%s492 + $0x400] sm:$0xff]
          %751 = vst [vmem:[%s493 + $0x400] sm:$0xff] %v750
          %v752 = vld [vmem:[%s492 + $0x408] sm:$0xff]
          %753 = vst [vmem:[%s493 + $0x408] sm:$0xff] %v752
          %v754 = vld [vmem:[%s492 + $0x410] sm:$0xff]
          %755 = vst [vmem:[%s493 + $0x410] sm:$0xff] %v754
          %v756 = vld [vmem:[%s492 + $0x418] sm:$0xff]
          %757 = vst [vmem:[%s493 + $0x418] sm:$0xff] %v756
          %v758 = vld [vmem:[%s492 + $0x420] sm:$0xff]
          %759 = vst [vmem:[%s493 + $0x420] sm:$0xff] %v758
          %v760 = vld [vmem:[%s492 + $0x428] sm:$0xff]
          %761 = vst [vmem:[%s493 + $0x428] sm:$0xff] %v760
          %v762 = vld [vmem:[%s492 + $0x430] sm:$0xff]
          %763 = vst [vmem:[%s493 + $0x430] sm:$0xff] %v762
          %v764 = vld [vmem:[%s492 + $0x438] sm:$0xff]
          %765 = vst [vmem:[%s493 + $0x438] sm:$0xff] %v764
          %v766 = vld [vmem:[%s492 + $0x440] sm:$0xff]
          %767 = vst [vmem:[%s493 + $0x440] sm:$0xff] %v766
          %v768 = vld [vmem:[%s492 + $0x448] sm:$0xff]
          %769 = vst [vmem:[%s493 + $0x448] sm:$0xff] %v768
          %v770 = vld [vmem:[%s492 + $0x450] sm:$0xff]
          %771 = vst [vmem:[%s493 + $0x450] sm:$0xff] %v770
          %v772 = vld [vmem:[%s492 + $0x458] sm:$0xff]
          %773 = vst [vmem:[%s493 + $0x458] sm:$0xff] %v772
          %v774 = vld [vmem:[%s492 + $0x460] sm:$0xff]
          %775 = vst [vmem:[%s493 + $0x460] sm:$0xff] %v774
          %v776 = vld [vmem:[%s492 + $0x468] sm:$0xff]
          %777 = vst [vmem:[%s493 + $0x468] sm:$0xff] %v776
          %v778 = vld [vmem:[%s492 + $0x470] sm:$0xff]
          %779 = vst [vmem:[%s493 + $0x470] sm:$0xff] %v778
          %v780 = vld [vmem:[%s492 + $0x478] sm:$0xff]
          %781 = vst [vmem:[%s493 + $0x478] sm:$0xff] %v780
          %v782 = vld [vmem:[%s492 + $0x480] sm:$0xff]
          %783 = vst [vmem:[%s493 + $0x480] sm:$0xff] %v782
          %v784 = vld [vmem:[%s492 + $0x488] sm:$0xff]
          %785 = vst [vmem:[%s493 + $0x488] sm:$0xff] %v784
          %v786 = vld [vmem:[%s492 + $0x490] sm:$0xff]
          %787 = vst [vmem:[%s493 + $0x490] sm:$0xff] %v786
          %v788 = vld [vmem:[%s492 + $0x498] sm:$0xff]
          %789 = vst [vmem:[%s493 + $0x498] sm:$0xff] %v788
          %v790 = vld [vmem:[%s492 + $0x4a0] sm:$0xff]
          %791 = vst [vmem:[%s493 + $0x4a0] sm:$0xff] %v790
          %v792 = vld [vmem:[%s492 + $0x4a8] sm:$0xff]
          %793 = vst [vmem:[%s493 + $0x4a8] sm:$0xff] %v792
          %v794 = vld [vmem:[%s492 + $0x4b0] sm:$0xff]
          %795 = vst [vmem:[%s493 + $0x4b0] sm:$0xff] %v794
          %v796 = vld [vmem:[%s492 + $0x4b8] sm:$0xff]
          %797 = vst [vmem:[%s493 + $0x4b8] sm:$0xff] %v796
          %v798 = vld [vmem:[%s492 + $0x4c0] sm:$0xff]
          %799 = vst [vmem:[%s493 + $0x4c0] sm:$0xff] %v798
          %v800 = vld [vmem:[%s492 + $0x4c8] sm:$0xff]
          %801 = vst [vmem:[%s493 + $0x4c8] sm:$0xff] %v800
          %v802 = vld [vmem:[%s492 + $0x4d0] sm:$0xff]
          %803 = vst [vmem:[%s493 + $0x4d0] sm:$0xff] %v802
          %v804 = vld [vmem:[%s492 + $0x4d8] sm:$0xff]
          %805 = vst [vmem:[%s493 + $0x4d8] sm:$0xff] %v804
          %v806 = vld [vmem:[%s492 + $0x4e0] sm:$0xff]
          %807 = vst [vmem:[%s493 + $0x4e0] sm:$0xff] %v806
          %v808 = vld [vmem:[%s492 + $0x4e8] sm:$0xff]
          %809 = vst [vmem:[%s493 + $0x4e8] sm:$0xff] %v808
          %v810 = vld [vmem:[%s492 + $0x4f0] sm:$0xff]
          %811 = vst [vmem:[%s493 + $0x4f0] sm:$0xff] %v810
          %v812 = vld [vmem:[%s492 + $0x4f8] sm:$0xff]
          %813 = vst [vmem:[%s493 + $0x4f8] sm:$0xff] %v812
          %v814 = vld [vmem:[%s492 + $0x500] sm:$0xff]
          %815 = vst [vmem:[%s493 + $0x500] sm:$0xff] %v814
          %v816 = vld [vmem:[%s492 + $0x508] sm:$0xff]
          %817 = vst [vmem:[%s493 + $0x508] sm:$0xff] %v816
          %v818 = vld [vmem:[%s492 + $0x510] sm:$0xff]
          %819 = vst [vmem:[%s493 + $0x510] sm:$0xff] %v818
          %v820 = vld [vmem:[%s492 + $0x518] sm:$0xff]
          %821 = vst [vmem:[%s493 + $0x518] sm:$0xff] %v820
          %v822 = vld [vmem:[%s492 + $0x520] sm:$0xff]
          %823 = vst [vmem:[%s493 + $0x520] sm:$0xff] %v822
          %v824 = vld [vmem:[%s492 + $0x528] sm:$0xff]
          %825 = vst [vmem:[%s493 + $0x528] sm:$0xff] %v824
          %v826 = vld [vmem:[%s492 + $0x530] sm:$0xff]
          %827 = vst [vmem:[%s493 + $0x530] sm:$0xff] %v826
          %v828 = vld [vmem:[%s492 + $0x538] sm:$0xff]
          %829 = vst [vmem:[%s493 + $0x538] sm:$0xff] %v828
          %v830 = vld [vmem:[%s492 + $0x540] sm:$0xff]
          %831 = vst [vmem:[%s493 + $0x540] sm:$0xff] %v830
          %v832 = vld [vmem:[%s492 + $0x548] sm:$0xff]
          %833 = vst [vmem:[%s493 + $0x548] sm:$0xff] %v832
          %v834 = vld [vmem:[%s492 + $0x550] sm:$0xff]
          %835 = vst [vmem:[%s493 + $0x550] sm:$0xff] %v834
          %v836 = vld [vmem:[%s492 + $0x558] sm:$0xff]
          %837 = vst [vmem:[%s493 + $0x558] sm:$0xff] %v836
          %v838 = vld [vmem:[%s492 + $0x560] sm:$0xff]
          %839 = vst [vmem:[%s493 + $0x560] sm:$0xff] %v838
          %v840 = vld [vmem:[%s492 + $0x568] sm:$0xff]
          %841 = vst [vmem:[%s493 + $0x568] sm:$0xff] %v840
          %v842 = vld [vmem:[%s492 + $0x570] sm:$0xff]
          %843 = vst [vmem:[%s493 + $0x570] sm:$0xff] %v842
          %v844 = vld [vmem:[%s492 + $0x578] sm:$0xff]
          %845 = vst [vmem:[%s493 + $0x578] sm:$0xff] %v844
          %v846 = vld [vmem:[%s492 + $0x580] sm:$0xff]
          %847 = vst [vmem:[%s493 + $0x580] sm:$0xff] %v846
          %v848 = vld [vmem:[%s492 + $0x588] sm:$0xff]
          %849 = vst [vmem:[%s493 + $0x588] sm:$0xff] %v848
          %v850 = vld [vmem:[%s492 + $0x590] sm:$0xff]
          %851 = vst [vmem:[%s493 + $0x590] sm:$0xff] %v850
          %v852 = vld [vmem:[%s492 + $0x598] sm:$0xff]
          %853 = vst [vmem:[%s493 + $0x598] sm:$0xff] %v852
          %v854 = vld [vmem:[%s492 + $0x5a0] sm:$0xff]
          %855 = vst [vmem:[%s493 + $0x5a0] sm:$0xff] %v854
          %v856 = vld [vmem:[%s492 + $0x5a8] sm:$0xff]
          %857 = vst [vmem:[%s493 + $0x5a8] sm:$0xff] %v856
          %v858 = vld [vmem:[%s492 + $0x5b0] sm:$0xff]
          %859 = vst [vmem:[%s493 + $0x5b0] sm:$0xff] %v858
          %v860 = vld [vmem:[%s492 + $0x5b8] sm:$0xff]
          %861 = vst [vmem:[%s493 + $0x5b8] sm:$0xff] %v860
          %v862 = vld [vmem:[%s492 + $0x5c0] sm:$0xff]
          %863 = vst [vmem:[%s493 + $0x5c0] sm:$0xff] %v862
          %v864 = vld [vmem:[%s492 + $0x5c8] sm:$0xff]
          %865 = vst [vmem:[%s493 + $0x5c8] sm:$0xff] %v864
          %v866 = vld [vmem:[%s492 + $0x5d0] sm:$0xff]
          %867 = vst [vmem:[%s493 + $0x5d0] sm:$0xff] %v866
          %v868 = vld [vmem:[%s492 + $0x5d8] sm:$0xff]
          %869 = vst [vmem:[%s493 + $0x5d8] sm:$0xff] %v868
          %v870 = vld [vmem:[%s492 + $0x5e0] sm:$0xff]
          %871 = vst [vmem:[%s493 + $0x5e0] sm:$0xff] %v870
          %v872 = vld [vmem:[%s492 + $0x5e8] sm:$0xff]
          %873 = vst [vmem:[%s493 + $0x5e8] sm:$0xff] %v872
          %v874 = vld [vmem:[%s492 + $0x5f0] sm:$0xff]
          %875 = vst [vmem:[%s493 + $0x5f0] sm:$0xff] %v874
          %v876 = vld [vmem:[%s492 + $0x5f8] sm:$0xff]
          %877 = vst [vmem:[%s493 + $0x5f8] sm:$0xff] %v876
          %v878 = vld [vmem:[%s492 + $0x600] sm:$0xff]
          %879 = vst [vmem:[%s493 + $0x600] sm:$0xff] %v878
          %v880 = vld [vmem:[%s492 + $0x608] sm:$0xff]
          %881 = vst [vmem:[%s493 + $0x608] sm:$0xff] %v880
          %v882 = vld [vmem:[%s492 + $0x610] sm:$0xff]
          %883 = vst [vmem:[%s493 + $0x610] sm:$0xff] %v882
          %v884 = vld [vmem:[%s492 + $0x618] sm:$0xff]
          %885 = vst [vmem:[%s493 + $0x618] sm:$0xff] %v884
          %v886 = vld [vmem:[%s492 + $0x620] sm:$0xff]
          %887 = vst [vmem:[%s493 + $0x620] sm:$0xff] %v886
          %v888 = vld [vmem:[%s492 + $0x628] sm:$0xff]
          %889 = vst [vmem:[%s493 + $0x628] sm:$0xff] %v888
          %v890 = vld [vmem:[%s492 + $0x630] sm:$0xff]
          %891 = vst [vmem:[%s493 + $0x630] sm:$0xff] %v890
          %v892 = vld [vmem:[%s492 + $0x638] sm:$0xff]
          %893 = vst [vmem:[%s493 + $0x638] sm:$0xff] %v892
          %v894 = vld [vmem:[%s492 + $0x640] sm:$0xff]
          %895 = vst [vmem:[%s493 + $0x640] sm:$0xff] %v894
          %v896 = vld [vmem:[%s492 + $0x648] sm:$0xff]
          %897 = vst [vmem:[%s493 + $0x648] sm:$0xff] %v896
          %v898 = vld [vmem:[%s492 + $0x650] sm:$0xff]
          %899 = vst [vmem:[%s493 + $0x650] sm:$0xff] %v898
          %v900 = vld [vmem:[%s492 + $0x658] sm:$0xff]
          %901 = vst [vmem:[%s493 + $0x658] sm:$0xff] %v900
          %v902 = vld [vmem:[%s492 + $0x660] sm:$0xff]
          %903 = vst [vmem:[%s493 + $0x660] sm:$0xff] %v902
          %v904 = vld [vmem:[%s492 + $0x668] sm:$0xff]
          %905 = vst [vmem:[%s493 + $0x668] sm:$0xff] %v904
          %v906 = vld [vmem:[%s492 + $0x670] sm:$0xff]
          %907 = vst [vmem:[%s493 + $0x670] sm:$0xff] %v906
          %v908 = vld [vmem:[%s492 + $0x678] sm:$0xff]
          %909 = vst [vmem:[%s493 + $0x678] sm:$0xff] %v908
          %v910 = vld [vmem:[%s492 + $0x680] sm:$0xff]
          %911 = vst [vmem:[%s493 + $0x680] sm:$0xff] %v910
          %v912 = vld [vmem:[%s492 + $0x688] sm:$0xff]
          %913 = vst [vmem:[%s493 + $0x688] sm:$0xff] %v912
          %v914 = vld [vmem:[%s492 + $0x690] sm:$0xff]
          %915 = vst [vmem:[%s493 + $0x690] sm:$0xff] %v914
          %v916 = vld [vmem:[%s492 + $0x698] sm:$0xff]
          %917 = vst [vmem:[%s493 + $0x698] sm:$0xff] %v916
          %v918 = vld [vmem:[%s492 + $0x6a0] sm:$0xff]
          %919 = vst [vmem:[%s493 + $0x6a0] sm:$0xff] %v918
          %v920 = vld [vmem:[%s492 + $0x6a8] sm:$0xff]
          %921 = vst [vmem:[%s493 + $0x6a8] sm:$0xff] %v920
          %v922 = vld [vmem:[%s492 + $0x6b0] sm:$0xff]
          %923 = vst [vmem:[%s493 + $0x6b0] sm:$0xff] %v922
          %v924 = vld [vmem:[%s492 + $0x6b8] sm:$0xff]
          %925 = vst [vmem:[%s493 + $0x6b8] sm:$0xff] %v924
          %v926 = vld [vmem:[%s492 + $0x6c0] sm:$0xff]
          %927 = vst [vmem:[%s493 + $0x6c0] sm:$0xff] %v926
          %v928 = vld [vmem:[%s492 + $0x6c8] sm:$0xff]
          %929 = vst [vmem:[%s493 + $0x6c8] sm:$0xff] %v928
          %v930 = vld [vmem:[%s492 + $0x6d0] sm:$0xff]
          %931 = vst [vmem:[%s493 + $0x6d0] sm:$0xff] %v930
          %v932 = vld [vmem:[%s492 + $0x6d8] sm:$0xff]
          %933 = vst [vmem:[%s493 + $0x6d8] sm:$0xff] %v932
          %v934 = vld [vmem:[%s492 + $0x6e0] sm:$0xff]
          %935 = vst [vmem:[%s493 + $0x6e0] sm:$0xff] %v934
          %v936 = vld [vmem:[%s492 + $0x6e8] sm:$0xff]
          %937 = vst [vmem:[%s493 + $0x6e8] sm:$0xff] %v936
          %v938 = vld [vmem:[%s492 + $0x6f0] sm:$0xff]
          %939 = vst [vmem:[%s493 + $0x6f0] sm:$0xff] %v938
          %v940 = vld [vmem:[%s492 + $0x6f8] sm:$0xff]
          %941 = vst [vmem:[%s493 + $0x6f8] sm:$0xff] %v940
          %v942 = vld [vmem:[%s492 + $0x700] sm:$0xff]
          %943 = vst [vmem:[%s493 + $0x700] sm:$0xff] %v942
          %v944 = vld [vmem:[%s492 + $0x708] sm:$0xff]
          %945 = vst [vmem:[%s493 + $0x708] sm:$0xff] %v944
          %v946 = vld [vmem:[%s492 + $0x710] sm:$0xff]
          %947 = vst [vmem:[%s493 + $0x710] sm:$0xff] %v946
          %v948 = vld [vmem:[%s492 + $0x718] sm:$0xff]
          %949 = vst [vmem:[%s493 + $0x718] sm:$0xff] %v948
          %v950 = vld [vmem:[%s492 + $0x720] sm:$0xff]
          %951 = vst [vmem:[%s493 + $0x720] sm:$0xff] %v950
          %v952 = vld [vmem:[%s492 + $0x728] sm:$0xff]
          %953 = vst [vmem:[%s493 + $0x728] sm:$0xff] %v952
          %v954 = vld [vmem:[%s492 + $0x730] sm:$0xff]
          %955 = vst [vmem:[%s493 + $0x730] sm:$0xff] %v954
          %v956 = vld [vmem:[%s492 + $0x738] sm:$0xff]
          %957 = vst [vmem:[%s493 + $0x738] sm:$0xff] %v956
          %v958 = vld [vmem:[%s492 + $0x740] sm:$0xff]
          %959 = vst [vmem:[%s493 + $0x740] sm:$0xff] %v958
          %v960 = vld [vmem:[%s492 + $0x748] sm:$0xff]
          %961 = vst [vmem:[%s493 + $0x748] sm:$0xff] %v960
          %v962 = vld [vmem:[%s492 + $0x750] sm:$0xff]
          %963 = vst [vmem:[%s493 + $0x750] sm:$0xff] %v962
          %v964 = vld [vmem:[%s492 + $0x758] sm:$0xff]
          %965 = vst [vmem:[%s493 + $0x758] sm:$0xff] %v964
          %v966 = vld [vmem:[%s492 + $0x760] sm:$0xff]
          %967 = vst [vmem:[%s493 + $0x760] sm:$0xff] %v966
          %v968 = vld [vmem:[%s492 + $0x768] sm:$0xff]
          %969 = vst [vmem:[%s493 + $0x768] sm:$0xff] %v968
          %v970 = vld [vmem:[%s492 + $0x770] sm:$0xff]
          %971 = vst [vmem:[%s493 + $0x770] sm:$0xff] %v970
          %v972 = vld [vmem:[%s492 + $0x778] sm:$0xff]
          %973 = vst [vmem:[%s493 + $0x778] sm:$0xff] %v972
          %v974 = vld [vmem:[%s492 + $0x780] sm:$0xff]
          %975 = vst [vmem:[%s493 + $0x780] sm:$0xff] %v974
          %v976 = vld [vmem:[%s492 + $0x788] sm:$0xff]
          %977 = vst [vmem:[%s493 + $0x788] sm:$0xff] %v976
          %v978 = vld [vmem:[%s492 + $0x790] sm:$0xff]
          %979 = vst [vmem:[%s493 + $0x790] sm:$0xff] %v978
          %v980 = vld [vmem:[%s492 + $0x798] sm:$0xff]
          %981 = vst [vmem:[%s493 + $0x798] sm:$0xff] %v980
          %v982 = vld [vmem:[%s492 + $0x7a0] sm:$0xff]
          %983 = vst [vmem:[%s493 + $0x7a0] sm:$0xff] %v982
          %v984 = vld [vmem:[%s492 + $0x7a8] sm:$0xff]
          %985 = vst [vmem:[%s493 + $0x7a8] sm:$0xff] %v984
          %v986 = vld [vmem:[%s492 + $0x7b0] sm:$0xff]
          %987 = vst [vmem:[%s493 + $0x7b0] sm:$0xff] %v986
          %v988 = vld [vmem:[%s492 + $0x7b8] sm:$0xff]
          %989 = vst [vmem:[%s493 + $0x7b8] sm:$0xff] %v988
          %v990 = vld [vmem:[%s492 + $0x7c0] sm:$0xff]
          %991 = vst [vmem:[%s493 + $0x7c0] sm:$0xff] %v990
          %v992 = vld [vmem:[%s492 + $0x7c8] sm:$0xff]
          %993 = vst [vmem:[%s493 + $0x7c8] sm:$0xff] %v992
          %v994 = vld [vmem:[%s492 + $0x7d0] sm:$0xff]
          %995 = vst [vmem:[%s493 + $0x7d0] sm:$0xff] %v994
          %v996 = vld [vmem:[%s492 + $0x7d8] sm:$0xff]
          %997 = vst [vmem:[%s493 + $0x7d8] sm:$0xff] %v996
          %v998 = vld [vmem:[%s492 + $0x7e0] sm:$0xff]
          %999 = vst [vmem:[%s493 + $0x7e0] sm:$0xff] %v998
          %v1000 = vld [vmem:[%s492 + $0x7e8] sm:$0xff]
          %1001 = vst [vmem:[%s493 + $0x7e8] sm:$0xff] %v1000
          %v1002 = vld [vmem:[%s492 + $0x7f0] sm:$0xff]
          %1003 = vst [vmem:[%s493 + $0x7f0] sm:$0xff] %v1002
          %v1004 = vld [vmem:[%s492 + $0x7f8] sm:$0xff]
          %1005 = vst [vmem:[%s493 + $0x7f8] sm:$0xff] %v1004
        $region149: #{vae_encoder.1} parent=143 // loop_footer
          %s491 = sadd.s32 1, %s487
        $region150: #{vae_encoder.1} parent=143 // loop_footer_branch
          %486 = sbr.rel target = $region146
        $region151: #{vae_encoder.1} parent=143 // loop_exit
          _
      $region144: #{vae_encoder.1} parent=128 // pred_fallthru
        _
      %p1006 = pneg %p482
      // Predicated region
      $region152: #{vae_encoder.1} parent=128 // pred_check
        _
      $region153: #{vae_encoder.1} parent=128 // pred_check_branch
        %1008 = sbr.rel (%p482) target = $region155
      $region154: #{vae_encoder.1} parent=128 // pred_region
        %s1009 = sand.u32 2048, 7
      $region155: #{vae_encoder.1} parent=128 // pred_fallthru
        _
    $region129: #{vae_encoder.1} parent=1 // pred_fallthru
      _
    // Predicated region
    $region130: #{vae_encoder.1} parent=1 // pred_check
      %p466 = pneg %p462
    $region131: #{vae_encoder.1} parent=1 // pred_check_branch
      %468 = sbr.rel (%p466) target = $region133
    $region132: #{vae_encoder.1} parent=1 // pred_region
      %s469 = sshll.u32 1, 2048
      %s470 = ssub.s32 %s469, 1
      loop: start=0, step=1, limit=1
      $region134: #{vae_encoder.1} parent=132 // loop_pre_header
        _
      $region135: #{vae_encoder.1} parent=132 // loop_header
        %s472 = sphi 0, %s476
        %p473 = scmp.ge.s32.totalorder %s472, 1
        %s477 = sphi %s11, %s11
        %s478 = sphi [#allocation4], [#allocation4]
      $region136: #{vae_encoder.1} parent=132 // loop_header_branch
        %475 = sbr.rel (%p473) target = $region140
      $region137: #{vae_encoder.1} parent=132 // loop_body
        %v479 = vld [vmem:[%s477] sm:%s470]
        %480 = vst [vmem:[%s478] sm:%s470] %v479
      $region138: #{vae_encoder.1} parent=132 // loop_footer
        %s476 = sadd.s32 1, %s472
      $region139: #{vae_encoder.1} parent=132 // loop_footer_branch
        %471 = sbr.rel target = $region135
      $region140: #{vae_encoder.1} parent=132 // loop_exit
        _
    $region133: #{vae_encoder.1} parent=1 // pred_fallthru
      _
    // Predicated region
    $region156: #{vae_encoder.1} parent=1 // pred_check
      _
    $region157: #{vae_encoder.1} parent=1 // pred_check_branch
      %1012 = sbr.rel (0) target = $region159
    $region158: #{vae_encoder.1} parent=1 // pred_region
      %1013 = vsyncadd %s460, 32768
    $region159: #{vae_encoder.1} parent=1 // pred_fallthru
      _
    %s1014 = scalar_lea.sflag [#allocation8], 3
    %p1016 = scmp.lt.u32.totalorder 256, 8
    %p1017 = pneg %p1016
    // Predicated region
    $region160: #{vae_encoder.1} parent=1 // pred_check
      _
    $region161: #{vae_encoder.1} parent=1 // pred_check_branch
      %1019 = sbr.rel (%p1016) target = $region163
    $region162: #{vae_encoder.1} parent=1 // pred_region
      %s1035 = sand.u32 256, 7
      %p1036 = scmp.eq.s32.totalorder %s1035, 0
      // Predicated region
      $region175: #{vae_encoder.1} parent=162 // pred_check
        %p1037 = pneg %p1036
      $region176: #{vae_encoder.1} parent=162 // pred_check_branch
        %1039 = sbr.rel (%p1037) target = $region178
      $region177: #{vae_encoder.1} parent=162 // pred_region
        loop: start=0, step=1, limit=1
        $region179: #{vae_encoder.1} parent=177 // loop_pre_header
          _
        $region180: #{vae_encoder.1} parent=177 // loop_header
          %s1041 = sphi 0, %s1045
          %p1042 = scmp.ge.s32.totalorder %s1041, 1
          %s1046 = sphi %s15, %s15
          %s1047 = sphi [#allocation5], [#allocation5]
        $region181: #{vae_encoder.1} parent=177 // loop_header_branch
          %1044 = sbr.rel (%p1042) target = $region185
        $region182: #{vae_encoder.1} parent=177 // loop_body
          %v1048 = vld [vmem:[%s1046] sm:$0xff]
          %1049 = vst [vmem:[%s1047] sm:$0xff] %v1048
          %v1050 = vld [vmem:[%s1046 + $0x8] sm:$0xff]
          %1051 = vst [vmem:[%s1047 + $0x8] sm:$0xff] %v1050
          %v1052 = vld [vmem:[%s1046 + $0x10] sm:$0xff]
          %1053 = vst [vmem:[%s1047 + $0x10] sm:$0xff] %v1052
          %v1054 = vld [vmem:[%s1046 + $0x18] sm:$0xff]
          %1055 = vst [vmem:[%s1047 + $0x18] sm:$0xff] %v1054
          %v1056 = vld [vmem:[%s1046 + $0x20] sm:$0xff]
          %1057 = vst [vmem:[%s1047 + $0x20] sm:$0xff] %v1056
          %v1058 = vld [vmem:[%s1046 + $0x28] sm:$0xff]
          %1059 = vst [vmem:[%s1047 + $0x28] sm:$0xff] %v1058
          %v1060 = vld [vmem:[%s1046 + $0x30] sm:$0xff]
          %1061 = vst [vmem:[%s1047 + $0x30] sm:$0xff] %v1060
          %v1062 = vld [vmem:[%s1046 + $0x38] sm:$0xff]
          %1063 = vst [vmem:[%s1047 + $0x38] sm:$0xff] %v1062
          %v1064 = vld [vmem:[%s1046 + $0x40] sm:$0xff]
          %1065 = vst [vmem:[%s1047 + $0x40] sm:$0xff] %v1064
          %v1066 = vld [vmem:[%s1046 + $0x48] sm:$0xff]
          %1067 = vst [vmem:[%s1047 + $0x48] sm:$0xff] %v1066
          %v1068 = vld [vmem:[%s1046 + $0x50] sm:$0xff]
          %1069 = vst [vmem:[%s1047 + $0x50] sm:$0xff] %v1068
          %v1070 = vld [vmem:[%s1046 + $0x58] sm:$0xff]
          %1071 = vst [vmem:[%s1047 + $0x58] sm:$0xff] %v1070
          %v1072 = vld [vmem:[%s1046 + $0x60] sm:$0xff]
          %1073 = vst [vmem:[%s1047 + $0x60] sm:$0xff] %v1072
          %v1074 = vld [vmem:[%s1046 + $0x68] sm:$0xff]
          %1075 = vst [vmem:[%s1047 + $0x68] sm:$0xff] %v1074
          %v1076 = vld [vmem:[%s1046 + $0x70] sm:$0xff]
          %1077 = vst [vmem:[%s1047 + $0x70] sm:$0xff] %v1076
          %v1078 = vld [vmem:[%s1046 + $0x78] sm:$0xff]
          %1079 = vst [vmem:[%s1047 + $0x78] sm:$0xff] %v1078
          %v1080 = vld [vmem:[%s1046 + $0x80] sm:$0xff]
          %1081 = vst [vmem:[%s1047 + $0x80] sm:$0xff] %v1080
          %v1082 = vld [vmem:[%s1046 + $0x88] sm:$0xff]
          %1083 = vst [vmem:[%s1047 + $0x88] sm:$0xff] %v1082
          %v1084 = vld [vmem:[%s1046 + $0x90] sm:$0xff]
          %1085 = vst [vmem:[%s1047 + $0x90] sm:$0xff] %v1084
          %v1086 = vld [vmem:[%s1046 + $0x98] sm:$0xff]
          %1087 = vst [vmem:[%s1047 + $0x98] sm:$0xff] %v1086
          %v1088 = vld [vmem:[%s1046 + $0xa0] sm:$0xff]
          %1089 = vst [vmem:[%s1047 + $0xa0] sm:$0xff] %v1088
          %v1090 = vld [vmem:[%s1046 + $0xa8] sm:$0xff]
          %1091 = vst [vmem:[%s1047 + $0xa8] sm:$0xff] %v1090
          %v1092 = vld [vmem:[%s1046 + $0xb0] sm:$0xff]
          %1093 = vst [vmem:[%s1047 + $0xb0] sm:$0xff] %v1092
          %v1094 = vld [vmem:[%s1046 + $0xb8] sm:$0xff]
          %1095 = vst [vmem:[%s1047 + $0xb8] sm:$0xff] %v1094
          %v1096 = vld [vmem:[%s1046 + $0xc0] sm:$0xff]
          %1097 = vst [vmem:[%s1047 + $0xc0] sm:$0xff] %v1096
          %v1098 = vld [vmem:[%s1046 + $0xc8] sm:$0xff]
          %1099 = vst [vmem:[%s1047 + $0xc8] sm:$0xff] %v1098
          %v1100 = vld [vmem:[%s1046 + $0xd0] sm:$0xff]
          %1101 = vst [vmem:[%s1047 + $0xd0] sm:$0xff] %v1100
          %v1102 = vld [vmem:[%s1046 + $0xd8] sm:$0xff]
          %1103 = vst [vmem:[%s1047 + $0xd8] sm:$0xff] %v1102
          %v1104 = vld [vmem:[%s1046 + $0xe0] sm:$0xff]
          %1105 = vst [vmem:[%s1047 + $0xe0] sm:$0xff] %v1104
          %v1106 = vld [vmem:[%s1046 + $0xe8] sm:$0xff]
          %1107 = vst [vmem:[%s1047 + $0xe8] sm:$0xff] %v1106
          %v1108 = vld [vmem:[%s1046 + $0xf0] sm:$0xff]
          %1109 = vst [vmem:[%s1047 + $0xf0] sm:$0xff] %v1108
          %v1110 = vld [vmem:[%s1046 + $0xf8] sm:$0xff]
          %1111 = vst [vmem:[%s1047 + $0xf8] sm:$0xff] %v1110
        $region183: #{vae_encoder.1} parent=177 // loop_footer
          %s1045 = sadd.s32 1, %s1041
        $region184: #{vae_encoder.1} parent=177 // loop_footer_branch
          %1040 = sbr.rel target = $region180
        $region185: #{vae_encoder.1} parent=177 // loop_exit
          _
      $region178: #{vae_encoder.1} parent=162 // pred_fallthru
        _
      %p1112 = pneg %p1036
      // Predicated region
      $region186: #{vae_encoder.1} parent=162 // pred_check
        _
      $region187: #{vae_encoder.1} parent=162 // pred_check_branch
        %1114 = sbr.rel (%p1036) target = $region189
      $region188: #{vae_encoder.1} parent=162 // pred_region
        %s1115 = sand.u32 256, 7
      $region189: #{vae_encoder.1} parent=162 // pred_fallthru
        _
    $region163: #{vae_encoder.1} parent=1 // pred_fallthru
      _
    // Predicated region
    $region164: #{vae_encoder.1} parent=1 // pred_check
      %p1020 = pneg %p1016
    $region165: #{vae_encoder.1} parent=1 // pred_check_branch
      %1022 = sbr.rel (%p1020) target = $region167
    $region166: #{vae_encoder.1} parent=1 // pred_region
      %s1023 = sshll.u32 1, 256
      %s1024 = ssub.s32 %s1023, 1
      loop: start=0, step=1, limit=1
      $region168: #{vae_encoder.1} parent=166 // loop_pre_header
        _
      $region169: #{vae_encoder.1} parent=166 // loop_header
        %s1026 = sphi 0, %s1030
        %p1027 = scmp.ge.s32.totalorder %s1026, 1
        %s1031 = sphi %s15, %s15
        %s1032 = sphi [#allocation5], [#allocation5]
      $region170: #{vae_encoder.1} parent=166 // loop_header_branch
        %1029 = sbr.rel (%p1027) target = $region174
      $region171: #{vae_encoder.1} parent=166 // loop_body
        %v1033 = vld [vmem:[%s1031] sm:%s1024]
        %1034 = vst [vmem:[%s1032] sm:%s1024] %v1033
      $region172: #{vae_encoder.1} parent=166 // loop_footer
        %s1030 = sadd.s32 1, %s1026
      $region173: #{vae_encoder.1} parent=166 // loop_footer_branch
        %1025 = sbr.rel target = $region169
      $region174: #{vae_encoder.1} parent=166 // loop_exit
        _
    $region167: #{vae_encoder.1} parent=1 // pred_fallthru
      _
    // Predicated region
    $region190: #{vae_encoder.1} parent=1 // pred_check
      _
    $region191: #{vae_encoder.1} parent=1 // pred_check_branch
      %1118 = sbr.rel (0) target = $region193
    $region192: #{vae_encoder.1} parent=1 // pred_region
      %1119 = vsyncadd %s1014, 4096
    $region193: #{vae_encoder.1} parent=1 // pred_fallthru
      _
    %v1120 = vld [vmem:[%s0] sm:$0xf]
    %v1121 = vld [vmem:[%s0 + $0x4] sm:$0xf]
    %v1122 = vld [vmem:[%s0 + $0x8] sm:$0xf]
    %v1123 = vld [vmem:[%s0 + $0xc] sm:$0xf]
    %v1124 = vld [vmem:[%s0 + $0x10] sm:$0xf]
    %v1125 = vld [vmem:[%s0 + $0x14] sm:$0xf]
    %v1126 = vld [vmem:[%s0 + $0x18] sm:$0xf]
    %v1127 = vld [vmem:[%s0 + $0x1c] sm:$0xf]
    %v1128 = vld [vmem:[%s0 + $0x20] sm:$0xf]
    %v1129 = vld [vmem:[%s0 + $0x24] sm:$0xf]
    %v1130 = vld [vmem:[%s0 + $0x28] sm:$0xf]
    %v1131 = vld [vmem:[%s0 + $0x2c] sm:$0xf]
    %v1132 = vld [vmem:[%s0 + $0x30] sm:$0xf]
    %v1133 = vld [vmem:[%s0 + $0x34] sm:$0xf]
    %v1134 = vld [vmem:[%s0 + $0x38] sm:$0xf]
    %v1135 = vld [vmem:[%s0 + $0x3c] sm:$0xf]
    %v1136 = vld [vmem:[%s1] sm:$0xf]
    %v1137 = vld [vmem:[%s1 + $0x4] sm:$0xf]
    %v1138 = vld [vmem:[%s1 + $0x8] sm:$0xf]
    %v1139 = vld [vmem:[%s1 + $0xc] sm:$0xf]
    %v1140 = vld [vmem:[%s1 + $0x10] sm:$0xf]
    %v1141 = vld [vmem:[%s1 + $0x14] sm:$0xf]
    %v1142 = vld [vmem:[%s2] sm:$0x1]
    %v1144 = vlaneseq
    %v1145 = vshrl.u32 %v1144, 7
    %v1146 = vsub.s32 0, %v1145
    %v1147 = vrot.slane %v1142, %v1146
    %v1165 = vunpack.c.l.b16 %v1120
    %v1166 = vunpack.c.l.b16 %v1121
    %v1167 = vunpack.c.l.b16 %v1122
    %v1168 = vunpack.c.l.b16 %v1123
    %v1169 = vunpack.c.l.b16 %v1124
    %v1170 = vunpack.c.l.b16 %v1125
    %v1171 = vunpack.c.l.b16 %v1126
    %v1172 = vunpack.c.l.b16 %v1127
    %v1173 = vunpack.c.l.b16 %v1128
    %v1174 = vunpack.c.l.b16 %v1129
    %v1175 = vunpack.c.l.b16 %v1130
    %v1176 = vunpack.c.l.b16 %v1131
    %v1177 = vunpack.c.l.b16 %v1132
    %v1178 = vunpack.c.l.b16 %v1133
    %v1179 = vunpack.c.l.b16 %v1134
    %v1180 = vunpack.c.l.b16 %v1135
    %v1181 = vpack.c.b16 %v1166, %v1165
    %v1182 = vpack.c.b16 %v1168, %v1167
    %v1183 = vpack.c.b16 %v1170, %v1169
    %v1184 = vpack.c.b16 %v1172, %v1171
    %v1185 = vpack.c.b16 %v1174, %v1173
    %v1186 = vpack.c.b16 %v1176, %v1175
    %v1187 = vpack.c.b16 %v1178, %v1177
    %v1188 = vpack.c.b16 %v1180, %v1179
    %v1195 = vunpack.c.l.b16 %v1136
    %v1196 = vunpack.c.l.b16 %v1137
    %v1197 = vunpack.c.l.b16 %v1138
    %v1198 = vunpack.c.l.b16 %v1139
    %v1199 = vunpack.c.l.b16 %v1140
    %v1200 = vunpack.c.l.b16 %v1141
    %v1201 = vpack.c.b16 %v1196, %v1195
    %v1202 = vpack.c.b16 %v1198, %v1197
    %v1203 = vpack.c.b16 %v1200, %v1199
    %vm1207 = vcmask 392192
    %v1209 = vsel %vm1207, %v1181, 0
    %v1212 = vsel %vm1207, %v1182, 0
    %v1215 = vsel %vm1207, %v1183, 0
    %v1218 = vsel %vm1207, %v1184, 0
    %v1221 = vsel %vm1207, %v1185, 0
    %v1224 = vsel %vm1207, %v1186, 0
    %v1227 = vsel %vm1207, %v1187, 0
    %v1230 = vsel %vm1207, %v1188, 0
    %1232 = vmatprep.subr.bf16.mxu0 0
    %1233 = vmatpush1.bf16.msra.mxu0 0
    %1234 = vmatprep.subr.bf16.mxu0 0
    %1235 = vmatpush1.bf16.msra.mxu0 0
    %1236 = vmatprep.subr.bf16.mxu0 0
    %1237 = vmatpush1.bf16.msra.mxu0 0
    %1238 = vmatprep.subr.bf16.mxu0 0
    %1239 = vmatpush1.bf16.msra.mxu0 0
    %1240 = vmatprep.subr.bf16.mxu0 0
    %1241 = vmatpush1.bf16.msra.mxu0 0
    %1242 = vmatprep.subr.bf16.mxu0 0
    %1243 = vmatpush1.bf16.msra.mxu0 %v1203
    %1244 = vmatprep.subr.bf16.mxu0 0
    %1245 = vmatpush1.bf16.msra.mxu0 %v1202
    %1246 = vmatprep.subr.bf16.mxu0 0
    %1247 = vmatpush1.bf16.msra.mxu0 %v1201
    %1248 = vmatprep.subr.bf16.mxu0 0
    %1249 = vmatpush2.bf16.msra.mxu0 0
    %1250 = vmatprep.subr.bf16.mxu0 0
    %1251 = vmatpush2.bf16.msra.mxu0 0
    %1252 = vmatprep.subr.bf16.mxu0 0
    %1253 = vmatpush2.bf16.msra.mxu0 0
    %1254 = vmatprep.subr.bf16.mxu0 0
    %1255 = vmatpush2.bf16.msra.mxu0 0
    %1256 = vmatprep.subr.bf16.mxu0 0
    %1257 = vmatpush2.bf16.msra.mxu0 0
    %1258 = vmatprep.subr.bf16.mxu0 0
    %1259 = vmatpush2.bf16.msra.mxu0 0
    %1260 = vmatprep.subr.bf16.mxu0 0
    %1261 = vmatpush2.bf16.msra.mxu0 0
    %1262 = vmatprep.subr.bf16.mxu0 0
    %1263 = vmatpush2.bf16.msra.mxu0 0
    %1264 = vmatprep.mubr.bf16.mxu0 0
    %1265 = vmatmul.mubr.bf16.gmra.mxu0 %v1209
    %v1266 = vpop.f32.mrf.mxu0
    %v1267 = vadd.f32 %v1147, %v1266
    %v1268 = vpop.f32.mrf.mxu0
    %v1269 = vpop.f32.mrf.mxu0
    %v1270 = vadd.f32 %v1147, %v1269
    %v1271 = vpop.f32.mrf.mxu0
    %1272 = vmatprep.mubr.bf16.mxu0 0
    %1273 = vmatmul.mubr.bf16.gmra.mxu0 %v1212
    %v1274 = vpop.f32.mrf.mxu0
    %v1275 = vadd.f32 %v1147, %v1274
    %v1276 = vpop.f32.mrf.mxu0
    %v1277 = vpop.f32.mrf.mxu0
    %v1278 = vadd.f32 %v1147, %v1277
    %v1279 = vpop.f32.mrf.mxu0
    %1280 = vmatprep.mubr.bf16.mxu0 0
    %1281 = vmatmul.mubr.bf16.gmra.mxu0 %v1215
    %v1282 = vpop.f32.mrf.mxu0
    %v1283 = vadd.f32 %v1147, %v1282
    %v1284 = vpop.f32.mrf.mxu0
    %v1285 = vpop.f32.mrf.mxu0
    %v1286 = vadd.f32 %v1147, %v1285
    %v1287 = vpop.f32.mrf.mxu0
    %1288 = vmatprep.mubr.bf16.mxu0 0
    %1289 = vmatmul.mubr.bf16.gmra.mxu0 %v1218
    %v1290 = vpop.f32.mrf.mxu0
    %v1291 = vadd.f32 %v1147, %v1290
    %v1292 = vpop.f32.mrf.mxu0
    %v1293 = vpop.f32.mrf.mxu0
    %v1294 = vadd.f32 %v1147, %v1293
    %v1295 = vpop.f32.mrf.mxu0
    %1296 = vmatprep.mubr.bf16.mxu0 0
    %1297 = vmatmul.mubr.bf16.gmra.mxu0 %v1221
    %v1298 = vpop.f32.mrf.mxu0
    %v1299 = vadd.f32 %v1147, %v1298
    %v1300 = vpop.f32.mrf.mxu0
    %v1301 = vpop.f32.mrf.mxu0
    %v1302 = vadd.f32 %v1147, %v1301
    %v1303 = vpop.f32.mrf.mxu0
    %1304 = vmatprep.mubr.bf16.mxu0 0
    %1305 = vmatmul.mubr.bf16.gmra.mxu0 %v1224
    %v1306 = vpop.f32.mrf.mxu0
    %v1307 = vadd.f32 %v1147, %v1306
    %v1308 = vpop.f32.mrf.mxu0
    %v1309 = vpop.f32.mrf.mxu0
    %v1310 = vadd.f32 %v1147, %v1309
    %v1311 = vpop.f32.mrf.mxu0
    %1312 = vmatprep.mubr.bf16.mxu0 0
    %1313 = vmatmul.mubr.bf16.gmra.mxu0 %v1227
    %v1314 = vpop.f32.mrf.mxu0
    %v1315 = vadd.f32 %v1147, %v1314
    %v1316 = vpop.f32.mrf.mxu0
    %v1317 = vpop.f32.mrf.mxu0
    %v1318 = vadd.f32 %v1147, %v1317
    %v1319 = vpop.f32.mrf.mxu0
    %1320 = vmatprep.mubr.bf16.mxu0 0
    %1321 = vmatmul.mubr.bf16.gmra.mxu0 %v1230
    %v1322 = vpop.f32.mrf.mxu0
    %v1323 = vadd.f32 %v1147, %v1322
    %v1324 = vpop.f32.mrf.mxu0
    %v1325 = vpop.f32.mrf.mxu0
    %v1326 = vadd.f32 %v1147, %v1325
    %v1327 = vpop.f32.mrf.mxu0
    %1328 = vdwg.mxu0
    %v1329 = vld [vmem:[%s3] sm:$0x1]
    %v1330 = vld [vmem:[%s4] sm:$0x1]
    %v1331 = vadd.f32 %v1267, %v1270
    %v1332 = vadd.f32 %v1331, %v1275
    %v1333 = vadd.f32 %v1332, %v1278
    %v1334 = vadd.f32 %v1333, %v1283
    %v1335 = vadd.f32 %v1334, %v1286
    %v1336 = vadd.f32 %v1335, %v1291
    %v1337 = vadd.f32 %v1336, %v1294
    %v1338 = vadd.f32 %v1337, %v1299
    %v1339 = vadd.f32 %v1338, %v1302
    %v1340 = vadd.f32 %v1339, %v1307
    %v1341 = vadd.f32 %v1340, %v1310
    %v1342 = vadd.f32 %v1341, %v1315
    %v1343 = vadd.f32 %v1342, %v1318
    %v1344 = vadd.f32 %v1343, %v1323
    %v1345 = vadd.f32 %v1344, %v1326
    %v1346 = vrot.slane %v1345, 4
    %v1347 = vadd.f32 %v1345, %v1346
    %v1348 = vrot.slane %v1347, 2
    %v1349 = vadd.f32 %v1347, %v1348
    %v1350 = vrot.slane %v1349, 1
    %v1351 = vadd.f32 %v1349, %v1350
    %v1352 = vmul.f32 %v1351, 0.0078125
    %v1353 = vsub.f32 %v1267, %v1352
    %v1354 = vsub.f32 %v1270, %v1352
    %v1355 = vsub.f32 %v1275, %v1352
    %v1356 = vsub.f32 %v1278, %v1352
    %v1357 = vsub.f32 %v1283, %v1352
    %v1358 = vsub.f32 %v1286, %v1352
    %v1359 = vsub.f32 %v1291, %v1352
    %v1360 = vsub.f32 %v1294, %v1352
    %v1361 = vsub.f32 %v1299, %v1352
    %v1362 = vsub.f32 %v1302, %v1352
    %v1363 = vsub.f32 %v1307, %v1352
    %v1364 = vsub.f32 %v1310, %v1352
    %v1365 = vsub.f32 %v1315, %v1352
    %v1366 = vsub.f32 %v1318, %v1352
    %v1367 = vsub.f32 %v1323, %v1352
    %v1368 = vsub.f32 %v1326, %v1352
    %v1369 = vmul.f32 %v1353, %v1353
    %v1370 = vmul.f32 %v1354, %v1354
    %v1371 = vmul.f32 %v1355, %v1355
    %v1372 = vmul.f32 %v1356, %v1356
    %v1373 = vmul.f32 %v1357, %v1357
    %v1374 = vmul.f32 %v1358, %v1358
    %v1375 = vmul.f32 %v1359, %v1359
    %v1376 = vmul.f32 %v1360, %v1360
    %v1377 = vmul.f32 %v1361, %v1361
    %v1378 = vmul.f32 %v1362, %v1362
    %v1379 = vmul.f32 %v1363, %v1363
    %v1380 = vmul.f32 %v1364, %v1364
    %v1381 = vmul.f32 %v1365, %v1365
    %v1382 = vmul.f32 %v1366, %v1366
    %v1383 = vmul.f32 %v1367, %v1367
    %v1384 = vmul.f32 %v1368, %v1368
    %v1385 = vadd.f32 %v1369, %v1370
    %v1386 = vadd.f32 %v1385, %v1371
    %v1387 = vadd.f32 %v1386, %v1372
    %v1388 = vadd.f32 %v1387, %v1373
    %v1389 = vadd.f32 %v1388, %v1374
    %v1390 = vadd.f32 %v1389, %v1375
    %v1391 = vadd.f32 %v1390, %v1376
    %v1392 = vadd.f32 %v1391, %v1377
    %v1393 = vadd.f32 %v1392, %v1378
    %v1394 = vadd.f32 %v1393, %v1379
    %v1395 = vadd.f32 %v1394, %v1380
    %v1396 = vadd.f32 %v1395, %v1381
    %v1397 = vadd.f32 %v1396, %v1382
    %v1398 = vadd.f32 %v1397, %v1383
    %v1399 = vadd.f32 %v1398, %v1384
    %v1400 = vrot.slane %v1399, 4
    %v1401 = vadd.f32 %v1399, %v1400
    %v1402 = vrot.slane %v1401, 2
    %v1403 = vadd.f32 %v1401, %v1402
    %v1404 = vrot.slane %v1403, 1
    %v1405 = vadd.f32 %v1403, %v1404
    %v1406 = vmul.f32 %v1405, 0.0078125
    %v1407 = vadd.f32 %v1406, 1e-05
    %v1408 = vrsqrt.pop %v1407
    %v1409 = vmul.f32 %v1329, %v1408
    %v1411 = vlaneseq
    %v1412 = vshrl.u32 %v1411, 7
    %v1413 = vsub.s32 0, %v1412
    %v1414 = vrot.slane %v1409, %v1413
    %v1416 = vmul.f32 %v1353, %v1414
    %v1417 = vmul.f32 %v1354, %v1414
    %v1418 = vmul.f32 %v1355, %v1414
    %v1419 = vmul.f32 %v1356, %v1414
    %v1420 = vmul.f32 %v1357, %v1414
    %v1421 = vmul.f32 %v1358, %v1414
    %v1422 = vmul.f32 %v1359, %v1414
    %v1423 = vmul.f32 %v1360, %v1414
    %v1424 = vmul.f32 %v1361, %v1414
    %v1425 = vmul.f32 %v1362, %v1414
    %v1426 = vmul.f32 %v1363, %v1414
    %v1427 = vmul.f32 %v1364, %v1414
    %v1428 = vmul.f32 %v1365, %v1414
    %v1429 = vmul.f32 %v1366, %v1414
    %v1430 = vmul.f32 %v1367, %v1414
    %v1431 = vmul.f32 %v1368, %v1414
    %v1433 = vlaneseq
    %v1434 = vshrl.u32 %v1433, 7
    %v1435 = vsub.s32 0, %v1434
    %v1436 = vrot.slane %v1330, %v1435
    %v1438 = vadd.f32 %v1416, %v1436
    %v1439 = vadd.f32 %v1417, %v1436
    %v1440 = vadd.f32 %v1418, %v1436
    %v1441 = vadd.f32 %v1419, %v1436
    %v1442 = vadd.f32 %v1420, %v1436
    %v1443 = vadd.f32 %v1421, %v1436
    %v1444 = vadd.f32 %v1422, %v1436
    %v1445 = vadd.f32 %v1423, %v1436
    %v1446 = vadd.f32 %v1424, %v1436
    %v1447 = vadd.f32 %v1425, %v1436
    %v1448 = vadd.f32 %v1426, %v1436
    %v1449 = vadd.f32 %v1427, %v1436
    %v1450 = vadd.f32 %v1428, %v1436
    %v1451 = vadd.f32 %v1429, %v1436
    %v1452 = vadd.f32 %v1430, %v1436
    %v1453 = vadd.f32 %v1431, %v1436
    %v1454 = vmax.f32 %v1438, 0.0
    %v1455 = vmax.f32 %v1439, 0.0
    %v1456 = vmax.f32 %v1440, 0.0
    %v1457 = vmax.f32 %v1441, 0.0
    %v1458 = vmax.f32 %v1442, 0.0
    %v1459 = vmax.f32 %v1443, 0.0
    %v1460 = vmax.f32 %v1444, 0.0
    %v1461 = vmax.f32 %v1445, 0.0
    %v1462 = vmax.f32 %v1446, 0.0
    %v1463 = vmax.f32 %v1447, 0.0
    %v1464 = vmax.f32 %v1448, 0.0
    %v1465 = vmax.f32 %v1449, 0.0
    %v1466 = vmax.f32 %v1450, 0.0
    %v1467 = vmax.f32 %v1451, 0.0
    %v1468 = vmax.f32 %v1452, 0.0
    %v1469 = vmax.f32 %v1453, 0.0
    %v1470 = vpack.c.bf16 %v1455, %v1454
    %v1471 = vpack.c.bf16 %v1457, %v1456
    %v1472 = vpack.c.bf16 %v1459, %v1458
    %v1473 = vpack.c.bf16 %v1461, %v1460
    %v1474 = vpack.c.bf16 %v1463, %v1462
    %v1475 = vpack.c.bf16 %v1465, %v1464
    %v1476 = vpack.c.bf16 %v1467, %v1466
    %v1477 = vpack.c.bf16 %v1469, %v1468
    %s1478 = smul.u32 4, 64
    %s1479 = smul.u32 %s1478, 1
    %s1480 = sshll.u32 %s1479, 4
    %1481 = dma.done [#allocation8], %s1480
    %v1482 = vld [vmem:[#allocation2] sm:$0xf]
    %v1483 = vld [vmem:[#allocation2 + $0x4] sm:$0xf]
    %v1484 = vld [vmem:[#allocation2 + $0x8] sm:$0xf]
    %v1485 = vld [vmem:[#allocation2 + $0xc] sm:$0xf]
    %v1486 = vld [vmem:[#allocation2 + $0x10] sm:$0xf]
    %v1487 = vld [vmem:[#allocation2 + $0x14] sm:$0xf]
    %v1488 = vld [vmem:[#allocation2 + $0x18] sm:$0xf]
    %v1489 = vld [vmem:[#allocation2 + $0x1c] sm:$0xf]
    %v1490 = vld [vmem:[#allocation2 + $0x20] sm:$0xf]
    %v1491 = vld [vmem:[#allocation2 + $0x24] sm:$0xf]
    %v1492 = vld [vmem:[#allocation2 + $0x28] sm:$0xf]
    %v1493 = vld [vmem:[#allocation2 + $0x2c] sm:$0xf]
    %v1494 = vld [vmem:[#allocation2 + $0x30] sm:$0xf]
    %v1495 = vld [vmem:[#allocation2 + $0x34] sm:$0xf]
    %v1496 = vld [vmem:[#allocation2 + $0x38] sm:$0xf]
    %v1497 = vld [vmem:[#allocation2 + $0x3c] sm:$0xf]
    %v1498 = vld [vmem:[#allocation2 + $0x40] sm:$0xf]
    %v1499 = vld [vmem:[#allocation2 + $0x44] sm:$0xf]
    %v1500 = vld [vmem:[#allocation2 + $0x48] sm:$0xf]
    %v1501 = vld [vmem:[#allocation2 + $0x4c] sm:$0xf]
    %v1502 = vld [vmem:[#allocation2 + $0x50] sm:$0xf]
    %v1503 = vld [vmem:[#allocation2 + $0x54] sm:$0xf]
    %v1504 = vld [vmem:[#allocation2 + $0x58] sm:$0xf]
    %v1505 = vld [vmem:[#allocation2 + $0x5c] sm:$0xf]
    %v1506 = vld [vmem:[#allocation2 + $0x60] sm:$0xf]
    %v1507 = vld [vmem:[#allocation2 + $0x64] sm:$0xf]
    %v1508 = vld [vmem:[#allocation2 + $0x68] sm:$0xf]
    %v1509 = vld [vmem:[#allocation2 + $0x6c] sm:$0xf]
    %v1510 = vld [vmem:[#allocation2 + $0x70] sm:$0xf]
    %v1511 = vld [vmem:[#allocation2 + $0x74] sm:$0xf]
    %v1512 = vld [vmem:[#allocation2 + $0x78] sm:$0xf]
    %v1513 = vld [vmem:[#allocation2 + $0x7c] sm:$0xf]
    %v1514 = vld [vmem:[#allocation2 + $0x80] sm:$0xf]
    %v1515 = vld [vmem:[#allocation2 + $0x84] sm:$0xf]
    %v1516 = vld [vmem:[#allocation2 + $0x88] sm:$0xf]
    %v1517 = vld [vmem:[#allocation2 + $0x8c] sm:$0xf]
    %v1518 = vld [vmem:[#allocation2 + $0x90] sm:$0xf]
    %v1519 = vld [vmem:[#allocation2 + $0x94] sm:$0xf]
    %v1520 = vld [vmem:[#allocation2 + $0x98] sm:$0xf]
    %v1521 = vld [vmem:[#allocation2 + $0x9c] sm:$0xf]
    %v1522 = vld [vmem:[#allocation2 + $0xa0] sm:$0xf]
    %v1523 = vld [vmem:[#allocation2 + $0xa4] sm:$0xf]
    %v1524 = vld [vmem:[#allocation2 + $0xa8] sm:$0xf]
    %v1525 = vld [vmem:[#allocation2 + $0xac] sm:$0xf]
    %v1526 = vld [vmem:[#allocation2 + $0xb0] sm:$0xf]
    %v1527 = vld [vmem:[#allocation2 + $0xb4] sm:$0xf]
    %v1528 = vld [vmem:[#allocation2 + $0xb8] sm:$0xf]
    %v1529 = vld [vmem:[#allocation2 + $0xbc] sm:$0xf]
    %v1530 = vld [vmem:[#allocation2 + $0xc0] sm:$0xf]
    %v1531 = vld [vmem:[#allocation2 + $0xc4] sm:$0xf]
    %v1532 = vld [vmem:[#allocation2 + $0xc8] sm:$0xf]
    %v1533 = vld [vmem:[#allocation2 + $0xcc] sm:$0xf]
    %v1534 = vld [vmem:[#allocation2 + $0xd0] sm:$0xf]
    %v1535 = vld [vmem:[#allocation2 + $0xd4] sm:$0xf]
    %v1536 = vld [vmem:[#allocation2 + $0xd8] sm:$0xf]
    %v1537 = vld [vmem:[#allocation2 + $0xdc] sm:$0xf]
    %v1538 = vld [vmem:[#allocation2 + $0xe0] sm:$0xf]
    %v1539 = vld [vmem:[#allocation2 + $0xe4] sm:$0xf]
    %v1540 = vld [vmem:[#allocation2 + $0xe8] sm:$0xf]
    %v1541 = vld [vmem:[#allocation2 + $0xec] sm:$0xf]
    %v1542 = vld [vmem:[#allocation2 + $0xf0] sm:$0xf]
    %v1543 = vld [vmem:[#allocation2 + $0xf4] sm:$0xf]
    %v1544 = vld [vmem:[#allocation2 + $0xf8] sm:$0xf]
    %v1545 = vld [vmem:[#allocation2 + $0xfc] sm:$0xf]
    %v1610 = vunpack.c.l.b16 %v1482
    %v1611 = vunpack.c.l.b16 %v1483
    %v1612 = vunpack.c.l.b16 %v1484
    %v1613 = vunpack.c.l.b16 %v1485
    %v1614 = vunpack.c.l.b16 %v1486
    %v1615 = vunpack.c.l.b16 %v1487
    %v1616 = vunpack.c.l.b16 %v1488
    %v1617 = vunpack.c.l.b16 %v1489
    %v1618 = vunpack.c.l.b16 %v1490
    %v1619 = vunpack.c.l.b16 %v1491
    %v1620 = vunpack.c.l.b16 %v1492
    %v1621 = vunpack.c.l.b16 %v1493
    %v1622 = vunpack.c.l.b16 %v1494
    %v1623 = vunpack.c.l.b16 %v1495
    %v1624 = vunpack.c.l.b16 %v1496
    %v1625 = vunpack.c.l.b16 %v1497
    %v1626 = vunpack.c.l.b16 %v1498
    %v1627 = vunpack.c.l.b16 %v1499
    %v1628 = vunpack.c.l.b16 %v1500
    %v1629 = vunpack.c.l.b16 %v1501
    %v1630 = vunpack.c.l.b16 %v1502
    %v1631 = vunpack.c.l.b16 %v1503
    %v1632 = vunpack.c.l.b16 %v1504
    %v1633 = vunpack.c.l.b16 %v1505
    %v1634 = vunpack.c.l.b16 %v1506
    %v1635 = vunpack.c.l.b16 %v1507
    %v1636 = vunpack.c.l.b16 %v1508
    %v1637 = vunpack.c.l.b16 %v1509
    %v1638 = vunpack.c.l.b16 %v1510
    %v1639 = vunpack.c.l.b16 %v1511
    %v1640 = vunpack.c.l.b16 %v1512
    %v1641 = vunpack.c.l.b16 %v1513
    %v1642 = vunpack.c.l.b16 %v1514
    %v1643 = vunpack.c.l.b16 %v1515
    %v1644 = vunpack.c.l.b16 %v1516
    %v1645 = vunpack.c.l.b16 %v1517
    %v1646 = vunpack.c.l.b16 %v1518
    %v1647 = vunpack.c.l.b16 %v1519
    %v1648 = vunpack.c.l.b16 %v1520
    %v1649 = vunpack.c.l.b16 %v1521
    %v1650 = vunpack.c.l.b16 %v1522
    %v1651 = vunpack.c.l.b16 %v1523
    %v1652 = vunpack.c.l.b16 %v1524
    %v1653 = vunpack.c.l.b16 %v1525
    %v1654 = vunpack.c.l.b16 %v1526
    %v1655 = vunpack.c.l.b16 %v1527
    %v1656 = vunpack.c.l.b16 %v1528
    %v1657 = vunpack.c.l.b16 %v1529
    %v1658 = vunpack.c.l.b16 %v1530
    %v1659 = vunpack.c.l.b16 %v1531
    %v1660 = vunpack.c.l.b16 %v1532
    %v1661 = vunpack.c.l.b16 %v1533
    %v1662 = vunpack.c.l.b16 %v1534
    %v1663 = vunpack.c.l.b16 %v1535
    %v1664 = vunpack.c.l.b16 %v1536
    %v1665 = vunpack.c.l.b16 %v1537
    %v1666 = vunpack.c.l.b16 %v1538
    %v1667 = vunpack.c.l.b16 %v1539
    %v1668 = vunpack.c.l.b16 %v1540
    %v1669 = vunpack.c.l.b16 %v1541
    %v1670 = vunpack.c.l.b16 %v1542
    %v1671 = vunpack.c.l.b16 %v1543
    %v1672 = vunpack.c.l.b16 %v1544
    %v1673 = vunpack.c.l.b16 %v1545
    %v1674 = vpack.c.b16 %v1611, %v1610
    %v1675 = vpack.c.b16 %v1613, %v1612
    %v1676 = vpack.c.b16 %v1615, %v1614
    %v1677 = vpack.c.b16 %v1617, %v1616
    %v1678 = vpack.c.b16 %v1619, %v1618
    %v1679 = vpack.c.b16 %v1621, %v1620
    %v1680 = vpack.c.b16 %v1623, %v1622
    %v1681 = vpack.c.b16 %v1625, %v1624
    %v1682 = vpack.c.b16 %v1627, %v1626
    %v1683 = vpack.c.b16 %v1629, %v1628
    %v1684 = vpack.c.b16 %v1631, %v1630
    %v1685 = vpack.c.b16 %v1633, %v1632
    %v1686 = vpack.c.b16 %v1635, %v1634
    %v1687 = vpack.c.b16 %v1637, %v1636
    %v1688 = vpack.c.b16 %v1639, %v1638
    %v1689 = vpack.c.b16 %v1641, %v1640
    %v1690 = vpack.c.b16 %v1643, %v1642
    %v1691 = vpack.c.b16 %v1645, %v1644
    %v1692 = vpack.c.b16 %v1647, %v1646
    %v1693 = vpack.c.b16 %v1649, %v1648
    %v1694 = vpack.c.b16 %v1651, %v1650
    %v1695 = vpack.c.b16 %v1653, %v1652
    %v1696 = vpack.c.b16 %v1655, %v1654
    %v1697 = vpack.c.b16 %v1657, %v1656
    %v1698 = vpack.c.b16 %v1659, %v1658
    %v1699 = vpack.c.b16 %v1661, %v1660
    %v1700 = vpack.c.b16 %v1663, %v1662
    %v1701 = vpack.c.b16 %v1665, %v1664
    %v1702 = vpack.c.b16 %v1667, %v1666
    %v1703 = vpack.c.b16 %v1669, %v1668
    %v1704 = vpack.c.b16 %v1671, %v1670
    %v1705 = vpack.c.b16 %v1673, %v1672
    %1738 = vmatprep.subr.bf16.mxu0 0
    %1739 = vmatpush1.bf16.msra.mxu0 %v1477
    %1740 = vmatprep.subr.bf16.mxu0 0
    %1741 = vmatpush1.bf16.msra.mxu0 %v1476
    %1742 = vmatprep.subr.bf16.mxu0 0
    %1743 = vmatpush1.bf16.msra.mxu0 %v1475
    %1744 = vmatprep.subr.bf16.mxu0 0
    %1745 = vmatpush1.bf16.msra.mxu0 %v1474
    %1746 = vmatprep.subr.bf16.mxu0 0
    %1747 = vmatpush1.bf16.msra.mxu0 %v1473
    %1748 = vmatprep.subr.bf16.mxu0 0
    %1749 = vmatpush1.bf16.msra.mxu0 %v1472
    %1750 = vmatprep.subr.bf16.mxu0 0
    %1751 = vmatpush1.bf16.msra.mxu0 %v1471
    %1752 = vmatprep.subr.bf16.mxu0 0
    %1753 = vmatpush1.bf16.msra.mxu0 %v1470
    %1754 = vmatprep.subr.bf16.mxu0 0
    %1755 = vmatpush2.bf16.msra.mxu0 0
    %1756 = vmatprep.subr.bf16.mxu0 0
    %1757 = vmatpush2.bf16.msra.mxu0 0
    %1758 = vmatprep.subr.bf16.mxu0 0
    %1759 = vmatpush2.bf16.msra.mxu0 0
    %1760 = vmatprep.subr.bf16.mxu0 0
    %1761 = vmatpush2.bf16.msra.mxu0 0
    %1762 = vmatprep.subr.bf16.mxu0 0
    %1763 = vmatpush2.bf16.msra.mxu0 0
    %1764 = vmatprep.subr.bf16.mxu0 0
    %1765 = vmatpush2.bf16.msra.mxu0 0
    %1766 = vmatprep.subr.bf16.mxu0 0
    %1767 = vmatpush2.bf16.msra.mxu0 0
    %1768 = vmatprep.subr.bf16.mxu0 0
    %1769 = vmatpush2.bf16.msra.mxu0 0
    %1770 = vmatprep.mubr.bf16.mxu0 0
    %1771 = vmatmul.mubr.bf16.gmra.mxu0 %v1674
    %v1772 = vpop.f32.mrf.mxu0
    %v1773 = vadd.f32 0.0, %v1772
    %v1774 = vpop.f32.mrf.mxu0
    %v1775 = vpop.f32.mrf.mxu0
    %v1776 = vadd.f32 0.0, %v1775
    %v1777 = vpop.f32.mrf.mxu0
    %1778 = vmatprep.mubr.bf16.mxu0 0
    %1779 = vmatmul.mubr.bf16.gmra.mxu0 %v1675
    %v1780 = vpop.f32.mrf.mxu0
    %v1781 = vadd.f32 0.0, %v1780
    %v1782 = vpop.f32.mrf.mxu0
    %v1783 = vpop.f32.mrf.mxu0
    %v1784 = vadd.f32 0.0, %v1783
    %v1785 = vpop.f32.mrf.mxu0
    %1786 = vmatprep.mubr.bf16.mxu0 0
    %1787 = vmatmul.mubr.bf16.gmra.mxu0 %v1676
    %v1788 = vpop.f32.mrf.mxu0
    %v1789 = vadd.f32 0.0, %v1788
    %v1790 = vpop.f32.mrf.mxu0
    %v1791 = vpop.f32.mrf.mxu0
    %v1792 = vadd.f32 0.0, %v1791
    %v1793 = vpop.f32.mrf.mxu0
    %1794 = vmatprep.mubr.bf16.mxu0 0
    %1795 = vmatmul.mubr.bf16.gmra.mxu0 %v1677
    %v1796 = vpop.f32.mrf.mxu0
    %v1797 = vadd.f32 0.0, %v1796
    %v1798 = vpop.f32.mrf.mxu0
    %v1799 = vpop.f32.mrf.mxu0
    %v1800 = vadd.f32 0.0, %v1799
    %v1801 = vpop.f32.mrf.mxu0
    %1802 = vmatprep.mubr.bf16.mxu0 0
    %1803 = vmatmul.mubr.bf16.gmra.mxu0 %v1678
    %v1804 = vpop.f32.mrf.mxu0
    %v1805 = vadd.f32 0.0, %v1804
    %v1806 = vpop.f32.mrf.mxu0
    %v1807 = vpop.f32.mrf.mxu0
    %v1808 = vadd.f32 0.0, %v1807
    %v1809 = vpop.f32.mrf.mxu0
    %1810 = vmatprep.mubr.bf16.mxu0 0
    %1811 = vmatmul.mubr.bf16.gmra.mxu0 %v1679
    %v1812 = vpop.f32.mrf.mxu0
    %v1813 = vadd.f32 0.0, %v1812
    %v1814 = vpop.f32.mrf.mxu0
    %v1815 = vpop.f32.mrf.mxu0
    %v1816 = vadd.f32 0.0, %v1815
    %v1817 = vpop.f32.mrf.mxu0
    %1818 = vmatprep.mubr.bf16.mxu0 0
    %1819 = vmatmul.mubr.bf16.gmra.mxu0 %v1680
    %v1820 = vpop.f32.mrf.mxu0
    %v1821 = vadd.f32 0.0, %v1820
    %v1822 = vpop.f32.mrf.mxu0
    %v1823 = vpop.f32.mrf.mxu0
    %v1824 = vadd.f32 0.0, %v1823
    %v1825 = vpop.f32.mrf.mxu0
    %1826 = vmatprep.mubr.bf16.mxu0 0
    %1827 = vmatmul.mubr.bf16.gmra.mxu0 %v1681
    %v1828 = vpop.f32.mrf.mxu0
    %v1829 = vadd.f32 0.0, %v1828
    %v1830 = vpop.f32.mrf.mxu0
    %v1831 = vpop.f32.mrf.mxu0
    %v1832 = vadd.f32 0.0, %v1831
    %v1833 = vpop.f32.mrf.mxu0
    %1834 = vmatprep.mubr.bf16.mxu0 0
    %1835 = vmatmul.mubr.bf16.gmra.mxu0 %v1682
    %v1836 = vpop.f32.mrf.mxu0
    %v1837 = vadd.f32 0.0, %v1836
    %v1838 = vpop.f32.mrf.mxu0
    %v1839 = vpop.f32.mrf.mxu0
    %v1840 = vadd.f32 0.0, %v1839
    %v1841 = vpop.f32.mrf.mxu0
    %1842 = vmatprep.mubr.bf16.mxu0 0
    %1843 = vmatmul.mubr.bf16.gmra.mxu0 %v1683
    %v1844 = vpop.f32.mrf.mxu0
    %v1845 = vadd.f32 0.0, %v1844
    %v1846 = vpop.f32.mrf.mxu0
    %v1847 = vpop.f32.mrf.mxu0
    %v1848 = vadd.f32 0.0, %v1847
    %v1849 = vpop.f32.mrf.mxu0
    %1850 = vmatprep.mubr.bf16.mxu0 0
    %1851 = vmatmul.mubr.bf16.gmra.mxu0 %v1684
    %v1852 = vpop.f32.mrf.mxu0
    %v1853 = vadd.f32 0.0, %v1852
    %v1854 = vpop.f32.mrf.mxu0
    %v1855 = vpop.f32.mrf.mxu0
    %v1856 = vadd.f32 0.0, %v1855
    %v1857 = vpop.f32.mrf.mxu0
    %1858 = vmatprep.mubr.bf16.mxu0 0
    %1859 = vmatmul.mubr.bf16.gmra.mxu0 %v1685
    %v1860 = vpop.f32.mrf.mxu0
    %v1861 = vadd.f32 0.0, %v1860
    %v1862 = vpop.f32.mrf.mxu0
    %v1863 = vpop.f32.mrf.mxu0
    %v1864 = vadd.f32 0.0, %v1863
    %v1865 = vpop.f32.mrf.mxu0
    %1866 = vmatprep.mubr.bf16.mxu0 0
    %1867 = vmatmul.mubr.bf16.gmra.mxu0 %v1686
    %v1868 = vpop.f32.mrf.mxu0
    %v1869 = vadd.f32 0.0, %v1868
    %v1870 = vpop.f32.mrf.mxu0
    %v1871 = vpop.f32.mrf.mxu0
    %v1872 = vadd.f32 0.0, %v1871
    %v1873 = vpop.f32.mrf.mxu0
    %1874 = vmatprep.mubr.bf16.mxu0 0
    %1875 = vmatmul.mubr.bf16.gmra.mxu0 %v1687
    %v1876 = vpop.f32.mrf.mxu0
    %v1877 = vadd.f32 0.0, %v1876
    %v1878 = vpop.f32.mrf.mxu0
    %v1879 = vpop.f32.mrf.mxu0
    %v1880 = vadd.f32 0.0, %v1879
    %v1881 = vpop.f32.mrf.mxu0
    %1882 = vmatprep.mubr.bf16.mxu0 0
    %1883 = vmatmul.mubr.bf16.gmra.mxu0 %v1688
    %v1884 = vpop.f32.mrf.mxu0
    %v1885 = vadd.f32 0.0, %v1884
    %v1886 = vpop.f32.mrf.mxu0
    %v1887 = vpop.f32.mrf.mxu0
    %v1888 = vadd.f32 0.0, %v1887
    %v1889 = vpop.f32.mrf.mxu0
    %1890 = vmatprep.mubr.bf16.mxu0 0
    %1891 = vmatmul.mubr.bf16.gmra.mxu0 %v1689
    %v1892 = vpop.f32.mrf.mxu0
    %v1893 = vadd.f32 0.0, %v1892
    %v1894 = vpop.f32.mrf.mxu0
    %v1895 = vpop.f32.mrf.mxu0
    %v1896 = vadd.f32 0.0, %v1895
    %v1897 = vpop.f32.mrf.mxu0
    %1898 = vmatprep.mubr.bf16.mxu0 0
    %1899 = vmatmul.mubr.bf16.gmra.mxu0 %v1690
    %v1900 = vpop.f32.mrf.mxu0
    %v1901 = vadd.f32 0.0, %v1900
    %v1902 = vpop.f32.mrf.mxu0
    %v1903 = vpop.f32.mrf.mxu0
    %v1904 = vadd.f32 0.0, %v1903
    %v1905 = vpop.f32.mrf.mxu0
    %1906 = vmatprep.mubr.bf16.mxu0 0
    %1907 = vmatmul.mubr.bf16.gmra.mxu0 %v1691
    %v1908 = vpop.f32.mrf.mxu0
    %v1909 = vadd.f32 0.0, %v1908
    %v1910 = vpop.f32.mrf.mxu0
    %v1911 = vpop.f32.mrf.mxu0
    %v1912 = vadd.f32 0.0, %v1911
    %v1913 = vpop.f32.mrf.mxu0
    %1914 = vmatprep.mubr.bf16.mxu0 0
    %1915 = vmatmul.mubr.bf16.gmra.mxu0 %v1692
    %v1916 = vpop.f32.mrf.mxu0
    %v1917 = vadd.f32 0.0, %v1916
    %v1918 = vpop.f32.mrf.mxu0
    %v1919 = vpop.f32.mrf.mxu0
    %v1920 = vadd.f32 0.0, %v1919
    %v1921 = vpop.f32.mrf.mxu0
    %1922 = vmatprep.mubr.bf16.mxu0 0
    %1923 = vmatmul.mubr.bf16.gmra.mxu0 %v1693
    %v1924 = vpop.f32.mrf.mxu0
    %v1925 = vadd.f32 0.0, %v1924
    %v1926 = vpop.f32.mrf.mxu0
    %v1927 = vpop.f32.mrf.mxu0
    %v1928 = vadd.f32 0.0, %v1927
    %v1929 = vpop.f32.mrf.mxu0
    %1930 = vmatprep.mubr.bf16.mxu0 0
    %1931 = vmatmul.mubr.bf16.gmra.mxu0 %v1694
    %v1932 = vpop.f32.mrf.mxu0
    %v1933 = vadd.f32 0.0, %v1932
    %v1934 = vpop.f32.mrf.mxu0
    %v1935 = vpop.f32.mrf.mxu0
    %v1936 = vadd.f32 0.0, %v1935
    %v1937 = vpop.f32.mrf.mxu0
    %1938 = vmatprep.mubr.bf16.mxu0 0
    %1939 = vmatmul.mubr.bf16.gmra.mxu0 %v1695
    %v1940 = vpop.f32.mrf.mxu0
    %v1941 = vadd.f32 0.0, %v1940
    %v1942 = vpop.f32.mrf.mxu0
    %v1943 = vpop.f32.mrf.mxu0
    %v1944 = vadd.f32 0.0, %v1943
    %v1945 = vpop.f32.mrf.mxu0
    %1946 = vmatprep.mubr.bf16.mxu0 0
    %1947 = vmatmul.mubr.bf16.gmra.mxu0 %v1696
    %v1948 = vpop.f32.mrf.mxu0
    %v1949 = vadd.f32 0.0, %v1948
    %v1950 = vpop.f32.mrf.mxu0
    %v1951 = vpop.f32.mrf.mxu0
    %v1952 = vadd.f32 0.0, %v1951
    %v1953 = vpop.f32.mrf.mxu0
    %1954 = vmatprep.mubr.bf16.mxu0 0
    %1955 = vmatmul.mubr.bf16.gmra.mxu0 %v1697
    %v1956 = vpop.f32.mrf.mxu0
    %v1957 = vadd.f32 0.0, %v1956
    %v1958 = vpop.f32.mrf.mxu0
    %v1959 = vpop.f32.mrf.mxu0
    %v1960 = vadd.f32 0.0, %v1959
    %v1961 = vpop.f32.mrf.mxu0
    %1962 = vmatprep.mubr.bf16.mxu0 0
    %1963 = vmatmul.mubr.bf16.gmra.mxu0 %v1698
    %v1964 = vpop.f32.mrf.mxu0
    %v1965 = vadd.f32 0.0, %v1964
    %v1966 = vpop.f32.mrf.mxu0
    %v1967 = vpop.f32.mrf.mxu0
    %v1968 = vadd.f32 0.0, %v1967
    %v1969 = vpop.f32.mrf.mxu0
    %1970 = vmatprep.mubr.bf16.mxu0 0
    %1971 = vmatmul.mubr.bf16.gmra.mxu0 %v1699
    %v1972 = vpop.f32.mrf.mxu0
    %v1973 = vadd.f32 0.0, %v1972
    %v1974 = vpop.f32.mrf.mxu0
    %v1975 = vpop.f32.mrf.mxu0
    %v1976 = vadd.f32 0.0, %v1975
    %v1977 = vpop.f32.mrf.mxu0
    %1978 = vmatprep.mubr.bf16.mxu0 0
    %1979 = vmatmul.mubr.bf16.gmra.mxu0 %v1700
    %v1980 = vpop.f32.mrf.mxu0
    %v1981 = vadd.f32 0.0, %v1980
    %v1982 = vpop.f32.mrf.mxu0
    %v1983 = vpop.f32.mrf.mxu0
    %v1984 = vadd.f32 0.0, %v1983
    %v1985 = vpop.f32.mrf.mxu0
    %1986 = vmatprep.mubr.bf16.mxu0 0
    %1987 = vmatmul.mubr.bf16.gmra.mxu0 %v1701
    %v1988 = vpop.f32.mrf.mxu0
    %v1989 = vadd.f32 0.0, %v1988
    %v1990 = vpop.f32.mrf.mxu0
    %v1991 = vpop.f32.mrf.mxu0
    %v1992 = vadd.f32 0.0, %v1991
    %v1993 = vpop.f32.mrf.mxu0
    %1994 = vmatprep.mubr.bf16.mxu0 0
    %1995 = vmatmul.mubr.bf16.gmra.mxu0 %v1702
    %v1996 = vpop.f32.mrf.mxu0
    %v1997 = vadd.f32 0.0, %v1996
    %v1998 = vpop.f32.mrf.mxu0
    %v1999 = vpop.f32.mrf.mxu0
    %v2000 = vadd.f32 0.0, %v1999
    %v2001 = vpop.f32.mrf.mxu0
    %2002 = vmatprep.mubr.bf16.mxu0 0
    %2003 = vmatmul.mubr.bf16.gmra.mxu0 %v1703
    %v2004 = vpop.f32.mrf.mxu0
    %v2005 = vadd.f32 0.0, %v2004
    %v2006 = vpop.f32.mrf.mxu0
    %v2007 = vpop.f32.mrf.mxu0
    %v2008 = vadd.f32 0.0, %v2007
    %v2009 = vpop.f32.mrf.mxu0
    %2010 = vmatprep.mubr.bf16.mxu0 0
    %2011 = vmatmul.mubr.bf16.gmra.mxu0 %v1704
    %v2012 = vpop.f32.mrf.mxu0
    %v2013 = vadd.f32 0.0, %v2012
    %v2014 = vpop.f32.mrf.mxu0
    %v2015 = vpop.f32.mrf.mxu0
    %v2016 = vadd.f32 0.0, %v2015
    %v2017 = vpop.f32.mrf.mxu0
    %2018 = vmatprep.mubr.bf16.mxu0 0
    %2019 = vmatmul.mubr.bf16.gmra.mxu0 %v1705
    %v2020 = vpop.f32.mrf.mxu0
    %v2021 = vadd.f32 0.0, %v2020
    %v2022 = vpop.f32.mrf.mxu0
    %v2023 = vpop.f32.mrf.mxu0
    %v2024 = vadd.f32 0.0, %v2023
    %v2025 = vpop.f32.mrf.mxu0
    %2026 = vdwg.mxu0
    %v2027 = vpack.c.bf16 %v1776, %v1773
    %v2028 = vpack.c.bf16 %v1784, %v1781
    %v2029 = vpack.c.bf16 %v1792, %v1789
    %v2030 = vpack.c.bf16 %v1800, %v1797
    %v2031 = vpack.c.bf16 %v1808, %v1805
    %v2032 = vpack.c.bf16 %v1816, %v1813
    %v2033 = vpack.c.bf16 %v1824, %v1821
    %v2034 = vpack.c.bf16 %v1832, %v1829
    %v2035 = vpack.c.bf16 %v1840, %v1837
    %v2036 = vpack.c.bf16 %v1848, %v1845
    %v2037 = vpack.c.bf16 %v1856, %v1853
    %v2038 = vpack.c.bf16 %v1864, %v1861
    %v2039 = vpack.c.bf16 %v1872, %v1869
    %v2040 = vpack.c.bf16 %v1880, %v1877
    %v2041 = vpack.c.bf16 %v1888, %v1885
    %v2042 = vpack.c.bf16 %v1896, %v1893
    %v2043 = vpack.c.bf16 %v1904, %v1901
    %v2044 = vpack.c.bf16 %v1912, %v1909
    %v2045 = vpack.c.bf16 %v1920, %v1917
    %v2046 = vpack.c.bf16 %v1928, %v1925
    %v2047 = vpack.c.bf16 %v1936, %v1933
    %v2048 = vpack.c.bf16 %v1944, %v1941
    %v2049 = vpack.c.bf16 %v1952, %v1949
    %v2050 = vpack.c.bf16 %v1960, %v1957
    %v2051 = vpack.c.bf16 %v1968, %v1965
    %v2052 = vpack.c.bf16 %v1976, %v1973
    %v2053 = vpack.c.bf16 %v1984, %v1981
    %v2054 = vpack.c.bf16 %v1992, %v1989
    %v2055 = vpack.c.bf16 %v2000, %v1997
    %v2056 = vpack.c.bf16 %v2008, %v2005
    %v2057 = vpack.c.bf16 %v2016, %v2013
    %v2058 = vpack.c.bf16 %v2024, %v2021
    %v2061 = vunpack.c.l.b16 %v2027
    %v2062 = vunpack.c.h.b16 %v2027
    %v2063 = vunpack.c.l.b16 %v2028
    %v2064 = vunpack.c.h.b16 %v2028
    %v2065 = vpack.c.b16 %v2061, %v2061
    %v2066 = vpack.c.b16 %v2062, %v2062
    %v2067 = vpack.c.b16 %v2063, %v2063
    %v2068 = vpack.c.b16 %v2064, %v2064
    %2073 = vst [vmem:[#allocation6] sm:$0xf] %v2065
    %2074 = vst [vmem:[#allocation6 + $0x40] sm:$0xf] %v2066
    %2075 = vst [vmem:[#allocation6 + $0x80] sm:$0xf] %v2067
    %2076 = vst [vmem:[#allocation6 + $0xc0] sm:$0xf] %v2068
    %v2079 = vunpack.c.l.b16 %v2029
    %v2080 = vunpack.c.h.b16 %v2029
    %v2081 = vunpack.c.l.b16 %v2030
    %v2082 = vunpack.c.h.b16 %v2030
    %v2083 = vpack.c.b16 %v2079, %v2079
    %v2084 = vpack.c.b16 %v2080, %v2080
    %v2085 = vpack.c.b16 %v2081, %v2081
    %v2086 = vpack.c.b16 %v2082, %v2082
    %2091 = vst [vmem:[#allocation6 + $0x4] sm:$0xf] %v2083
    %2092 = vst [vmem:[#allocation6 + $0x44] sm:$0xf] %v2084
    %2093 = vst [vmem:[#allocation6 + $0x84] sm:$0xf] %v2085
    %2094 = vst [vmem:[#allocation6 + $0xc4] sm:$0xf] %v2086
    %v2097 = vunpack.c.l.b16 %v2031
    %v2098 = vunpack.c.h.b16 %v2031
    %v2099 = vunpack.c.l.b16 %v2032
    %v2100 = vunpack.c.h.b16 %v2032
    %v2101 = vpack.c.b16 %v2097, %v2097
    %v2102 = vpack.c.b16 %v2098, %v2098
    %v2103 = vpack.c.b16 %v2099, %v2099
    %v2104 = vpack.c.b16 %v2100, %v2100
    %2109 = vst [vmem:[#allocation6 + $0x8] sm:$0xf] %v2101
    %2110 = vst [vmem:[#allocation6 + $0x48] sm:$0xf] %v2102
    %2111 = vst [vmem:[#allocation6 + $0x88] sm:$0xf] %v2103
    %2112 = vst [vmem:[#allocation6 + $0xc8] sm:$0xf] %v2104
    %v2115 = vunpack.c.l.b16 %v2033
    %v2116 = vunpack.c.h.b16 %v2033
    %v2117 = vunpack.c.l.b16 %v2034
    %v2118 = vunpack.c.h.b16 %v2034
    %v2119 = vpack.c.b16 %v2115, %v2115
    %v2120 = vpack.c.b16 %v2116, %v2116
    %v2121 = vpack.c.b16 %v2117, %v2117
    %v2122 = vpack.c.b16 %v2118, %v2118
    %2127 = vst [vmem:[#allocation6 + $0xc] sm:$0xf] %v2119
    %2128 = vst [vmem:[#allocation6 + $0x4c] sm:$0xf] %v2120
    %2129 = vst [vmem:[#allocation6 + $0x8c] sm:$0xf] %v2121
    %2130 = vst [vmem:[#allocation6 + $0xcc] sm:$0xf] %v2122
    %v2133 = vunpack.c.l.b16 %v2035
    %v2134 = vunpack.c.h.b16 %v2035
    %v2135 = vunpack.c.l.b16 %v2036
    %v2136 = vunpack.c.h.b16 %v2036
    %v2137 = vpack.c.b16 %v2133, %v2133
    %v2138 = vpack.c.b16 %v2134, %v2134
    %v2139 = vpack.c.b16 %v2135, %v2135
    %v2140 = vpack.c.b16 %v2136, %v2136
    %2145 = vst [vmem:[#allocation6 + $0x10] sm:$0xf] %v2137
    %2146 = vst [vmem:[#allocation6 + $0x50] sm:$0xf] %v2138
    %2147 = vst [vmem:[#allocation6 + $0x90] sm:$0xf] %v2139
    %2148 = vst [vmem:[#allocation6 + $0xd0] sm:$0xf] %v2140
    %v2151 = vunpack.c.l.b16 %v2037
    %v2152 = vunpack.c.h.b16 %v2037
    %v2153 = vunpack.c.l.b16 %v2038
    %v2154 = vunpack.c.h.b16 %v2038
    %v2155 = vpack.c.b16 %v2151, %v2151
    %v2156 = vpack.c.b16 %v2152, %v2152
    %v2157 = vpack.c.b16 %v2153, %v2153
    %v2158 = vpack.c.b16 %v2154, %v2154
    %2163 = vst [vmem:[#allocation6 + $0x14] sm:$0xf] %v2155
    %2164 = vst [vmem:[#allocation6 + $0x54] sm:$0xf] %v2156
    %2165 = vst [vmem:[#allocation6 + $0x94] sm:$0xf] %v2157
    %2166 = vst [vmem:[#allocation6 + $0xd4] sm:$0xf] %v2158
    %v2169 = vunpack.c.l.b16 %v2039
    %v2170 = vunpack.c.h.b16 %v2039
    %v2171 = vunpack.c.l.b16 %v2040
    %v2172 = vunpack.c.h.b16 %v2040
    %v2173 = vpack.c.b16 %v2169, %v2169
    %v2174 = vpack.c.b16 %v2170, %v2170
    %v2175 = vpack.c.b16 %v2171, %v2171
    %v2176 = vpack.c.b16 %v2172, %v2172
    %2181 = vst [vmem:[#allocation6 + $0x18] sm:$0xf] %v2173
    %2182 = vst [vmem:[#allocation6 + $0x58] sm:$0xf] %v2174
    %2183 = vst [vmem:[#allocation6 + $0x98] sm:$0xf] %v2175
    %2184 = vst [vmem:[#allocation6 + $0xd8] sm:$0xf] %v2176
    %v2187 = vunpack.c.l.b16 %v2041
    %v2188 = vunpack.c.h.b16 %v2041
    %v2189 = vunpack.c.l.b16 %v2042
    %v2190 = vunpack.c.h.b16 %v2042
    %v2191 = vpack.c.b16 %v2187, %v2187
    %v2192 = vpack.c.b16 %v2188, %v2188
    %v2193 = vpack.c.b16 %v2189, %v2189
    %v2194 = vpack.c.b16 %v2190, %v2190
    %2199 = vst [vmem:[#allocation6 + $0x1c] sm:$0xf] %v2191
    %2200 = vst [vmem:[#allocation6 + $0x5c] sm:$0xf] %v2192
    %2201 = vst [vmem:[#allocation6 + $0x9c] sm:$0xf] %v2193
    %2202 = vst [vmem:[#allocation6 + $0xdc] sm:$0xf] %v2194
    %v2205 = vunpack.c.l.b16 %v2043
    %v2206 = vunpack.c.h.b16 %v2043
    %v2207 = vunpack.c.l.b16 %v2044
    %v2208 = vunpack.c.h.b16 %v2044
    %v2209 = vpack.c.b16 %v2205, %v2205
    %v2210 = vpack.c.b16 %v2206, %v2206
    %v2211 = vpack.c.b16 %v2207, %v2207
    %v2212 = vpack.c.b16 %v2208, %v2208
    %2217 = vst [vmem:[#allocation6 + $0x20] sm:$0xf] %v2209
    %2218 = vst [vmem:[#allocation6 + $0x60] sm:$0xf] %v2210
    %2219 = vst [vmem:[#allocation6 + $0xa0] sm:$0xf] %v2211
    %2220 = vst [vmem:[#allocation6 + $0xe0] sm:$0xf] %v2212
    %v2223 = vunpack.c.l.b16 %v2045
    %v2224 = vunpack.c.h.b16 %v2045
    %v2225 = vunpack.c.l.b16 %v2046
    %v2226 = vunpack.c.h.b16 %v2046
    %v2227 = vpack.c.b16 %v2223, %v2223
    %v2228 = vpack.c.b16 %v2224, %v2224
    %v2229 = vpack.c.b16 %v2225, %v2225
    %v2230 = vpack.c.b16 %v2226, %v2226
    %2235 = vst [vmem:[#allocation6 + $0x24] sm:$0xf] %v2227
    %2236 = vst [vmem:[#allocation6 + $0x64] sm:$0xf] %v2228
    %2237 = vst [vmem:[#allocation6 + $0xa4] sm:$0xf] %v2229
    %2238 = vst [vmem:[#allocation6 + $0xe4] sm:$0xf] %v2230
    %v2241 = vunpack.c.l.b16 %v2047
    %v2242 = vunpack.c.h.b16 %v2047
    %v2243 = vunpack.c.l.b16 %v2048
    %v2244 = vunpack.c.h.b16 %v2048
    %v2245 = vpack.c.b16 %v2241, %v2241
    %v2246 = vpack.c.b16 %v2242, %v2242
    %v2247 = vpack.c.b16 %v2243, %v2243
    %v2248 = vpack.c.b16 %v2244, %v2244
    %2253 = vst [vmem:[#allocation6 + $0x28] sm:$0xf] %v2245
    %2254 = vst [vmem:[#allocation6 + $0x68] sm:$0xf] %v2246
    %2255 = vst [vmem:[#allocation6 + $0xa8] sm:$0xf] %v2247
    %2256 = vst [vmem:[#allocation6 + $0xe8] sm:$0xf] %v2248
    %v2259 = vunpack.c.l.b16 %v2049
    %v2260 = vunpack.c.h.b16 %v2049
    %v2261 = vunpack.c.l.b16 %v2050
    %v2262 = vunpack.c.h.b16 %v2050
    %v2263 = vpack.c.b16 %v2259, %v2259
    %v2264 = vpack.c.b16 %v2260, %v2260
    %v2265 = vpack.c.b16 %v2261, %v2261
    %v2266 = vpack.c.b16 %v2262, %v2262
    %2271 = vst [vmem:[#allocation6 + $0x2c] sm:$0xf] %v2263
    %2272 = vst [vmem:[#allocation6 + $0x6c] sm:$0xf] %v2264
    %2273 = vst [vmem:[#allocation6 + $0xac] sm:$0xf] %v2265
    %2274 = vst [vmem:[#allocation6 + $0xec] sm:$0xf] %v2266
    %v2277 = vunpack.c.l.b16 %v2051
    %v2278 = vunpack.c.h.b16 %v2051
    %v2279 = vunpack.c.l.b16 %v2052
    %v2280 = vunpack.c.h.b16 %v2052
    %v2281 = vpack.c.b16 %v2277, %v2277
    %v2282 = vpack.c.b16 %v2278, %v2278
    %v2283 = vpack.c.b16 %v2279, %v2279
    %v2284 = vpack.c.b16 %v2280, %v2280
    %2289 = vst [vmem:[#allocation6 + $0x30] sm:$0xf] %v2281
    %2290 = vst [vmem:[#allocation6 + $0x70] sm:$0xf] %v2282
    %2291 = vst [vmem:[#allocation6 + $0xb0] sm:$0xf] %v2283
    %2292 = vst [vmem:[#allocation6 + $0xf0] sm:$0xf] %v2284
    %v2295 = vunpack.c.l.b16 %v2053
    %v2296 = vunpack.c.h.b16 %v2053
    %v2297 = vunpack.c.l.b16 %v2054
    %v2298 = vunpack.c.h.b16 %v2054
    %v2299 = vpack.c.b16 %v2295, %v2295
    %v2300 = vpack.c.b16 %v2296, %v2296
    %v2301 = vpack.c.b16 %v2297, %v2297
    %v2302 = vpack.c.b16 %v2298, %v2298
    %2307 = vst [vmem:[#allocation6 + $0x34] sm:$0xf] %v2299
    %2308 = vst [vmem:[#allocation6 + $0x74] sm:$0xf] %v2300
    %2309 = vst [vmem:[#allocation6 + $0xb4] sm:$0xf] %v2301
    %2310 = vst [vmem:[#allocation6 + $0xf4] sm:$0xf] %v2302
    %v2313 = vunpack.c.l.b16 %v2055
    %v2314 = vunpack.c.h.b16 %v2055
    %v2315 = vunpack.c.l.b16 %v2056
    %v2316 = vunpack.c.h.b16 %v2056
    %v2317 = vpack.c.b16 %v2313, %v2313
    %v2318 = vpack.c.b16 %v2314, %v2314
    %v2319 = vpack.c.b16 %v2315, %v2315
    %v2320 = vpack.c.b16 %v2316, %v2316
    %2325 = vst [vmem:[#allocation6 + $0x38] sm:$0xf] %v2317
    %2326 = vst [vmem:[#allocation6 + $0x78] sm:$0xf] %v2318
    %2327 = vst [vmem:[#allocation6 + $0xb8] sm:$0xf] %v2319
    %2328 = vst [vmem:[#allocation6 + $0xf8] sm:$0xf] %v2320
    %v2331 = vunpack.c.l.b16 %v2057
    %v2332 = vunpack.c.h.b16 %v2057
    %v2333 = vunpack.c.l.b16 %v2058
    %v2334 = vunpack.c.h.b16 %v2058
    %v2335 = vpack.c.b16 %v2331, %v2331
    %v2336 = vpack.c.b16 %v2332, %v2332
    %v2337 = vpack.c.b16 %v2333, %v2333
    %v2338 = vpack.c.b16 %v2334, %v2334
    %2343 = vst [vmem:[#allocation6 + $0x3c] sm:$0xf] %v2335
    %2344 = vst [vmem:[#allocation6 + $0x7c] sm:$0xf] %v2336
    %2345 = vst [vmem:[#allocation6 + $0xbc] sm:$0xf] %v2337
    %2346 = vst [vmem:[#allocation6 + $0xfc] sm:$0xf] %v2338
    %v2347 = vld [vmem:[#allocation6] sm:$0xff]
    %v2348 = vld [vmem:[#allocation6 + $0x8] sm:$0xff]
    %v2349 = vld [vmem:[#allocation6 + $0x10] sm:$0xff]
    %v2350 = vld [vmem:[#allocation6 + $0x18] sm:$0xff]
    %v2351 = vld [vmem:[#allocation6 + $0x20] sm:$0xff]
    %v2352 = vld [vmem:[#allocation6 + $0x28] sm:$0xff]
    %v2353 = vld [vmem:[#allocation6 + $0x30] sm:$0xff]
    %v2354 = vld [vmem:[#allocation6 + $0x38] sm:$0xff]
    %v2355 = vld [vmem:[#allocation6 + $0x40] sm:$0xff]
    %v2356 = vld [vmem:[#allocation6 + $0x48] sm:$0xff]
    %v2357 = vld [vmem:[#allocation6 + $0x50] sm:$0xff]
    %v2358 = vld [vmem:[#allocation6 + $0x58] sm:$0xff]
    %v2359 = vld [vmem:[#allocation6 + $0x60] sm:$0xff]
    %v2360 = vld [vmem:[#allocation6 + $0x68] sm:$0xff]
    %v2361 = vld [vmem:[#allocation6 + $0x70] sm:$0xff]
    %v2362 = vld [vmem:[#allocation6 + $0x78] sm:$0xff]
    %v2363 = vld [vmem:[#allocation6 + $0x80] sm:$0xff]
    %v2364 = vld [vmem:[#allocation6 + $0x88] sm:$0xff]
    %v2365 = vld [vmem:[#allocation6 + $0x90] sm:$0xff]
    %v2366 = vld [vmem:[#allocation6 + $0x98] sm:$0xff]
    %v2367 = vld [vmem:[#allocation6 + $0xa0] sm:$0xff]
    %v2368 = vld [vmem:[#allocation6 + $0xa8] sm:$0xff]
    %v2369 = vld [vmem:[#allocation6 + $0xb0] sm:$0xff]
    %v2370 = vld [vmem:[#allocation6 + $0xb8] sm:$0xff]
    %v2371 = vld [vmem:[#allocation6 + $0xc0] sm:$0xff]
    %v2372 = vld [vmem:[#allocation6 + $0xc8] sm:$0xff]
    %v2373 = vld [vmem:[#allocation6 + $0xd0] sm:$0xff]
    %v2374 = vld [vmem:[#allocation6 + $0xd8] sm:$0xff]
    %v2375 = vld [vmem:[#allocation6 + $0xe0] sm:$0xff]
    %v2376 = vld [vmem:[#allocation6 + $0xe8] sm:$0xff]
    %v2377 = vld [vmem:[#allocation6 + $0xf0] sm:$0xff]
    %v2378 = vld [vmem:[#allocation6 + $0xf8] sm:$0xff]
    %s2379 = smul.u32 4, 256
    %s2380 = smul.u32 %s2379, 1
    %s2381 = sshll.u32 %s2380, 4
    %2382 = dma.done %s162, %s2381
    %v2383 = vld [vmem:[#allocation3] sm:$0xf]
    %v2384 = vld [vmem:[#allocation3 + $0x4] sm:$0xf]
    %v2385 = vld [vmem:[#allocation3 + $0x8] sm:$0xf]
    %v2386 = vld [vmem:[#allocation3 + $0xc] sm:$0xf]
    %v2387 = vld [vmem:[#allocation3 + $0x10] sm:$0xf]
    %v2388 = vld [vmem:[#allocation3 + $0x14] sm:$0xf]
    %v2389 = vld [vmem:[#allocation3 + $0x18] sm:$0xf]
    %v2390 = vld [vmem:[#allocation3 + $0x1c] sm:$0xf]
    %v2391 = vld [vmem:[#allocation3 + $0x20] sm:$0xf]
    %v2392 = vld [vmem:[#allocation3 + $0x24] sm:$0xf]
    %v2393 = vld [vmem:[#allocation3 + $0x28] sm:$0xf]
    %v2394 = vld [vmem:[#allocation3 + $0x2c] sm:$0xf]
    %v2395 = vld [vmem:[#allocation3 + $0x30] sm:$0xf]
    %v2396 = vld [vmem:[#allocation3 + $0x34] sm:$0xf]
    %v2397 = vld [vmem:[#allocation3 + $0x38] sm:$0xf]
    %v2398 = vld [vmem:[#allocation3 + $0x3c] sm:$0xf]
    %v2399 = vld [vmem:[#allocation3 + $0x40] sm:$0xf]
    %v2400 = vld [vmem:[#allocation3 + $0x44] sm:$0xf]
    %v2401 = vld [vmem:[#allocation3 + $0x48] sm:$0xf]
    %v2402 = vld [vmem:[#allocation3 + $0x4c] sm:$0xf]
    %v2403 = vld [vmem:[#allocation3 + $0x50] sm:$0xf]
    %v2404 = vld [vmem:[#allocation3 + $0x54] sm:$0xf]
    %v2405 = vld [vmem:[#allocation3 + $0x58] sm:$0xf]
    %v2406 = vld [vmem:[#allocation3 + $0x5c] sm:$0xf]
    %v2407 = vld [vmem:[#allocation3 + $0x60] sm:$0xf]
    %v2408 = vld [vmem:[#allocation3 + $0x64] sm:$0xf]
    %v2409 = vld [vmem:[#allocation3 + $0x68] sm:$0xf]
    %v2410 = vld [vmem:[#allocation3 + $0x6c] sm:$0xf]
    %v2411 = vld [vmem:[#allocation3 + $0x70] sm:$0xf]
    %v2412 = vld [vmem:[#allocation3 + $0x74] sm:$0xf]
    %v2413 = vld [vmem:[#allocation3 + $0x78] sm:$0xf]
    %v2414 = vld [vmem:[#allocation3 + $0x7c] sm:$0xf]
    %v2415 = vld [vmem:[#allocation3 + $0x80] sm:$0xf]
    %v2416 = vld [vmem:[#allocation3 + $0x84] sm:$0xf]
    %v2417 = vld [vmem:[#allocation3 + $0x88] sm:$0xf]
    %v2418 = vld [vmem:[#allocation3 + $0x8c] sm:$0xf]
    %v2419 = vld [vmem:[#allocation3 + $0x90] sm:$0xf]
    %v2420 = vld [vmem:[#allocation3 + $0x94] sm:$0xf]
    %v2421 = vld [vmem:[#allocation3 + $0x98] sm:$0xf]
    %v2422 = vld [vmem:[#allocation3 + $0x9c] sm:$0xf]
    %v2423 = vld [vmem:[#allocation3 + $0xa0] sm:$0xf]
    %v2424 = vld [vmem:[#allocation3 + $0xa4] sm:$0xf]
    %v2425 = vld [vmem:[#allocation3 + $0xa8] sm:$0xf]
    %v2426 = vld [vmem:[#allocation3 + $0xac] sm:$0xf]
    %v2427 = vld [vmem:[#allocation3 + $0xb0] sm:$0xf]
    %v2428 = vld [vmem:[#allocation3 + $0xb4] sm:$0xf]
    %v2429 = vld [vmem:[#allocation3 + $0xb8] sm:$0xf]
    %v2430 = vld [vmem:[#allocation3 + $0xbc] sm:$0xf]
    %v2431 = vld [vmem:[#allocation3 + $0xc0] sm:$0xf]
    %v2432 = vld [vmem:[#allocation3 + $0xc4] sm:$0xf]
    %v2433 = vld [vmem:[#allocation3 + $0xc8] sm:$0xf]
    %v2434 = vld [vmem:[#allocation3 + $0xcc] sm:$0xf]
    %v2435 = vld [vmem:[#allocation3 + $0xd0] sm:$0xf]
    %v2436 = vld [vmem:[#allocation3 + $0xd4] sm:$0xf]
    %v2437 = vld [vmem:[#allocation3 + $0xd8] sm:$0xf]
    %v2438 = vld [vmem:[#allocation3 + $0xdc] sm:$0xf]
    %v2439 = vld [vmem:[#allocation3 + $0xe0] sm:$0xf]
    %v2440 = vld [vmem:[#allocation3 + $0xe4] sm:$0xf]
    %v2441 = vld [vmem:[#allocation3 + $0xe8] sm:$0xf]
    %v2442 = vld [vmem:[#allocation3 + $0xec] sm:$0xf]
    %v2443 = vld [vmem:[#allocation3 + $0xf0] sm:$0xf]
    %v2444 = vld [vmem:[#allocation3 + $0xf4] sm:$0xf]
    %v2445 = vld [vmem:[#allocation3 + $0xf8] sm:$0xf]
    %v2446 = vld [vmem:[#allocation3 + $0xfc] sm:$0xf]
    %v2447 = vld [vmem:[#allocation3 + $0x100] sm:$0xf]
    %v2448 = vld [vmem:[#allocation3 + $0x104] sm:$0xf]
    %v2449 = vld [vmem:[#allocation3 + $0x108] sm:$0xf]
    %v2450 = vld [vmem:[#allocation3 + $0x10c] sm:$0xf]
    %v2451 = vld [vmem:[#allocation3 + $0x110] sm:$0xf]
    %v2452 = vld [vmem:[#allocation3 + $0x114] sm:$0xf]
    %v2453 = vld [vmem:[#allocation3 + $0x118] sm:$0xf]
    %v2454 = vld [vmem:[#allocation3 + $0x11c] sm:$0xf]
    %v2455 = vld [vmem:[#allocation3 + $0x120] sm:$0xf]
    %v2456 = vld [vmem:[#allocation3 + $0x124] sm:$0xf]
    %v2457 = vld [vmem:[#allocation3 + $0x128] sm:$0xf]
    %v2458 = vld [vmem:[#allocation3 + $0x12c] sm:$0xf]
    %v2459 = vld [vmem:[#allocation3 + $0x130] sm:$0xf]
    %v2460 = vld [vmem:[#allocation3 + $0x134] sm:$0xf]
    %v2461 = vld [vmem:[#allocation3 + $0x138] sm:$0xf]
    %v2462 = vld [vmem:[#allocation3 + $0x13c] sm:$0xf]
    %v2463 = vld [vmem:[#allocation3 + $0x140] sm:$0xf]
    %v2464 = vld [vmem:[#allocation3 + $0x144] sm:$0xf]
    %v2465 = vld [vmem:[#allocation3 + $0x148] sm:$0xf]
    %v2466 = vld [vmem:[#allocation3 + $0x14c] sm:$0xf]
    %v2467 = vld [vmem:[#allocation3 + $0x150] sm:$0xf]
    %v2468 = vld [vmem:[#allocation3 + $0x154] sm:$0xf]
    %v2469 = vld [vmem:[#allocation3 + $0x158] sm:$0xf]
    %v2470 = vld [vmem:[#allocation3 + $0x15c] sm:$0xf]
    %v2471 = vld [vmem:[#allocation3 + $0x160] sm:$0xf]
    %v2472 = vld [vmem:[#allocation3 + $0x164] sm:$0xf]
    %v2473 = vld [vmem:[#allocation3 + $0x168] sm:$0xf]
    %v2474 = vld [vmem:[#allocation3 + $0x16c] sm:$0xf]
    %v2475 = vld [vmem:[#allocation3 + $0x170] sm:$0xf]
    %v2476 = vld [vmem:[#allocation3 + $0x174] sm:$0xf]
    %v2477 = vld [vmem:[#allocation3 + $0x178] sm:$0xf]
    %v2478 = vld [vmem:[#allocation3 + $0x17c] sm:$0xf]
    %v2479 = vld [vmem:[#allocation3 + $0x180] sm:$0xf]
    %v2480 = vld [vmem:[#allocation3 + $0x184] sm:$0xf]
    %v2481 = vld [vmem:[#allocation3 + $0x188] sm:$0xf]
    %v2482 = vld [vmem:[#allocation3 + $0x18c] sm:$0xf]
    %v2483 = vld [vmem:[#allocation3 + $0x190] sm:$0xf]
    %v2484 = vld [vmem:[#allocation3 + $0x194] sm:$0xf]
    %v2485 = vld [vmem:[#allocation3 + $0x198] sm:$0xf]
    %v2486 = vld [vmem:[#allocation3 + $0x19c] sm:$0xf]
    %v2487 = vld [vmem:[#allocation3 + $0x1a0] sm:$0xf]
    %v2488 = vld [vmem:[#allocation3 + $0x1a4] sm:$0xf]
    %v2489 = vld [vmem:[#allocation3 + $0x1a8] sm:$0xf]
    %v2490 = vld [vmem:[#allocation3 + $0x1ac] sm:$0xf]
    %v2491 = vld [vmem:[#allocation3 + $0x1b0] sm:$0xf]
    %v2492 = vld [vmem:[#allocation3 + $0x1b4] sm:$0xf]
    %v2493 = vld [vmem:[#allocation3 + $0x1b8] sm:$0xf]
    %v2494 = vld [vmem:[#allocation3 + $0x1bc] sm:$0xf]
    %v2495 = vld [vmem:[#allocation3 + $0x1c0] sm:$0xf]
    %v2496 = vld [vmem:[#allocation3 + $0x1c4] sm:$0xf]
    %v2497 = vld [vmem:[#allocation3 + $0x1c8] sm:$0xf]
    %v2498 = vld [vmem:[#allocation3 + $0x1cc] sm:$0xf]
    %v2499 = vld [vmem:[#allocation3 + $0x1d0] sm:$0xf]
    %v2500 = vld [vmem:[#allocation3 + $0x1d4] sm:$0xf]
    %v2501 = vld [vmem:[#allocation3 + $0x1d8] sm:$0xf]
    %v2502 = vld [vmem:[#allocation3 + $0x1dc] sm:$0xf]
    %v2503 = vld [vmem:[#allocation3 + $0x1e0] sm:$0xf]
    %v2504 = vld [vmem:[#allocation3 + $0x1e4] sm:$0xf]
    %v2505 = vld [vmem:[#allocation3 + $0x1e8] sm:$0xf]
    %v2506 = vld [vmem:[#allocation3 + $0x1ec] sm:$0xf]
    %v2507 = vld [vmem:[#allocation3 + $0x1f0] sm:$0xf]
    %v2508 = vld [vmem:[#allocation3 + $0x1f4] sm:$0xf]
    %v2509 = vld [vmem:[#allocation3 + $0x1f8] sm:$0xf]
    %v2510 = vld [vmem:[#allocation3 + $0x1fc] sm:$0xf]
    %v2511 = vld [vmem:[#allocation3 + $0x200] sm:$0xf]
    %v2512 = vld [vmem:[#allocation3 + $0x204] sm:$0xf]
    %v2513 = vld [vmem:[#allocation3 + $0x208] sm:$0xf]
    %v2514 = vld [vmem:[#allocation3 + $0x20c] sm:$0xf]
    %v2515 = vld [vmem:[#allocation3 + $0x210] sm:$0xf]
    %v2516 = vld [vmem:[#allocation3 + $0x214] sm:$0xf]
    %v2517 = vld [vmem:[#allocation3 + $0x218] sm:$0xf]
    %v2518 = vld [vmem:[#allocation3 + $0x21c] sm:$0xf]
    %v2519 = vld [vmem:[#allocation3 + $0x220] sm:$0xf]
    %v2520 = vld [vmem:[#allocation3 + $0x224] sm:$0xf]
    %v2521 = vld [vmem:[#allocation3 + $0x228] sm:$0xf]
    %v2522 = vld [vmem:[#allocation3 + $0x22c] sm:$0xf]
    %v2523 = vld [vmem:[#allocation3 + $0x230] sm:$0xf]
    %v2524 = vld [vmem:[#allocation3 + $0x234] sm:$0xf]
    %v2525 = vld [vmem:[#allocation3 + $0x238] sm:$0xf]
    %v2526 = vld [vmem:[#allocation3 + $0x23c] sm:$0xf]
    %v2527 = vld [vmem:[#allocation3 + $0x240] sm:$0xf]
    %v2528 = vld [vmem:[#allocation3 + $0x244] sm:$0xf]
    %v2529 = vld [vmem:[#allocation3 + $0x248] sm:$0xf]
    %v2530 = vld [vmem:[#allocation3 + $0x24c] sm:$0xf]
    %v2531 = vld [vmem:[#allocation3 + $0x250] sm:$0xf]
    %v2532 = vld [vmem:[#allocation3 + $0x254] sm:$0xf]
    %v2533 = vld [vmem:[#allocation3 + $0x258] sm:$0xf]
    %v2534 = vld [vmem:[#allocation3 + $0x25c] sm:$0xf]
    %v2535 = vld [vmem:[#allocation3 + $0x260] sm:$0xf]
    %v2536 = vld [vmem:[#allocation3 + $0x264] sm:$0xf]
    %v2537 = vld [vmem:[#allocation3 + $0x268] sm:$0xf]
    %v2538 = vld [vmem:[#allocation3 + $0x26c] sm:$0xf]
    %v2539 = vld [vmem:[#allocation3 + $0x270] sm:$0xf]
    %v2540 = vld [vmem:[#allocation3 + $0x274] sm:$0xf]
    %v2541 = vld [vmem:[#allocation3 + $0x278] sm:$0xf]
    %v2542 = vld [vmem:[#allocation3 + $0x27c] sm:$0xf]
    %v2543 = vld [vmem:[#allocation3 + $0x280] sm:$0xf]
    %v2544 = vld [vmem:[#allocation3 + $0x284] sm:$0xf]
    %v2545 = vld [vmem:[#allocation3 + $0x288] sm:$0xf]
    %v2546 = vld [vmem:[#allocation3 + $0x28c] sm:$0xf]
    %v2547 = vld [vmem:[#allocation3 + $0x290] sm:$0xf]
    %v2548 = vld [vmem:[#allocation3 + $0x294] sm:$0xf]
    %v2549 = vld [vmem:[#allocation3 + $0x298] sm:$0xf]
    %v2550 = vld [vmem:[#allocation3 + $0x29c] sm:$0xf]
    %v2551 = vld [vmem:[#allocation3 + $0x2a0] sm:$0xf]
    %v2552 = vld [vmem:[#allocation3 + $0x2a4] sm:$0xf]
    %v2553 = vld [vmem:[#allocation3 + $0x2a8] sm:$0xf]
    %v2554 = vld [vmem:[#allocation3 + $0x2ac] sm:$0xf]
    %v2555 = vld [vmem:[#allocation3 + $0x2b0] sm:$0xf]
    %v2556 = vld [vmem:[#allocation3 + $0x2b4] sm:$0xf]
    %v2557 = vld [vmem:[#allocation3 + $0x2b8] sm:$0xf]
    %v2558 = vld [vmem:[#allocation3 + $0x2bc] sm:$0xf]
    %v2559 = vld [vmem:[#allocation3 + $0x2c0] sm:$0xf]
    %v2560 = vld [vmem:[#allocation3 + $0x2c4] sm:$0xf]
    %v2561 = vld [vmem:[#allocation3 + $0x2c8] sm:$0xf]
    %v2562 = vld [vmem:[#allocation3 + $0x2cc] sm:$0xf]
    %v2563 = vld [vmem:[#allocation3 + $0x2d0] sm:$0xf]
    %v2564 = vld [vmem:[#allocation3 + $0x2d4] sm:$0xf]
    %v2565 = vld [vmem:[#allocation3 + $0x2d8] sm:$0xf]
    %v2566 = vld [vmem:[#allocation3 + $0x2dc] sm:$0xf]
    %v2567 = vld [vmem:[#allocation3 + $0x2e0] sm:$0xf]
    %v2568 = vld [vmem:[#allocation3 + $0x2e4] sm:$0xf]
    %v2569 = vld [vmem:[#allocation3 + $0x2e8] sm:$0xf]
    %v2570 = vld [vmem:[#allocation3 + $0x2ec] sm:$0xf]
    %v2571 = vld [vmem:[#allocation3 + $0x2f0] sm:$0xf]
    %v2572 = vld [vmem:[#allocation3 + $0x2f4] sm:$0xf]
    %v2573 = vld [vmem:[#allocation3 + $0x2f8] sm:$0xf]
    %v2574 = vld [vmem:[#allocation3 + $0x2fc] sm:$0xf]
    %v2575 = vld [vmem:[#allocation3 + $0x300] sm:$0xf]
    %v2576 = vld [vmem:[#allocation3 + $0x304] sm:$0xf]
    %v2577 = vld [vmem:[#allocation3 + $0x308] sm:$0xf]
    %v2578 = vld [vmem:[#allocation3 + $0x30c] sm:$0xf]
    %v2579 = vld [vmem:[#allocation3 + $0x310] sm:$0xf]
    %v2580 = vld [vmem:[#allocation3 + $0x314] sm:$0xf]
    %v2581 = vld [vmem:[#allocation3 + $0x318] sm:$0xf]
    %v2582 = vld [vmem:[#allocation3 + $0x31c] sm:$0xf]
    %v2583 = vld [vmem:[#allocation3 + $0x320] sm:$0xf]
    %v2584 = vld [vmem:[#allocation3 + $0x324] sm:$0xf]
    %v2585 = vld [vmem:[#allocation3 + $0x328] sm:$0xf]
    %v2586 = vld [vmem:[#allocation3 + $0x32c] sm:$0xf]
    %v2587 = vld [vmem:[#allocation3 + $0x330] sm:$0xf]
    %v2588 = vld [vmem:[#allocation3 + $0x334] sm:$0xf]
    %v2589 = vld [vmem:[#allocation3 + $0x338] sm:$0xf]
    %v2590 = vld [vmem:[#allocation3 + $0x33c] sm:$0xf]
    %v2591 = vld [vmem:[#allocation3 + $0x340] sm:$0xf]
    %v2592 = vld [vmem:[#allocation3 + $0x344] sm:$0xf]
    %v2593 = vld [vmem:[#allocation3 + $0x348] sm:$0xf]
    %v2594 = vld [vmem:[#allocation3 + $0x34c] sm:$0xf]
    %v2595 = vld [vmem:[#allocation3 + $0x350] sm:$0xf]
    %v2596 = vld [vmem:[#allocation3 + $0x354] sm:$0xf]
    %v2597 = vld [vmem:[#allocation3 + $0x358] sm:$0xf]
    %v2598 = vld [vmem:[#allocation3 + $0x35c] sm:$0xf]
    %v2599 = vld [vmem:[#allocation3 + $0x360] sm:$0xf]
    %v2600 = vld [vmem:[#allocation3 + $0x364] sm:$0xf]
    %v2601 = vld [vmem:[#allocation3 + $0x368] sm:$0xf]
    %v2602 = vld [vmem:[#allocation3 + $0x36c] sm:$0xf]
    %v2603 = vld [vmem:[#allocation3 + $0x370] sm:$0xf]
    %v2604 = vld [vmem:[#allocation3 + $0x374] sm:$0xf]
    %v2605 = vld [vmem:[#allocation3 + $0x378] sm:$0xf]
    %v2606 = vld [vmem:[#allocation3 + $0x37c] sm:$0xf]
    %v2607 = vld [vmem:[#allocation3 + $0x380] sm:$0xf]
    %v2608 = vld [vmem:[#allocation3 + $0x384] sm:$0xf]
    %v2609 = vld [vmem:[#allocation3 + $0x388] sm:$0xf]
    %v2610 = vld [vmem:[#allocation3 + $0x38c] sm:$0xf]
    %v2611 = vld [vmem:[#allocation3 + $0x390] sm:$0xf]
    %v2612 = vld [vmem:[#allocation3 + $0x394] sm:$0xf]
    %v2613 = vld [vmem:[#allocation3 + $0x398] sm:$0xf]
    %v2614 = vld [vmem:[#allocation3 + $0x39c] sm:$0xf]
    %v2615 = vld [vmem:[#allocation3 + $0x3a0] sm:$0xf]
    %v2616 = vld [vmem:[#allocation3 + $0x3a4] sm:$0xf]
    %v2617 = vld [vmem:[#allocation3 + $0x3a8] sm:$0xf]
    %v2618 = vld [vmem:[#allocation3 + $0x3ac] sm:$0xf]
    %v2619 = vld [vmem:[#allocation3 + $0x3b0] sm:$0xf]
    %v2620 = vld [vmem:[#allocation3 + $0x3b4] sm:$0xf]
    %v2621 = vld [vmem:[#allocation3 + $0x3b8] sm:$0xf]
    %v2622 = vld [vmem:[#allocation3 + $0x3bc] sm:$0xf]
    %v2623 = vld [vmem:[#allocation3 + $0x3c0] sm:$0xf]
    %v2624 = vld [vmem:[#allocation3 + $0x3c4] sm:$0xf]
    %v2625 = vld [vmem:[#allocation3 + $0x3c8] sm:$0xf]
    %v2626 = vld [vmem:[#allocation3 + $0x3cc] sm:$0xf]
    %v2627 = vld [vmem:[#allocation3 + $0x3d0] sm:$0xf]
    %v2628 = vld [vmem:[#allocation3 + $0x3d4] sm:$0xf]
    %v2629 = vld [vmem:[#allocation3 + $0x3d8] sm:$0xf]
    %v2630 = vld [vmem:[#allocation3 + $0x3dc] sm:$0xf]
    %v2631 = vld [vmem:[#allocation3 + $0x3e0] sm:$0xf]
    %v2632 = vld [vmem:[#allocation3 + $0x3e4] sm:$0xf]
    %v2633 = vld [vmem:[#allocation3 + $0x3e8] sm:$0xf]
    %v2634 = vld [vmem:[#allocation3 + $0x3ec] sm:$0xf]
    %v2635 = vld [vmem:[#allocation3 + $0x3f0] sm:$0xf]
    %v2636 = vld [vmem:[#allocation3 + $0x3f4] sm:$0xf]
    %v2637 = vld [vmem:[#allocation3 + $0x3f8] sm:$0xf]
    %v2638 = vld [vmem:[#allocation3 + $0x3fc] sm:$0xf]
    %v2639 = vld [vmem:[%s7] sm:$0x1]
    %v2641 = vlaneseq
    %v2642 = vshrl.u32 %v2641, 7
    %v2643 = vsub.s32 0, %v2642
    %v2644 = vrot.slane %v2639, %v2643
    %v2678 = vunpack.c.l.b16 %v2347
    %v2679 = vunpack.c.h.b16 %v2347
    %v2680 = vunpack.c.l.b16 %v2348
    %v2681 = vunpack.c.h.b16 %v2348
    %v2682 = vunpack.c.l.b16 %v2349
    %v2683 = vunpack.c.h.b16 %v2349
    %v2684 = vunpack.c.l.b16 %v2350
    %v2685 = vunpack.c.h.b16 %v2350
    %v2686 = vunpack.c.l.b16 %v2351
    %v2687 = vunpack.c.h.b16 %v2351
    %v2688 = vunpack.c.l.b16 %v2352
    %v2689 = vunpack.c.h.b16 %v2352
    %v2690 = vunpack.c.l.b16 %v2353
    %v2691 = vunpack.c.h.b16 %v2353
    %v2692 = vunpack.c.l.b16 %v2354
    %v2693 = vunpack.c.h.b16 %v2354
    %v2694 = vunpack.c.l.b16 %v2355
    %v2695 = vunpack.c.h.b16 %v2355
    %v2696 = vunpack.c.l.b16 %v2356
    %v2697 = vunpack.c.h.b16 %v2356
    %v2698 = vunpack.c.l.b16 %v2357
    %v2699 = vunpack.c.h.b16 %v2357
    %v2700 = vunpack.c.l.b16 %v2358
    %v2701 = vunpack.c.h.b16 %v2358
    %v2702 = vunpack.c.l.b16 %v2359
    %v2703 = vunpack.c.h.b16 %v2359
    %v2704 = vunpack.c.l.b16 %v2360
    %v2705 = vunpack.c.h.b16 %v2360
    %v2706 = vunpack.c.l.b16 %v2361
    %v2707 = vunpack.c.h.b16 %v2361
    %v2708 = vunpack.c.l.b16 %v2362
    %v2709 = vunpack.c.h.b16 %v2362
    %v2710 = vunpack.c.l.b16 %v2363
    %v2711 = vunpack.c.h.b16 %v2363
    %v2712 = vunpack.c.l.b16 %v2364
    %v2713 = vunpack.c.h.b16 %v2364
    %v2714 = vunpack.c.l.b16 %v2365
    %v2715 = vunpack.c.h.b16 %v2365
    %v2716 = vunpack.c.l.b16 %v2366
    %v2717 = vunpack.c.h.b16 %v2366
    %v2718 = vunpack.c.l.b16 %v2367
    %v2719 = vunpack.c.h.b16 %v2367
    %v2720 = vunpack.c.l.b16 %v2368
    %v2721 = vunpack.c.h.b16 %v2368
    %v2722 = vunpack.c.l.b16 %v2369
    %v2723 = vunpack.c.h.b16 %v2369
    %v2724 = vunpack.c.l.b16 %v2370
    %v2725 = vunpack.c.h.b16 %v2370
    %v2726 = vunpack.c.l.b16 %v2371
    %v2727 = vunpack.c.h.b16 %v2371
    %v2728 = vunpack.c.l.b16 %v2372
    %v2729 = vunpack.c.h.b16 %v2372
    %v2730 = vunpack.c.l.b16 %v2373
    %v2731 = vunpack.c.h.b16 %v2373
    %v2732 = vunpack.c.l.b16 %v2374
    %v2733 = vunpack.c.h.b16 %v2374
    %v2734 = vunpack.c.l.b16 %v2375
    %v2735 = vunpack.c.h.b16 %v2375
    %v2736 = vunpack.c.l.b16 %v2376
    %v2737 = vunpack.c.h.b16 %v2376
    %v2738 = vunpack.c.l.b16 %v2377
    %v2739 = vunpack.c.h.b16 %v2377
    %v2740 = vunpack.c.l.b16 %v2378
    %v2741 = vunpack.c.h.b16 %v2378
    %v2742 = vpack.c.b16 %v2694, %v2678
    %v2743 = vpack.c.b16 %v2695, %v2679
    %v2744 = vpack.c.b16 %v2696, %v2680
    %v2745 = vpack.c.b16 %v2697, %v2681
    %v2746 = vpack.c.b16 %v2698, %v2682
    %v2747 = vpack.c.b16 %v2699, %v2683
    %v2748 = vpack.c.b16 %v2700, %v2684
    %v2749 = vpack.c.b16 %v2701, %v2685
    %v2750 = vpack.c.b16 %v2702, %v2686
    %v2751 = vpack.c.b16 %v2703, %v2687
    %v2752 = vpack.c.b16 %v2704, %v2688
    %v2753 = vpack.c.b16 %v2705, %v2689
    %v2754 = vpack.c.b16 %v2706, %v2690
    %v2755 = vpack.c.b16 %v2707, %v2691
    %v2756 = vpack.c.b16 %v2708, %v2692
    %v2757 = vpack.c.b16 %v2709, %v2693
    %v2758 = vpack.c.b16 %v2726, %v2710
    %v2759 = vpack.c.b16 %v2727, %v2711
    %v2760 = vpack.c.b16 %v2728, %v2712
    %v2761 = vpack.c.b16 %v2729, %v2713
    %v2762 = vpack.c.b16 %v2730, %v2714
    %v2763 = vpack.c.b16 %v2731, %v2715
    %v2764 = vpack.c.b16 %v2732, %v2716
    %v2765 = vpack.c.b16 %v2733, %v2717
    %v2766 = vpack.c.b16 %v2734, %v2718
    %v2767 = vpack.c.b16 %v2735, %v2719
    %v2768 = vpack.c.b16 %v2736, %v2720
    %v2769 = vpack.c.b16 %v2737, %v2721
    %v2770 = vpack.c.b16 %v2738, %v2722
    %v2771 = vpack.c.b16 %v2739, %v2723
    %v2772 = vpack.c.b16 %v2740, %v2724
    %v2773 = vpack.c.b16 %v2741, %v2725
    %v3062 = vunpack.c.l.b16 %v2383
    %v3063 = vunpack.c.l.b16 %v2384
    %v3064 = vunpack.c.l.b16 %v2385
    %v3065 = vunpack.c.l.b16 %v2386
    %v3066 = vunpack.c.l.b16 %v2387
    %v3067 = vunpack.c.l.b16 %v2388
    %v3068 = vunpack.c.l.b16 %v2389
    %v3069 = vunpack.c.l.b16 %v2390
    %v3070 = vunpack.c.l.b16 %v2391
    %v3071 = vunpack.c.l.b16 %v2392
    %v3072 = vunpack.c.l.b16 %v2393
    %v3073 = vunpack.c.l.b16 %v2394
    %v3074 = vunpack.c.l.b16 %v2395
    %v3075 = vunpack.c.l.b16 %v2396
    %v3076 = vunpack.c.l.b16 %v2397
    %v3077 = vunpack.c.l.b16 %v2398
    %v3078 = vunpack.c.l.b16 %v2399
    %v3079 = vunpack.c.l.b16 %v2400
    %v3080 = vunpack.c.l.b16 %v2401
    %v3081 = vunpack.c.l.b16 %v2402
    %v3082 = vunpack.c.l.b16 %v2403
    %v3083 = vunpack.c.l.b16 %v2404
    %v3084 = vunpack.c.l.b16 %v2405
    %v3085 = vunpack.c.l.b16 %v2406
    %v3086 = vunpack.c.l.b16 %v2407
    %v3087 = vunpack.c.l.b16 %v2408
    %v3088 = vunpack.c.l.b16 %v2409
    %v3089 = vunpack.c.l.b16 %v2410
    %v3090 = vunpack.c.l.b16 %v2411
    %v3091 = vunpack.c.l.b16 %v2412
    %v3092 = vunpack.c.l.b16 %v2413
    %v3093 = vunpack.c.l.b16 %v2414
    %v3094 = vunpack.c.l.b16 %v2415
    %v3095 = vunpack.c.l.b16 %v2416
    %v3096 = vunpack.c.l.b16 %v2417
    %v3097 = vunpack.c.l.b16 %v2418
    %v3098 = vunpack.c.l.b16 %v2419
    %v3099 = vunpack.c.l.b16 %v2420
    %v3100 = vunpack.c.l.b16 %v2421
    %v3101 = vunpack.c.l.b16 %v2422
    %v3102 = vunpack.c.l.b16 %v2423
    %v3103 = vunpack.c.l.b16 %v2424
    %v3104 = vunpack.c.l.b16 %v2425
    %v3105 = vunpack.c.l.b16 %v2426
    %v3106 = vunpack.c.l.b16 %v2427
    %v3107 = vunpack.c.l.b16 %v2428
    %v3108 = vunpack.c.l.b16 %v2429
    %v3109 = vunpack.c.l.b16 %v2430
    %v3110 = vunpack.c.l.b16 %v2431
    %v3111 = vunpack.c.l.b16 %v2432
    %v3112 = vunpack.c.l.b16 %v2433
    %v3113 = vunpack.c.l.b16 %v2434
    %v3114 = vunpack.c.l.b16 %v2435
    %v3115 = vunpack.c.l.b16 %v2436
    %v3116 = vunpack.c.l.b16 %v2437
    %v3117 = vunpack.c.l.b16 %v2438
    %v3118 = vunpack.c.l.b16 %v2439
    %v3119 = vunpack.c.l.b16 %v2440
    %v3120 = vunpack.c.l.b16 %v2441
    %v3121 = vunpack.c.l.b16 %v2442
    %v3122 = vunpack.c.l.b16 %v2443
    %v3123 = vunpack.c.l.b16 %v2444
    %v3124 = vunpack.c.l.b16 %v2445
    %v3125 = vunpack.c.l.b16 %v2446
    %v3126 = vunpack.c.l.b16 %v2447
    %v3127 = vunpack.c.l.b16 %v2448
    %v3128 = vunpack.c.l.b16 %v2449
    %v3129 = vunpack.c.l.b16 %v2450
    %v3130 = vunpack.c.l.b16 %v2451
    %v3131 = vunpack.c.l.b16 %v2452
    %v3132 = vunpack.c.l.b16 %v2453
    %v3133 = vunpack.c.l.b16 %v2454
    %v3134 = vunpack.c.l.b16 %v2455
    %v3135 = vunpack.c.l.b16 %v2456
    %v3136 = vunpack.c.l.b16 %v2457
    %v3137 = vunpack.c.l.b16 %v2458
    %v3138 = vunpack.c.l.b16 %v2459
    %v3139 = vunpack.c.l.b16 %v2460
    %v3140 = vunpack.c.l.b16 %v2461
    %v3141 = vunpack.c.l.b16 %v2462
    %v3142 = vunpack.c.l.b16 %v2463
    %v3143 = vunpack.c.l.b16 %v2464
    %v3144 = vunpack.c.l.b16 %v2465
    %v3145 = vunpack.c.l.b16 %v2466
    %v3146 = vunpack.c.l.b16 %v2467
    %v3147 = vunpack.c.l.b16 %v2468
    %v3148 = vunpack.c.l.b16 %v2469
    %v3149 = vunpack.c.l.b16 %v2470
    %v3150 = vunpack.c.l.b16 %v2471
    %v3151 = vunpack.c.l.b16 %v2472
    %v3152 = vunpack.c.l.b16 %v2473
    %v3153 = vunpack.c.l.b16 %v2474
    %v3154 = vunpack.c.l.b16 %v2475
    %v3155 = vunpack.c.l.b16 %v2476
    %v3156 = vunpack.c.l.b16 %v2477
    %v3157 = vunpack.c.l.b16 %v2478
    %v3158 = vunpack.c.l.b16 %v2479
    %v3159 = vunpack.c.l.b16 %v2480
    %v3160 = vunpack.c.l.b16 %v2481
    %v3161 = vunpack.c.l.b16 %v2482
    %v3162 = vunpack.c.l.b16 %v2483
    %v3163 = vunpack.c.l.b16 %v2484
    %v3164 = vunpack.c.l.b16 %v2485
    %v3165 = vunpack.c.l.b16 %v2486
    %v3166 = vunpack.c.l.b16 %v2487
    %v3167 = vunpack.c.l.b16 %v2488
    %v3168 = vunpack.c.l.b16 %v2489
    %v3169 = vunpack.c.l.b16 %v2490
    %v3170 = vunpack.c.l.b16 %v2491
    %v3171 = vunpack.c.l.b16 %v2492
    %v3172 = vunpack.c.l.b16 %v2493
    %v3173 = vunpack.c.l.b16 %v2494
    %v3174 = vunpack.c.l.b16 %v2495
    %v3175 = vunpack.c.l.b16 %v2496
    %v3176 = vunpack.c.l.b16 %v2497
    %v3177 = vunpack.c.l.b16 %v2498
    %v3178 = vunpack.c.l.b16 %v2499
    %v3179 = vunpack.c.l.b16 %v2500
    %v3180 = vunpack.c.l.b16 %v2501
    %v3181 = vunpack.c.l.b16 %v2502
    %v3182 = vunpack.c.l.b16 %v2503
    %v3183 = vunpack.c.l.b16 %v2504
    %v3184 = vunpack.c.l.b16 %v2505
    %v3185 = vunpack.c.l.b16 %v2506
    %v3186 = vunpack.c.l.b16 %v2507
    %v3187 = vunpack.c.l.b16 %v2508
    %v3188 = vunpack.c.l.b16 %v2509
    %v3189 = vunpack.c.l.b16 %v2510
    %v3190 = vunpack.c.l.b16 %v2511
    %v3191 = vunpack.c.l.b16 %v2512
    %v3192 = vunpack.c.l.b16 %v2513
    %v3193 = vunpack.c.l.b16 %v2514
    %v3194 = vunpack.c.l.b16 %v2515
    %v3195 = vunpack.c.l.b16 %v2516
    %v3196 = vunpack.c.l.b16 %v2517
    %v3197 = vunpack.c.l.b16 %v2518
    %v3198 = vunpack.c.l.b16 %v2519
    %v3199 = vunpack.c.l.b16 %v2520
    %v3200 = vunpack.c.l.b16 %v2521
    %v3201 = vunpack.c.l.b16 %v2522
    %v3202 = vunpack.c.l.b16 %v2523
    %v3203 = vunpack.c.l.b16 %v2524
    %v3204 = vunpack.c.l.b16 %v2525
    %v3205 = vunpack.c.l.b16 %v2526
    %v3206 = vunpack.c.l.b16 %v2527
    %v3207 = vunpack.c.l.b16 %v2528
    %v3208 = vunpack.c.l.b16 %v2529
    %v3209 = vunpack.c.l.b16 %v2530
    %v3210 = vunpack.c.l.b16 %v2531
    %v3211 = vunpack.c.l.b16 %v2532
    %v3212 = vunpack.c.l.b16 %v2533
    %v3213 = vunpack.c.l.b16 %v2534
    %v3214 = vunpack.c.l.b16 %v2535
    %v3215 = vunpack.c.l.b16 %v2536
    %v3216 = vunpack.c.l.b16 %v2537
    %v3217 = vunpack.c.l.b16 %v2538
    %v3218 = vunpack.c.l.b16 %v2539
    %v3219 = vunpack.c.l.b16 %v2540
    %v3220 = vunpack.c.l.b16 %v2541
    %v3221 = vunpack.c.l.b16 %v2542
    %v3222 = vunpack.c.l.b16 %v2543
    %v3223 = vunpack.c.l.b16 %v2544
    %v3224 = vunpack.c.l.b16 %v2545
    %v3225 = vunpack.c.l.b16 %v2546
    %v3226 = vunpack.c.l.b16 %v2547
    %v3227 = vunpack.c.l.b16 %v2548
    %v3228 = vunpack.c.l.b16 %v2549
    %v3229 = vunpack.c.l.b16 %v2550
    %v3230 = vunpack.c.l.b16 %v2551
    %v3231 = vunpack.c.l.b16 %v2552
    %v3232 = vunpack.c.l.b16 %v2553
    %v3233 = vunpack.c.l.b16 %v2554
    %v3234 = vunpack.c.l.b16 %v2555
    %v3235 = vunpack.c.l.b16 %v2556
    %v3236 = vunpack.c.l.b16 %v2557
    %v3237 = vunpack.c.l.b16 %v2558
    %v3238 = vunpack.c.l.b16 %v2559
    %v3239 = vunpack.c.l.b16 %v2560
    %v3240 = vunpack.c.l.b16 %v2561
    %v3241 = vunpack.c.l.b16 %v2562
    %v3242 = vunpack.c.l.b16 %v2563
    %v3243 = vunpack.c.l.b16 %v2564
    %v3244 = vunpack.c.l.b16 %v2565
    %v3245 = vunpack.c.l.b16 %v2566
    %v3246 = vunpack.c.l.b16 %v2567
    %v3247 = vunpack.c.l.b16 %v2568
    %v3248 = vunpack.c.l.b16 %v2569
    %v3249 = vunpack.c.l.b16 %v2570
    %v3250 = vunpack.c.l.b16 %v2571
    %v3251 = vunpack.c.l.b16 %v2572
    %v3252 = vunpack.c.l.b16 %v2573
    %v3253 = vunpack.c.l.b16 %v2574
    %v3254 = vunpack.c.l.b16 %v2575
    %v3255 = vunpack.c.l.b16 %v2576
    %v3256 = vunpack.c.l.b16 %v2577
    %v3257 = vunpack.c.l.b16 %v2578
    %v3258 = vunpack.c.l.b16 %v2579
    %v3259 = vunpack.c.l.b16 %v2580
    %v3260 = vunpack.c.l.b16 %v2581
    %v3261 = vunpack.c.l.b16 %v2582
    %v3262 = vunpack.c.l.b16 %v2583
    %v3263 = vunpack.c.l.b16 %v2584
    %v3264 = vunpack.c.l.b16 %v2585
    %v3265 = vunpack.c.l.b16 %v2586
    %v3266 = vunpack.c.l.b16 %v2587
    %v3267 = vunpack.c.l.b16 %v2588
    %v3268 = vunpack.c.l.b16 %v2589
    %v3269 = vunpack.c.l.b16 %v2590
    %v3270 = vunpack.c.l.b16 %v2591
    %v3271 = vunpack.c.l.b16 %v2592
    %v3272 = vunpack.c.l.b16 %v2593
    %v3273 = vunpack.c.l.b16 %v2594
    %v3274 = vunpack.c.l.b16 %v2595
    %v3275 = vunpack.c.l.b16 %v2596
    %v3276 = vunpack.c.l.b16 %v2597
    %v3277 = vunpack.c.l.b16 %v2598
    %v3278 = vunpack.c.l.b16 %v2599
    %v3279 = vunpack.c.l.b16 %v2600
    %v3280 = vunpack.c.l.b16 %v2601
    %v3281 = vunpack.c.l.b16 %v2602
    %v3282 = vunpack.c.l.b16 %v2603
    %v3283 = vunpack.c.l.b16 %v2604
    %v3284 = vunpack.c.l.b16 %v2605
    %v3285 = vunpack.c.l.b16 %v2606
    %v3286 = vunpack.c.l.b16 %v2607
    %v3287 = vunpack.c.l.b16 %v2608
    %v3288 = vunpack.c.l.b16 %v2609
    %v3289 = vunpack.c.l.b16 %v2610
    %v3290 = vunpack.c.l.b16 %v2611
    %v3291 = vunpack.c.l.b16 %v2612
    %v3292 = vunpack.c.l.b16 %v2613
    %v3293 = vunpack.c.l.b16 %v2614
    %v3294 = vunpack.c.l.b16 %v2615
    %v3295 = vunpack.c.l.b16 %v2616
    %v3296 = vunpack.c.l.b16 %v2617
    %v3297 = vunpack.c.l.b16 %v2618
    %v3298 = vunpack.c.l.b16 %v2619
    %v3299 = vunpack.c.l.b16 %v2620
    %v3300 = vunpack.c.l.b16 %v2621
    %v3301 = vunpack.c.l.b16 %v2622
    %v3302 = vunpack.c.l.b16 %v2623
    %v3303 = vunpack.c.l.b16 %v2624
    %v3304 = vunpack.c.l.b16 %v2625
    %v3305 = vunpack.c.l.b16 %v2626
    %v3306 = vunpack.c.l.b16 %v2627
    %v3307 = vunpack.c.l.b16 %v2628
    %v3308 = vunpack.c.l.b16 %v2629
    %v3309 = vunpack.c.l.b16 %v2630
    %v3310 = vunpack.c.l.b16 %v2631
    %v3311 = vunpack.c.l.b16 %v2632
    %v3312 = vunpack.c.l.b16 %v2633
    %v3313 = vunpack.c.l.b16 %v2634
    %v3314 = vunpack.c.l.b16 %v2635
    %v3315 = vunpack.c.l.b16 %v2636
    %v3316 = vunpack.c.l.b16 %v2637
    %v3317 = vunpack.c.l.b16 %v2638
    %v3318 = vpack.c.b16 %v3063, %v3062
    %v3319 = vpack.c.b16 %v3065, %v3064
    %v3320 = vpack.c.b16 %v3067, %v3066
    %v3321 = vpack.c.b16 %v3069, %v3068
    %v3322 = vpack.c.b16 %v3071, %v3070
    %v3323 = vpack.c.b16 %v3073, %v3072
    %v3324 = vpack.c.b16 %v3075, %v3074
    %v3325 = vpack.c.b16 %v3077, %v3076
    %v3326 = vpack.c.b16 %v3079, %v3078
    %v3327 = vpack.c.b16 %v3081, %v3080
    %v3328 = vpack.c.b16 %v3083, %v3082
    %v3329 = vpack.c.b16 %v3085, %v3084
    %v3330 = vpack.c.b16 %v3087, %v3086
    %v3331 = vpack.c.b16 %v3089, %v3088
    %v3332 = vpack.c.b16 %v3091, %v3090
    %v3333 = vpack.c.b16 %v3093, %v3092
    %v3334 = vpack.c.b16 %v3095, %v3094
    %v3335 = vpack.c.b16 %v3097, %v3096
    %v3336 = vpack.c.b16 %v3099, %v3098
    %v3337 = vpack.c.b16 %v3101, %v3100
    %v3338 = vpack.c.b16 %v3103, %v3102
    %v3339 = vpack.c.b16 %v3105, %v3104
    %v3340 = vpack.c.b16 %v3107, %v3106
    %v3341 = vpack.c.b16 %v3109, %v3108
    %v3342 = vpack.c.b16 %v3111, %v3110
    %v3343 = vpack.c.b16 %v3113, %v3112
    %v3344 = vpack.c.b16 %v3115, %v3114
    %v3345 = vpack.c.b16 %v3117, %v3116
    %v3346 = vpack.c.b16 %v3119, %v3118
    %v3347 = vpack.c.b16 %v3121, %v3120
    %v3348 = vpack.c.b16 %v3123, %v3122
    %v3349 = vpack.c.b16 %v3125, %v3124
    %v3350 = vpack.c.b16 %v3127, %v3126
    %v3351 = vpack.c.b16 %v3129, %v3128
    %v3352 = vpack.c.b16 %v3131, %v3130
    %v3353 = vpack.c.b16 %v3133, %v3132
    %v3354 = vpack.c.b16 %v3135, %v3134
    %v3355 = vpack.c.b16 %v3137, %v3136
    %v3356 = vpack.c.b16 %v3139, %v3138
    %v3357 = vpack.c.b16 %v3141, %v3140
    %v3358 = vpack.c.b16 %v3143, %v3142
    %v3359 = vpack.c.b16 %v3145, %v3144
    %v3360 = vpack.c.b16 %v3147, %v3146
    %v3361 = vpack.c.b16 %v3149, %v3148
    %v3362 = vpack.c.b16 %v3151, %v3150
    %v3363 = vpack.c.b16 %v3153, %v3152
    %v3364 = vpack.c.b16 %v3155, %v3154
    %v3365 = vpack.c.b16 %v3157, %v3156
    %v3366 = vpack.c.b16 %v3159, %v3158
    %v3367 = vpack.c.b16 %v3161, %v3160
    %v3368 = vpack.c.b16 %v3163, %v3162
    %v3369 = vpack.c.b16 %v3165, %v3164
    %v3370 = vpack.c.b16 %v3167, %v3166
    %v3371 = vpack.c.b16 %v3169, %v3168
    %v3372 = vpack.c.b16 %v3171, %v3170
    %v3373 = vpack.c.b16 %v3173, %v3172
    %v3374 = vpack.c.b16 %v3175, %v3174
    %v3375 = vpack.c.b16 %v3177, %v3176
    %v3376 = vpack.c.b16 %v3179, %v3178
    %v3377 = vpack.c.b16 %v3181, %v3180
    %v3378 = vpack.c.b16 %v3183, %v3182
    %v3379 = vpack.c.b16 %v3185, %v3184
    %v3380 = vpack.c.b16 %v3187, %v3186
    %v3381 = vpack.c.b16 %v3189, %v3188
    %v3382 = vpack.c.b16 %v3191, %v3190
    %v3383 = vpack.c.b16 %v3193, %v3192
    %v3384 = vpack.c.b16 %v3195, %v3194
    %v3385 = vpack.c.b16 %v3197, %v3196
    %v3386 = vpack.c.b16 %v3199, %v3198
    %v3387 = vpack.c.b16 %v3201, %v3200
    %v3388 = vpack.c.b16 %v3203, %v3202
    %v3389 = vpack.c.b16 %v3205, %v3204
    %v3390 = vpack.c.b16 %v3207, %v3206
    %v3391 = vpack.c.b16 %v3209, %v3208
    %v3392 = vpack.c.b16 %v3211, %v3210
    %v3393 = vpack.c.b16 %v3213, %v3212
    %v3394 = vpack.c.b16 %v3215, %v3214
    %v3395 = vpack.c.b16 %v3217, %v3216
    %v3396 = vpack.c.b16 %v3219, %v3218
    %v3397 = vpack.c.b16 %v3221, %v3220
    %v3398 = vpack.c.b16 %v3223, %v3222
    %v3399 = vpack.c.b16 %v3225, %v3224
    %v3400 = vpack.c.b16 %v3227, %v3226
    %v3401 = vpack.c.b16 %v3229, %v3228
    %v3402 = vpack.c.b16 %v3231, %v3230
    %v3403 = vpack.c.b16 %v3233, %v3232
    %v3404 = vpack.c.b16 %v3235, %v3234
    %v3405 = vpack.c.b16 %v3237, %v3236
    %v3406 = vpack.c.b16 %v3239, %v3238
    %v3407 = vpack.c.b16 %v3241, %v3240
    %v3408 = vpack.c.b16 %v3243, %v3242
    %v3409 = vpack.c.b16 %v3245, %v3244
    %v3410 = vpack.c.b16 %v3247, %v3246
    %v3411 = vpack.c.b16 %v3249, %v3248
    %v3412 = vpack.c.b16 %v3251, %v3250
    %v3413 = vpack.c.b16 %v3253, %v3252
    %v3414 = vpack.c.b16 %v3255, %v3254
    %v3415 = vpack.c.b16 %v3257, %v3256
    %v3416 = vpack.c.b16 %v3259, %v3258
    %v3417 = vpack.c.b16 %v3261, %v3260
    %v3418 = vpack.c.b16 %v3263, %v3262
    %v3419 = vpack.c.b16 %v3265, %v3264
    %v3420 = vpack.c.b16 %v3267, %v3266
    %v3421 = vpack.c.b16 %v3269, %v3268
    %v3422 = vpack.c.b16 %v3271, %v3270
    %v3423 = vpack.c.b16 %v3273, %v3272
    %v3424 = vpack.c.b16 %v3275, %v3274
    %v3425 = vpack.c.b16 %v3277, %v3276
    %v3426 = vpack.c.b16 %v3279, %v3278
    %v3427 = vpack.c.b16 %v3281, %v3280
    %v3428 = vpack.c.b16 %v3283, %v3282
    %v3429 = vpack.c.b16 %v3285, %v3284
    %v3430 = vpack.c.b16 %v3287, %v3286
    %v3431 = vpack.c.b16 %v3289, %v3288
    %v3432 = vpack.c.b16 %v3291, %v3290
    %v3433 = vpack.c.b16 %v3293, %v3292
    %v3434 = vpack.c.b16 %v3295, %v3294
    %v3435 = vpack.c.b16 %v3297, %v3296
    %v3436 = vpack.c.b16 %v3299, %v3298
    %v3437 = vpack.c.b16 %v3301, %v3300
    %v3438 = vpack.c.b16 %v3303, %v3302
    %v3439 = vpack.c.b16 %v3305, %v3304
    %v3440 = vpack.c.b16 %v3307, %v3306
    %v3441 = vpack.c.b16 %v3309, %v3308
    %v3442 = vpack.c.b16 %v3311, %v3310
    %v3443 = vpack.c.b16 %v3313, %v3312
    %v3444 = vpack.c.b16 %v3315, %v3314
    %v3445 = vpack.c.b16 %v3317, %v3316
    %3574 = vmatprep.subr.bf16.mxu0 0
    %3575 = vmatpush1.bf16.msra.mxu0 %v3325
    %3576 = vmatprep.subr.bf16.mxu0 0
    %3577 = vmatpush1.bf16.msra.mxu0 %v3324
    %3578 = vmatprep.subr.bf16.mxu0 0
    %3579 = vmatpush1.bf16.msra.mxu0 %v3323
    %3580 = vmatprep.subr.bf16.mxu0 0
    %3581 = vmatpush1.bf16.msra.mxu0 %v3322
    %3582 = vmatprep.subr.bf16.mxu0 0
    %3583 = vmatpush1.bf16.msra.mxu0 %v3321
    %3584 = vmatprep.subr.bf16.mxu0 0
    %3585 = vmatpush1.bf16.msra.mxu0 %v3320
    %3586 = vmatprep.subr.bf16.mxu0 0
    %3587 = vmatpush1.bf16.msra.mxu0 %v3319
    %3588 = vmatprep.subr.bf16.mxu0 0
    %3589 = vmatpush1.bf16.msra.mxu0 %v3318
    %3590 = vmatprep.subr.bf16.mxu0 0
    %3591 = vmatpush2.bf16.msra.mxu0 %v3333
    %3592 = vmatprep.subr.bf16.mxu0 0
    %3593 = vmatpush2.bf16.msra.mxu0 %v3332
    %3594 = vmatprep.subr.bf16.mxu0 0
    %3595 = vmatpush2.bf16.msra.mxu0 %v3331
    %3596 = vmatprep.subr.bf16.mxu0 0
    %3597 = vmatpush2.bf16.msra.mxu0 %v3330
    %3598 = vmatprep.subr.bf16.mxu0 0
    %3599 = vmatpush2.bf16.msra.mxu0 %v3329
    %3600 = vmatprep.subr.bf16.mxu0 0
    %3601 = vmatpush2.bf16.msra.mxu0 %v3328
    %3602 = vmatprep.subr.bf16.mxu0 0
    %3603 = vmatpush2.bf16.msra.mxu0 %v3327
    %3604 = vmatprep.subr.bf16.mxu0 0
    %3605 = vmatpush2.bf16.msra.mxu0 %v3326
    %3606 = vmatprep.mubr.bf16.mxu0 %v2743
    %3607 = vmatmul.mubr.bf16.gmra.mxu0 %v2742
    %v3608 = vpop.f32.mrf.mxu0
    %v3609 = vadd.f32 %v2644, %v3608
    %v3610 = vpop.f32.mrf.mxu0
    %v3611 = vpop.f32.mrf.mxu0
    %v3612 = vadd.f32 %v2644, %v3611
    %v3613 = vpop.f32.mrf.mxu0
    %3614 = vmatprep.mubr.bf16.mxu0 %v2759
    %3615 = vmatmul.mubr.bf16.gmra.mxu0 %v2758
    %v3616 = vpop.f32.mrf.mxu0
    %v3617 = vadd.f32 %v2644, %v3616
    %v3618 = vpop.f32.mrf.mxu0
    %v3619 = vpop.f32.mrf.mxu0
    %v3620 = vadd.f32 %v2644, %v3619
    %v3621 = vpop.f32.mrf.mxu0
    %3622 = vdwg.mxu0
    %3623 = vmatprep.subr.bf16.mxu0 0
    %3624 = vmatpush1.bf16.msra.mxu0 %v3341
    %3625 = vmatprep.subr.bf16.mxu0 0
    %3626 = vmatpush1.bf16.msra.mxu0 %v3340
    %3627 = vmatprep.subr.bf16.mxu0 0
    %3628 = vmatpush1.bf16.msra.mxu0 %v3339
    %3629 = vmatprep.subr.bf16.mxu0 0
    %3630 = vmatpush1.bf16.msra.mxu0 %v3338
    %3631 = vmatprep.subr.bf16.mxu0 0
    %3632 = vmatpush1.bf16.msra.mxu0 %v3337
    %3633 = vmatprep.subr.bf16.mxu0 0
    %3634 = vmatpush1.bf16.msra.mxu0 %v3336
    %3635 = vmatprep.subr.bf16.mxu0 0
    %3636 = vmatpush1.bf16.msra.mxu0 %v3335
    %3637 = vmatprep.subr.bf16.mxu0 0
    %3638 = vmatpush1.bf16.msra.mxu0 %v3334
    %3639 = vmatprep.subr.bf16.mxu0 0
    %3640 = vmatpush2.bf16.msra.mxu0 %v3349
    %3641 = vmatprep.subr.bf16.mxu0 0
    %3642 = vmatpush2.bf16.msra.mxu0 %v3348
    %3643 = vmatprep.subr.bf16.mxu0 0
    %3644 = vmatpush2.bf16.msra.mxu0 %v3347
    %3645 = vmatprep.subr.bf16.mxu0 0
    %3646 = vmatpush2.bf16.msra.mxu0 %v3346
    %3647 = vmatprep.subr.bf16.mxu0 0
    %3648 = vmatpush2.bf16.msra.mxu0 %v3345
    %3649 = vmatprep.subr.bf16.mxu0 0
    %3650 = vmatpush2.bf16.msra.mxu0 %v3344
    %3651 = vmatprep.subr.bf16.mxu0 0
    %3652 = vmatpush2.bf16.msra.mxu0 %v3343
    %3653 = vmatprep.subr.bf16.mxu0 0
    %3654 = vmatpush2.bf16.msra.mxu0 %v3342
    %3655 = vmatprep.mubr.bf16.mxu0 %v2745
    %3656 = vmatmul.mubr.bf16.gmra.mxu0 %v2744
    %v3657 = vpop.f32.mrf.mxu0
    %v3658 = vadd.f32 %v3609, %v3657
    %v3659 = vpop.f32.mrf.mxu0
    %v3660 = vpop.f32.mrf.mxu0
    %v3661 = vadd.f32 %v3612, %v3660
    %v3662 = vpop.f32.mrf.mxu0
    %3663 = vmatprep.mubr.bf16.mxu0 %v2761
    %3664 = vmatmul.mubr.bf16.gmra.mxu0 %v2760
    %v3665 = vpop.f32.mrf.mxu0
    %v3666 = vadd.f32 %v3617, %v3665
    %v3667 = vpop.f32.mrf.mxu0
    %v3668 = vpop.f32.mrf.mxu0
    %v3669 = vadd.f32 %v3620, %v3668
    %v3670 = vpop.f32.mrf.mxu0
    %3671 = vdwg.mxu0
    %3672 = vmatprep.subr.bf16.mxu0 0
    %3673 = vmatpush1.bf16.msra.mxu0 %v3357
    %3674 = vmatprep.subr.bf16.mxu0 0
    %3675 = vmatpush1.bf16.msra.mxu0 %v3356
    %3676 = vmatprep.subr.bf16.mxu0 0
    %3677 = vmatpush1.bf16.msra.mxu0 %v3355
    %3678 = vmatprep.subr.bf16.mxu0 0
    %3679 = vmatpush1.bf16.msra.mxu0 %v3354
    %3680 = vmatprep.subr.bf16.mxu0 0
    %3681 = vmatpush1.bf16.msra.mxu0 %v3353
    %3682 = vmatprep.subr.bf16.mxu0 0
    %3683 = vmatpush1.bf16.msra.mxu0 %v3352
    %3684 = vmatprep.subr.bf16.mxu0 0
    %3685 = vmatpush1.bf16.msra.mxu0 %v3351
    %3686 = vmatprep.subr.bf16.mxu0 0
    %3687 = vmatpush1.bf16.msra.mxu0 %v3350
    %3688 = vmatprep.subr.bf16.mxu0 0
    %3689 = vmatpush2.bf16.msra.mxu0 %v3365
    %3690 = vmatprep.subr.bf16.mxu0 0
    %3691 = vmatpush2.bf16.msra.mxu0 %v3364
    %3692 = vmatprep.subr.bf16.mxu0 0
    %3693 = vmatpush2.bf16.msra.mxu0 %v3363
    %3694 = vmatprep.subr.bf16.mxu0 0
    %3695 = vmatpush2.bf16.msra.mxu0 %v3362
    %3696 = vmatprep.subr.bf16.mxu0 0
    %3697 = vmatpush2.bf16.msra.mxu0 %v3361
    %3698 = vmatprep.subr.bf16.mxu0 0
    %3699 = vmatpush2.bf16.msra.mxu0 %v3360
    %3700 = vmatprep.subr.bf16.mxu0 0
    %3701 = vmatpush2.bf16.msra.mxu0 %v3359
    %3702 = vmatprep.subr.bf16.mxu0 0
    %3703 = vmatpush2.bf16.msra.mxu0 %v3358
    %3704 = vmatprep.mubr.bf16.mxu0 %v2747
    %3705 = vmatmul.mubr.bf16.gmra.mxu0 %v2746
    %v3706 = vpop.f32.mrf.mxu0
    %v3707 = vadd.f32 %v3658, %v3706
    %v3708 = vpop.f32.mrf.mxu0
    %v3709 = vpop.f32.mrf.mxu0
    %v3710 = vadd.f32 %v3661, %v3709
    %v3711 = vpop.f32.mrf.mxu0
    %3712 = vmatprep.mubr.bf16.mxu0 %v2763
    %3713 = vmatmul.mubr.bf16.gmra.mxu0 %v2762
    %v3714 = vpop.f32.mrf.mxu0
    %v3715 = vadd.f32 %v3666, %v3714
    %v3716 = vpop.f32.mrf.mxu0
    %v3717 = vpop.f32.mrf.mxu0
    %v3718 = vadd.f32 %v3669, %v3717
    %v3719 = vpop.f32.mrf.mxu0
    %3720 = vdwg.mxu0
    %3721 = vmatprep.subr.bf16.mxu0 0
    %3722 = vmatpush1.bf16.msra.mxu0 %v3373
    %3723 = vmatprep.subr.bf16.mxu0 0
    %3724 = vmatpush1.bf16.msra.mxu0 %v3372
    %3725 = vmatprep.subr.bf16.mxu0 0
    %3726 = vmatpush1.bf16.msra.mxu0 %v3371
    %3727 = vmatprep.subr.bf16.mxu0 0
    %3728 = vmatpush1.bf16.msra.mxu0 %v3370
    %3729 = vmatprep.subr.bf16.mxu0 0
    %3730 = vmatpush1.bf16.msra.mxu0 %v3369
    %3731 = vmatprep.subr.bf16.mxu0 0
    %3732 = vmatpush1.bf16.msra.mxu0 %v3368
    %3733 = vmatprep.subr.bf16.mxu0 0
    %3734 = vmatpush1.bf16.msra.mxu0 %v3367
    %3735 = vmatprep.subr.bf16.mxu0 0
    %3736 = vmatpush1.bf16.msra.mxu0 %v3366
    %3737 = vmatprep.subr.bf16.mxu0 0
    %3738 = vmatpush2.bf16.msra.mxu0 %v3381
    %3739 = vmatprep.subr.bf16.mxu0 0
    %3740 = vmatpush2.bf16.msra.mxu0 %v3380
    %3741 = vmatprep.subr.bf16.mxu0 0
    %3742 = vmatpush2.bf16.msra.mxu0 %v3379
    %3743 = vmatprep.subr.bf16.mxu0 0
    %3744 = vmatpush2.bf16.msra.mxu0 %v3378
    %3745 = vmatprep.subr.bf16.mxu0 0
    %3746 = vmatpush2.bf16.msra.mxu0 %v3377
    %3747 = vmatprep.subr.bf16.mxu0 0
    %3748 = vmatpush2.bf16.msra.mxu0 %v3376
    %3749 = vmatprep.subr.bf16.mxu0 0
    %3750 = vmatpush2.bf16.msra.mxu0 %v3375
    %3751 = vmatprep.subr.bf16.mxu0 0
    %3752 = vmatpush2.bf16.msra.mxu0 %v3374
    %3753 = vmatprep.mubr.bf16.mxu0 %v2749
    %3754 = vmatmul.mubr.bf16.gmra.mxu0 %v2748
    %v3755 = vpop.f32.mrf.mxu0
    %v3756 = vadd.f32 %v3707, %v3755
    %v3757 = vpop.f32.mrf.mxu0
    %v3758 = vpop.f32.mrf.mxu0
    %v3759 = vadd.f32 %v3710, %v3758
    %v3760 = vpop.f32.mrf.mxu0
    %3761 = vmatprep.mubr.bf16.mxu0 %v2765
    %3762 = vmatmul.mubr.bf16.gmra.mxu0 %v2764
    %v3763 = vpop.f32.mrf.mxu0
    %v3764 = vadd.f32 %v3715, %v3763
    %v3765 = vpop.f32.mrf.mxu0
    %v3766 = vpop.f32.mrf.mxu0
    %v3767 = vadd.f32 %v3718, %v3766
    %v3768 = vpop.f32.mrf.mxu0
    %3769 = vdwg.mxu0
    %3770 = vmatprep.subr.bf16.mxu0 0
    %3771 = vmatpush1.bf16.msra.mxu0 %v3389
    %3772 = vmatprep.subr.bf16.mxu0 0
    %3773 = vmatpush1.bf16.msra.mxu0 %v3388
    %3774 = vmatprep.subr.bf16.mxu0 0
    %3775 = vmatpush1.bf16.msra.mxu0 %v3387
    %3776 = vmatprep.subr.bf16.mxu0 0
    %3777 = vmatpush1.bf16.msra.mxu0 %v3386
    %3778 = vmatprep.subr.bf16.mxu0 0
    %3779 = vmatpush1.bf16.msra.mxu0 %v3385
    %3780 = vmatprep.subr.bf16.mxu0 0
    %3781 = vmatpush1.bf16.msra.mxu0 %v3384
    %3782 = vmatprep.subr.bf16.mxu0 0
    %3783 = vmatpush1.bf16.msra.mxu0 %v3383
    %3784 = vmatprep.subr.bf16.mxu0 0
    %3785 = vmatpush1.bf16.msra.mxu0 %v3382
    %3786 = vmatprep.subr.bf16.mxu0 0
    %3787 = vmatpush2.bf16.msra.mxu0 %v3397
    %3788 = vmatprep.subr.bf16.mxu0 0
    %3789 = vmatpush2.bf16.msra.mxu0 %v3396
    %3790 = vmatprep.subr.bf16.mxu0 0
    %3791 = vmatpush2.bf16.msra.mxu0 %v3395
    %3792 = vmatprep.subr.bf16.mxu0 0
    %3793 = vmatpush2.bf16.msra.mxu0 %v3394
    %3794 = vmatprep.subr.bf16.mxu0 0
    %3795 = vmatpush2.bf16.msra.mxu0 %v3393
    %3796 = vmatprep.subr.bf16.mxu0 0
    %3797 = vmatpush2.bf16.msra.mxu0 %v3392
    %3798 = vmatprep.subr.bf16.mxu0 0
    %3799 = vmatpush2.bf16.msra.mxu0 %v3391
    %3800 = vmatprep.subr.bf16.mxu0 0
    %3801 = vmatpush2.bf16.msra.mxu0 %v3390
    %3802 = vmatprep.mubr.bf16.mxu0 %v2751
    %3803 = vmatmul.mubr.bf16.gmra.mxu0 %v2750
    %v3804 = vpop.f32.mrf.mxu0
    %v3805 = vadd.f32 %v3756, %v3804
    %v3806 = vpop.f32.mrf.mxu0
    %v3807 = vpop.f32.mrf.mxu0
    %v3808 = vadd.f32 %v3759, %v3807
    %v3809 = vpop.f32.mrf.mxu0
    %3810 = vmatprep.mubr.bf16.mxu0 %v2767
    %3811 = vmatmul.mubr.bf16.gmra.mxu0 %v2766
    %v3812 = vpop.f32.mrf.mxu0
    %v3813 = vadd.f32 %v3764, %v3812
    %v3814 = vpop.f32.mrf.mxu0
    %v3815 = vpop.f32.mrf.mxu0
    %v3816 = vadd.f32 %v3767, %v3815
    %v3817 = vpop.f32.mrf.mxu0
    %3818 = vdwg.mxu0
    %3819 = vmatprep.subr.bf16.mxu0 0
    %3820 = vmatpush1.bf16.msra.mxu0 %v3405
    %3821 = vmatprep.subr.bf16.mxu0 0
    %3822 = vmatpush1.bf16.msra.mxu0 %v3404
    %3823 = vmatprep.subr.bf16.mxu0 0
    %3824 = vmatpush1.bf16.msra.mxu0 %v3403
    %3825 = vmatprep.subr.bf16.mxu0 0
    %3826 = vmatpush1.bf16.msra.mxu0 %v3402
    %3827 = vmatprep.subr.bf16.mxu0 0
    %3828 = vmatpush1.bf16.msra.mxu0 %v3401
    %3829 = vmatprep.subr.bf16.mxu0 0
    %3830 = vmatpush1.bf16.msra.mxu0 %v3400
    %3831 = vmatprep.subr.bf16.mxu0 0
    %3832 = vmatpush1.bf16.msra.mxu0 %v3399
    %3833 = vmatprep.subr.bf16.mxu0 0
    %3834 = vmatpush1.bf16.msra.mxu0 %v3398
    %3835 = vmatprep.subr.bf16.mxu0 0
    %3836 = vmatpush2.bf16.msra.mxu0 %v3413
    %3837 = vmatprep.subr.bf16.mxu0 0
    %3838 = vmatpush2.bf16.msra.mxu0 %v3412
    %3839 = vmatprep.subr.bf16.mxu0 0
    %3840 = vmatpush2.bf16.msra.mxu0 %v3411
    %3841 = vmatprep.subr.bf16.mxu0 0
    %3842 = vmatpush2.bf16.msra.mxu0 %v3410
    %3843 = vmatprep.subr.bf16.mxu0 0
    %3844 = vmatpush2.bf16.msra.mxu0 %v3409
    %3845 = vmatprep.subr.bf16.mxu0 0
    %3846 = vmatpush2.bf16.msra.mxu0 %v3408
    %3847 = vmatprep.subr.bf16.mxu0 0
    %3848 = vmatpush2.bf16.msra.mxu0 %v3407
    %3849 = vmatprep.subr.bf16.mxu0 0
    %3850 = vmatpush2.bf16.msra.mxu0 %v3406
    %3851 = vmatprep.mubr.bf16.mxu0 %v2753
    %3852 = vmatmul.mubr.bf16.gmra.mxu0 %v2752
    %v3853 = vpop.f32.mrf.mxu0
    %v3854 = vadd.f32 %v3805, %v3853
    %v3855 = vpop.f32.mrf.mxu0
    %v3856 = vpop.f32.mrf.mxu0
    %v3857 = vadd.f32 %v3808, %v3856
    %v3858 = vpop.f32.mrf.mxu0
    %3859 = vmatprep.mubr.bf16.mxu0 %v2769
    %3860 = vmatmul.mubr.bf16.gmra.mxu0 %v2768
    %v3861 = vpop.f32.mrf.mxu0
    %v3862 = vadd.f32 %v3813, %v3861
    %v3863 = vpop.f32.mrf.mxu0
    %v3864 = vpop.f32.mrf.mxu0
    %v3865 = vadd.f32 %v3816, %v3864
    %v3866 = vpop.f32.mrf.mxu0
    %3867 = vdwg.mxu0
    %3868 = vmatprep.subr.bf16.mxu0 0
    %3869 = vmatpush1.bf16.msra.mxu0 %v3421
    %3870 = vmatprep.subr.bf16.mxu0 0
    %3871 = vmatpush1.bf16.msra.mxu0 %v3420
    %3872 = vmatprep.subr.bf16.mxu0 0
    %3873 = vmatpush1.bf16.msra.mxu0 %v3419
    %3874 = vmatprep.subr.bf16.mxu0 0
    %3875 = vmatpush1.bf16.msra.mxu0 %v3418
    %3876 = vmatprep.subr.bf16.mxu0 0
    %3877 = vmatpush1.bf16.msra.mxu0 %v3417
    %3878 = vmatprep.subr.bf16.mxu0 0
    %3879 = vmatpush1.bf16.msra.mxu0 %v3416
    %3880 = vmatprep.subr.bf16.mxu0 0
    %3881 = vmatpush1.bf16.msra.mxu0 %v3415
    %3882 = vmatprep.subr.bf16.mxu0 0
    %3883 = vmatpush1.bf16.msra.mxu0 %v3414
    %3884 = vmatprep.subr.bf16.mxu0 0
    %3885 = vmatpush2.bf16.msra.mxu0 %v3429
    %3886 = vmatprep.subr.bf16.mxu0 0
    %3887 = vmatpush2.bf16.msra.mxu0 %v3428
    %3888 = vmatprep.subr.bf16.mxu0 0
    %3889 = vmatpush2.bf16.msra.mxu0 %v3427
    %3890 = vmatprep.subr.bf16.mxu0 0
    %3891 = vmatpush2.bf16.msra.mxu0 %v3426
    %3892 = vmatprep.subr.bf16.mxu0 0
    %3893 = vmatpush2.bf16.msra.mxu0 %v3425
    %3894 = vmatprep.subr.bf16.mxu0 0
    %3895 = vmatpush2.bf16.msra.mxu0 %v3424
    %3896 = vmatprep.subr.bf16.mxu0 0
    %3897 = vmatpush2.bf16.msra.mxu0 %v3423
    %3898 = vmatprep.subr.bf16.mxu0 0
    %3899 = vmatpush2.bf16.msra.mxu0 %v3422
    %3900 = vmatprep.mubr.bf16.mxu0 %v2755
    %3901 = vmatmul.mubr.bf16.gmra.mxu0 %v2754
    %v3902 = vpop.f32.mrf.mxu0
    %v3903 = vadd.f32 %v3854, %v3902
    %v3904 = vpop.f32.mrf.mxu0
    %v3905 = vpop.f32.mrf.mxu0
    %v3906 = vadd.f32 %v3857, %v3905
    %v3907 = vpop.f32.mrf.mxu0
    %3908 = vmatprep.mubr.bf16.mxu0 %v2771
    %3909 = vmatmul.mubr.bf16.gmra.mxu0 %v2770
    %v3910 = vpop.f32.mrf.mxu0
    %v3911 = vadd.f32 %v3862, %v3910
    %v3912 = vpop.f32.mrf.mxu0
    %v3913 = vpop.f32.mrf.mxu0
    %v3914 = vadd.f32 %v3865, %v3913
    %v3915 = vpop.f32.mrf.mxu0
    %3916 = vdwg.mxu0
    %3917 = vmatprep.subr.bf16.mxu0 0
    %3918 = vmatpush1.bf16.msra.mxu0 %v3437
    %3919 = vmatprep.subr.bf16.mxu0 0
    %3920 = vmatpush1.bf16.msra.mxu0 %v3436
    %3921 = vmatprep.subr.bf16.mxu0 0
    %3922 = vmatpush1.bf16.msra.mxu0 %v3435
    %3923 = vmatprep.subr.bf16.mxu0 0
    %3924 = vmatpush1.bf16.msra.mxu0 %v3434
    %3925 = vmatprep.subr.bf16.mxu0 0
    %3926 = vmatpush1.bf16.msra.mxu0 %v3433
    %3927 = vmatprep.subr.bf16.mxu0 0
    %3928 = vmatpush1.bf16.msra.mxu0 %v3432
    %3929 = vmatprep.subr.bf16.mxu0 0
    %3930 = vmatpush1.bf16.msra.mxu0 %v3431
    %3931 = vmatprep.subr.bf16.mxu0 0
    %3932 = vmatpush1.bf16.msra.mxu0 %v3430
    %3933 = vmatprep.subr.bf16.mxu0 0
    %3934 = vmatpush2.bf16.msra.mxu0 %v3445
    %3935 = vmatprep.subr.bf16.mxu0 0
    %3936 = vmatpush2.bf16.msra.mxu0 %v3444
    %3937 = vmatprep.subr.bf16.mxu0 0
    %3938 = vmatpush2.bf16.msra.mxu0 %v3443
    %3939 = vmatprep.subr.bf16.mxu0 0
    %3940 = vmatpush2.bf16.msra.mxu0 %v3442
    %3941 = vmatprep.subr.bf16.mxu0 0
    %3942 = vmatpush2.bf16.msra.mxu0 %v3441
    %3943 = vmatprep.subr.bf16.mxu0 0
    %3944 = vmatpush2.bf16.msra.mxu0 %v3440
    %3945 = vmatprep.subr.bf16.mxu0 0
    %3946 = vmatpush2.bf16.msra.mxu0 %v3439
    %3947 = vmatprep.subr.bf16.mxu0 0
    %3948 = vmatpush2.bf16.msra.mxu0 %v3438
    %3949 = vmatprep.mubr.bf16.mxu0 %v2757
    %3950 = vmatmul.mubr.bf16.gmra.mxu0 %v2756
    %v3951 = vpop.f32.mrf.mxu0
    %v3952 = vadd.f32 %v3903, %v3951
    %v3953 = vpop.f32.mrf.mxu0
    %v3954 = vpop.f32.mrf.mxu0
    %v3955 = vadd.f32 %v3906, %v3954
    %v3956 = vpop.f32.mrf.mxu0
    %3957 = vmatprep.mubr.bf16.mxu0 %v2773
    %3958 = vmatmul.mubr.bf16.gmra.mxu0 %v2772
    %v3959 = vpop.f32.mrf.mxu0
    %v3960 = vadd.f32 %v3911, %v3959
    %v3961 = vpop.f32.mrf.mxu0
    %v3962 = vpop.f32.mrf.mxu0
    %v3963 = vadd.f32 %v3914, %v3962
    %v3964 = vpop.f32.mrf.mxu0
    %3965 = vdwg.mxu0
    %v3966 = vld [vmem:[%s8] sm:$0x1]
    %v3967 = vld [vmem:[%s9] sm:$0x1]
    %v3968 = vadd.f32 %v3952, %v3955
    %v3969 = vadd.f32 %v3968, %v3960
    %v3970 = vadd.f32 %v3969, %v3963
    %v3971 = vrot.slane %v3970, 4
    %v3972 = vadd.f32 %v3970, %v3971
    %v3973 = vrot.slane %v3972, 2
    %v3974 = vadd.f32 %v3972, %v3973
    %v3975 = vrot.slane %v3974, 1
    %v3976 = vadd.f32 %v3974, %v3975
    %v3977 = vmul.f32 %v3976, 0.03125
    %v3978 = vsub.f32 %v3952, %v3977
    %v3979 = vsub.f32 %v3955, %v3977
    %v3980 = vsub.f32 %v3960, %v3977
    %v3981 = vsub.f32 %v3963, %v3977
    %v3982 = vmul.f32 %v3978, %v3978
    %v3983 = vmul.f32 %v3979, %v3979
    %v3984 = vmul.f32 %v3980, %v3980
    %v3985 = vmul.f32 %v3981, %v3981
    %v3986 = vadd.f32 %v3982, %v3983
    %v3987 = vadd.f32 %v3986, %v3984
    %v3988 = vadd.f32 %v3987, %v3985
    %v3989 = vrot.slane %v3988, 4
    %v3990 = vadd.f32 %v3988, %v3989
    %v3991 = vrot.slane %v3990, 2
    %v3992 = vadd.f32 %v3990, %v3991
    %v3993 = vrot.slane %v3992, 1
    %v3994 = vadd.f32 %v3992, %v3993
    %v3995 = vmul.f32 %v3994, 0.03125
    %v3996 = vadd.f32 %v3995, 1e-05
    %v3997 = vrsqrt.pop %v3996
    %v3998 = vmul.f32 %v3966, %v3997
    %v4000 = vlaneseq
    %v4001 = vshrl.u32 %v4000, 7
    %v4002 = vsub.s32 0, %v4001
    %v4003 = vrot.slane %v3998, %v4002
    %v4005 = vmul.f32 %v3978, %v4003
    %v4006 = vmul.f32 %v3979, %v4003
    %v4007 = vmul.f32 %v3980, %v4003
    %v4008 = vmul.f32 %v3981, %v4003
    %v4010 = vlaneseq
    %v4011 = vshrl.u32 %v4010, 7
    %v4012 = vsub.s32 0, %v4011
    %v4013 = vrot.slane %v3967, %v4012
    %v4015 = vadd.f32 %v4005, %v4013
    %v4016 = vadd.f32 %v4006, %v4013
    %v4017 = vadd.f32 %v4007, %v4013
    %v4018 = vadd.f32 %v4008, %v4013
    %v4019 = vmax.f32 %v4015, 0.0
    %v4020 = vmax.f32 %v4016, 0.0
    %v4021 = vmax.f32 %v4017, 0.0
    %v4022 = vmax.f32 %v4018, 0.0
    %v4023 = vpack.c.bf16 %v4020, %v4019
    %v4024 = vpack.c.bf16 %v4022, %v4021
    %v4025 = vld [vmem:[%s10] sm:$0xf]
    %v4026 = vld [vmem:[%s10 + $0x4] sm:$0xf]
    %v4027 = vld [vmem:[%s10 + $0x8] sm:$0xf]
    %v4028 = vld [vmem:[%s10 + $0xc] sm:$0xf]
    %v4029 = vld [vmem:[%s10 + $0x10] sm:$0xf]
    %v4030 = vld [vmem:[%s10 + $0x14] sm:$0xf]
    %v4031 = vld [vmem:[%s10 + $0x18] sm:$0xf]
    %v4032 = vld [vmem:[%s10 + $0x1c] sm:$0xf]
    %v4033 = vld [vmem:[%s10 + $0x20] sm:$0xf]
    %v4034 = vld [vmem:[%s10 + $0x24] sm:$0xf]
    %v4035 = vld [vmem:[%s10 + $0x28] sm:$0xf]
    %v4036 = vld [vmem:[%s10 + $0x2c] sm:$0xf]
    %v4037 = vld [vmem:[%s10 + $0x30] sm:$0xf]
    %v4038 = vld [vmem:[%s10 + $0x34] sm:$0xf]
    %v4039 = vld [vmem:[%s10 + $0x38] sm:$0xf]
    %v4040 = vld [vmem:[%s10 + $0x3c] sm:$0xf]
    %v4057 = vunpack.c.l.b16 %v4025
    %v4058 = vunpack.c.l.b16 %v4026
    %v4059 = vunpack.c.l.b16 %v4027
    %v4060 = vunpack.c.l.b16 %v4028
    %v4061 = vunpack.c.l.b16 %v4029
    %v4062 = vunpack.c.l.b16 %v4030
    %v4063 = vunpack.c.l.b16 %v4031
    %v4064 = vunpack.c.l.b16 %v4032
    %v4065 = vunpack.c.l.b16 %v4033
    %v4066 = vunpack.c.l.b16 %v4034
    %v4067 = vunpack.c.l.b16 %v4035
    %v4068 = vunpack.c.l.b16 %v4036
    %v4069 = vunpack.c.l.b16 %v4037
    %v4070 = vunpack.c.l.b16 %v4038
    %v4071 = vunpack.c.l.b16 %v4039
    %v4072 = vunpack.c.l.b16 %v4040
    %v4073 = vpack.c.b16 %v4058, %v4057
    %v4074 = vpack.c.b16 %v4060, %v4059
    %v4075 = vpack.c.b16 %v4062, %v4061
    %v4076 = vpack.c.b16 %v4064, %v4063
    %v4077 = vpack.c.b16 %v4066, %v4065
    %v4078 = vpack.c.b16 %v4068, %v4067
    %v4079 = vpack.c.b16 %v4070, %v4069
    %v4080 = vpack.c.b16 %v4072, %v4071
    %vm4081 = vcmask 261120
    %v4083 = vsel %vm4081, %v4073, 0
    %v4086 = vsel %vm4081, %v4074, 0
    %v4089 = vsel %vm4081, %v4075, 0
    %v4092 = vsel %vm4081, %v4076, 0
    %v4095 = vsel %vm4081, %v4077, 0
    %v4098 = vsel %vm4081, %v4078, 0
    %v4101 = vsel %vm4081, %v4079, 0
    %v4104 = vsel %vm4081, %v4080, 0
    %4106 = vmatprep.subr.bf16.mxu0 0
    %4107 = vmatpush1.bf16.msra.mxu0 0
    %4108 = vmatprep.subr.bf16.mxu0 0
    %4109 = vmatpush1.bf16.msra.mxu0 0
    %4110 = vmatprep.subr.bf16.mxu0 0
    %4111 = vmatpush1.bf16.msra.mxu0 0
    %4112 = vmatprep.subr.bf16.mxu0 0
    %4113 = vmatpush1.bf16.msra.mxu0 0
    %4114 = vmatprep.subr.bf16.mxu0 0
    %4115 = vmatpush1.bf16.msra.mxu0 0
    %4116 = vmatprep.subr.bf16.mxu0 0
    %4117 = vmatpush1.bf16.msra.mxu0 0
    %4118 = vmatprep.subr.bf16.mxu0 0
    %4119 = vmatpush1.bf16.msra.mxu0 %v4024
    %4120 = vmatprep.subr.bf16.mxu0 0
    %4121 = vmatpush1.bf16.msra.mxu0 %v4023
    %4122 = vmatprep.subr.bf16.mxu0 0
    %4123 = vmatpush2.bf16.msra.mxu0 0
    %4124 = vmatprep.subr.bf16.mxu0 0
    %4125 = vmatpush2.bf16.msra.mxu0 0
    %4126 = vmatprep.subr.bf16.mxu0 0
    %4127 = vmatpush2.bf16.msra.mxu0 0
    %4128 = vmatprep.subr.bf16.mxu0 0
    %4129 = vmatpush2.bf16.msra.mxu0 0
    %4130 = vmatprep.subr.bf16.mxu0 0
    %4131 = vmatpush2.bf16.msra.mxu0 0
    %4132 = vmatprep.subr.bf16.mxu0 0
    %4133 = vmatpush2.bf16.msra.mxu0 0
    %4134 = vmatprep.subr.bf16.mxu0 0
    %4135 = vmatpush2.bf16.msra.mxu0 0
    %4136 = vmatprep.subr.bf16.mxu0 0
    %4137 = vmatpush2.bf16.msra.mxu0 0
    %4138 = vmatprep.mubr.bf16.mxu0 0
    %4139 = vmatmul.mubr.bf16.gmra.mxu0 %v4083
    %v4140 = vpop.f32.mrf.mxu0
    %v4141 = vadd.f32 0.0, %v4140
    %v4142 = vpop.f32.mrf.mxu0
    %v4143 = vpop.f32.mrf.mxu0
    %v4144 = vadd.f32 0.0, %v4143
    %v4145 = vpop.f32.mrf.mxu0
    %4146 = vmatprep.mubr.bf16.mxu0 0
    %4147 = vmatmul.mubr.bf16.gmra.mxu0 %v4086
    %v4148 = vpop.f32.mrf.mxu0
    %v4149 = vadd.f32 0.0, %v4148
    %v4150 = vpop.f32.mrf.mxu0
    %v4151 = vpop.f32.mrf.mxu0
    %v4152 = vadd.f32 0.0, %v4151
    %v4153 = vpop.f32.mrf.mxu0
    %4154 = vmatprep.mubr.bf16.mxu0 0
    %4155 = vmatmul.mubr.bf16.gmra.mxu0 %v4089
    %v4156 = vpop.f32.mrf.mxu0
    %v4157 = vadd.f32 0.0, %v4156
    %v4158 = vpop.f32.mrf.mxu0
    %v4159 = vpop.f32.mrf.mxu0
    %v4160 = vadd.f32 0.0, %v4159
    %v4161 = vpop.f32.mrf.mxu0
    %4162 = vmatprep.mubr.bf16.mxu0 0
    %4163 = vmatmul.mubr.bf16.gmra.mxu0 %v4092
    %v4164 = vpop.f32.mrf.mxu0
    %v4165 = vadd.f32 0.0, %v4164
    %v4166 = vpop.f32.mrf.mxu0
    %v4167 = vpop.f32.mrf.mxu0
    %v4168 = vadd.f32 0.0, %v4167
    %v4169 = vpop.f32.mrf.mxu0
    %4170 = vmatprep.mubr.bf16.mxu0 0
    %4171 = vmatmul.mubr.bf16.gmra.mxu0 %v4095
    %v4172 = vpop.f32.mrf.mxu0
    %v4173 = vadd.f32 0.0, %v4172
    %v4174 = vpop.f32.mrf.mxu0
    %v4175 = vpop.f32.mrf.mxu0
    %v4176 = vadd.f32 0.0, %v4175
    %v4177 = vpop.f32.mrf.mxu0
    %4178 = vmatprep.mubr.bf16.mxu0 0
    %4179 = vmatmul.mubr.bf16.gmra.mxu0 %v4098
    %v4180 = vpop.f32.mrf.mxu0
    %v4181 = vadd.f32 0.0, %v4180
    %v4182 = vpop.f32.mrf.mxu0
    %v4183 = vpop.f32.mrf.mxu0
    %v4184 = vadd.f32 0.0, %v4183
    %v4185 = vpop.f32.mrf.mxu0
    %4186 = vmatprep.mubr.bf16.mxu0 0
    %4187 = vmatmul.mubr.bf16.gmra.mxu0 %v4101
    %v4188 = vpop.f32.mrf.mxu0
    %v4189 = vadd.f32 0.0, %v4188
    %v4190 = vpop.f32.mrf.mxu0
    %v4191 = vpop.f32.mrf.mxu0
    %v4192 = vadd.f32 0.0, %v4191
    %v4193 = vpop.f32.mrf.mxu0
    %4194 = vmatprep.mubr.bf16.mxu0 0
    %4195 = vmatmul.mubr.bf16.gmra.mxu0 %v4104
    %v4196 = vpop.f32.mrf.mxu0
    %v4197 = vadd.f32 0.0, %v4196
    %v4198 = vpop.f32.mrf.mxu0
    %v4199 = vpop.f32.mrf.mxu0
    %v4200 = vadd.f32 0.0, %v4199
    %v4201 = vpop.f32.mrf.mxu0
    %4202 = vdwg.mxu0
    %v4203 = vpack.c.bf16 %v4144, %v4141
    %v4204 = vpack.c.bf16 %v4152, %v4149
    %v4205 = vpack.c.bf16 %v4160, %v4157
    %v4206 = vpack.c.bf16 %v4168, %v4165
    %v4207 = vpack.c.bf16 %v4176, %v4173
    %v4208 = vpack.c.bf16 %v4184, %v4181
    %v4209 = vpack.c.bf16 %v4192, %v4189
    %v4210 = vpack.c.bf16 %v4200, %v4197
    %4211 = vst [vmem:[#allocation7] sm:$0xf] %v4203
    %v4213 = vunpack.c.h.b16 %v4203
    %v4214 = vpack.c.b16 %v4213, %v4213
    %4216 = vst [vmem:[#allocation7 + $0x4] sm:$0xf] %v4214
    %4217 = vst [vmem:[#allocation7 + $0x8] sm:$0xf] %v4204
    %v4219 = vunpack.c.h.b16 %v4204
    %v4220 = vpack.c.b16 %v4219, %v4219
    %4222 = vst [vmem:[#allocation7 + $0xc] sm:$0xf] %v4220
    %4223 = vst [vmem:[#allocation7 + $0x10] sm:$0xf] %v4205
    %v4225 = vunpack.c.h.b16 %v4205
    %v4226 = vpack.c.b16 %v4225, %v4225
    %4228 = vst [vmem:[#allocation7 + $0x14] sm:$0xf] %v4226
    %4229 = vst [vmem:[#allocation7 + $0x18] sm:$0xf] %v4206
    %v4231 = vunpack.c.h.b16 %v4206
    %v4232 = vpack.c.b16 %v4231, %v4231
    %4234 = vst [vmem:[#allocation7 + $0x1c] sm:$0xf] %v4232
    %4235 = vst [vmem:[#allocation7 + $0x20] sm:$0xf] %v4207
    %v4237 = vunpack.c.h.b16 %v4207
    %v4238 = vpack.c.b16 %v4237, %v4237
    %4240 = vst [vmem:[#allocation7 + $0x24] sm:$0xf] %v4238
    %4241 = vst [vmem:[#allocation7 + $0x28] sm:$0xf] %v4208
    %v4243 = vunpack.c.h.b16 %v4208
    %v4244 = vpack.c.b16 %v4243, %v4243
    %4246 = vst [vmem:[#allocation7 + $0x2c] sm:$0xf] %v4244
    %4247 = vst [vmem:[#allocation7 + $0x30] sm:$0xf] %v4209
    %v4249 = vunpack.c.h.b16 %v4209
    %v4250 = vpack.c.b16 %v4249, %v4249
    %4252 = vst [vmem:[#allocation7 + $0x34] sm:$0xf] %v4250
    %4253 = vst [vmem:[#allocation7 + $0x38] sm:$0xf] %v4210
    %v4255 = vunpack.c.h.b16 %v4210
    %v4256 = vpack.c.b16 %v4255, %v4255
    %4258 = vst [vmem:[#allocation7 + $0x3c] sm:$0xf] %v4256
    %v4259 = vld [vmem:[#allocation7] sm:$0xff]
    %v4260 = vld [vmem:[#allocation7 + $0x8] sm:$0xff]
    %v4261 = vld [vmem:[#allocation7 + $0x10] sm:$0xff]
    %v4262 = vld [vmem:[#allocation7 + $0x18] sm:$0xff]
    %v4263 = vld [vmem:[#allocation7 + $0x20] sm:$0xff]
    %v4264 = vld [vmem:[#allocation7 + $0x28] sm:$0xff]
    %v4265 = vld [vmem:[#allocation7 + $0x30] sm:$0xff]
    %v4266 = vld [vmem:[#allocation7 + $0x38] sm:$0xff]
    %s4267 = smul.u32 %s2379, 2
    %s4268 = sshll.u32 %s4267, 4
    %4269 = dma.done %s460, %s4268
    %v4270 = vld [vmem:[#allocation4] sm:$0xff]
    %v4271 = vld [vmem:[#allocation4 + $0x8] sm:$0xff]
    %v4272 = vld [vmem:[#allocation4 + $0x10] sm:$0xff]
    %v4273 = vld [vmem:[#allocation4 + $0x18] sm:$0xff]
    %v4274 = vld [vmem:[#allocation4 + $0x20] sm:$0xff]
    %v4275 = vld [vmem:[#allocation4 + $0x28] sm:$0xff]
    %v4276 = vld [vmem:[#allocation4 + $0x30] sm:$0xff]
    %v4277 = vld [vmem:[#allocation4 + $0x38] sm:$0xff]
    %v4278 = vld [vmem:[#allocation4 + $0x40] sm:$0xff]
    %v4279 = vld [vmem:[#allocation4 + $0x48] sm:$0xff]
    %v4280 = vld [vmem:[#allocation4 + $0x50] sm:$0xff]
    %v4281 = vld [vmem:[#allocation4 + $0x58] sm:$0xff]
    %v4282 = vld [vmem:[#allocation4 + $0x60] sm:$0xff]
    %v4283 = vld [vmem:[#allocation4 + $0x68] sm:$0xff]
    %v4284 = vld [vmem:[#allocation4 + $0x70] sm:$0xff]
    %v4285 = vld [vmem:[#allocation4 + $0x78] sm:$0xff]
    %v4286 = vld [vmem:[#allocation4 + $0x80] sm:$0xff]
    %v4287 = vld [vmem:[#allocation4 + $0x88] sm:$0xff]
    %v4288 = vld [vmem:[#allocation4 + $0x90] sm:$0xff]
    %v4289 = vld [vmem:[#allocation4 + $0x98] sm:$0xff]
    %v4290 = vld [vmem:[#allocation4 + $0xa0] sm:$0xff]
    %v4291 = vld [vmem:[#allocation4 + $0xa8] sm:$0xff]
    %v4292 = vld [vmem:[#allocation4 + $0xb0] sm:$0xff]
    %v4293 = vld [vmem:[#allocation4 + $0xb8] sm:$0xff]
    %v4294 = vld [vmem:[#allocation4 + $0xc0] sm:$0xff]
    %v4295 = vld [vmem:[#allocation4 + $0xc8] sm:$0xff]
    %v4296 = vld [vmem:[#allocation4 + $0xd0] sm:$0xff]
    %v4297 = vld [vmem:[#allocation4 + $0xd8] sm:$0xff]
    %v4298 = vld [vmem:[#allocation4 + $0xe0] sm:$0xff]
    %v4299 = vld [vmem:[#allocation4 + $0xe8] sm:$0xff]
    %v4300 = vld [vmem:[#allocation4 + $0xf0] sm:$0xff]
    %v4301 = vld [vmem:[#allocation4 + $0xf8] sm:$0xff]
    %v4302 = vld [vmem:[#allocation4 + $0x100] sm:$0xff]
    %v4303 = vld [vmem:[#allocation4 + $0x108] sm:$0xff]
    %v4304 = vld [vmem:[#allocation4 + $0x110] sm:$0xff]
    %v4305 = vld [vmem:[#allocation4 + $0x118] sm:$0xff]
    %v4306 = vld [vmem:[#allocation4 + $0x120] sm:$0xff]
    %v4307 = vld [vmem:[#allocation4 + $0x128] sm:$0xff]
    %v4308 = vld [vmem:[#allocation4 + $0x130] sm:$0xff]
    %v4309 = vld [vmem:[#allocation4 + $0x138] sm:$0xff]
    %v4310 = vld [vmem:[#allocation4 + $0x140] sm:$0xff]
    %v4311 = vld [vmem:[#allocation4 + $0x148] sm:$0xff]
    %v4312 = vld [vmem:[#allocation4 + $0x150] sm:$0xff]
    %v4313 = vld [vmem:[#allocation4 + $0x158] sm:$0xff]
    %v4314 = vld [vmem:[#allocation4 + $0x160] sm:$0xff]
    %v4315 = vld [vmem:[#allocation4 + $0x168] sm:$0xff]
    %v4316 = vld [vmem:[#allocation4 + $0x170] sm:$0xff]
    %v4317 = vld [vmem:[#allocation4 + $0x178] sm:$0xff]
    %v4318 = vld [vmem:[#allocation4 + $0x180] sm:$0xff]
    %v4319 = vld [vmem:[#allocation4 + $0x188] sm:$0xff]
    %v4320 = vld [vmem:[#allocation4 + $0x190] sm:$0xff]
    %v4321 = vld [vmem:[#allocation4 + $0x198] sm:$0xff]
    %v4322 = vld [vmem:[#allocation4 + $0x1a0] sm:$0xff]
    %v4323 = vld [vmem:[#allocation4 + $0x1a8] sm:$0xff]
    %v4324 = vld [vmem:[#allocation4 + $0x1b0] sm:$0xff]
    %v4325 = vld [vmem:[#allocation4 + $0x1b8] sm:$0xff]
    %v4326 = vld [vmem:[#allocation4 + $0x1c0] sm:$0xff]
    %v4327 = vld [vmem:[#allocation4 + $0x1c8] sm:$0xff]
    %v4328 = vld [vmem:[#allocation4 + $0x1d0] sm:$0xff]
    %v4329 = vld [vmem:[#allocation4 + $0x1d8] sm:$0xff]
    %v4330 = vld [vmem:[#allocation4 + $0x1e0] sm:$0xff]
    %v4331 = vld [vmem:[#allocation4 + $0x1e8] sm:$0xff]
    %v4332 = vld [vmem:[#allocation4 + $0x1f0] sm:$0xff]
    %v4333 = vld [vmem:[#allocation4 + $0x1f8] sm:$0xff]
    %v4334 = vld [vmem:[#allocation4 + $0x200] sm:$0xff]
    %v4335 = vld [vmem:[#allocation4 + $0x208] sm:$0xff]
    %v4336 = vld [vmem:[#allocation4 + $0x210] sm:$0xff]
    %v4337 = vld [vmem:[#allocation4 + $0x218] sm:$0xff]
    %v4338 = vld [vmem:[#allocation4 + $0x220] sm:$0xff]
    %v4339 = vld [vmem:[#allocation4 + $0x228] sm:$0xff]
    %v4340 = vld [vmem:[#allocation4 + $0x230] sm:$0xff]
    %v4341 = vld [vmem:[#allocation4 + $0x238] sm:$0xff]
    %v4342 = vld [vmem:[#allocation4 + $0x240] sm:$0xff]
    %v4343 = vld [vmem:[#allocation4 + $0x248] sm:$0xff]
    %v4344 = vld [vmem:[#allocation4 + $0x250] sm:$0xff]
    %v4345 = vld [vmem:[#allocation4 + $0x258] sm:$0xff]
    %v4346 = vld [vmem:[#allocation4 + $0x260] sm:$0xff]
    %v4347 = vld [vmem:[#allocation4 + $0x268] sm:$0xff]
    %v4348 = vld [vmem:[#allocation4 + $0x270] sm:$0xff]
    %v4349 = vld [vmem:[#allocation4 + $0x278] sm:$0xff]
    %v4350 = vld [vmem:[#allocation4 + $0x280] sm:$0xff]
    %v4351 = vld [vmem:[#allocation4 + $0x288] sm:$0xff]
    %v4352 = vld [vmem:[#allocation4 + $0x290] sm:$0xff]
    %v4353 = vld [vmem:[#allocation4 + $0x298] sm:$0xff]
    %v4354 = vld [vmem:[#allocation4 + $0x2a0] sm:$0xff]
    %v4355 = vld [vmem:[#allocation4 + $0x2a8] sm:$0xff]
    %v4356 = vld [vmem:[#allocation4 + $0x2b0] sm:$0xff]
    %v4357 = vld [vmem:[#allocation4 + $0x2b8] sm:$0xff]
    %v4358 = vld [vmem:[#allocation4 + $0x2c0] sm:$0xff]
    %v4359 = vld [vmem:[#allocation4 + $0x2c8] sm:$0xff]
    %v4360 = vld [vmem:[#allocation4 + $0x2d0] sm:$0xff]
    %v4361 = vld [vmem:[#allocation4 + $0x2d8] sm:$0xff]
    %v4362 = vld [vmem:[#allocation4 + $0x2e0] sm:$0xff]
    %v4363 = vld [vmem:[#allocation4 + $0x2e8] sm:$0xff]
    %v4364 = vld [vmem:[#allocation4 + $0x2f0] sm:$0xff]
    %v4365 = vld [vmem:[#allocation4 + $0x2f8] sm:$0xff]
    %v4366 = vld [vmem:[#allocation4 + $0x300] sm:$0xff]
    %v4367 = vld [vmem:[#allocation4 + $0x308] sm:$0xff]
    %v4368 = vld [vmem:[#allocation4 + $0x310] sm:$0xff]
    %v4369 = vld [vmem:[#allocation4 + $0x318] sm:$0xff]
    %v4370 = vld [vmem:[#allocation4 + $0x320] sm:$0xff]
    %v4371 = vld [vmem:[#allocation4 + $0x328] sm:$0xff]
    %v4372 = vld [vmem:[#allocation4 + $0x330] sm:$0xff]
    %v4373 = vld [vmem:[#allocation4 + $0x338] sm:$0xff]
    %v4374 = vld [vmem:[#allocation4 + $0x340] sm:$0xff]
    %v4375 = vld [vmem:[#allocation4 + $0x348] sm:$0xff]
    %v4376 = vld [vmem:[#allocation4 + $0x350] sm:$0xff]
    %v4377 = vld [vmem:[#allocation4 + $0x358] sm:$0xff]
    %v4378 = vld [vmem:[#allocation4 + $0x360] sm:$0xff]
    %v4379 = vld [vmem:[#allocation4 + $0x368] sm:$0xff]
    %v4380 = vld [vmem:[#allocation4 + $0x370] sm:$0xff]
    %v4381 = vld [vmem:[#allocation4 + $0x378] sm:$0xff]
    %v4382 = vld [vmem:[#allocation4 + $0x380] sm:$0xff]
    %v4383 = vld [vmem:[#allocation4 + $0x388] sm:$0xff]
    %v4384 = vld [vmem:[#allocation4 + $0x390] sm:$0xff]
    %v4385 = vld [vmem:[#allocation4 + $0x398] sm:$0xff]
    %v4386 = vld [vmem:[#allocation4 + $0x3a0] sm:$0xff]
    %v4387 = vld [vmem:[#allocation4 + $0x3a8] sm:$0xff]
    %v4388 = vld [vmem:[#allocation4 + $0x3b0] sm:$0xff]
    %v4389 = vld [vmem:[#allocation4 + $0x3b8] sm:$0xff]
    %v4390 = vld [vmem:[#allocation4 + $0x3c0] sm:$0xff]
    %v4391 = vld [vmem:[#allocation4 + $0x3c8] sm:$0xff]
    %v4392 = vld [vmem:[#allocation4 + $0x3d0] sm:$0xff]
    %v4393 = vld [vmem:[#allocation4 + $0x3d8] sm:$0xff]
    %v4394 = vld [vmem:[#allocation4 + $0x3e0] sm:$0xff]
    %v4395 = vld [vmem:[#allocation4 + $0x3e8] sm:$0xff]
    %v4396 = vld [vmem:[#allocation4 + $0x3f0] sm:$0xff]
    %v4397 = vld [vmem:[#allocation4 + $0x3f8] sm:$0xff]
    %v4398 = vld [vmem:[#allocation4 + $0x400] sm:$0xff]
    %v4399 = vld [vmem:[#allocation4 + $0x408] sm:$0xff]
    %v4400 = vld [vmem:[#allocation4 + $0x410] sm:$0xff]
    %v4401 = vld [vmem:[#allocation4 + $0x418] sm:$0xff]
    %v4402 = vld [vmem:[#allocation4 + $0x420] sm:$0xff]
    %v4403 = vld [vmem:[#allocation4 + $0x428] sm:$0xff]
    %v4404 = vld [vmem:[#allocation4 + $0x430] sm:$0xff]
    %v4405 = vld [vmem:[#allocation4 + $0x438] sm:$0xff]
    %v4406 = vld [vmem:[#allocation4 + $0x440] sm:$0xff]
    %v4407 = vld [vmem:[#allocation4 + $0x448] sm:$0xff]
    %v4408 = vld [vmem:[#allocation4 + $0x450] sm:$0xff]
    %v4409 = vld [vmem:[#allocation4 + $0x458] sm:$0xff]
    %v4410 = vld [vmem:[#allocation4 + $0x460] sm:$0xff]
    %v4411 = vld [vmem:[#allocation4 + $0x468] sm:$0xff]
    %v4412 = vld [vmem:[#allocation4 + $0x470] sm:$0xff]
    %v4413 = vld [vmem:[#allocation4 + $0x478] sm:$0xff]
    %v4414 = vld [vmem:[#allocation4 + $0x480] sm:$0xff]
    %v4415 = vld [vmem:[#allocation4 + $0x488] sm:$0xff]
    %v4416 = vld [vmem:[#allocation4 + $0x490] sm:$0xff]
    %v4417 = vld [vmem:[#allocation4 + $0x498] sm:$0xff]
    %v4418 = vld [vmem:[#allocation4 + $0x4a0] sm:$0xff]
    %v4419 = vld [vmem:[#allocation4 + $0x4a8] sm:$0xff]
    %v4420 = vld [vmem:[#allocation4 + $0x4b0] sm:$0xff]
    %v4421 = vld [vmem:[#allocation4 + $0x4b8] sm:$0xff]
    %v4422 = vld [vmem:[#allocation4 + $0x4c0] sm:$0xff]
    %v4423 = vld [vmem:[#allocation4 + $0x4c8] sm:$0xff]
    %v4424 = vld [vmem:[#allocation4 + $0x4d0] sm:$0xff]
    %v4425 = vld [vmem:[#allocation4 + $0x4d8] sm:$0xff]
    %v4426 = vld [vmem:[#allocation4 + $0x4e0] sm:$0xff]
    %v4427 = vld [vmem:[#allocation4 + $0x4e8] sm:$0xff]
    %v4428 = vld [vmem:[#allocation4 + $0x4f0] sm:$0xff]
    %v4429 = vld [vmem:[#allocation4 + $0x4f8] sm:$0xff]
    %v4430 = vld [vmem:[#allocation4 + $0x500] sm:$0xff]
    %v4431 = vld [vmem:[#allocation4 + $0x508] sm:$0xff]
    %v4432 = vld [vmem:[#allocation4 + $0x510] sm:$0xff]
    %v4433 = vld [vmem:[#allocation4 + $0x518] sm:$0xff]
    %v4434 = vld [vmem:[#allocation4 + $0x520] sm:$0xff]
    %v4435 = vld [vmem:[#allocation4 + $0x528] sm:$0xff]
    %v4436 = vld [vmem:[#allocation4 + $0x530] sm:$0xff]
    %v4437 = vld [vmem:[#allocation4 + $0x538] sm:$0xff]
    %v4438 = vld [vmem:[#allocation4 + $0x540] sm:$0xff]
    %v4439 = vld [vmem:[#allocation4 + $0x548] sm:$0xff]
    %v4440 = vld [vmem:[#allocation4 + $0x550] sm:$0xff]
    %v4441 = vld [vmem:[#allocation4 + $0x558] sm:$0xff]
    %v4442 = vld [vmem:[#allocation4 + $0x560] sm:$0xff]
    %v4443 = vld [vmem:[#allocation4 + $0x568] sm:$0xff]
    %v4444 = vld [vmem:[#allocation4 + $0x570] sm:$0xff]
    %v4445 = vld [vmem:[#allocation4 + $0x578] sm:$0xff]
    %v4446 = vld [vmem:[#allocation4 + $0x580] sm:$0xff]
    %v4447 = vld [vmem:[#allocation4 + $0x588] sm:$0xff]
    %v4448 = vld [vmem:[#allocation4 + $0x590] sm:$0xff]
    %v4449 = vld [vmem:[#allocation4 + $0x598] sm:$0xff]
    %v4450 = vld [vmem:[#allocation4 + $0x5a0] sm:$0xff]
    %v4451 = vld [vmem:[#allocation4 + $0x5a8] sm:$0xff]
    %v4452 = vld [vmem:[#allocation4 + $0x5b0] sm:$0xff]
    %v4453 = vld [vmem:[#allocation4 + $0x5b8] sm:$0xff]
    %v4454 = vld [vmem:[#allocation4 + $0x5c0] sm:$0xff]
    %v4455 = vld [vmem:[#allocation4 + $0x5c8] sm:$0xff]
    %v4456 = vld [vmem:[#allocation4 + $0x5d0] sm:$0xff]
    %v4457 = vld [vmem:[#allocation4 + $0x5d8] sm:$0xff]
    %v4458 = vld [vmem:[#allocation4 + $0x5e0] sm:$0xff]
    %v4459 = vld [vmem:[#allocation4 + $0x5e8] sm:$0xff]
    %v4460 = vld [vmem:[#allocation4 + $0x5f0] sm:$0xff]
    %v4461 = vld [vmem:[#allocation4 + $0x5f8] sm:$0xff]
    %v4462 = vld [vmem:[#allocation4 + $0x600] sm:$0xff]
    %v4463 = vld [vmem:[#allocation4 + $0x608] sm:$0xff]
    %v4464 = vld [vmem:[#allocation4 + $0x610] sm:$0xff]
    %v4465 = vld [vmem:[#allocation4 + $0x618] sm:$0xff]
    %v4466 = vld [vmem:[#allocation4 + $0x620] sm:$0xff]
    %v4467 = vld [vmem:[#allocation4 + $0x628] sm:$0xff]
    %v4468 = vld [vmem:[#allocation4 + $0x630] sm:$0xff]
    %v4469 = vld [vmem:[#allocation4 + $0x638] sm:$0xff]
    %v4470 = vld [vmem:[#allocation4 + $0x640] sm:$0xff]
    %v4471 = vld [vmem:[#allocation4 + $0x648] sm:$0xff]
    %v4472 = vld [vmem:[#allocation4 + $0x650] sm:$0xff]
    %v4473 = vld [vmem:[#allocation4 + $0x658] sm:$0xff]
    %v4474 = vld [vmem:[#allocation4 + $0x660] sm:$0xff]
    %v4475 = vld [vmem:[#allocation4 + $0x668] sm:$0xff]
    %v4476 = vld [vmem:[#allocation4 + $0x670] sm:$0xff]
    %v4477 = vld [vmem:[#allocation4 + $0x678] sm:$0xff]
    %v4478 = vld [vmem:[#allocation4 + $0x680] sm:$0xff]
    %v4479 = vld [vmem:[#allocation4 + $0x688] sm:$0xff]
    %v4480 = vld [vmem:[#allocation4 + $0x690] sm:$0xff]
    %v4481 = vld [vmem:[#allocation4 + $0x698] sm:$0xff]
    %v4482 = vld [vmem:[#allocation4 + $0x6a0] sm:$0xff]
    %v4483 = vld [vmem:[#allocation4 + $0x6a8] sm:$0xff]
    %v4484 = vld [vmem:[#allocation4 + $0x6b0] sm:$0xff]
    %v4485 = vld [vmem:[#allocation4 + $0x6b8] sm:$0xff]
    %v4486 = vld [vmem:[#allocation4 + $0x6c0] sm:$0xff]
    %v4487 = vld [vmem:[#allocation4 + $0x6c8] sm:$0xff]
    %v4488 = vld [vmem:[#allocation4 + $0x6d0] sm:$0xff]
    %v4489 = vld [vmem:[#allocation4 + $0x6d8] sm:$0xff]
    %v4490 = vld [vmem:[#allocation4 + $0x6e0] sm:$0xff]
    %v4491 = vld [vmem:[#allocation4 + $0x6e8] sm:$0xff]
    %v4492 = vld [vmem:[#allocation4 + $0x6f0] sm:$0xff]
    %v4493 = vld [vmem:[#allocation4 + $0x6f8] sm:$0xff]
    %v4494 = vld [vmem:[#allocation4 + $0x700] sm:$0xff]
    %v4495 = vld [vmem:[#allocation4 + $0x708] sm:$0xff]
    %v4496 = vld [vmem:[#allocation4 + $0x710] sm:$0xff]
    %v4497 = vld [vmem:[#allocation4 + $0x718] sm:$0xff]
    %v4498 = vld [vmem:[#allocation4 + $0x720] sm:$0xff]
    %v4499 = vld [vmem:[#allocation4 + $0x728] sm:$0xff]
    %v4500 = vld [vmem:[#allocation4 + $0x730] sm:$0xff]
    %v4501 = vld [vmem:[#allocation4 + $0x738] sm:$0xff]
    %v4502 = vld [vmem:[#allocation4 + $0x740] sm:$0xff]
    %v4503 = vld [vmem:[#allocation4 + $0x748] sm:$0xff]
    %v4504 = vld [vmem:[#allocation4 + $0x750] sm:$0xff]
    %v4505 = vld [vmem:[#allocation4 + $0x758] sm:$0xff]
    %v4506 = vld [vmem:[#allocation4 + $0x760] sm:$0xff]
    %v4507 = vld [vmem:[#allocation4 + $0x768] sm:$0xff]
    %v4508 = vld [vmem:[#allocation4 + $0x770] sm:$0xff]
    %v4509 = vld [vmem:[#allocation4 + $0x778] sm:$0xff]
    %v4510 = vld [vmem:[#allocation4 + $0x780] sm:$0xff]
    %v4511 = vld [vmem:[#allocation4 + $0x788] sm:$0xff]
    %v4512 = vld [vmem:[#allocation4 + $0x790] sm:$0xff]
    %v4513 = vld [vmem:[#allocation4 + $0x798] sm:$0xff]
    %v4514 = vld [vmem:[#allocation4 + $0x7a0] sm:$0xff]
    %v4515 = vld [vmem:[#allocation4 + $0x7a8] sm:$0xff]
    %v4516 = vld [vmem:[#allocation4 + $0x7b0] sm:$0xff]
    %v4517 = vld [vmem:[#allocation4 + $0x7b8] sm:$0xff]
    %v4518 = vld [vmem:[#allocation4 + $0x7c0] sm:$0xff]
    %v4519 = vld [vmem:[#allocation4 + $0x7c8] sm:$0xff]
    %v4520 = vld [vmem:[#allocation4 + $0x7d0] sm:$0xff]
    %v4521 = vld [vmem:[#allocation4 + $0x7d8] sm:$0xff]
    %v4522 = vld [vmem:[#allocation4 + $0x7e0] sm:$0xff]
    %v4523 = vld [vmem:[#allocation4 + $0x7e8] sm:$0xff]
    %v4524 = vld [vmem:[#allocation4 + $0x7f0] sm:$0xff]
    %v4525 = vld [vmem:[#allocation4 + $0x7f8] sm:$0xff]
    %v4526 = vld [vmem:[%s12] sm:$0x3]
    %v4528 = vlaneseq
    %v4529 = vshrl.u32 %v4528, 7
    %v4530 = vsub.s32 0, %v4529
    %v4531 = vrot.slane %v4526, %v4530
    %v4532 = vlaneseq
    %v4533 = vshrl.u32 %v4532, 7
    %v4534 = vsub.s32 1, %v4533
    %v4535 = vrot.slane %v4526, %v4534
    %v4546 = vunpack.c.l.b16 %v4259
    %v4547 = vunpack.c.h.b16 %v4259
    %v4548 = vunpack.c.l.b16 %v4260
    %v4549 = vunpack.c.h.b16 %v4260
    %v4550 = vunpack.c.l.b16 %v4261
    %v4551 = vunpack.c.h.b16 %v4261
    %v4552 = vunpack.c.l.b16 %v4262
    %v4553 = vunpack.c.h.b16 %v4262
    %v4554 = vunpack.c.l.b16 %v4263
    %v4555 = vunpack.c.h.b16 %v4263
    %v4556 = vunpack.c.l.b16 %v4264
    %v4557 = vunpack.c.h.b16 %v4264
    %v4558 = vunpack.c.l.b16 %v4265
    %v4559 = vunpack.c.h.b16 %v4265
    %v4560 = vunpack.c.l.b16 %v4266
    %v4561 = vunpack.c.h.b16 %v4266
    %v4562 = vpack.c.b16 %v4546, %v4546
    %v4563 = vpack.c.b16 %v4547, %v4547
    %v4564 = vpack.c.b16 %v4548, %v4548
    %v4565 = vpack.c.b16 %v4549, %v4549
    %v4566 = vpack.c.b16 %v4550, %v4550
    %v4567 = vpack.c.b16 %v4551, %v4551
    %v4568 = vpack.c.b16 %v4552, %v4552
    %v4569 = vpack.c.b16 %v4553, %v4553
    %v4570 = vpack.c.b16 %v4554, %v4554
    %v4571 = vpack.c.b16 %v4555, %v4555
    %v4572 = vpack.c.b16 %v4556, %v4556
    %v4573 = vpack.c.b16 %v4557, %v4557
    %v4574 = vpack.c.b16 %v4558, %v4558
    %v4575 = vpack.c.b16 %v4559, %v4559
    %v4576 = vpack.c.b16 %v4560, %v4560
    %v4577 = vpack.c.b16 %v4561, %v4561
    %v4850 = vunpack.c.l.b16 %v4270
    %v4851 = vunpack.c.h.b16 %v4270
    %v4852 = vunpack.c.l.b16 %v4271
    %v4853 = vunpack.c.h.b16 %v4271
    %v4854 = vunpack.c.l.b16 %v4272
    %v4855 = vunpack.c.h.b16 %v4272
    %v4856 = vunpack.c.l.b16 %v4273
    %v4857 = vunpack.c.h.b16 %v4273
    %v4858 = vunpack.c.l.b16 %v4274
    %v4859 = vunpack.c.h.b16 %v4274
    %v4860 = vunpack.c.l.b16 %v4275
    %v4861 = vunpack.c.h.b16 %v4275
    %v4862 = vunpack.c.l.b16 %v4276
    %v4863 = vunpack.c.h.b16 %v4276
    %v4864 = vunpack.c.l.b16 %v4277
    %v4865 = vunpack.c.h.b16 %v4277
    %v4866 = vunpack.c.l.b16 %v4278
    %v4867 = vunpack.c.h.b16 %v4278
    %v4868 = vunpack.c.l.b16 %v4279
    %v4869 = vunpack.c.h.b16 %v4279
    %v4870 = vunpack.c.l.b16 %v4280
    %v4871 = vunpack.c.h.b16 %v4280
    %v4872 = vunpack.c.l.b16 %v4281
    %v4873 = vunpack.c.h.b16 %v4281
    %v4874 = vunpack.c.l.b16 %v4282
    %v4875 = vunpack.c.h.b16 %v4282
    %v4876 = vunpack.c.l.b16 %v4283
    %v4877 = vunpack.c.h.b16 %v4283
    %v4878 = vunpack.c.l.b16 %v4284
    %v4879 = vunpack.c.h.b16 %v4284
    %v4880 = vunpack.c.l.b16 %v4285
    %v4881 = vunpack.c.h.b16 %v4285
    %v4882 = vunpack.c.l.b16 %v4286
    %v4883 = vunpack.c.h.b16 %v4286
    %v4884 = vunpack.c.l.b16 %v4287
    %v4885 = vunpack.c.h.b16 %v4287
    %v4886 = vunpack.c.l.b16 %v4288
    %v4887 = vunpack.c.h.b16 %v4288
    %v4888 = vunpack.c.l.b16 %v4289
    %v4889 = vunpack.c.h.b16 %v4289
    %v4890 = vunpack.c.l.b16 %v4290
    %v4891 = vunpack.c.h.b16 %v4290
    %v4892 = vunpack.c.l.b16 %v4291
    %v4893 = vunpack.c.h.b16 %v4291
    %v4894 = vunpack.c.l.b16 %v4292
    %v4895 = vunpack.c.h.b16 %v4292
    %v4896 = vunpack.c.l.b16 %v4293
    %v4897 = vunpack.c.h.b16 %v4293
    %v4898 = vunpack.c.l.b16 %v4294
    %v4899 = vunpack.c.h.b16 %v4294
    %v4900 = vunpack.c.l.b16 %v4295
    %v4901 = vunpack.c.h.b16 %v4295
    %v4902 = vunpack.c.l.b16 %v4296
    %v4903 = vunpack.c.h.b16 %v4296
    %v4904 = vunpack.c.l.b16 %v4297
    %v4905 = vunpack.c.h.b16 %v4297
    %v4906 = vunpack.c.l.b16 %v4298
    %v4907 = vunpack.c.h.b16 %v4298
    %v4908 = vunpack.c.l.b16 %v4299
    %v4909 = vunpack.c.h.b16 %v4299
    %v4910 = vunpack.c.l.b16 %v4300
    %v4911 = vunpack.c.h.b16 %v4300
    %v4912 = vunpack.c.l.b16 %v4301
    %v4913 = vunpack.c.h.b16 %v4301
    %v4914 = vunpack.c.l.b16 %v4302
    %v4915 = vunpack.c.h.b16 %v4302
    %v4916 = vunpack.c.l.b16 %v4303
    %v4917 = vunpack.c.h.b16 %v4303
    %v4918 = vunpack.c.l.b16 %v4304
    %v4919 = vunpack.c.h.b16 %v4304
    %v4920 = vunpack.c.l.b16 %v4305
    %v4921 = vunpack.c.h.b16 %v4305
    %v4922 = vunpack.c.l.b16 %v4306
    %v4923 = vunpack.c.h.b16 %v4306
    %v4924 = vunpack.c.l.b16 %v4307
    %v4925 = vunpack.c.h.b16 %v4307
    %v4926 = vunpack.c.l.b16 %v4308
    %v4927 = vunpack.c.h.b16 %v4308
    %v4928 = vunpack.c.l.b16 %v4309
    %v4929 = vunpack.c.h.b16 %v4309
    %v4930 = vunpack.c.l.b16 %v4310
    %v4931 = vunpack.c.h.b16 %v4310
    %v4932 = vunpack.c.l.b16 %v4311
    %v4933 = vunpack.c.h.b16 %v4311
    %v4934 = vunpack.c.l.b16 %v4312
    %v4935 = vunpack.c.h.b16 %v4312
    %v4936 = vunpack.c.l.b16 %v4313
    %v4937 = vunpack.c.h.b16 %v4313
    %v4938 = vunpack.c.l.b16 %v4314
    %v4939 = vunpack.c.h.b16 %v4314
    %v4940 = vunpack.c.l.b16 %v4315
    %v4941 = vunpack.c.h.b16 %v4315
    %v4942 = vunpack.c.l.b16 %v4316
    %v4943 = vunpack.c.h.b16 %v4316
    %v4944 = vunpack.c.l.b16 %v4317
    %v4945 = vunpack.c.h.b16 %v4317
    %v4946 = vunpack.c.l.b16 %v4318
    %v4947 = vunpack.c.h.b16 %v4318
    %v4948 = vunpack.c.l.b16 %v4319
    %v4949 = vunpack.c.h.b16 %v4319
    %v4950 = vunpack.c.l.b16 %v4320
    %v4951 = vunpack.c.h.b16 %v4320
    %v4952 = vunpack.c.l.b16 %v4321
    %v4953 = vunpack.c.h.b16 %v4321
    %v4954 = vunpack.c.l.b16 %v4322
    %v4955 = vunpack.c.h.b16 %v4322
    %v4956 = vunpack.c.l.b16 %v4323
    %v4957 = vunpack.c.h.b16 %v4323
    %v4958 = vunpack.c.l.b16 %v4324
    %v4959 = vunpack.c.h.b16 %v4324
    %v4960 = vunpack.c.l.b16 %v4325
    %v4961 = vunpack.c.h.b16 %v4325
    %v4962 = vunpack.c.l.b16 %v4326
    %v4963 = vunpack.c.h.b16 %v4326
    %v4964 = vunpack.c.l.b16 %v4327
    %v4965 = vunpack.c.h.b16 %v4327
    %v4966 = vunpack.c.l.b16 %v4328
    %v4967 = vunpack.c.h.b16 %v4328
    %v4968 = vunpack.c.l.b16 %v4329
    %v4969 = vunpack.c.h.b16 %v4329
    %v4970 = vunpack.c.l.b16 %v4330
    %v4971 = vunpack.c.h.b16 %v4330
    %v4972 = vunpack.c.l.b16 %v4331
    %v4973 = vunpack.c.h.b16 %v4331
    %v4974 = vunpack.c.l.b16 %v4332
    %v4975 = vunpack.c.h.b16 %v4332
    %v4976 = vunpack.c.l.b16 %v4333
    %v4977 = vunpack.c.h.b16 %v4333
    %v4978 = vunpack.c.l.b16 %v4334
    %v4979 = vunpack.c.h.b16 %v4334
    %v4980 = vunpack.c.l.b16 %v4335
    %v4981 = vunpack.c.h.b16 %v4335
    %v4982 = vunpack.c.l.b16 %v4336
    %v4983 = vunpack.c.h.b16 %v4336
    %v4984 = vunpack.c.l.b16 %v4337
    %v4985 = vunpack.c.h.b16 %v4337
    %v4986 = vunpack.c.l.b16 %v4338
    %v4987 = vunpack.c.h.b16 %v4338
    %v4988 = vunpack.c.l.b16 %v4339
    %v4989 = vunpack.c.h.b16 %v4339
    %v4990 = vunpack.c.l.b16 %v4340
    %v4991 = vunpack.c.h.b16 %v4340
    %v4992 = vunpack.c.l.b16 %v4341
    %v4993 = vunpack.c.h.b16 %v4341
    %v4994 = vunpack.c.l.b16 %v4342
    %v4995 = vunpack.c.h.b16 %v4342
    %v4996 = vunpack.c.l.b16 %v4343
    %v4997 = vunpack.c.h.b16 %v4343
    %v4998 = vunpack.c.l.b16 %v4344
    %v4999 = vunpack.c.h.b16 %v4344
    %v5000 = vunpack.c.l.b16 %v4345
    %v5001 = vunpack.c.h.b16 %v4345
    %v5002 = vunpack.c.l.b16 %v4346
    %v5003 = vunpack.c.h.b16 %v4346
    %v5004 = vunpack.c.l.b16 %v4347
    %v5005 = vunpack.c.h.b16 %v4347
    %v5006 = vunpack.c.l.b16 %v4348
    %v5007 = vunpack.c.h.b16 %v4348
    %v5008 = vunpack.c.l.b16 %v4349
    %v5009 = vunpack.c.h.b16 %v4349
    %v5010 = vunpack.c.l.b16 %v4350
    %v5011 = vunpack.c.h.b16 %v4350
    %v5012 = vunpack.c.l.b16 %v4351
    %v5013 = vunpack.c.h.b16 %v4351
    %v5014 = vunpack.c.l.b16 %v4352
    %v5015 = vunpack.c.h.b16 %v4352
    %v5016 = vunpack.c.l.b16 %v4353
    %v5017 = vunpack.c.h.b16 %v4353
    %v5018 = vunpack.c.l.b16 %v4354
    %v5019 = vunpack.c.h.b16 %v4354
    %v5020 = vunpack.c.l.b16 %v4355
    %v5021 = vunpack.c.h.b16 %v4355
    %v5022 = vunpack.c.l.b16 %v4356
    %v5023 = vunpack.c.h.b16 %v4356
    %v5024 = vunpack.c.l.b16 %v4357
    %v5025 = vunpack.c.h.b16 %v4357
    %v5026 = vunpack.c.l.b16 %v4358
    %v5027 = vunpack.c.h.b16 %v4358
    %v5028 = vunpack.c.l.b16 %v4359
    %v5029 = vunpack.c.h.b16 %v4359
    %v5030 = vunpack.c.l.b16 %v4360
    %v5031 = vunpack.c.h.b16 %v4360
    %v5032 = vunpack.c.l.b16 %v4361
    %v5033 = vunpack.c.h.b16 %v4361
    %v5034 = vunpack.c.l.b16 %v4362
    %v5035 = vunpack.c.h.b16 %v4362
    %v5036 = vunpack.c.l.b16 %v4363
    %v5037 = vunpack.c.h.b16 %v4363
    %v5038 = vunpack.c.l.b16 %v4364
    %v5039 = vunpack.c.h.b16 %v4364
    %v5040 = vunpack.c.l.b16 %v4365
    %v5041 = vunpack.c.h.b16 %v4365
    %v5042 = vunpack.c.l.b16 %v4366
    %v5043 = vunpack.c.h.b16 %v4366
    %v5044 = vunpack.c.l.b16 %v4367
    %v5045 = vunpack.c.h.b16 %v4367
    %v5046 = vunpack.c.l.b16 %v4368
    %v5047 = vunpack.c.h.b16 %v4368
    %v5048 = vunpack.c.l.b16 %v4369
    %v5049 = vunpack.c.h.b16 %v4369
    %v5050 = vunpack.c.l.b16 %v4370
    %v5051 = vunpack.c.h.b16 %v4370
    %v5052 = vunpack.c.l.b16 %v4371
    %v5053 = vunpack.c.h.b16 %v4371
    %v5054 = vunpack.c.l.b16 %v4372
    %v5055 = vunpack.c.h.b16 %v4372
    %v5056 = vunpack.c.l.b16 %v4373
    %v5057 = vunpack.c.h.b16 %v4373
    %v5058 = vunpack.c.l.b16 %v4374
    %v5059 = vunpack.c.h.b16 %v4374
    %v5060 = vunpack.c.l.b16 %v4375
    %v5061 = vunpack.c.h.b16 %v4375
    %v5062 = vunpack.c.l.b16 %v4376
    %v5063 = vunpack.c.h.b16 %v4376
    %v5064 = vunpack.c.l.b16 %v4377
    %v5065 = vunpack.c.h.b16 %v4377
    %v5066 = vunpack.c.l.b16 %v4378
    %v5067 = vunpack.c.h.b16 %v4378
    %v5068 = vunpack.c.l.b16 %v4379
    %v5069 = vunpack.c.h.b16 %v4379
    %v5070 = vunpack.c.l.b16 %v4380
    %v5071 = vunpack.c.h.b16 %v4380
    %v5072 = vunpack.c.l.b16 %v4381
    %v5073 = vunpack.c.h.b16 %v4381
    %v5074 = vunpack.c.l.b16 %v4382
    %v5075 = vunpack.c.h.b16 %v4382
    %v5076 = vunpack.c.l.b16 %v4383
    %v5077 = vunpack.c.h.b16 %v4383
    %v5078 = vunpack.c.l.b16 %v4384
    %v5079 = vunpack.c.h.b16 %v4384
    %v5080 = vunpack.c.l.b16 %v4385
    %v5081 = vunpack.c.h.b16 %v4385
    %v5082 = vunpack.c.l.b16 %v4386
    %v5083 = vunpack.c.h.b16 %v4386
    %v5084 = vunpack.c.l.b16 %v4387
    %v5085 = vunpack.c.h.b16 %v4387
    %v5086 = vunpack.c.l.b16 %v4388
    %v5087 = vunpack.c.h.b16 %v4388
    %v5088 = vunpack.c.l.b16 %v4389
    %v5089 = vunpack.c.h.b16 %v4389
    %v5090 = vunpack.c.l.b16 %v4390
    %v5091 = vunpack.c.h.b16 %v4390
    %v5092 = vunpack.c.l.b16 %v4391
    %v5093 = vunpack.c.h.b16 %v4391
    %v5094 = vunpack.c.l.b16 %v4392
    %v5095 = vunpack.c.h.b16 %v4392
    %v5096 = vunpack.c.l.b16 %v4393
    %v5097 = vunpack.c.h.b16 %v4393
    %v5098 = vunpack.c.l.b16 %v4394
    %v5099 = vunpack.c.h.b16 %v4394
    %v5100 = vunpack.c.l.b16 %v4395
    %v5101 = vunpack.c.h.b16 %v4395
    %v5102 = vunpack.c.l.b16 %v4396
    %v5103 = vunpack.c.h.b16 %v4396
    %v5104 = vunpack.c.l.b16 %v4397
    %v5105 = vunpack.c.h.b16 %v4397
    %v5106 = vunpack.c.l.b16 %v4398
    %v5107 = vunpack.c.h.b16 %v4398
    %v5108 = vunpack.c.l.b16 %v4399
    %v5109 = vunpack.c.h.b16 %v4399
    %v5110 = vunpack.c.l.b16 %v4400
    %v5111 = vunpack.c.h.b16 %v4400
    %v5112 = vunpack.c.l.b16 %v4401
    %v5113 = vunpack.c.h.b16 %v4401
    %v5114 = vunpack.c.l.b16 %v4402
    %v5115 = vunpack.c.h.b16 %v4402
    %v5116 = vunpack.c.l.b16 %v4403
    %v5117 = vunpack.c.h.b16 %v4403
    %v5118 = vunpack.c.l.b16 %v4404
    %v5119 = vunpack.c.h.b16 %v4404
    %v5120 = vunpack.c.l.b16 %v4405
    %v5121 = vunpack.c.h.b16 %v4405
    %v5122 = vunpack.c.l.b16 %v4406
    %v5123 = vunpack.c.h.b16 %v4406
    %v5124 = vunpack.c.l.b16 %v4407
    %v5125 = vunpack.c.h.b16 %v4407
    %v5126 = vunpack.c.l.b16 %v4408
    %v5127 = vunpack.c.h.b16 %v4408
    %v5128 = vunpack.c.l.b16 %v4409
    %v5129 = vunpack.c.h.b16 %v4409
    %v5130 = vunpack.c.l.b16 %v4410
    %v5131 = vunpack.c.h.b16 %v4410
    %v5132 = vunpack.c.l.b16 %v4411
    %v5133 = vunpack.c.h.b16 %v4411
    %v5134 = vunpack.c.l.b16 %v4412
    %v5135 = vunpack.c.h.b16 %v4412
    %v5136 = vunpack.c.l.b16 %v4413
    %v5137 = vunpack.c.h.b16 %v4413
    %v5138 = vunpack.c.l.b16 %v4414
    %v5139 = vunpack.c.h.b16 %v4414
    %v5140 = vunpack.c.l.b16 %v4415
    %v5141 = vunpack.c.h.b16 %v4415
    %v5142 = vunpack.c.l.b16 %v4416
    %v5143 = vunpack.c.h.b16 %v4416
    %v5144 = vunpack.c.l.b16 %v4417
    %v5145 = vunpack.c.h.b16 %v4417
    %v5146 = vunpack.c.l.b16 %v4418
    %v5147 = vunpack.c.h.b16 %v4418
    %v5148 = vunpack.c.l.b16 %v4419
    %v5149 = vunpack.c.h.b16 %v4419
    %v5150 = vunpack.c.l.b16 %v4420
    %v5151 = vunpack.c.h.b16 %v4420
    %v5152 = vunpack.c.l.b16 %v4421
    %v5153 = vunpack.c.h.b16 %v4421
    %v5154 = vunpack.c.l.b16 %v4422
    %v5155 = vunpack.c.h.b16 %v4422
    %v5156 = vunpack.c.l.b16 %v4423
    %v5157 = vunpack.c.h.b16 %v4423
    %v5158 = vunpack.c.l.b16 %v4424
    %v5159 = vunpack.c.h.b16 %v4424
    %v5160 = vunpack.c.l.b16 %v4425
    %v5161 = vunpack.c.h.b16 %v4425
    %v5162 = vunpack.c.l.b16 %v4426
    %v5163 = vunpack.c.h.b16 %v4426
    %v5164 = vunpack.c.l.b16 %v4427
    %v5165 = vunpack.c.h.b16 %v4427
    %v5166 = vunpack.c.l.b16 %v4428
    %v5167 = vunpack.c.h.b16 %v4428
    %v5168 = vunpack.c.l.b16 %v4429
    %v5169 = vunpack.c.h.b16 %v4429
    %v5170 = vunpack.c.l.b16 %v4430
    %v5171 = vunpack.c.h.b16 %v4430
    %v5172 = vunpack.c.l.b16 %v4431
    %v5173 = vunpack.c.h.b16 %v4431
    %v5174 = vunpack.c.l.b16 %v4432
    %v5175 = vunpack.c.h.b16 %v4432
    %v5176 = vunpack.c.l.b16 %v4433
    %v5177 = vunpack.c.h.b16 %v4433
    %v5178 = vunpack.c.l.b16 %v4434
    %v5179 = vunpack.c.h.b16 %v4434
    %v5180 = vunpack.c.l.b16 %v4435
    %v5181 = vunpack.c.h.b16 %v4435
    %v5182 = vunpack.c.l.b16 %v4436
    %v5183 = vunpack.c.h.b16 %v4436
    %v5184 = vunpack.c.l.b16 %v4437
    %v5185 = vunpack.c.h.b16 %v4437
    %v5186 = vunpack.c.l.b16 %v4438
    %v5187 = vunpack.c.h.b16 %v4438
    %v5188 = vunpack.c.l.b16 %v4439
    %v5189 = vunpack.c.h.b16 %v4439
    %v5190 = vunpack.c.l.b16 %v4440
    %v5191 = vunpack.c.h.b16 %v4440
    %v5192 = vunpack.c.l.b16 %v4441
    %v5193 = vunpack.c.h.b16 %v4441
    %v5194 = vunpack.c.l.b16 %v4442
    %v5195 = vunpack.c.h.b16 %v4442
    %v5196 = vunpack.c.l.b16 %v4443
    %v5197 = vunpack.c.h.b16 %v4443
    %v5198 = vunpack.c.l.b16 %v4444
    %v5199 = vunpack.c.h.b16 %v4444
    %v5200 = vunpack.c.l.b16 %v4445
    %v5201 = vunpack.c.h.b16 %v4445
    %v5202 = vunpack.c.l.b16 %v4446
    %v5203 = vunpack.c.h.b16 %v4446
    %v5204 = vunpack.c.l.b16 %v4447
    %v5205 = vunpack.c.h.b16 %v4447
    %v5206 = vunpack.c.l.b16 %v4448
    %v5207 = vunpack.c.h.b16 %v4448
    %v5208 = vunpack.c.l.b16 %v4449
    %v5209 = vunpack.c.h.b16 %v4449
    %v5210 = vunpack.c.l.b16 %v4450
    %v5211 = vunpack.c.h.b16 %v4450
    %v5212 = vunpack.c.l.b16 %v4451
    %v5213 = vunpack.c.h.b16 %v4451
    %v5214 = vunpack.c.l.b16 %v4452
    %v5215 = vunpack.c.h.b16 %v4452
    %v5216 = vunpack.c.l.b16 %v4453
    %v5217 = vunpack.c.h.b16 %v4453
    %v5218 = vunpack.c.l.b16 %v4454
    %v5219 = vunpack.c.h.b16 %v4454
    %v5220 = vunpack.c.l.b16 %v4455
    %v5221 = vunpack.c.h.b16 %v4455
    %v5222 = vunpack.c.l.b16 %v4456
    %v5223 = vunpack.c.h.b16 %v4456
    %v5224 = vunpack.c.l.b16 %v4457
    %v5225 = vunpack.c.h.b16 %v4457
    %v5226 = vunpack.c.l.b16 %v4458
    %v5227 = vunpack.c.h.b16 %v4458
    %v5228 = vunpack.c.l.b16 %v4459
    %v5229 = vunpack.c.h.b16 %v4459
    %v5230 = vunpack.c.l.b16 %v4460
    %v5231 = vunpack.c.h.b16 %v4460
    %v5232 = vunpack.c.l.b16 %v4461
    %v5233 = vunpack.c.h.b16 %v4461
    %v5234 = vunpack.c.l.b16 %v4462
    %v5235 = vunpack.c.h.b16 %v4462
    %v5236 = vunpack.c.l.b16 %v4463
    %v5237 = vunpack.c.h.b16 %v4463
    %v5238 = vunpack.c.l.b16 %v4464
    %v5239 = vunpack.c.h.b16 %v4464
    %v5240 = vunpack.c.l.b16 %v4465
    %v5241 = vunpack.c.h.b16 %v4465
    %v5242 = vunpack.c.l.b16 %v4466
    %v5243 = vunpack.c.h.b16 %v4466
    %v5244 = vunpack.c.l.b16 %v4467
    %v5245 = vunpack.c.h.b16 %v4467
    %v5246 = vunpack.c.l.b16 %v4468
    %v5247 = vunpack.c.h.b16 %v4468
    %v5248 = vunpack.c.l.b16 %v4469
    %v5249 = vunpack.c.h.b16 %v4469
    %v5250 = vunpack.c.l.b16 %v4470
    %v5251 = vunpack.c.h.b16 %v4470
    %v5252 = vunpack.c.l.b16 %v4471
    %v5253 = vunpack.c.h.b16 %v4471
    %v5254 = vunpack.c.l.b16 %v4472
    %v5255 = vunpack.c.h.b16 %v4472
    %v5256 = vunpack.c.l.b16 %v4473
    %v5257 = vunpack.c.h.b16 %v4473
    %v5258 = vunpack.c.l.b16 %v4474
    %v5259 = vunpack.c.h.b16 %v4474
    %v5260 = vunpack.c.l.b16 %v4475
    %v5261 = vunpack.c.h.b16 %v4475
    %v5262 = vunpack.c.l.b16 %v4476
    %v5263 = vunpack.c.h.b16 %v4476
    %v5264 = vunpack.c.l.b16 %v4477
    %v5265 = vunpack.c.h.b16 %v4477
    %v5266 = vunpack.c.l.b16 %v4478
    %v5267 = vunpack.c.h.b16 %v4478
    %v5268 = vunpack.c.l.b16 %v4479
    %v5269 = vunpack.c.h.b16 %v4479
    %v5270 = vunpack.c.l.b16 %v4480
    %v5271 = vunpack.c.h.b16 %v4480
    %v5272 = vunpack.c.l.b16 %v4481
    %v5273 = vunpack.c.h.b16 %v4481
    %v5274 = vunpack.c.l.b16 %v4482
    %v5275 = vunpack.c.h.b16 %v4482
    %v5276 = vunpack.c.l.b16 %v4483
    %v5277 = vunpack.c.h.b16 %v4483
    %v5278 = vunpack.c.l.b16 %v4484
    %v5279 = vunpack.c.h.b16 %v4484
    %v5280 = vunpack.c.l.b16 %v4485
    %v5281 = vunpack.c.h.b16 %v4485
    %v5282 = vunpack.c.l.b16 %v4486
    %v5283 = vunpack.c.h.b16 %v4486
    %v5284 = vunpack.c.l.b16 %v4487
    %v5285 = vunpack.c.h.b16 %v4487
    %v5286 = vunpack.c.l.b16 %v4488
    %v5287 = vunpack.c.h.b16 %v4488
    %v5288 = vunpack.c.l.b16 %v4489
    %v5289 = vunpack.c.h.b16 %v4489
    %v5290 = vunpack.c.l.b16 %v4490
    %v5291 = vunpack.c.h.b16 %v4490
    %v5292 = vunpack.c.l.b16 %v4491
    %v5293 = vunpack.c.h.b16 %v4491
    %v5294 = vunpack.c.l.b16 %v4492
    %v5295 = vunpack.c.h.b16 %v4492
    %v5296 = vunpack.c.l.b16 %v4493
    %v5297 = vunpack.c.h.b16 %v4493
    %v5298 = vunpack.c.l.b16 %v4494
    %v5299 = vunpack.c.h.b16 %v4494
    %v5300 = vunpack.c.l.b16 %v4495
    %v5301 = vunpack.c.h.b16 %v4495
    %v5302 = vunpack.c.l.b16 %v4496
    %v5303 = vunpack.c.h.b16 %v4496
    %v5304 = vunpack.c.l.b16 %v4497
    %v5305 = vunpack.c.h.b16 %v4497
    %v5306 = vunpack.c.l.b16 %v4498
    %v5307 = vunpack.c.h.b16 %v4498
    %v5308 = vunpack.c.l.b16 %v4499
    %v5309 = vunpack.c.h.b16 %v4499
    %v5310 = vunpack.c.l.b16 %v4500
    %v5311 = vunpack.c.h.b16 %v4500
    %v5312 = vunpack.c.l.b16 %v4501
    %v5313 = vunpack.c.h.b16 %v4501
    %v5314 = vunpack.c.l.b16 %v4502
    %v5315 = vunpack.c.h.b16 %v4502
    %v5316 = vunpack.c.l.b16 %v4503
    %v5317 = vunpack.c.h.b16 %v4503
    %v5318 = vunpack.c.l.b16 %v4504
    %v5319 = vunpack.c.h.b16 %v4504
    %v5320 = vunpack.c.l.b16 %v4505
    %v5321 = vunpack.c.h.b16 %v4505
    %v5322 = vunpack.c.l.b16 %v4506
    %v5323 = vunpack.c.h.b16 %v4506
    %v5324 = vunpack.c.l.b16 %v4507
    %v5325 = vunpack.c.h.b16 %v4507
    %v5326 = vunpack.c.l.b16 %v4508
    %v5327 = vunpack.c.h.b16 %v4508
    %v5328 = vunpack.c.l.b16 %v4509
    %v5329 = vunpack.c.h.b16 %v4509
    %v5330 = vunpack.c.l.b16 %v4510
    %v5331 = vunpack.c.h.b16 %v4510
    %v5332 = vunpack.c.l.b16 %v4511
    %v5333 = vunpack.c.h.b16 %v4511
    %v5334 = vunpack.c.l.b16 %v4512
    %v5335 = vunpack.c.h.b16 %v4512
    %v5336 = vunpack.c.l.b16 %v4513
    %v5337 = vunpack.c.h.b16 %v4513
    %v5338 = vunpack.c.l.b16 %v4514
    %v5339 = vunpack.c.h.b16 %v4514
    %v5340 = vunpack.c.l.b16 %v4515
    %v5341 = vunpack.c.h.b16 %v4515
    %v5342 = vunpack.c.l.b16 %v4516
    %v5343 = vunpack.c.h.b16 %v4516
    %v5344 = vunpack.c.l.b16 %v4517
    %v5345 = vunpack.c.h.b16 %v4517
    %v5346 = vunpack.c.l.b16 %v4518
    %v5347 = vunpack.c.h.b16 %v4518
    %v5348 = vunpack.c.l.b16 %v4519
    %v5349 = vunpack.c.h.b16 %v4519
    %v5350 = vunpack.c.l.b16 %v4520
    %v5351 = vunpack.c.h.b16 %v4520
    %v5352 = vunpack.c.l.b16 %v4521
    %v5353 = vunpack.c.h.b16 %v4521
    %v5354 = vunpack.c.l.b16 %v4522
    %v5355 = vunpack.c.h.b16 %v4522
    %v5356 = vunpack.c.l.b16 %v4523
    %v5357 = vunpack.c.h.b16 %v4523
    %v5358 = vunpack.c.l.b16 %v4524
    %v5359 = vunpack.c.h.b16 %v4524
    %v5360 = vunpack.c.l.b16 %v4525
    %v5361 = vunpack.c.h.b16 %v4525
    %v5362 = vpack.c.b16 %v4852, %v4850
    %v5363 = vpack.c.b16 %v4853, %v4851
    %v5364 = vpack.c.b16 %v4856, %v4854
    %v5365 = vpack.c.b16 %v4857, %v4855
    %v5366 = vpack.c.b16 %v4860, %v4858
    %v5367 = vpack.c.b16 %v4861, %v4859
    %v5368 = vpack.c.b16 %v4864, %v4862
    %v5369 = vpack.c.b16 %v4865, %v4863
    %v5370 = vpack.c.b16 %v4868, %v4866
    %v5371 = vpack.c.b16 %v4869, %v4867
    %v5372 = vpack.c.b16 %v4872, %v4870
    %v5373 = vpack.c.b16 %v4873, %v4871
    %v5374 = vpack.c.b16 %v4876, %v4874
    %v5375 = vpack.c.b16 %v4877, %v4875
    %v5376 = vpack.c.b16 %v4880, %v4878
    %v5377 = vpack.c.b16 %v4881, %v4879
    %v5378 = vpack.c.b16 %v4884, %v4882
    %v5379 = vpack.c.b16 %v4885, %v4883
    %v5380 = vpack.c.b16 %v4888, %v4886
    %v5381 = vpack.c.b16 %v4889, %v4887
    %v5382 = vpack.c.b16 %v4892, %v4890
    %v5383 = vpack.c.b16 %v4893, %v4891
    %v5384 = vpack.c.b16 %v4896, %v4894
    %v5385 = vpack.c.b16 %v4897, %v4895
    %v5386 = vpack.c.b16 %v4900, %v4898
    %v5387 = vpack.c.b16 %v4901, %v4899
    %v5388 = vpack.c.b16 %v4904, %v4902
    %v5389 = vpack.c.b16 %v4905, %v4903
    %v5390 = vpack.c.b16 %v4908, %v4906
    %v5391 = vpack.c.b16 %v4909, %v4907
    %v5392 = vpack.c.b16 %v4912, %v4910
    %v5393 = vpack.c.b16 %v4913, %v4911
    %v5394 = vpack.c.b16 %v4916, %v4914
    %v5395 = vpack.c.b16 %v4917, %v4915
    %v5396 = vpack.c.b16 %v4920, %v4918
    %v5397 = vpack.c.b16 %v4921, %v4919
    %v5398 = vpack.c.b16 %v4924, %v4922
    %v5399 = vpack.c.b16 %v4925, %v4923
    %v5400 = vpack.c.b16 %v4928, %v4926
    %v5401 = vpack.c.b16 %v4929, %v4927
    %v5402 = vpack.c.b16 %v4932, %v4930
    %v5403 = vpack.c.b16 %v4933, %v4931
    %v5404 = vpack.c.b16 %v4936, %v4934
    %v5405 = vpack.c.b16 %v4937, %v4935
    %v5406 = vpack.c.b16 %v4940, %v4938
    %v5407 = vpack.c.b16 %v4941, %v4939
    %v5408 = vpack.c.b16 %v4944, %v4942
    %v5409 = vpack.c.b16 %v4945, %v4943
    %v5410 = vpack.c.b16 %v4948, %v4946
    %v5411 = vpack.c.b16 %v4949, %v4947
    %v5412 = vpack.c.b16 %v4952, %v4950
    %v5413 = vpack.c.b16 %v4953, %v4951
    %v5414 = vpack.c.b16 %v4956, %v4954
    %v5415 = vpack.c.b16 %v4957, %v4955
    %v5416 = vpack.c.b16 %v4960, %v4958
    %v5417 = vpack.c.b16 %v4961, %v4959
    %v5418 = vpack.c.b16 %v4964, %v4962
    %v5419 = vpack.c.b16 %v4965, %v4963
    %v5420 = vpack.c.b16 %v4968, %v4966
    %v5421 = vpack.c.b16 %v4969, %v4967
    %v5422 = vpack.c.b16 %v4972, %v4970
    %v5423 = vpack.c.b16 %v4973, %v4971
    %v5424 = vpack.c.b16 %v4976, %v4974
    %v5425 = vpack.c.b16 %v4977, %v4975
    %v5426 = vpack.c.b16 %v4980, %v4978
    %v5427 = vpack.c.b16 %v4981, %v4979
    %v5428 = vpack.c.b16 %v4984, %v4982
    %v5429 = vpack.c.b16 %v4985, %v4983
    %v5430 = vpack.c.b16 %v4988, %v4986
    %v5431 = vpack.c.b16 %v4989, %v4987
    %v5432 = vpack.c.b16 %v4992, %v4990
    %v5433 = vpack.c.b16 %v4993, %v4991
    %v5434 = vpack.c.b16 %v4996, %v4994
    %v5435 = vpack.c.b16 %v4997, %v4995
    %v5436 = vpack.c.b16 %v5000, %v4998
    %v5437 = vpack.c.b16 %v5001, %v4999
    %v5438 = vpack.c.b16 %v5004, %v5002
    %v5439 = vpack.c.b16 %v5005, %v5003
    %v5440 = vpack.c.b16 %v5008, %v5006
    %v5441 = vpack.c.b16 %v5009, %v5007
    %v5442 = vpack.c.b16 %v5012, %v5010
    %v5443 = vpack.c.b16 %v5013, %v5011
    %v5444 = vpack.c.b16 %v5016, %v5014
    %v5445 = vpack.c.b16 %v5017, %v5015
    %v5446 = vpack.c.b16 %v5020, %v5018
    %v5447 = vpack.c.b16 %v5021, %v5019
    %v5448 = vpack.c.b16 %v5024, %v5022
    %v5449 = vpack.c.b16 %v5025, %v5023
    %v5450 = vpack.c.b16 %v5028, %v5026
    %v5451 = vpack.c.b16 %v5029, %v5027
    %v5452 = vpack.c.b16 %v5032, %v5030
    %v5453 = vpack.c.b16 %v5033, %v5031
    %v5454 = vpack.c.b16 %v5036, %v5034
    %v5455 = vpack.c.b16 %v5037, %v5035
    %v5456 = vpack.c.b16 %v5040, %v5038
    %v5457 = vpack.c.b16 %v5041, %v5039
    %v5458 = vpack.c.b16 %v5044, %v5042
    %v5459 = vpack.c.b16 %v5045, %v5043
    %v5460 = vpack.c.b16 %v5048, %v5046
    %v5461 = vpack.c.b16 %v5049, %v5047
    %v5462 = vpack.c.b16 %v5052, %v5050
    %v5463 = vpack.c.b16 %v5053, %v5051
    %v5464 = vpack.c.b16 %v5056, %v5054
    %v5465 = vpack.c.b16 %v5057, %v5055
    %v5466 = vpack.c.b16 %v5060, %v5058
    %v5467 = vpack.c.b16 %v5061, %v5059
    %v5468 = vpack.c.b16 %v5064, %v5062
    %v5469 = vpack.c.b16 %v5065, %v5063
    %v5470 = vpack.c.b16 %v5068, %v5066
    %v5471 = vpack.c.b16 %v5069, %v5067
    %v5472 = vpack.c.b16 %v5072, %v5070
    %v5473 = vpack.c.b16 %v5073, %v5071
    %v5474 = vpack.c.b16 %v5076, %v5074
    %v5475 = vpack.c.b16 %v5077, %v5075
    %v5476 = vpack.c.b16 %v5080, %v5078
    %v5477 = vpack.c.b16 %v5081, %v5079
    %v5478 = vpack.c.b16 %v5084, %v5082
    %v5479 = vpack.c.b16 %v5085, %v5083
    %v5480 = vpack.c.b16 %v5088, %v5086
    %v5481 = vpack.c.b16 %v5089, %v5087
    %v5482 = vpack.c.b16 %v5092, %v5090
    %v5483 = vpack.c.b16 %v5093, %v5091
    %v5484 = vpack.c.b16 %v5096, %v5094
    %v5485 = vpack.c.b16 %v5097, %v5095
    %v5486 = vpack.c.b16 %v5100, %v5098
    %v5487 = vpack.c.b16 %v5101, %v5099
    %v5488 = vpack.c.b16 %v5104, %v5102
    %v5489 = vpack.c.b16 %v5105, %v5103
    %v5490 = vpack.c.b16 %v5108, %v5106
    %v5491 = vpack.c.b16 %v5109, %v5107
    %v5492 = vpack.c.b16 %v5112, %v5110
    %v5493 = vpack.c.b16 %v5113, %v5111
    %v5494 = vpack.c.b16 %v5116, %v5114
    %v5495 = vpack.c.b16 %v5117, %v5115
    %v5496 = vpack.c.b16 %v5120, %v5118
    %v5497 = vpack.c.b16 %v5121, %v5119
    %v5498 = vpack.c.b16 %v5124, %v5122
    %v5499 = vpack.c.b16 %v5125, %v5123
    %v5500 = vpack.c.b16 %v5128, %v5126
    %v5501 = vpack.c.b16 %v5129, %v5127
    %v5502 = vpack.c.b16 %v5132, %v5130
    %v5503 = vpack.c.b16 %v5133, %v5131
    %v5504 = vpack.c.b16 %v5136, %v5134
    %v5505 = vpack.c.b16 %v5137, %v5135
    %v5506 = vpack.c.b16 %v5140, %v5138
    %v5507 = vpack.c.b16 %v5141, %v5139
    %v5508 = vpack.c.b16 %v5144, %v5142
    %v5509 = vpack.c.b16 %v5145, %v5143
    %v5510 = vpack.c.b16 %v5148, %v5146
    %v5511 = vpack.c.b16 %v5149, %v5147
    %v5512 = vpack.c.b16 %v5152, %v5150
    %v5513 = vpack.c.b16 %v5153, %v5151
    %v5514 = vpack.c.b16 %v5156, %v5154
    %v5515 = vpack.c.b16 %v5157, %v5155
    %v5516 = vpack.c.b16 %v5160, %v5158
    %v5517 = vpack.c.b16 %v5161, %v5159
    %v5518 = vpack.c.b16 %v5164, %v5162
    %v5519 = vpack.c.b16 %v5165, %v5163
    %v5520 = vpack.c.b16 %v5168, %v5166
    %v5521 = vpack.c.b16 %v5169, %v5167
    %v5522 = vpack.c.b16 %v5172, %v5170
    %v5523 = vpack.c.b16 %v5173, %v5171
    %v5524 = vpack.c.b16 %v5176, %v5174
    %v5525 = vpack.c.b16 %v5177, %v5175
    %v5526 = vpack.c.b16 %v5180, %v5178
    %v5527 = vpack.c.b16 %v5181, %v5179
    %v5528 = vpack.c.b16 %v5184, %v5182
    %v5529 = vpack.c.b16 %v5185, %v5183
    %v5530 = vpack.c.b16 %v5188, %v5186
    %v5531 = vpack.c.b16 %v5189, %v5187
    %v5532 = vpack.c.b16 %v5192, %v5190
    %v5533 = vpack.c.b16 %v5193, %v5191
    %v5534 = vpack.c.b16 %v5196, %v5194
    %v5535 = vpack.c.b16 %v5197, %v5195
    %v5536 = vpack.c.b16 %v5200, %v5198
    %v5537 = vpack.c.b16 %v5201, %v5199
    %v5538 = vpack.c.b16 %v5204, %v5202
    %v5539 = vpack.c.b16 %v5205, %v5203
    %v5540 = vpack.c.b16 %v5208, %v5206
    %v5541 = vpack.c.b16 %v5209, %v5207
    %v5542 = vpack.c.b16 %v5212, %v5210
    %v5543 = vpack.c.b16 %v5213, %v5211
    %v5544 = vpack.c.b16 %v5216, %v5214
    %v5545 = vpack.c.b16 %v5217, %v5215
    %v5546 = vpack.c.b16 %v5220, %v5218
    %v5547 = vpack.c.b16 %v5221, %v5219
    %v5548 = vpack.c.b16 %v5224, %v5222
    %v5549 = vpack.c.b16 %v5225, %v5223
    %v5550 = vpack.c.b16 %v5228, %v5226
    %v5551 = vpack.c.b16 %v5229, %v5227
    %v5552 = vpack.c.b16 %v5232, %v5230
    %v5553 = vpack.c.b16 %v5233, %v5231
    %v5554 = vpack.c.b16 %v5236, %v5234
    %v5555 = vpack.c.b16 %v5237, %v5235
    %v5556 = vpack.c.b16 %v5240, %v5238
    %v5557 = vpack.c.b16 %v5241, %v5239
    %v5558 = vpack.c.b16 %v5244, %v5242
    %v5559 = vpack.c.b16 %v5245, %v5243
    %v5560 = vpack.c.b16 %v5248, %v5246
    %v5561 = vpack.c.b16 %v5249, %v5247
    %v5562 = vpack.c.b16 %v5252, %v5250
    %v5563 = vpack.c.b16 %v5253, %v5251
    %v5564 = vpack.c.b16 %v5256, %v5254
    %v5565 = vpack.c.b16 %v5257, %v5255
    %v5566 = vpack.c.b16 %v5260, %v5258
    %v5567 = vpack.c.b16 %v5261, %v5259
    %v5568 = vpack.c.b16 %v5264, %v5262
    %v5569 = vpack.c.b16 %v5265, %v5263
    %v5570 = vpack.c.b16 %v5268, %v5266
    %v5571 = vpack.c.b16 %v5269, %v5267
    %v5572 = vpack.c.b16 %v5272, %v5270
    %v5573 = vpack.c.b16 %v5273, %v5271
    %v5574 = vpack.c.b16 %v5276, %v5274
    %v5575 = vpack.c.b16 %v5277, %v5275
    %v5576 = vpack.c.b16 %v5280, %v5278
    %v5577 = vpack.c.b16 %v5281, %v5279
    %v5578 = vpack.c.b16 %v5284, %v5282
    %v5579 = vpack.c.b16 %v5285, %v5283
    %v5580 = vpack.c.b16 %v5288, %v5286
    %v5581 = vpack.c.b16 %v5289, %v5287
    %v5582 = vpack.c.b16 %v5292, %v5290
    %v5583 = vpack.c.b16 %v5293, %v5291
    %v5584 = vpack.c.b16 %v5296, %v5294
    %v5585 = vpack.c.b16 %v5297, %v5295
    %v5586 = vpack.c.b16 %v5300, %v5298
    %v5587 = vpack.c.b16 %v5301, %v5299
    %v5588 = vpack.c.b16 %v5304, %v5302
    %v5589 = vpack.c.b16 %v5305, %v5303
    %v5590 = vpack.c.b16 %v5308, %v5306
    %v5591 = vpack.c.b16 %v5309, %v5307
    %v5592 = vpack.c.b16 %v5312, %v5310
    %v5593 = vpack.c.b16 %v5313, %v5311
    %v5594 = vpack.c.b16 %v5316, %v5314
    %v5595 = vpack.c.b16 %v5317, %v5315
    %v5596 = vpack.c.b16 %v5320, %v5318
    %v5597 = vpack.c.b16 %v5321, %v5319
    %v5598 = vpack.c.b16 %v5324, %v5322
    %v5599 = vpack.c.b16 %v5325, %v5323
    %v5600 = vpack.c.b16 %v5328, %v5326
    %v5601 = vpack.c.b16 %v5329, %v5327
    %v5602 = vpack.c.b16 %v5332, %v5330
    %v5603 = vpack.c.b16 %v5333, %v5331
    %v5604 = vpack.c.b16 %v5336, %v5334
    %v5605 = vpack.c.b16 %v5337, %v5335
    %v5606 = vpack.c.b16 %v5340, %v5338
    %v5607 = vpack.c.b16 %v5341, %v5339
    %v5608 = vpack.c.b16 %v5344, %v5342
    %v5609 = vpack.c.b16 %v5345, %v5343
    %v5610 = vpack.c.b16 %v5348, %v5346
    %v5611 = vpack.c.b16 %v5349, %v5347
    %v5612 = vpack.c.b16 %v5352, %v5350
    %v5613 = vpack.c.b16 %v5353, %v5351
    %v5614 = vpack.c.b16 %v5356, %v5354
    %v5615 = vpack.c.b16 %v5357, %v5355
    %v5616 = vpack.c.b16 %v5360, %v5358
    %v5617 = vpack.c.b16 %v5361, %v5359
    %5874 = vmatprep.subr.bf16.mxu0 %v5377
    %5875 = vmatpush1.bf16.msra.mxu0 %v5376
    %5876 = vmatprep.subr.bf16.mxu0 %v5375
    %5877 = vmatpush1.bf16.msra.mxu0 %v5374
    %5878 = vmatprep.subr.bf16.mxu0 %v5373
    %5879 = vmatpush1.bf16.msra.mxu0 %v5372
    %5880 = vmatprep.subr.bf16.mxu0 %v5371
    %5881 = vmatpush1.bf16.msra.mxu0 %v5370
    %5882 = vmatprep.subr.bf16.mxu0 %v5369
    %5883 = vmatpush1.bf16.msra.mxu0 %v5368
    %5884 = vmatprep.subr.bf16.mxu0 %v5367
    %5885 = vmatpush1.bf16.msra.mxu0 %v5366
    %5886 = vmatprep.subr.bf16.mxu0 %v5365
    %5887 = vmatpush1.bf16.msra.mxu0 %v5364
    %5888 = vmatprep.subr.bf16.mxu0 %v5363
    %5889 = vmatpush1.bf16.msra.mxu0 %v5362
    %5890 = vmatprep.subr.bf16.mxu0 %v5393
    %5891 = vmatpush2.bf16.msra.mxu0 %v5392
    %5892 = vmatprep.subr.bf16.mxu0 %v5391
    %5893 = vmatpush2.bf16.msra.mxu0 %v5390
    %5894 = vmatprep.subr.bf16.mxu0 %v5389
    %5895 = vmatpush2.bf16.msra.mxu0 %v5388
    %5896 = vmatprep.subr.bf16.mxu0 %v5387
    %5897 = vmatpush2.bf16.msra.mxu0 %v5386
    %5898 = vmatprep.subr.bf16.mxu0 %v5385
    %5899 = vmatpush2.bf16.msra.mxu0 %v5384
    %5900 = vmatprep.subr.bf16.mxu0 %v5383
    %5901 = vmatpush2.bf16.msra.mxu0 %v5382
    %5902 = vmatprep.subr.bf16.mxu0 %v5381
    %5903 = vmatpush2.bf16.msra.mxu0 %v5380
    %5904 = vmatprep.subr.bf16.mxu0 %v5379
    %5905 = vmatpush2.bf16.msra.mxu0 %v5378
    %5906 = vmatprep.mubr.bf16.mxu0 %v4563
    %5907 = vmatmul.mubr.bf16.gmra.mxu0 %v4562
    %v5908 = vpop.f32.mrf.mxu0
    %v5909 = vadd.f32 %v4531, %v5908
    %v5910 = vpop.f32.mrf.mxu0
    %v5911 = vadd.f32 %v4535, %v5910
    %v5912 = vpop.f32.mrf.mxu0
    %v5913 = vpop.f32.mrf.mxu0
    %5914 = vdwg.mxu0
    %5915 = vmatprep.subr.bf16.mxu0 %v5409
    %5916 = vmatpush1.bf16.msra.mxu0 %v5408
    %5917 = vmatprep.subr.bf16.mxu0 %v5407
    %5918 = vmatpush1.bf16.msra.mxu0 %v5406
    %5919 = vmatprep.subr.bf16.mxu0 %v5405
    %5920 = vmatpush1.bf16.msra.mxu0 %v5404
    %5921 = vmatprep.subr.bf16.mxu0 %v5403
    %5922 = vmatpush1.bf16.msra.mxu0 %v5402
    %5923 = vmatprep.subr.bf16.mxu0 %v5401
    %5924 = vmatpush1.bf16.msra.mxu0 %v5400
    %5925 = vmatprep.subr.bf16.mxu0 %v5399
    %5926 = vmatpush1.bf16.msra.mxu0 %v5398
    %5927 = vmatprep.subr.bf16.mxu0 %v5397
    %5928 = vmatpush1.bf16.msra.mxu0 %v5396
    %5929 = vmatprep.subr.bf16.mxu0 %v5395
    %5930 = vmatpush1.bf16.msra.mxu0 %v5394
    %5931 = vmatprep.subr.bf16.mxu0 %v5425
    %5932 = vmatpush2.bf16.msra.mxu0 %v5424
    %5933 = vmatprep.subr.bf16.mxu0 %v5423
    %5934 = vmatpush2.bf16.msra.mxu0 %v5422
    %5935 = vmatprep.subr.bf16.mxu0 %v5421
    %5936 = vmatpush2.bf16.msra.mxu0 %v5420
    %5937 = vmatprep.subr.bf16.mxu0 %v5419
    %5938 = vmatpush2.bf16.msra.mxu0 %v5418
    %5939 = vmatprep.subr.bf16.mxu0 %v5417
    %5940 = vmatpush2.bf16.msra.mxu0 %v5416
    %5941 = vmatprep.subr.bf16.mxu0 %v5415
    %5942 = vmatpush2.bf16.msra.mxu0 %v5414
    %5943 = vmatprep.subr.bf16.mxu0 %v5413
    %5944 = vmatpush2.bf16.msra.mxu0 %v5412
    %5945 = vmatprep.subr.bf16.mxu0 %v5411
    %5946 = vmatpush2.bf16.msra.mxu0 %v5410
    %5947 = vmatprep.mubr.bf16.mxu0 %v4565
    %5948 = vmatmul.mubr.bf16.gmra.mxu0 %v4564
    %v5949 = vpop.f32.mrf.mxu0
    %v5950 = vadd.f32 %v5909, %v5949
    %v5951 = vpop.f32.mrf.mxu0
    %v5952 = vadd.f32 %v5911, %v5951
    %v5953 = vpop.f32.mrf.mxu0
    %v5954 = vpop.f32.mrf.mxu0
    %5955 = vdwg.mxu0
    %5956 = vmatprep.subr.bf16.mxu0 %v5441
    %5957 = vmatpush1.bf16.msra.mxu0 %v5440
    %5958 = vmatprep.subr.bf16.mxu0 %v5439
    %5959 = vmatpush1.bf16.msra.mxu0 %v5438
    %5960 = vmatprep.subr.bf16.mxu0 %v5437
    %5961 = vmatpush1.bf16.msra.mxu0 %v5436
    %5962 = vmatprep.subr.bf16.mxu0 %v5435
    %5963 = vmatpush1.bf16.msra.mxu0 %v5434
    %5964 = vmatprep.subr.bf16.mxu0 %v5433
    %5965 = vmatpush1.bf16.msra.mxu0 %v5432
    %5966 = vmatprep.subr.bf16.mxu0 %v5431
    %5967 = vmatpush1.bf16.msra.mxu0 %v5430
    %5968 = vmatprep.subr.bf16.mxu0 %v5429
    %5969 = vmatpush1.bf16.msra.mxu0 %v5428
    %5970 = vmatprep.subr.bf16.mxu0 %v5427
    %5971 = vmatpush1.bf16.msra.mxu0 %v5426
    %5972 = vmatprep.subr.bf16.mxu0 %v5457
    %5973 = vmatpush2.bf16.msra.mxu0 %v5456
    %5974 = vmatprep.subr.bf16.mxu0 %v5455
    %5975 = vmatpush2.bf16.msra.mxu0 %v5454
    %5976 = vmatprep.subr.bf16.mxu0 %v5453
    %5977 = vmatpush2.bf16.msra.mxu0 %v5452
    %5978 = vmatprep.subr.bf16.mxu0 %v5451
    %5979 = vmatpush2.bf16.msra.mxu0 %v5450
    %5980 = vmatprep.subr.bf16.mxu0 %v5449
    %5981 = vmatpush2.bf16.msra.mxu0 %v5448
    %5982 = vmatprep.subr.bf16.mxu0 %v5447
    %5983 = vmatpush2.bf16.msra.mxu0 %v5446
    %5984 = vmatprep.subr.bf16.mxu0 %v5445
    %5985 = vmatpush2.bf16.msra.mxu0 %v5444
    %5986 = vmatprep.subr.bf16.mxu0 %v5443
    %5987 = vmatpush2.bf16.msra.mxu0 %v5442
    %5988 = vmatprep.mubr.bf16.mxu0 %v4567
    %5989 = vmatmul.mubr.bf16.gmra.mxu0 %v4566
    %v5990 = vpop.f32.mrf.mxu0
    %v5991 = vadd.f32 %v5950, %v5990
    %v5992 = vpop.f32.mrf.mxu0
    %v5993 = vadd.f32 %v5952, %v5992
    %v5994 = vpop.f32.mrf.mxu0
    %v5995 = vpop.f32.mrf.mxu0
    %5996 = vdwg.mxu0
    %5997 = vmatprep.subr.bf16.mxu0 %v5473
    %5998 = vmatpush1.bf16.msra.mxu0 %v5472
    %5999 = vmatprep.subr.bf16.mxu0 %v5471
    %6000 = vmatpush1.bf16.msra.mxu0 %v5470
    %6001 = vmatprep.subr.bf16.mxu0 %v5469
    %6002 = vmatpush1.bf16.msra.mxu0 %v5468
    %6003 = vmatprep.subr.bf16.mxu0 %v5467
    %6004 = vmatpush1.bf16.msra.mxu0 %v5466
    %6005 = vmatprep.subr.bf16.mxu0 %v5465
    %6006 = vmatpush1.bf16.msra.mxu0 %v5464
    %6007 = vmatprep.subr.bf16.mxu0 %v5463
    %6008 = vmatpush1.bf16.msra.mxu0 %v5462
    %6009 = vmatprep.subr.bf16.mxu0 %v5461
    %6010 = vmatpush1.bf16.msra.mxu0 %v5460
    %6011 = vmatprep.subr.bf16.mxu0 %v5459
    %6012 = vmatpush1.bf16.msra.mxu0 %v5458
    %6013 = vmatprep.subr.bf16.mxu0 %v5489
    %6014 = vmatpush2.bf16.msra.mxu0 %v5488
    %6015 = vmatprep.subr.bf16.mxu0 %v5487
    %6016 = vmatpush2.bf16.msra.mxu0 %v5486
    %6017 = vmatprep.subr.bf16.mxu0 %v5485
    %6018 = vmatpush2.bf16.msra.mxu0 %v5484
    %6019 = vmatprep.subr.bf16.mxu0 %v5483
    %6020 = vmatpush2.bf16.msra.mxu0 %v5482
    %6021 = vmatprep.subr.bf16.mxu0 %v5481
    %6022 = vmatpush2.bf16.msra.mxu0 %v5480
    %6023 = vmatprep.subr.bf16.mxu0 %v5479
    %6024 = vmatpush2.bf16.msra.mxu0 %v5478
    %6025 = vmatprep.subr.bf16.mxu0 %v5477
    %6026 = vmatpush2.bf16.msra.mxu0 %v5476
    %6027 = vmatprep.subr.bf16.mxu0 %v5475
    %6028 = vmatpush2.bf16.msra.mxu0 %v5474
    %6029 = vmatprep.mubr.bf16.mxu0 %v4569
    %6030 = vmatmul.mubr.bf16.gmra.mxu0 %v4568
    %v6031 = vpop.f32.mrf.mxu0
    %v6032 = vadd.f32 %v5991, %v6031
    %v6033 = vpop.f32.mrf.mxu0
    %v6034 = vadd.f32 %v5993, %v6033
    %v6035 = vpop.f32.mrf.mxu0
    %v6036 = vpop.f32.mrf.mxu0
    %6037 = vdwg.mxu0
    %6038 = vmatprep.subr.bf16.mxu0 %v5505
    %6039 = vmatpush1.bf16.msra.mxu0 %v5504
    %6040 = vmatprep.subr.bf16.mxu0 %v5503
    %6041 = vmatpush1.bf16.msra.mxu0 %v5502
    %6042 = vmatprep.subr.bf16.mxu0 %v5501
    %6043 = vmatpush1.bf16.msra.mxu0 %v5500
    %6044 = vmatprep.subr.bf16.mxu0 %v5499
    %6045 = vmatpush1.bf16.msra.mxu0 %v5498
    %6046 = vmatprep.subr.bf16.mxu0 %v5497
    %6047 = vmatpush1.bf16.msra.mxu0 %v5496
    %6048 = vmatprep.subr.bf16.mxu0 %v5495
    %6049 = vmatpush1.bf16.msra.mxu0 %v5494
    %6050 = vmatprep.subr.bf16.mxu0 %v5493
    %6051 = vmatpush1.bf16.msra.mxu0 %v5492
    %6052 = vmatprep.subr.bf16.mxu0 %v5491
    %6053 = vmatpush1.bf16.msra.mxu0 %v5490
    %6054 = vmatprep.subr.bf16.mxu0 %v5521
    %6055 = vmatpush2.bf16.msra.mxu0 %v5520
    %6056 = vmatprep.subr.bf16.mxu0 %v5519
    %6057 = vmatpush2.bf16.msra.mxu0 %v5518
    %6058 = vmatprep.subr.bf16.mxu0 %v5517
    %6059 = vmatpush2.bf16.msra.mxu0 %v5516
    %6060 = vmatprep.subr.bf16.mxu0 %v5515
    %6061 = vmatpush2.bf16.msra.mxu0 %v5514
    %6062 = vmatprep.subr.bf16.mxu0 %v5513
    %6063 = vmatpush2.bf16.msra.mxu0 %v5512
    %6064 = vmatprep.subr.bf16.mxu0 %v5511
    %6065 = vmatpush2.bf16.msra.mxu0 %v5510
    %6066 = vmatprep.subr.bf16.mxu0 %v5509
    %6067 = vmatpush2.bf16.msra.mxu0 %v5508
    %6068 = vmatprep.subr.bf16.mxu0 %v5507
    %6069 = vmatpush2.bf16.msra.mxu0 %v5506
    %6070 = vmatprep.mubr.bf16.mxu0 %v4571
    %6071 = vmatmul.mubr.bf16.gmra.mxu0 %v4570
    %v6072 = vpop.f32.mrf.mxu0
    %v6073 = vadd.f32 %v6032, %v6072
    %v6074 = vpop.f32.mrf.mxu0
    %v6075 = vadd.f32 %v6034, %v6074
    %v6076 = vpop.f32.mrf.mxu0
    %v6077 = vpop.f32.mrf.mxu0
    %6078 = vdwg.mxu0
    %6079 = vmatprep.subr.bf16.mxu0 %v5537
    %6080 = vmatpush1.bf16.msra.mxu0 %v5536
    %6081 = vmatprep.subr.bf16.mxu0 %v5535
    %6082 = vmatpush1.bf16.msra.mxu0 %v5534
    %6083 = vmatprep.subr.bf16.mxu0 %v5533
    %6084 = vmatpush1.bf16.msra.mxu0 %v5532
    %6085 = vmatprep.subr.bf16.mxu0 %v5531
    %6086 = vmatpush1.bf16.msra.mxu0 %v5530
    %6087 = vmatprep.subr.bf16.mxu0 %v5529
    %6088 = vmatpush1.bf16.msra.mxu0 %v5528
    %6089 = vmatprep.subr.bf16.mxu0 %v5527
    %6090 = vmatpush1.bf16.msra.mxu0 %v5526
    %6091 = vmatprep.subr.bf16.mxu0 %v5525
    %6092 = vmatpush1.bf16.msra.mxu0 %v5524
    %6093 = vmatprep.subr.bf16.mxu0 %v5523
    %6094 = vmatpush1.bf16.msra.mxu0 %v5522
    %6095 = vmatprep.subr.bf16.mxu0 %v5553
    %6096 = vmatpush2.bf16.msra.mxu0 %v5552
    %6097 = vmatprep.subr.bf16.mxu0 %v5551
    %6098 = vmatpush2.bf16.msra.mxu0 %v5550
    %6099 = vmatprep.subr.bf16.mxu0 %v5549
    %6100 = vmatpush2.bf16.msra.mxu0 %v5548
    %6101 = vmatprep.subr.bf16.mxu0 %v5547
    %6102 = vmatpush2.bf16.msra.mxu0 %v5546
    %6103 = vmatprep.subr.bf16.mxu0 %v5545
    %6104 = vmatpush2.bf16.msra.mxu0 %v5544
    %6105 = vmatprep.subr.bf16.mxu0 %v5543
    %6106 = vmatpush2.bf16.msra.mxu0 %v5542
    %6107 = vmatprep.subr.bf16.mxu0 %v5541
    %6108 = vmatpush2.bf16.msra.mxu0 %v5540
    %6109 = vmatprep.subr.bf16.mxu0 %v5539
    %6110 = vmatpush2.bf16.msra.mxu0 %v5538
    %6111 = vmatprep.mubr.bf16.mxu0 %v4573
    %6112 = vmatmul.mubr.bf16.gmra.mxu0 %v4572
    %v6113 = vpop.f32.mrf.mxu0
    %v6114 = vadd.f32 %v6073, %v6113
    %v6115 = vpop.f32.mrf.mxu0
    %v6116 = vadd.f32 %v6075, %v6115
    %v6117 = vpop.f32.mrf.mxu0
    %v6118 = vpop.f32.mrf.mxu0
    %6119 = vdwg.mxu0
    %6120 = vmatprep.subr.bf16.mxu0 %v5569
    %6121 = vmatpush1.bf16.msra.mxu0 %v5568
    %6122 = vmatprep.subr.bf16.mxu0 %v5567
    %6123 = vmatpush1.bf16.msra.mxu0 %v5566
    %6124 = vmatprep.subr.bf16.mxu0 %v5565
    %6125 = vmatpush1.bf16.msra.mxu0 %v5564
    %6126 = vmatprep.subr.bf16.mxu0 %v5563
    %6127 = vmatpush1.bf16.msra.mxu0 %v5562
    %6128 = vmatprep.subr.bf16.mxu0 %v5561
    %6129 = vmatpush1.bf16.msra.mxu0 %v5560
    %6130 = vmatprep.subr.bf16.mxu0 %v5559
    %6131 = vmatpush1.bf16.msra.mxu0 %v5558
    %6132 = vmatprep.subr.bf16.mxu0 %v5557
    %6133 = vmatpush1.bf16.msra.mxu0 %v5556
    %6134 = vmatprep.subr.bf16.mxu0 %v5555
    %6135 = vmatpush1.bf16.msra.mxu0 %v5554
    %6136 = vmatprep.subr.bf16.mxu0 %v5585
    %6137 = vmatpush2.bf16.msra.mxu0 %v5584
    %6138 = vmatprep.subr.bf16.mxu0 %v5583
    %6139 = vmatpush2.bf16.msra.mxu0 %v5582
    %6140 = vmatprep.subr.bf16.mxu0 %v5581
    %6141 = vmatpush2.bf16.msra.mxu0 %v5580
    %6142 = vmatprep.subr.bf16.mxu0 %v5579
    %6143 = vmatpush2.bf16.msra.mxu0 %v5578
    %6144 = vmatprep.subr.bf16.mxu0 %v5577
    %6145 = vmatpush2.bf16.msra.mxu0 %v5576
    %6146 = vmatprep.subr.bf16.mxu0 %v5575
    %6147 = vmatpush2.bf16.msra.mxu0 %v5574
    %6148 = vmatprep.subr.bf16.mxu0 %v5573
    %6149 = vmatpush2.bf16.msra.mxu0 %v5572
    %6150 = vmatprep.subr.bf16.mxu0 %v5571
    %6151 = vmatpush2.bf16.msra.mxu0 %v5570
    %6152 = vmatprep.mubr.bf16.mxu0 %v4575
    %6153 = vmatmul.mubr.bf16.gmra.mxu0 %v4574
    %v6154 = vpop.f32.mrf.mxu0
    %v6155 = vadd.f32 %v6114, %v6154
    %v6156 = vpop.f32.mrf.mxu0
    %v6157 = vadd.f32 %v6116, %v6156
    %v6158 = vpop.f32.mrf.mxu0
    %v6159 = vpop.f32.mrf.mxu0
    %6160 = vdwg.mxu0
    %6161 = vmatprep.subr.bf16.mxu0 %v5601
    %6162 = vmatpush1.bf16.msra.mxu0 %v5600
    %6163 = vmatprep.subr.bf16.mxu0 %v5599
    %6164 = vmatpush1.bf16.msra.mxu0 %v5598
    %6165 = vmatprep.subr.bf16.mxu0 %v5597
    %6166 = vmatpush1.bf16.msra.mxu0 %v5596
    %6167 = vmatprep.subr.bf16.mxu0 %v5595
    %6168 = vmatpush1.bf16.msra.mxu0 %v5594
    %6169 = vmatprep.subr.bf16.mxu0 %v5593
    %6170 = vmatpush1.bf16.msra.mxu0 %v5592
    %6171 = vmatprep.subr.bf16.mxu0 %v5591
    %6172 = vmatpush1.bf16.msra.mxu0 %v5590
    %6173 = vmatprep.subr.bf16.mxu0 %v5589
    %6174 = vmatpush1.bf16.msra.mxu0 %v5588
    %6175 = vmatprep.subr.bf16.mxu0 %v5587
    %6176 = vmatpush1.bf16.msra.mxu0 %v5586
    %6177 = vmatprep.subr.bf16.mxu0 %v5617
    %6178 = vmatpush2.bf16.msra.mxu0 %v5616
    %6179 = vmatprep.subr.bf16.mxu0 %v5615
    %6180 = vmatpush2.bf16.msra.mxu0 %v5614
    %6181 = vmatprep.subr.bf16.mxu0 %v5613
    %6182 = vmatpush2.bf16.msra.mxu0 %v5612
    %6183 = vmatprep.subr.bf16.mxu0 %v5611
    %6184 = vmatpush2.bf16.msra.mxu0 %v5610
    %6185 = vmatprep.subr.bf16.mxu0 %v5609
    %6186 = vmatpush2.bf16.msra.mxu0 %v5608
    %6187 = vmatprep.subr.bf16.mxu0 %v5607
    %6188 = vmatpush2.bf16.msra.mxu0 %v5606
    %6189 = vmatprep.subr.bf16.mxu0 %v5605
    %6190 = vmatpush2.bf16.msra.mxu0 %v5604
    %6191 = vmatprep.subr.bf16.mxu0 %v5603
    %6192 = vmatpush2.bf16.msra.mxu0 %v5602
    %6193 = vmatprep.mubr.bf16.mxu0 %v4577
    %6194 = vmatmul.mubr.bf16.gmra.mxu0 %v4576
    %v6195 = vpop.f32.mrf.mxu0
    %v6196 = vadd.f32 %v6155, %v6195
    %v6197 = vpop.f32.mrf.mxu0
    %v6198 = vadd.f32 %v6157, %v6197
    %v6199 = vpop.f32.mrf.mxu0
    %v6200 = vpop.f32.mrf.mxu0
    %6201 = vdwg.mxu0
    %v6202 = vld [vmem:[%s13] sm:$0x3]
    %v6203 = vld [vmem:[%s14] sm:$0x3]
    %v6204 = vrot.slane %v6196, 4
    %v6205 = vadd.f32 %v6196, %v6204
    %v6206 = vrot.slane %v6205, 2
    %v6207 = vadd.f32 %v6205, %v6206
    %v6208 = vrot.slane %v6207, 1
    %v6209 = vadd.f32 %v6207, %v6208
    %v6210 = vrot.slane %v6198, 4
    %v6211 = vadd.f32 %v6198, %v6210
    %v6212 = vrot.slane %v6211, 2
    %v6213 = vadd.f32 %v6211, %v6212
    %v6214 = vrot.slane %v6213, 1
    %v6215 = vadd.f32 %v6213, %v6214
    %v6216 = vmul.f32 %v6209, 0.125
    %v6217 = vmul.f32 %v6215, 0.125
    %v6218 = vsub.f32 %v6196, %v6216
    %v6219 = vsub.f32 %v6198, %v6217
    %v6220 = vmul.f32 %v6218, %v6218
    %v6221 = vmul.f32 %v6219, %v6219
    %v6222 = vrot.slane %v6220, 4
    %v6223 = vadd.f32 %v6220, %v6222
    %v6224 = vrot.slane %v6223, 2
    %v6225 = vadd.f32 %v6223, %v6224
    %v6226 = vrot.slane %v6225, 1
    %v6227 = vadd.f32 %v6225, %v6226
    %v6228 = vrot.slane %v6221, 4
    %v6229 = vadd.f32 %v6221, %v6228
    %v6230 = vrot.slane %v6229, 2
    %v6231 = vadd.f32 %v6229, %v6230
    %v6232 = vrot.slane %v6231, 1
    %v6233 = vadd.f32 %v6231, %v6232
    %v6234 = vmul.f32 %v6227, 0.125
    %v6235 = vmul.f32 %v6233, 0.125
    %v6236 = vadd.f32 %v6234, 1e-05
    %v6237 = vadd.f32 %v6235, 1e-05
    %v6238 = vrsqrt.pop %v6236
    %v6239 = vrsqrt.pop %v6237
    %v6242 = vcombine.low %v6238, %v6239
    %v6244 = vunpack.c.l.s4 1966171168
    %v6245 = vunpack.c.0.s8 %v6244
    %v6246 = vlaneseq
    %v6247 = vshrl.u32 %v6246, 7
    %v6248 = vsub.s32 %v6245, %v6247
    %v6249 = vrot.slane %v6242, %v6248
    %v6251 = vunpack.c.l.s4 1966171168
    %v6252 = vunpack.c.0.s8 %v6251
    %v6253 = vlaneseq
    %v6254 = vshrl.u32 %v6253, 7
    %v6255 = vsub.s32 %v6252, %v6254
    %v6256 = vrot.slane %v6249, %v6255
    %v6258 = vmul.f32 %v6202, %v6256
    %v6260 = vlaneseq
    %v6261 = vshrl.u32 %v6260, 7
    %v6262 = vsub.s32 0, %v6261
    %v6263 = vrot.slane %v6258, %v6262
    %v6264 = vlaneseq
    %v6265 = vshrl.u32 %v6264, 7
    %v6266 = vsub.s32 1, %v6265
    %v6267 = vrot.slane %v6258, %v6266
    %v6270 = vmul.f32 %v6218, %v6263
    %v6271 = vmul.f32 %v6219, %v6267
    %v6273 = vlaneseq
    %v6274 = vshrl.u32 %v6273, 7
    %v6275 = vsub.s32 0, %v6274
    %v6276 = vrot.slane %v6203, %v6275
    %v6277 = vlaneseq
    %v6278 = vshrl.u32 %v6277, 7
    %v6279 = vsub.s32 1, %v6278
    %v6280 = vrot.slane %v6203, %v6279
    %v6283 = vadd.f32 %v6270, %v6276
    %v6284 = vadd.f32 %v6271, %v6280
    %v6285 = vmax.f32 %v6283, 0.0
    %v6286 = vmax.f32 %v6284, 0.0
    %v6287 = vpack.c.bf16 %v6285, %v6285
    %v6288 = vpack.c.bf16 %v6286, %v6286
    %s6289 = smul.u32 4, 32
    %s6290 = smul.u32 %s6289, 2
    %s6291 = sshll.u32 %s6290, 4
    %6292 = dma.done %s1014, %s6291
    %v6293 = vld [vmem:[#allocation5] sm:$0xff]
    %v6294 = vld [vmem:[#allocation5 + $0x8] sm:$0xff]
    %v6295 = vld [vmem:[#allocation5 + $0x10] sm:$0xff]
    %v6296 = vld [vmem:[#allocation5 + $0x18] sm:$0xff]
    %v6297 = vld [vmem:[#allocation5 + $0x20] sm:$0xff]
    %v6298 = vld [vmem:[#allocation5 + $0x28] sm:$0xff]
    %v6299 = vld [vmem:[#allocation5 + $0x30] sm:$0xff]
    %v6300 = vld [vmem:[#allocation5 + $0x38] sm:$0xff]
    %v6301 = vld [vmem:[#allocation5 + $0x40] sm:$0xff]
    %v6302 = vld [vmem:[#allocation5 + $0x48] sm:$0xff]
    %v6303 = vld [vmem:[#allocation5 + $0x50] sm:$0xff]
    %v6304 = vld [vmem:[#allocation5 + $0x58] sm:$0xff]
    %v6305 = vld [vmem:[#allocation5 + $0x60] sm:$0xff]
    %v6306 = vld [vmem:[#allocation5 + $0x68] sm:$0xff]
    %v6307 = vld [vmem:[#allocation5 + $0x70] sm:$0xff]
    %v6308 = vld [vmem:[#allocation5 + $0x78] sm:$0xff]
    %v6309 = vld [vmem:[#allocation5 + $0x80] sm:$0xff]
    %v6310 = vld [vmem:[#allocation5 + $0x88] sm:$0xff]
    %v6311 = vld [vmem:[#allocation5 + $0x90] sm:$0xff]
    %v6312 = vld [vmem:[#allocation5 + $0x98] sm:$0xff]
    %v6313 = vld [vmem:[#allocation5 + $0xa0] sm:$0xff]
    %v6314 = vld [vmem:[#allocation5 + $0xa8] sm:$0xff]
    %v6315 = vld [vmem:[#allocation5 + $0xb0] sm:$0xff]
    %v6316 = vld [vmem:[#allocation5 + $0xb8] sm:$0xff]
    %v6317 = vld [vmem:[#allocation5 + $0xc0] sm:$0xff]
    %v6318 = vld [vmem:[#allocation5 + $0xc8] sm:$0xff]
    %v6319 = vld [vmem:[#allocation5 + $0xd0] sm:$0xff]
    %v6320 = vld [vmem:[#allocation5 + $0xd8] sm:$0xff]
    %v6321 = vld [vmem:[#allocation5 + $0xe0] sm:$0xff]
    %v6322 = vld [vmem:[#allocation5 + $0xe8] sm:$0xff]
    %v6323 = vld [vmem:[#allocation5 + $0xf0] sm:$0xff]
    %v6324 = vld [vmem:[#allocation5 + $0xf8] sm:$0xff]
    %v6325 = vld [vmem:[%s16] sm:$0x3]
    %v6327 = vlaneseq
    %v6328 = vshrl.u32 %v6327, 7
    %v6329 = vsub.s32 0, %v6328
    %v6330 = vrot.slane %v6325, %v6329
    %v6331 = vlaneseq
    %v6332 = vshrl.u32 %v6331, 7
    %v6333 = vsub.s32 1, %v6332
    %v6334 = vrot.slane %v6325, %v6333
    %v6369 = vunpack.c.l.b16 %v6293
    %v6370 = vunpack.c.h.b16 %v6293
    %v6371 = vunpack.c.l.b16 %v6294
    %v6372 = vunpack.c.h.b16 %v6294
    %v6373 = vunpack.c.l.b16 %v6295
    %v6374 = vunpack.c.h.b16 %v6295
    %v6375 = vunpack.c.l.b16 %v6296
    %v6376 = vunpack.c.h.b16 %v6296
    %v6377 = vunpack.c.l.b16 %v6297
    %v6378 = vunpack.c.h.b16 %v6297
    %v6379 = vunpack.c.l.b16 %v6298
    %v6380 = vunpack.c.h.b16 %v6298
    %v6381 = vunpack.c.l.b16 %v6299
    %v6382 = vunpack.c.h.b16 %v6299
    %v6383 = vunpack.c.l.b16 %v6300
    %v6384 = vunpack.c.h.b16 %v6300
    %v6385 = vunpack.c.l.b16 %v6301
    %v6386 = vunpack.c.h.b16 %v6301
    %v6387 = vunpack.c.l.b16 %v6302
    %v6388 = vunpack.c.h.b16 %v6302
    %v6389 = vunpack.c.l.b16 %v6303
    %v6390 = vunpack.c.h.b16 %v6303
    %v6391 = vunpack.c.l.b16 %v6304
    %v6392 = vunpack.c.h.b16 %v6304
    %v6393 = vunpack.c.l.b16 %v6305
    %v6394 = vunpack.c.h.b16 %v6305
    %v6395 = vunpack.c.l.b16 %v6306
    %v6396 = vunpack.c.h.b16 %v6306
    %v6397 = vunpack.c.l.b16 %v6307
    %v6398 = vunpack.c.h.b16 %v6307
    %v6399 = vunpack.c.l.b16 %v6308
    %v6400 = vunpack.c.h.b16 %v6308
    %v6401 = vunpack.c.l.b16 %v6309
    %v6402 = vunpack.c.h.b16 %v6309
    %v6403 = vunpack.c.l.b16 %v6310
    %v6404 = vunpack.c.h.b16 %v6310
    %v6405 = vunpack.c.l.b16 %v6311
    %v6406 = vunpack.c.h.b16 %v6311
    %v6407 = vunpack.c.l.b16 %v6312
    %v6408 = vunpack.c.h.b16 %v6312
    %v6409 = vunpack.c.l.b16 %v6313
    %v6410 = vunpack.c.h.b16 %v6313
    %v6411 = vunpack.c.l.b16 %v6314
    %v6412 = vunpack.c.h.b16 %v6314
    %v6413 = vunpack.c.l.b16 %v6315
    %v6414 = vunpack.c.h.b16 %v6315
    %v6415 = vunpack.c.l.b16 %v6316
    %v6416 = vunpack.c.h.b16 %v6316
    %v6417 = vunpack.c.l.b16 %v6317
    %v6418 = vunpack.c.h.b16 %v6317
    %v6419 = vunpack.c.l.b16 %v6318
    %v6420 = vunpack.c.h.b16 %v6318
    %v6421 = vunpack.c.l.b16 %v6319
    %v6422 = vunpack.c.h.b16 %v6319
    %v6423 = vunpack.c.l.b16 %v6320
    %v6424 = vunpack.c.h.b16 %v6320
    %v6425 = vunpack.c.l.b16 %v6321
    %v6426 = vunpack.c.h.b16 %v6321
    %v6427 = vunpack.c.l.b16 %v6322
    %v6428 = vunpack.c.h.b16 %v6322
    %v6429 = vunpack.c.l.b16 %v6323
    %v6430 = vunpack.c.h.b16 %v6323
    %v6431 = vunpack.c.l.b16 %v6324
    %v6432 = vunpack.c.h.b16 %v6324
    %v6433 = vpack.c.b16 %v6371, %v6369
    %v6434 = vpack.c.b16 %v6372, %v6370
    %v6435 = vpack.c.b16 %v6375, %v6373
    %v6436 = vpack.c.b16 %v6376, %v6374
    %v6437 = vpack.c.b16 %v6379, %v6377
    %v6438 = vpack.c.b16 %v6380, %v6378
    %v6439 = vpack.c.b16 %v6383, %v6381
    %v6440 = vpack.c.b16 %v6384, %v6382
    %v6441 = vpack.c.b16 %v6387, %v6385
    %v6442 = vpack.c.b16 %v6388, %v6386
    %v6443 = vpack.c.b16 %v6391, %v6389
    %v6444 = vpack.c.b16 %v6392, %v6390
    %v6445 = vpack.c.b16 %v6395, %v6393
    %v6446 = vpack.c.b16 %v6396, %v6394
    %v6447 = vpack.c.b16 %v6399, %v6397
    %v6448 = vpack.c.b16 %v6400, %v6398
    %v6449 = vpack.c.b16 %v6403, %v6401
    %v6450 = vpack.c.b16 %v6404, %v6402
    %v6451 = vpack.c.b16 %v6407, %v6405
    %v6452 = vpack.c.b16 %v6408, %v6406
    %v6453 = vpack.c.b16 %v6411, %v6409
    %v6454 = vpack.c.b16 %v6412, %v6410
    %v6455 = vpack.c.b16 %v6415, %v6413
    %v6456 = vpack.c.b16 %v6416, %v6414
    %v6457 = vpack.c.b16 %v6419, %v6417
    %v6458 = vpack.c.b16 %v6420, %v6418
    %v6459 = vpack.c.b16 %v6423, %v6421
    %v6460 = vpack.c.b16 %v6424, %v6422
    %v6461 = vpack.c.b16 %v6427, %v6425
    %v6462 = vpack.c.b16 %v6428, %v6426
    %v6463 = vpack.c.b16 %v6431, %v6429
    %v6464 = vpack.c.b16 %v6432, %v6430
    %6497 = vmatprep.subr.bf16.mxu0 %v6448
    %6498 = vmatpush1.bf16.msra.mxu0 %v6447
    %6499 = vmatprep.subr.bf16.mxu0 %v6446
    %6500 = vmatpush1.bf16.msra.mxu0 %v6445
    %6501 = vmatprep.subr.bf16.mxu0 %v6444
    %6502 = vmatpush1.bf16.msra.mxu0 %v6443
    %6503 = vmatprep.subr.bf16.mxu0 %v6442
    %6504 = vmatpush1.bf16.msra.mxu0 %v6441
    %6505 = vmatprep.subr.bf16.mxu0 %v6440
    %6506 = vmatpush1.bf16.msra.mxu0 %v6439
    %6507 = vmatprep.subr.bf16.mxu0 %v6438
    %6508 = vmatpush1.bf16.msra.mxu0 %v6437
    %6509 = vmatprep.subr.bf16.mxu0 %v6436
    %6510 = vmatpush1.bf16.msra.mxu0 %v6435
    %6511 = vmatprep.subr.bf16.mxu0 %v6434
    %6512 = vmatpush1.bf16.msra.mxu0 %v6433
    %6513 = vmatprep.subr.bf16.mxu0 %v6464
    %6514 = vmatpush2.bf16.msra.mxu0 %v6463
    %6515 = vmatprep.subr.bf16.mxu0 %v6462
    %6516 = vmatpush2.bf16.msra.mxu0 %v6461
    %6517 = vmatprep.subr.bf16.mxu0 %v6460
    %6518 = vmatpush2.bf16.msra.mxu0 %v6459
    %6519 = vmatprep.subr.bf16.mxu0 %v6458
    %6520 = vmatpush2.bf16.msra.mxu0 %v6457
    %6521 = vmatprep.subr.bf16.mxu0 %v6456
    %6522 = vmatpush2.bf16.msra.mxu0 %v6455
    %6523 = vmatprep.subr.bf16.mxu0 %v6454
    %6524 = vmatpush2.bf16.msra.mxu0 %v6453
    %6525 = vmatprep.subr.bf16.mxu0 %v6452
    %6526 = vmatpush2.bf16.msra.mxu0 %v6451
    %6527 = vmatprep.subr.bf16.mxu0 %v6450
    %6528 = vmatpush2.bf16.msra.mxu0 %v6449
    %6529 = vmatprep.mubr.bf16.mxu0 %v6288
    %6530 = vmatmul.mubr.bf16.gmra.mxu0 %v6287
    %v6531 = vpop.f32.mrf.mxu0
    %v6532 = vadd.f32 %v6330, %v6531
    %v6533 = vpop.f32.mrf.mxu0
    %v6534 = vadd.f32 %v6334, %v6533
    %v6535 = vpop.f32.mrf.mxu0
    %v6536 = vpop.f32.mrf.mxu0
    %6537 = vdwg.mxu0
    %v6538 = vld [vmem:[%s17] sm:$0xff]
    %v6539 = vmul.f32 %v6534, 0.5
    %v6540 = vmul.f32 %v6539, 1.442695
    %v6541 = vpow.pop %v6540
    %v6542 = vmul.f32 %v6538, %v6541
    %v6543 = vadd.f32 %v6532, %v6542
    %6544 = vst [vmem:[#allocation9] sm:$0xff] %v6543
    %6545 = vst [vmem:[#allocation11] sm:$0xff] %v6532
    %6546 = vst [vmem:[#allocation13] sm:$0xff] %v6534
    // Predicated region
    $region194: #{vae_encoder.1} parent=1 // pred_check
      _
    $region195: #{vae_encoder.1} parent=1 // pred_check_branch
      %6548 = sbr.rel (0) target = $region197
    $region196: #{vae_encoder.1} parent=1 // pred_region
      %s6550 = ssub.s32 128, 128
      %6551 = vsyncadd [#allocation10], %s6550
      %s6553 = sshll.u32 [#allocation9], 4
      %s6554 = int_to_ptr.vmem [resolvable:$true] %s6553
      %6556 = dma.vmem_to_hbm [thread:$0]  %s6554, 128, %s18, [#allocation10]
    $region197: #{vae_encoder.1} parent=1 // pred_fallthru
      _
    // Predicated region
    $region198: #{vae_encoder.1} parent=1 // pred_check
      _
    $region199: #{vae_encoder.1} parent=1 // pred_check_branch
      %6558 = sbr.rel (0) target = $region201
    $region200: #{vae_encoder.1} parent=1 // pred_region
      %s6560 = ssub.s32 128, 128
      %6561 = vsyncadd [#allocation12], %s6560
      %s6563 = sshll.u32 [#allocation11], 4
      %s6564 = int_to_ptr.vmem [resolvable:$true] %s6563
      %6566 = dma.vmem_to_hbm [thread:$0]  %s6564, 128, %s19, [#allocation12]
    $region201: #{vae_encoder.1} parent=1 // pred_fallthru
      _
    // Predicated region
    $region202: #{vae_encoder.1} parent=1 // pred_check
      _
    $region203: #{vae_encoder.1} parent=1 // pred_check_branch
      %6568 = sbr.rel (0) target = $region205
    $region204: #{vae_encoder.1} parent=1 // pred_region
      %s6570 = ssub.s32 128, 128
      %6571 = vsyncadd [#allocation12], %s6570
      %s6573 = sshll.u32 [#allocation13], 4
      %s6574 = int_to_ptr.vmem [resolvable:$true] %s6573
      %6576 = dma.vmem_to_hbm [thread:$0]  %s6574, 128, %s20, [#allocation12]
    $region205: #{vae_encoder.1} parent=1 // pred_fallthru
      _
    // Predicated region
    $region206: #{vae_encoder.1} parent=1 // pred_check
      _
    $region207: #{vae_encoder.1} parent=1 // pred_check_branch
      %6578 = sbr.rel (0) target = $region209
    $region208: #{vae_encoder.1} parent=1 // pred_region
      %6579 = dma.done [#allocation10], 128
    $region209: #{vae_encoder.1} parent=1 // pred_fallthru
      _
    // Predicated region
    $region210: #{vae_encoder.1} parent=1 // pred_check
      _
    $region211: #{vae_encoder.1} parent=1 // pred_check_branch
      %6581 = sbr.rel (0) target = $region213
    $region212: #{vae_encoder.1} parent=1 // pred_region
      %6582 = dma.done [#allocation12], 128
    $region213: #{vae_encoder.1} parent=1 // pred_fallthru
      _
    // Predicated region
    $region214: #{vae_encoder.1} parent=1 // pred_check
      _
    $region215: #{vae_encoder.1} parent=1 // pred_check_branch
      %6584 = sbr.rel (0) target = $region217
    $region216: #{vae_encoder.1} parent=1 // pred_region
      %6585 = dma.done [#allocation12], 128
    $region217: #{vae_encoder.1} parent=1 // pred_fallthru
      _
    %6586 = vsyncpa [#allocation10], 1
    %6587 = vsyncpa [#allocation12], 1
  %6588 = vsyncmov [#allocation8]
  %s6589 = vpop.sfrf %6588
  %p6590 = scmp.eq.s32.totalorder %s6589, 0
  %p6591 = pneg %p6590
  %6593 = shalt.err (%p6591)
  %s6594 = scalar_lea.sflag [#allocation8], 1
  %6595 = vsyncmov %s6594
  %s6596 = vpop.sfrf %6595
  %p6597 = scmp.eq.s32.totalorder %s6596, 0
  %p6598 = pneg %p6597
  %6600 = shalt.err (%p6598)
  %s6601 = scalar_lea.sflag [#allocation8], 2
  %6602 = vsyncmov %s6601
  %s6603 = vpop.sfrf %6602
  %p6604 = scmp.eq.s32.totalorder %s6603, 0
  %p6605 = pneg %p6604
  %6607 = shalt.err (%p6605)
  %s6608 = scalar_lea.sflag [#allocation8], 3
  %6609 = vsyncmov %s6608
  %s6610 = vpop.sfrf %6609
  %p6611 = scmp.eq.s32.totalorder %s6610, 0
  %p6612 = pneg %p6611
  %6614 = shalt.err (%p6612)

</llo_original>
